<compile_context>
chip_gen: v6e
topology: v6e:2x2x1
jax: 0.10.0
libtpu: 0.0.40
codegen_flags: <defaults>
</compile_context>

<pallas_src>
import numpy as np

import jax
import jax.numpy as jnp
from jax.experimental import pallas as pl
from jax.experimental.pallas import tpu as pltpu

_LANE = 128          # lane padding for the logits -> lane-dense final store
_S234 = (8, 4, 2)    # input spatial size of blocks 2, 3, 4
_OFF234 = (16, 8, 8)  # 8-aligned data-start row of each padded scratch


# ------------------------------ fused kernel --------------------------------

def _classifier_kernel(xcol_ref, w1_ref, w234_ref, bn_ref, mask_ref, wl_ref, bl_ref,
                       o_ref, xs2, xs3, xs4, ys, pw, feat):
    nb = o_ref.shape[0]
    f32 = jnp.float32

    # Zero the padded scratches once: their pad rows/cols *are* the convs' zero
    # padding, and zeroed margins keep the (discarded) boundary rows finite.
    xs2[...] = jnp.zeros(xs2.shape, xs2.dtype)
    xs3[...] = jnp.zeros(xs3.shape, xs3.dtype)
    xs4[...] = jnp.zeros(xs4.shape, xs4.dtype)

    def bn_relu(acc, blk, maskf, m_valid):
        # Training-mode BatchNorm (biased var, eps=1e-5) folded into one per-channel
        # scale/shift; centered two-pass statistics; then ReLU.  `maskf` (rows,1)
        # zeroes the padded/garbage rows out of the statistics (blocks 2-4 only).
        g = bn_ref[blk - 1:blk, :]
        bt = bn_ref[blk + 3:blk + 4, :]
        inv_m = 1.0 / m_valid
        if maskf is None:
            mean = jnp.sum(acc, axis=0, keepdims=True) * inv_m
            d = acc - mean
        else:
            mean = jnp.sum(acc * maskf, axis=0, keepdims=True) * inv_m
            d = (acc - mean) * maskf
        var = jnp.sum(d * d, axis=0, keepdims=True) * inv_m
        scale = g * jax.lax.rsqrt(var + 1e-5)
        shift = bt - mean * scale
        return jnp.maximum(acc * scale + shift, 0.0)

    # ---------------- block 1: 16x16, conv == ONE K=9*cin matmul ----------------
    m1 = nb * 256
    acc = jnp.dot(xcol_ref[...], w1_ref[...], preferred_element_type=f32)  # (m1,64)
    ys[0:m1, :] = bn_relu(acc, 1, None, m1)

    # w-direction max-pool: single full-buffer stride-2 pair max.
    np1 = m1 // 2
    pw[0:np1, :] = jnp.maximum(ys[pl.ds(0, np1, stride=2), :],
                               ys[pl.ds(1, np1, stride=2), :])
    # h-direction max-pool fused with the scatter into block 2's padded scratch.
    # pw row of (n, h, ow) is n*128 + h*8 + ow.
    for n in range(nb):
        for oh in range(8):
            b0 = n * 128 + 2 * oh * 8
            piece = jnp.maximum(pw[b0:b0 + 8, :], pw[b0 + 8:b0 + 16, :])
            r0 = _OFF234[0] + n * 100 + (oh + 1) * 10 + 1
            xs2[r0:r0 + 8, :] = piece

    # ---------------- blocks 2..4: padded-layout conv, mask-free taps -----------
    mask_off = 0
    specs = ((xs2, xs3, 8), (xs3, xs4, 4), (xs4, None, 2))
    for bi, (xs, nxt, S) in enumerate(specs):
        blk = bi + 2
        off = _OFF234[bi]
        Wp = S + 2
        P = Wp * Wp
        m_pad = nb * P
        So = S // 2

        # conv3x3(pad=1): 9 accumulated MXU matmuls over shifted row windows of the
        # zero-padded scratch (row shift = (dy-1)*Wp + (dx-1)); boundary taps read
        # the scratch's zero pad rows/cols, so no per-tap masks are needed.
        acc = None
        for dy in range(3):
            for dx in range(3):
                start = off + (dy - 1) * Wp + (dx - 1)
                win = xs[start:start + m_pad, :].astype(jnp.bfloat16)
                part = jnp.dot(win, w234_ref[(blk - 2) * 9 + dy * 3 + dx],
                               preferred_element_type=f32)
                acc = part if acc is None else acc + part

        # BN statistics over the valid (interior) rows only; mask is a constant.
        maskf = mask_ref[mask_off:mask_off + m_pad, :]
        mask_off += m_pad
        y = bn_relu(acc, blk, maskf, nb * S * S)

        # max-pool 2x2: full-buffer strided w-pass, then per-(image, output-row)
        # h-pass fused with the scatter into the next block's padded scratch.
        ys[0:m_pad, :] = y
        npair = m_pad // 2 - 1
        pw[0:npair, :] = jnp.maximum(ys[pl.ds(1, npair, stride=2), :],
                                     ys[pl.ds(2, npair, stride=2), :])
        Ph, Wph = P // 2, Wp // 2
        for n in range(nb):
            for oh in range(So):
                b0 = n * Ph + (2 * oh + 1) * Wph
                piece = jnp.maximum(pw[b0:b0 + So, :],
                                    pw[b0 + Wph:b0 + Wph + So, :])
                if nxt is None:
                    feat[n:n + 1, :] = piece                       # (1,64) features
                else:
                    noff = _OFF234[bi + 1]
                    nWp = S // 2 + 2
                    nP = nWp * nWp
                    r0 = noff + n * nP + (oh + 1) * nWp + 1
                    nxt[r0:r0 + So, :] = piece

    # ---------------- linear head (lanes padded to 128 -> dense store) ----------
    logits = jnp.dot(feat[...].astype(jnp.bfloat16), wl_ref[...],
                     preferred_element_type=f32) + bl_ref[...]
    o_ref[...] = logits


# -------------------------------- wrapper ------------------------------------

def classifier_forward(x_nchw, params):
    """Full Classifier forward. x_nchw: (N, in_ch, 16, 16) -> (N, n_way)."""
    nb, cin, hh, ww = x_nchw.shape
    assert hh == 16 and ww == 16, "Classifier expects 16x16 inputs (pools to 1x1)"
    n_way = params["lin_w"].shape[0]
    assert n_way <= _LANE

    # --- block-1 im2col in the wrapper: one (nb*256, 9*cin) patch matrix --------
    xh = jnp.transpose(x_nchw, (0, 2, 3, 1)).astype(jnp.float32)       # NHWC
    xp = jnp.pad(xh, ((0, 0), (1, 1), (1, 1), (0, 0)))
    cols = [xp[:, dy:dy + 16, dx:dx + 16, :] for dy in range(3) for dx in range(3)]
    xcol = jnp.concatenate(cols, axis=-1).reshape(nb * 256, 9 * cin)
    xcol = xcol.astype(jnp.bfloat16)

    # --- weights (conv biases dropped: training-mode BN cancels them) -----------
    w1 = params["conv"][0][0]
    w1m = jnp.transpose(w1, (2, 3, 1, 0)).reshape(9 * cin, 64).astype(jnp.bfloat16)
    w234 = jnp.stack(
        [jnp.transpose(w, (2, 3, 1, 0)).reshape(9, 64, 64)
         for (w, _b, _g, _bt) in params["conv"][1:]], axis=0
    ).reshape(27, 64, 64).astype(jnp.bfloat16)
    bn = jnp.stack([p[2] for p in params["conv"]] +
                   [p[3] for p in params["conv"]], axis=0).astype(jnp.float32)  # (8,64)
    wl = jnp.zeros((64, _LANE), jnp.bfloat16).at[:, :n_way].set(
        params["lin_w"].T.astype(jnp.bfloat16))
    bl = jnp.zeros((1, _LANE), jnp.float32).at[:, :n_way].set(
        params["lin_b"].reshape(1, n_way).astype(jnp.float32))

    # --- validity mask of the padded conv-output rows (blocks 2..4, constant) ---
    mask_np = []
    for S in _S234:
        Wp = S + 2
        m = np.zeros((nb, Wp, Wp), np.float32)
        m[:, 1:S + 1, 1:S + 1] = 1.0
        mask_np.append(m.reshape(-1))
    bnmask = jnp.asarray(np.concatenate(mask_np)[:, None])  # (nb*(100+36+16), 1)

    vmem = pl.BlockSpec(memory_space=pltpu.MemorySpace.VMEM)
    scratch_shapes = [
        pltpu.VMEM((_OFF234[0] + nb * 100 + 16, 64), jnp.float32),  # block-2 padded in
        pltpu.VMEM((_OFF234[1] + nb * 36 + 8, 64), jnp.float32),    # block-3 padded in
        pltpu.VMEM((_OFF234[2] + nb * 16 + 8, 64), jnp.float32),    # block-4 padded in
        pltpu.VMEM((nb * 256, 64), jnp.float32),                    # pre-pool activation
        pltpu.VMEM((nb * 128, 64), jnp.float32),                    # w-pooled staging
        pltpu.VMEM((nb, 64), jnp.float32),                          # flattened features
    ]

    out = pl.pallas_call(
        _classifier_kernel,
        out_shape=jax.ShapeDtypeStruct((nb, _LANE), jnp.float32),
        in_specs=[vmem] * 7,
        out_specs=vmem,
        scratch_shapes=scratch_shapes,
    )(xcol, w1m, w234, bn, bnmask, wl, bl)
    return out[:, :n_way]


# --------------------------- plain-JAX reference -----------------------------

def reference_forward(x_nchw, params):
    y = jnp.transpose(x_nchw, (0, 2, 3, 1)).astype(jnp.float32)
    for (w, b, g, bt) in params["conv"]:
        w_hwio = jnp.transpose(w, (2, 3, 1, 0))
        y = jax.lax.conv_general_dilated(
            y, w_hwio, (1, 1), "SAME",
            dimension_numbers=("NHWC", "HWIO", "NHWC")) + b
        mean = jnp.mean(y, axis=(0, 1, 2), keepdims=True)
        var = jnp.mean(jnp.square(y - mean), axis=(0, 1, 2), keepdims=True)
        y = (y - mean) * jax.lax.rsqrt(var + 1e-5) * g + bt
        y = jnp.maximum(y, 0.0)
        N, H, W, C = y.shape
        y = y.reshape(N, H // 2, 2, W // 2, 2, C).max(axis=(2, 4))
    y = y.reshape(y.shape[0], -1)
    return y @ params["lin_w"].T + params["lin_b"]


# --------------------------------- main ---------------------------------------

def init_params(key, in_ch, n_way):
    params = {"conv": []}
    chans = [in_ch, 64, 64, 64, 64]
    keys = jax.random.split(key, 4 * 4 + 2)
    ki = 0
    for blk in range(4):
        cin, cout = chans[blk], chans[blk + 1]
        w = 0.1 * jax.random.normal(keys[ki], (cout, cin, 3, 3), jnp.float32); ki += 1
        b = 0.1 * jax.random.normal(keys[ki], (cout,), jnp.float32); ki += 1
        g = 1.0 + 0.1 * jax.random.normal(keys[ki], (cout,), jnp.float32); ki += 1
        bt = 0.1 * jax.random.normal(keys[ki], (cout,), jnp.float32); ki += 1
        params["conv"].append((w, b, g, bt))
    params["lin_w"] = 0.1 * jax.random.normal(keys[ki], (n_way, 64), jnp.float32); ki += 1
    params["lin_b"] = 0.1 * jax.random.normal(keys[ki], (n_way,), jnp.float32)
    return params


if __name__ == "__main__":
    in_ch, n_way = 4, 5
    batch, spatial = 2, 16  # 16 -> 8 -> 4 -> 2 -> 1 after the four 2x2 pools

    key = jax.random.PRNGKey(0)
    k_x, k_p = jax.random.split(key)
    x = jax.random.normal(k_x, (batch, in_ch, spatial, spatial), jnp.float32)
    params = init_params(k_p, in_ch, n_way)

    fwd = jax.jit(classifier_forward)
    out = jax.block_until_ready(fwd(x, params))
    assert out.shape == (batch, n_way)

    ref = jax.block_until_ready(reference_forward(x, params))
    # bf16 MXU operands -> slightly looser tolerance than pure f32.
    if not jnp.allclose(out, ref, atol=3e-2, rtol=3e-2):
        raise AssertionError("Pallas output does not match reference")

    print("KERNEL_OK")
</pallas_src>

<mosaic_0001>
module attributes {stable_mosaic.version = 11 : i64} {
  func.func @_classifier_kernel(%arg0: memref<512x36xbf16, #tpu.memory_space<vmem>>, %arg1: memref<36x64xbf16, #tpu.memory_space<vmem>>, %arg2: memref<27x64x64xbf16, #tpu.memory_space<vmem>>, %arg3: memref<8x64xf32, #tpu.memory_space<vmem>>, %arg4: memref<304x1xf32, #tpu.memory_space<vmem>>, %arg5: memref<64x128xbf16, #tpu.memory_space<vmem>>, %arg6: memref<1x128xf32, #tpu.memory_space<vmem>>, %arg7: memref<2x128xf32, #tpu.memory_space<vmem>>, %arg8: memref<232x64xf32, #tpu.memory_space<vmem>>, %arg9: memref<88x64xf32, #tpu.memory_space<vmem>>, %arg10: memref<48x64xf32, #tpu.memory_space<vmem>>, %arg11: memref<512x64xf32, #tpu.memory_space<vmem>>, %arg12: memref<256x64xf32, #tpu.memory_space<vmem>>, %arg13: memref<2x64xf32, #tpu.memory_space<vmem>>) attributes {dimension_semantics = [], scalar_prefetch = 0 : i64, scratch_operands = 6 : i64, tpu.core_type = #tpu.core_type<tc>} {
    %cst = arith.constant 0.000000e+00 : f32
    %0 = vector.broadcast %cst : f32 to vector<232x64xf32>
    %c0 = arith.constant 0 : index
    %c0_0 = arith.constant 0 : index
    %1 = vector.load %arg8[%c0, %c0_0] : memref<232x64xf32, #tpu.memory_space<vmem>>, vector<232x64xf32>
    tpu.vector_store %arg8[%c0, %c0_0], %0 {strides = array<i32>} : memref<232x64xf32, #tpu.memory_space<vmem>>, vector<232x64xf32>,
    %cst_1 = arith.constant 0.000000e+00 : f32
    %2 = vector.broadcast %cst_1 : f32 to vector<88x64xf32>
    %c0_2 = arith.constant 0 : index
    %c0_3 = arith.constant 0 : index
    %3 = vector.load %arg9[%c0_2, %c0_3] : memref<88x64xf32, #tpu.memory_space<vmem>>, vector<88x64xf32>
    tpu.vector_store %arg9[%c0_2, %c0_3], %2 {strides = array<i32>} : memref<88x64xf32, #tpu.memory_space<vmem>>, vector<88x64xf32>,
    %cst_4 = arith.constant 0.000000e+00 : f32
    %4 = vector.broadcast %cst_4 : f32 to vector<48x64xf32>
    %c0_5 = arith.constant 0 : index
    %c0_6 = arith.constant 0 : index
    %5 = vector.load %arg10[%c0_5, %c0_6] : memref<48x64xf32, #tpu.memory_space<vmem>>, vector<48x64xf32>
    tpu.vector_store %arg10[%c0_5, %c0_6], %4 {strides = array<i32>} : memref<48x64xf32, #tpu.memory_space<vmem>>, vector<48x64xf32>,
    %c0_7 = arith.constant 0 : index
    %c0_8 = arith.constant 0 : index
    %6 = vector.load %arg0[%c0_7, %c0_8] : memref<512x36xbf16, #tpu.memory_space<vmem>>, vector<512x36xbf16>
    %c0_9 = arith.constant 0 : index
    %c0_10 = arith.constant 0 : index
    %7 = vector.load %arg1[%c0_9, %c0_10] : memref<36x64xbf16, #tpu.memory_space<vmem>>, vector<36x64xbf16>
    %cst_11 = arith.constant dense<0.000000e+00> : vector<512x64xf32>
    %8 = tpu.matmul %6, %7, %cst_11 {dimension_numbers = #tpu.dot_dimension_numbers<[1], [0], [0], [1], [0, 0, 1, 1], [], []>} : vector<512x36xbf16>, vector<36x64xbf16>, vector<512x64xf32> -> vector<512x64xf32>
    %c0_12 = arith.constant 0 : index
    %c0_13 = arith.constant 0 : index
    %9 = vector.load %arg3[%c0_12, %c0_13] : memref<8x64xf32, #tpu.memory_space<vmem>>, vector<1x64xf32>
    %c4 = arith.constant 4 : index
    %c0_14 = arith.constant 0 : index
    %10 = vector.load %arg3[%c4, %c0_14] : memref<8x64xf32, #tpu.memory_space<vmem>>, vector<1x64xf32>
    %cst_15 = arith.constant dense<0.000000e+00> : vector<64xf32>
    %11 = vector.multi_reduction <add>, %8, %cst_15 [0] : vector<512x64xf32> to vector<64xf32>
    %12 = vector.shape_cast %11 : vector<64xf32> to vector<1x64xf32>
    %cst_16 = arith.constant 0.001953125 : f32
    %13 = vector.broadcast %cst_16 : f32 to vector<1x64xf32>
    %14 = arith.mulf %12, %13 : vector<1x64xf32>
    %15 = vector.broadcast %14 : vector<1x64xf32> to vector<512x64xf32>
    %16 = arith.subf %8, %15 : vector<512x64xf32>
    %17 = arith.mulf %16, %16 : vector<512x64xf32>
    %cst_17 = arith.constant dense<0.000000e+00> : vector<64xf32>
    %18 = vector.multi_reduction <add>, %17, %cst_17 [0] : vector<512x64xf32> to vector<64xf32>
    %19 = vector.shape_cast %18 : vector<64xf32> to vector<1x64xf32>
    %cst_18 = arith.constant 0.001953125 : f32
    %20 = vector.broadcast %cst_18 : f32 to vector<1x64xf32>
    %21 = arith.mulf %19, %20 : vector<1x64xf32>
    %cst_19 = arith.constant 9.99999974E-6 : f32
    %22 = vector.broadcast %cst_19 : f32 to vector<1x64xf32>
    %23 = arith.addf %21, %22 : vector<1x64xf32>
    %24 = math.rsqrt %23 : vector<1x64xf32>
    %25 = arith.mulf %9, %24 : vector<1x64xf32>
    %26 = arith.mulf %14, %25 : vector<1x64xf32>
    %27 = arith.subf %10, %26 : vector<1x64xf32>
    %28 = vector.broadcast %25 : vector<1x64xf32> to vector<512x64xf32>
    %29 = arith.mulf %8, %28 : vector<512x64xf32>
    %30 = vector.broadcast %27 : vector<1x64xf32> to vector<512x64xf32>
    %31 = arith.addf %29, %30 : vector<512x64xf32>
    %cst_20 = arith.constant 0.000000e+00 : f32
    %32 = vector.broadcast %cst_20 : f32 to vector<512x64xf32>
    %33 = arith.maximumf %31, %32 : vector<512x64xf32>
    %c0_21 = arith.constant 0 : index
    %c0_22 = arith.constant 0 : index
    %34 = vector.load %arg11[%c0_21, %c0_22] : memref<512x64xf32, #tpu.memory_space<vmem>>, vector<512x64xf32>
    tpu.vector_store %arg11[%c0_21, %c0_22], %33 {strides = array<i32>} : memref<512x64xf32, #tpu.memory_space<vmem>>, vector<512x64xf32>,
    %c0_23 = arith.constant 0 : index
    %c0_24 = arith.constant 0 : index
    %35 = tpu.strided_load %arg11[%c0_23, %c0_24] {strides = array<i32: 2, 1>} : memref<512x64xf32, #tpu.memory_space<vmem>>, vector<256x64xf32>
    %c1 = arith.constant 1 : index
    %c0_25 = arith.constant 0 : index
    %36 = tpu.strided_load %arg11[%c1, %c0_25] {strides = array<i32: 2, 1>} : memref<512x64xf32, #tpu.memory_space<vmem>>, vector<256x64xf32>
    %37 = arith.maximumf %35, %36 : vector<256x64xf32>
    %c0_26 = arith.constant 0 : index
    %c0_27 = arith.constant 0 : index
    %38 = vector.load %arg12[%c0_26, %c0_27] : memref<256x64xf32, #tpu.memory_space<vmem>>, vector<256x64xf32>
    tpu.vector_store %arg12[%c0_26, %c0_27], %37 {strides = array<i32>} : memref<256x64xf32, #tpu.memory_space<vmem>>, vector<256x64xf32>,
    %c0_28 = arith.constant 0 : index
    %c0_29 = arith.constant 0 : index
    %39 = vector.load %arg12[%c0_28, %c0_29] : memref<256x64xf32, #tpu.memory_space<vmem>>, vector<8x64xf32>
    %c8 = arith.constant 8 : index
    %c0_30 = arith.constant 0 : index
    %40 = vector.load %arg12[%c8, %c0_30] : memref<256x64xf32, #tpu.memory_space<vmem>>, vector<8x64xf32>
    %41 = arith.maximumf %39, %40 : vector<8x64xf32>
    %c27 = arith.constant 27 : index
    %c0_31 = arith.constant 0 : index
    %42 = vector.load %arg8[%c27, %c0_31] : memref<232x64xf32, #tpu.memory_space<vmem>>, vector<8x64xf32>
    tpu.vector_store %arg8[%c27, %c0_31], %41 {strides = array<i32>} : memref<232x64xf32, #tpu.memory_space<vmem>>, vector<8x64xf32>,
    %c16 = arith.constant 16 : index
    %c0_32 = arith.constant 0 : index
    %43 = vector.load %arg12[%c16, %c0_32] : memref<256x64xf32, #tpu.memory_space<vmem>>, vector<8x64xf32>
    %c24 = arith.constant 24 : index
    %c0_33 = arith.constant 0 : index
    %44 = vector.load %arg12[%c24, %c0_33] : memref<256x64xf32, #tpu.memory_space<vmem>>, vector<8x64xf32>
    %45 = arith.maximumf %43, %44 : vector<8x64xf32>
    %c37 = arith.constant 37 : index
    %c0_34 = arith.constant 0 : index
    %46 = vector.load %arg8[%c37, %c0_34] : memref<232x64xf32, #tpu.memory_space<vmem>>, vector<8x64xf32>
    tpu.vector_store %arg8[%c37, %c0_34], %45 {strides = array<i32>} : memref<232x64xf32, #tpu.memory_space<vmem>>, vector<8x64xf32>,
    %c32 = arith.constant 32 : index
    %c0_35 = arith.constant 0 : index
    %47 = vector.load %arg12[%c32, %c0_35] : memref<256x64xf32, #tpu.memory_space<vmem>>, vector<8x64xf32>
    %c40 = arith.constant 40 : index
    %c0_36 = arith.constant 0 : index
    %48 = vector.load %arg12[%c40, %c0_36] : memref<256x64xf32, #tpu.memory_space<vmem>>, vector<8x64xf32>
    %49 = arith.maximumf %47, %48 : vector<8x64xf32>
    %c47 = arith.constant 47 : index
    %c0_37 = arith.constant 0 : index
    %50 = vector.load %arg8[%c47, %c0_37] : memref<232x64xf32, #tpu.memory_space<vmem>>, vector<8x64xf32>
    tpu.vector_store %arg8[%c47, %c0_37], %49 {strides = array<i32>} : memref<232x64xf32, #tpu.memory_space<vmem>>, vector<8x64xf32>,
    %c48 = arith.constant 48 : index
    %c0_38 = arith.constant 0 : index
    %51 = vector.load %arg12[%c48, %c0_38] : memref<256x64xf32, #tpu.memory_space<vmem>>, vector<8x64xf32>
    %c56 = arith.constant 56 : index
    %c0_39 = arith.constant 0 : index
    %52 = vector.load %arg12[%c56, %c0_39] : memref<256x64xf32, #tpu.memory_space<vmem>>, vector<8x64xf32>
    %53 = arith.maximumf %51, %52 : vector<8x64xf32>
    %c57 = arith.constant 57 : index
    %c0_40 = arith.constant 0 : index
    %54 = vector.load %arg8[%c57, %c0_40] : memref<232x64xf32, #tpu.memory_space<vmem>>, vector<8x64xf32>
    tpu.vector_store %arg8[%c57, %c0_40], %53 {strides = array<i32>} : memref<232x64xf32, #tpu.memory_space<vmem>>, vector<8x64xf32>,
    %c64 = arith.constant 64 : index
    %c0_41 = arith.constant 0 : index
    %55 = vector.load %arg12[%c64, %c0_41] : memref<256x64xf32, #tpu.memory_space<vmem>>, vector<8x64xf32>
    %c72 = arith.constant 72 : index
    %c0_42 = arith.constant 0 : index
    %56 = vector.load %arg12[%c72, %c0_42] : memref<256x64xf32, #tpu.memory_space<vmem>>, vector<8x64xf32>
    %57 = arith.maximumf %55, %56 : vector<8x64xf32>
    %c67 = arith.constant 67 : index
    %c0_43 = arith.constant 0 : index
    %58 = vector.load %arg8[%c67, %c0_43] : memref<232x64xf32, #tpu.memory_space<vmem>>, vector<8x64xf32>
    tpu.vector_store %arg8[%c67, %c0_43], %57 {strides = array<i32>} : memref<232x64xf32, #tpu.memory_space<vmem>>, vector<8x64xf32>,
    %c80 = arith.constant 80 : index
    %c0_44 = arith.constant 0 : index
    %59 = vector.load %arg12[%c80, %c0_44] : memref<256x64xf32, #tpu.memory_space<vmem>>, vector<8x64xf32>
    %c88 = arith.constant 88 : index
    %c0_45 = arith.constant 0 : index
    %60 = vector.load %arg12[%c88, %c0_45] : memref<256x64xf32, #tpu.memory_space<vmem>>, vector<8x64xf32>
    %61 = arith.maximumf %59, %60 : vector<8x64xf32>
    %c77 = arith.constant 77 : index
    %c0_46 = arith.constant 0 : index
    %62 = vector.load %arg8[%c77, %c0_46] : memref<232x64xf32, #tpu.memory_space<vmem>>, vector<8x64xf32>
    tpu.vector_store %arg8[%c77, %c0_46], %61 {strides = array<i32>} : memref<232x64xf32, #tpu.memory_space<vmem>>, vector<8x64xf32>,
    %c96 = arith.constant 96 : index
    %c0_47 = arith.constant 0 : index
    %63 = vector.load %arg12[%c96, %c0_47] : memref<256x64xf32, #tpu.memory_space<vmem>>, vector<8x64xf32>
    %c104 = arith.constant 104 : index
    %c0_48 = arith.constant 0 : index
    %64 = vector.load %arg12[%c104, %c0_48] : memref<256x64xf32, #tpu.memory_space<vmem>>, vector<8x64xf32>
    %65 = arith.maximumf %63, %64 : vector<8x64xf32>
    %c87 = arith.constant 87 : index
    %c0_49 = arith.constant 0 : index
    %66 = vector.load %arg8[%c87, %c0_49] : memref<232x64xf32, #tpu.memory_space<vmem>>, vector<8x64xf32>
    tpu.vector_store %arg8[%c87, %c0_49], %65 {strides = array<i32>} : memref<232x64xf32, #tpu.memory_space<vmem>>, vector<8x64xf32>,
    %c112 = arith.constant 112 : index
    %c0_50 = arith.constant 0 : index
    %67 = vector.load %arg12[%c112, %c0_50] : memref<256x64xf32, #tpu.memory_space<vmem>>, vector<8x64xf32>
    %c120 = arith.constant 120 : index
    %c0_51 = arith.constant 0 : index
    %68 = vector.load %arg12[%c120, %c0_51] : memref<256x64xf32, #tpu.memory_space<vmem>>, vector<8x64xf32>
    %69 = arith.maximumf %67, %68 : vector<8x64xf32>
    %c97 = arith.constant 97 : index
    %c0_52 = arith.constant 0 : index
    %70 = vector.load %arg8[%c97, %c0_52] : memref<232x64xf32, #tpu.memory_space<vmem>>, vector<8x64xf32>
    tpu.vector_store %arg8[%c97, %c0_52], %69 {strides = array<i32>} : memref<232x64xf32, #tpu.memory_space<vmem>>, vector<8x64xf32>,
    %c128 = arith.constant 128 : index
    %c0_53 = arith.constant 0 : index
    %71 = vector.load %arg12[%c128, %c0_53] : memref<256x64xf32, #tpu.memory_space<vmem>>, vector<8x64xf32>
    %c136 = arith.constant 136 : index
    %c0_54 = arith.constant 0 : index
    %72 = vector.load %arg12[%c136, %c0_54] : memref<256x64xf32, #tpu.memory_space<vmem>>, vector<8x64xf32>
    %73 = arith.maximumf %71, %72 : vector<8x64xf32>
    %c127 = arith.constant 127 : index
    %c0_55 = arith.constant 0 : index
    %74 = vector.load %arg8[%c127, %c0_55] : memref<232x64xf32, #tpu.memory_space<vmem>>, vector<8x64xf32>
    tpu.vector_store %arg8[%c127, %c0_55], %73 {strides = array<i32>} : memref<232x64xf32, #tpu.memory_space<vmem>>, vector<8x64xf32>,
    %c144 = arith.constant 144 : index
    %c0_56 = arith.constant 0 : index
    %75 = vector.load %arg12[%c144, %c0_56] : memref<256x64xf32, #tpu.memory_space<vmem>>, vector<8x64xf32>
    %c152 = arith.constant 152 : index
    %c0_57 = arith.constant 0 : index
    %76 = vector.load %arg12[%c152, %c0_57] : memref<256x64xf32, #tpu.memory_space<vmem>>, vector<8x64xf32>
    %77 = arith.maximumf %75, %76 : vector<8x64xf32>
    %c137 = arith.constant 137 : index
    %c0_58 = arith.constant 0 : index
    %78 = vector.load %arg8[%c137, %c0_58] : memref<232x64xf32, #tpu.memory_space<vmem>>, vector<8x64xf32>
    tpu.vector_store %arg8[%c137, %c0_58], %77 {strides = array<i32>} : memref<232x64xf32, #tpu.memory_space<vmem>>, vector<8x64xf32>,
    %c160 = arith.constant 160 : index
    %c0_59 = arith.constant 0 : index
    %79 = vector.load %arg12[%c160, %c0_59] : memref<256x64xf32, #tpu.memory_space<vmem>>, vector<8x64xf32>
    %c168 = arith.constant 168 : index
    %c0_60 = arith.constant 0 : index
    %80 = vector.load %arg12[%c168, %c0_60] : memref<256x64xf32, #tpu.memory_space<vmem>>, vector<8x64xf32>
    %81 = arith.maximumf %79, %80 : vector<8x64xf32>
    %c147 = arith.constant 147 : index
    %c0_61 = arith.constant 0 : index
    %82 = vector.load %arg8[%c147, %c0_61] : memref<232x64xf32, #tpu.memory_space<vmem>>, vector<8x64xf32>
    tpu.vector_store %arg8[%c147, %c0_61], %81 {strides = array<i32>} : memref<232x64xf32, #tpu.memory_space<vmem>>, vector<8x64xf32>,
    %c176 = arith.constant 176 : index
    %c0_62 = arith.constant 0 : index
    %83 = vector.load %arg12[%c176, %c0_62] : memref<256x64xf32, #tpu.memory_space<vmem>>, vector<8x64xf32>
    %c184 = arith.constant 184 : index
    %c0_63 = arith.constant 0 : index
    %84 = vector.load %arg12[%c184, %c0_63] : memref<256x64xf32, #tpu.memory_space<vmem>>, vector<8x64xf32>
    %85 = arith.maximumf %83, %84 : vector<8x64xf32>
    %c157 = arith.constant 157 : index
    %c0_64 = arith.constant 0 : index
    %86 = vector.load %arg8[%c157, %c0_64] : memref<232x64xf32, #tpu.memory_space<vmem>>, vector<8x64xf32>
    tpu.vector_store %arg8[%c157, %c0_64], %85 {strides = array<i32>} : memref<232x64xf32, #tpu.memory_space<vmem>>, vector<8x64xf32>,
    %c192 = arith.constant 192 : index
    %c0_65 = arith.constant 0 : index
    %87 = vector.load %arg12[%c192, %c0_65] : memref<256x64xf32, #tpu.memory_space<vmem>>, vector<8x64xf32>
    %c200 = arith.constant 200 : index
    %c0_66 = arith.constant 0 : index
    %88 = vector.load %arg12[%c200, %c0_66] : memref<256x64xf32, #tpu.memory_space<vmem>>, vector<8x64xf32>
    %89 = arith.maximumf %87, %88 : vector<8x64xf32>
    %c167 = arith.constant 167 : index
    %c0_67 = arith.constant 0 : index
    %90 = vector.load %arg8[%c167, %c0_67] : memref<232x64xf32, #tpu.memory_space<vmem>>, vector<8x64xf32>
    tpu.vector_store %arg8[%c167, %c0_67], %89 {strides = array<i32>} : memref<232x64xf32, #tpu.memory_space<vmem>>, vector<8x64xf32>,
    %c208 = arith.constant 208 : index
    %c0_68 = arith.constant 0 : index
    %91 = vector.load %arg12[%c208, %c0_68] : memref<256x64xf32, #tpu.memory_space<vmem>>, vector<8x64xf32>
    %c216 = arith.constant 216 : index
    %c0_69 = arith.constant 0 : index
    %92 = vector.load %arg12[%c216, %c0_69] : memref<256x64xf32, #tpu.memory_space<vmem>>, vector<8x64xf32>
    %93 = arith.maximumf %91, %92 : vector<8x64xf32>
    %c177 = arith.constant 177 : index
    %c0_70 = arith.constant 0 : index
    %94 = vector.load %arg8[%c177, %c0_70] : memref<232x64xf32, #tpu.memory_space<vmem>>, vector<8x64xf32>
    tpu.vector_store %arg8[%c177, %c0_70], %93 {strides = array<i32>} : memref<232x64xf32, #tpu.memory_space<vmem>>, vector<8x64xf32>,
    %c224 = arith.constant 224 : index
    %c0_71 = arith.constant 0 : index
    %95 = vector.load %arg12[%c224, %c0_71] : memref<256x64xf32, #tpu.memory_space<vmem>>, vector<8x64xf32>
    %c232 = arith.constant 232 : index
    %c0_72 = arith.constant 0 : index
    %96 = vector.load %arg12[%c232, %c0_72] : memref<256x64xf32, #tpu.memory_space<vmem>>, vector<8x64xf32>
    %97 = arith.maximumf %95, %96 : vector<8x64xf32>
    %c187 = arith.constant 187 : index
    %c0_73 = arith.constant 0 : index
    %98 = vector.load %arg8[%c187, %c0_73] : memref<232x64xf32, #tpu.memory_space<vmem>>, vector<8x64xf32>
    tpu.vector_store %arg8[%c187, %c0_73], %97 {strides = array<i32>} : memref<232x64xf32, #tpu.memory_space<vmem>>, vector<8x64xf32>,
    %c240 = arith.constant 240 : index
    %c0_74 = arith.constant 0 : index
    %99 = vector.load %arg12[%c240, %c0_74] : memref<256x64xf32, #tpu.memory_space<vmem>>, vector<8x64xf32>
    %c248 = arith.constant 248 : index
    %c0_75 = arith.constant 0 : index
    %100 = vector.load %arg12[%c248, %c0_75] : memref<256x64xf32, #tpu.memory_space<vmem>>, vector<8x64xf32>
    %101 = arith.maximumf %99, %100 : vector<8x64xf32>
    %c197 = arith.constant 197 : index
    %c0_76 = arith.constant 0 : index
    %102 = vector.load %arg8[%c197, %c0_76] : memref<232x64xf32, #tpu.memory_space<vmem>>, vector<8x64xf32>
    tpu.vector_store %arg8[%c197, %c0_76], %101 {strides = array<i32>} : memref<232x64xf32, #tpu.memory_space<vmem>>, vector<8x64xf32>,
    %c5 = arith.constant 5 : index
    %c0_77 = arith.constant 0 : index
    %103 = vector.load %arg8[%c5, %c0_77] : memref<232x64xf32, #tpu.memory_space<vmem>>, vector<200x64xf32>
    %104 = arith.truncf %103 : vector<200x64xf32> to vector<200x64xbf16>
    %c0_78 = arith.constant 0 : index
    %c0_79 = arith.constant 0 : index
    %c0_80 = arith.constant 0 : index
    %105 = vector.load %arg2[%c0_78, %c0_79, %c0_80] : memref<27x64x64xbf16, #tpu.memory_space<vmem>>, vector<1x64x64xbf16>
    %106 = vector.shape_cast %105 : vector<1x64x64xbf16> to vector<64x64xbf16>
    %cst_81 = arith.constant dense<0.000000e+00> : vector<200x64xf32>
    %107 = tpu.matmul %104, %106, %cst_81 {dimension_numbers = #tpu.dot_dimension_numbers<[1], [0], [0], [1], [0, 0, 1, 1], [], []>} : vector<200x64xbf16>, vector<64x64xbf16>, vector<200x64xf32> -> vector<200x64xf32>
    %c6 = arith.constant 6 : index
    %c0_82 = arith.constant 0 : index
    %108 = vector.load %arg8[%c6, %c0_82] : memref<232x64xf32, #tpu.memory_space<vmem>>, vector<200x64xf32>
    %109 = arith.truncf %108 : vector<200x64xf32> to vector<200x64xbf16>
    %c1_83 = arith.constant 1 : index
    %c0_84 = arith.constant 0 : index
    %c0_85 = arith.constant 0 : index
    %110 = vector.load %arg2[%c1_83, %c0_84, %c0_85] : memref<27x64x64xbf16, #tpu.memory_space<vmem>>, vector<1x64x64xbf16>
    %111 = vector.shape_cast %110 : vector<1x64x64xbf16> to vector<64x64xbf16>
    %cst_86 = arith.constant dense<0.000000e+00> : vector<200x64xf32>
    %112 = tpu.matmul %109, %111, %cst_86 {dimension_numbers = #tpu.dot_dimension_numbers<[1], [0], [0], [1], [0, 0, 1, 1], [], []>} : vector<200x64xbf16>, vector<64x64xbf16>, vector<200x64xf32> -> vector<200x64xf32>
    %113 = arith.addf %107, %112 : vector<200x64xf32>
    %c7 = arith.constant 7 : index
    %c0_87 = arith.constant 0 : index
    %114 = vector.load %arg8[%c7, %c0_87] : memref<232x64xf32, #tpu.memory_space<vmem>>, vector<200x64xf32>
    %115 = arith.truncf %114 : vector<200x64xf32> to vector<200x64xbf16>
    %c2 = arith.constant 2 : index
    %c0_88 = arith.constant 0 : index
    %c0_89 = arith.constant 0 : index
    %116 = vector.load %arg2[%c2, %c0_88, %c0_89] : memref<27x64x64xbf16, #tpu.memory_space<vmem>>, vector<1x64x64xbf16>
    %117 = vector.shape_cast %116 : vector<1x64x64xbf16> to vector<64x64xbf16>
    %cst_90 = arith.constant dense<0.000000e+00> : vector<200x64xf32>
    %118 = tpu.matmul %115, %117, %cst_90 {dimension_numbers = #tpu.dot_dimension_numbers<[1], [0], [0], [1], [0, 0, 1, 1], [], []>} : vector<200x64xbf16>, vector<64x64xbf16>, vector<200x64xf32> -> vector<200x64xf32>
    %119 = arith.addf %113, %118 : vector<200x64xf32>
    %c15 = arith.constant 15 : index
    %c0_91 = arith.constant 0 : index
    %120 = vector.load %arg8[%c15, %c0_91] : memref<232x64xf32, #tpu.memory_space<vmem>>, vector<200x64xf32>
    %121 = arith.truncf %120 : vector<200x64xf32> to vector<200x64xbf16>
    %c3 = arith.constant 3 : index
    %c0_92 = arith.constant 0 : index
    %c0_93 = arith.constant 0 : index
    %122 = vector.load %arg2[%c3, %c0_92, %c0_93] : memref<27x64x64xbf16, #tpu.memory_space<vmem>>, vector<1x64x64xbf16>
    %123 = vector.shape_cast %122 : vector<1x64x64xbf16> to vector<64x64xbf16>
    %cst_94 = arith.constant dense<0.000000e+00> : vector<200x64xf32>
    %124 = tpu.matmul %121, %123, %cst_94 {dimension_numbers = #tpu.dot_dimension_numbers<[1], [0], [0], [1], [0, 0, 1, 1], [], []>} : vector<200x64xbf16>, vector<64x64xbf16>, vector<200x64xf32> -> vector<200x64xf32>
    %125 = arith.addf %119, %124 : vector<200x64xf32>
    %c16_95 = arith.constant 16 : index
    %c0_96 = arith.constant 0 : index
    %126 = vector.load %arg8[%c16_95, %c0_96] : memref<232x64xf32, #tpu.memory_space<vmem>>, vector<200x64xf32>
    %127 = arith.truncf %126 : vector<200x64xf32> to vector<200x64xbf16>
    %c4_97 = arith.constant 4 : index
    %c0_98 = arith.constant 0 : index
    %c0_99 = arith.constant 0 : index
    %128 = vector.load %arg2[%c4_97, %c0_98, %c0_99] : memref<27x64x64xbf16, #tpu.memory_space<vmem>>, vector<1x64x64xbf16>
    %129 = vector.shape_cast %128 : vector<1x64x64xbf16> to vector<64x64xbf16>
    %cst_100 = arith.constant dense<0.000000e+00> : vector<200x64xf32>
    %130 = tpu.matmul %127, %129, %cst_100 {dimension_numbers = #tpu.dot_dimension_numbers<[1], [0], [0], [1], [0, 0, 1, 1], [], []>} : vector<200x64xbf16>, vector<64x64xbf16>, vector<200x64xf32> -> vector<200x64xf32>
    %131 = arith.addf %125, %130 : vector<200x64xf32>
    %c17 = arith.constant 17 : index
    %c0_101 = arith.constant 0 : index
    %132 = vector.load %arg8[%c17, %c0_101] : memref<232x64xf32, #tpu.memory_space<vmem>>, vector<200x64xf32>
    %133 = arith.truncf %132 : vector<200x64xf32> to vector<200x64xbf16>
    %c5_102 = arith.constant 5 : index
    %c0_103 = arith.constant 0 : index
    %c0_104 = arith.constant 0 : index
    %134 = vector.load %arg2[%c5_102, %c0_103, %c0_104] : memref<27x64x64xbf16, #tpu.memory_space<vmem>>, vector<1x64x64xbf16>
    %135 = vector.shape_cast %134 : vector<1x64x64xbf16> to vector<64x64xbf16>
    %cst_105 = arith.constant dense<0.000000e+00> : vector<200x64xf32>
    %136 = tpu.matmul %133, %135, %cst_105 {dimension_numbers = #tpu.dot_dimension_numbers<[1], [0], [0], [1], [0, 0, 1, 1], [], []>} : vector<200x64xbf16>, vector<64x64xbf16>, vector<200x64xf32> -> vector<200x64xf32>
    %137 = arith.addf %131, %136 : vector<200x64xf32>
    %c25 = arith.constant 25 : index
    %c0_106 = arith.constant 0 : index
    %138 = vector.load %arg8[%c25, %c0_106] : memref<232x64xf32, #tpu.memory_space<vmem>>, vector<200x64xf32>
    %139 = arith.truncf %138 : vector<200x64xf32> to vector<200x64xbf16>
    %c6_107 = arith.constant 6 : index
    %c0_108 = arith.constant 0 : index
    %c0_109 = arith.constant 0 : index
    %140 = vector.load %arg2[%c6_107, %c0_108, %c0_109] : memref<27x64x64xbf16, #tpu.memory_space<vmem>>, vector<1x64x64xbf16>
    %141 = vector.shape_cast %140 : vector<1x64x64xbf16> to vector<64x64xbf16>
    %cst_110 = arith.constant dense<0.000000e+00> : vector<200x64xf32>
    %142 = tpu.matmul %139, %141, %cst_110 {dimension_numbers = #tpu.dot_dimension_numbers<[1], [0], [0], [1], [0, 0, 1, 1], [], []>} : vector<200x64xbf16>, vector<64x64xbf16>, vector<200x64xf32> -> vector<200x64xf32>
    %143 = arith.addf %137, %142 : vector<200x64xf32>
    %c26 = arith.constant 26 : index
    %c0_111 = arith.constant 0 : index
    %144 = vector.load %arg8[%c26, %c0_111] : memref<232x64xf32, #tpu.memory_space<vmem>>, vector<200x64xf32>
    %145 = arith.truncf %144 : vector<200x64xf32> to vector<200x64xbf16>
    %c7_112 = arith.constant 7 : index
    %c0_113 = arith.constant 0 : index
    %c0_114 = arith.constant 0 : index
    %146 = vector.load %arg2[%c7_112, %c0_113, %c0_114] : memref<27x64x64xbf16, #tpu.memory_space<vmem>>, vector<1x64x64xbf16>
    %147 = vector.shape_cast %146 : vector<1x64x64xbf16> to vector<64x64xbf16>
    %cst_115 = arith.constant dense<0.000000e+00> : vector<200x64xf32>
    %148 = tpu.matmul %145, %147, %cst_115 {dimension_numbers = #tpu.dot_dimension_numbers<[1], [0], [0], [1], [0, 0, 1, 1], [], []>} : vector<200x64xbf16>, vector<64x64xbf16>, vector<200x64xf32> -> vector<200x64xf32>
    %149 = arith.addf %143, %148 : vector<200x64xf32>
    %c27_116 = arith.constant 27 : index
    %c0_117 = arith.constant 0 : index
    %150 = vector.load %arg8[%c27_116, %c0_117] : memref<232x64xf32, #tpu.memory_space<vmem>>, vector<200x64xf32>
    %151 = arith.truncf %150 : vector<200x64xf32> to vector<200x64xbf16>
    %c8_118 = arith.constant 8 : index
    %c0_119 = arith.constant 0 : index
    %c0_120 = arith.constant 0 : index
    %152 = vector.load %arg2[%c8_118, %c0_119, %c0_120] : memref<27x64x64xbf16, #tpu.memory_space<vmem>>, vector<1x64x64xbf16>
    %153 = vector.shape_cast %152 : vector<1x64x64xbf16> to vector<64x64xbf16>
    %cst_121 = arith.constant dense<0.000000e+00> : vector<200x64xf32>
    %154 = tpu.matmul %151, %153, %cst_121 {dimension_numbers = #tpu.dot_dimension_numbers<[1], [0], [0], [1], [0, 0, 1, 1], [], []>} : vector<200x64xbf16>, vector<64x64xbf16>, vector<200x64xf32> -> vector<200x64xf32>
    %155 = arith.addf %149, %154 : vector<200x64xf32>
    %c0_122 = arith.constant 0 : index
    %c0_123 = arith.constant 0 : index
    %156 = vector.load %arg4[%c0_122, %c0_123] : memref<304x1xf32, #tpu.memory_space<vmem>>, vector<200x1xf32>
    %c1_124 = arith.constant 1 : index
    %c0_125 = arith.constant 0 : index
    %157 = vector.load %arg3[%c1_124, %c0_125] : memref<8x64xf32, #tpu.memory_space<vmem>>, vector<1x64xf32>
    %c5_126 = arith.constant 5 : index
    %c0_127 = arith.constant 0 : index
    %158 = vector.load %arg3[%c5_126, %c0_127] : memref<8x64xf32, #tpu.memory_space<vmem>>, vector<1x64xf32>
    %159 = vector.broadcast %156 : vector<200x1xf32> to vector<200x64xf32>
    %160 = arith.mulf %155, %159 : vector<200x64xf32>
    %cst_128 = arith.constant dense<0.000000e+00> : vector<64xf32>
    %161 = vector.multi_reduction <add>, %160, %cst_128 [0] : vector<200x64xf32> to vector<64xf32>
    %162 = vector.shape_cast %161 : vector<64xf32> to vector<1x64xf32>
    %cst_129 = arith.constant 7.812500e-03 : f32
    %163 = vector.broadcast %cst_129 : f32 to vector<1x64xf32>
    %164 = arith.mulf %162, %163 : vector<1x64xf32>
    %165 = vector.broadcast %164 : vector<1x64xf32> to vector<200x64xf32>
    %166 = arith.subf %155, %165 : vector<200x64xf32>
    %167 = vector.broadcast %156 : vector<200x1xf32> to vector<200x64xf32>
    %168 = arith.mulf %166, %167 : vector<200x64xf32>
    %169 = arith.mulf %168, %168 : vector<200x64xf32>
    %cst_130 = arith.constant dense<0.000000e+00> : vector<64xf32>
    %170 = vector.multi_reduction <add>, %169, %cst_130 [0] : vector<200x64xf32> to vector<64xf32>
    %171 = vector.shape_cast %170 : vector<64xf32> to vector<1x64xf32>
    %cst_131 = arith.constant 7.812500e-03 : f32
    %172 = vector.broadcast %cst_131 : f32 to vector<1x64xf32>
    %173 = arith.mulf %171, %172 : vector<1x64xf32>
    %cst_132 = arith.constant 9.99999974E-6 : f32
    %174 = vector.broadcast %cst_132 : f32 to vector<1x64xf32>
    %175 = arith.addf %173, %174 : vector<1x64xf32>
    %176 = math.rsqrt %175 : vector<1x64xf32>
    %177 = arith.mulf %157, %176 : vector<1x64xf32>
    %178 = arith.mulf %164, %177 : vector<1x64xf32>
    %179 = arith.subf %158, %178 : vector<1x64xf32>
    %180 = vector.broadcast %177 : vector<1x64xf32> to vector<200x64xf32>
    %181 = arith.mulf %155, %180 : vector<200x64xf32>
    %182 = vector.broadcast %179 : vector<1x64xf32> to vector<200x64xf32>
    %183 = arith.addf %181, %182 : vector<200x64xf32>
    %cst_133 = arith.constant 0.000000e+00 : f32
    %184 = vector.broadcast %cst_133 : f32 to vector<200x64xf32>
    %185 = arith.maximumf %183, %184 : vector<200x64xf32>
    %c0_134 = arith.constant 0 : index
    %c0_135 = arith.constant 0 : index
    %186 = vector.load %arg11[%c0_134, %c0_135] : memref<512x64xf32, #tpu.memory_space<vmem>>, vector<200x64xf32>
    tpu.vector_store %arg11[%c0_134, %c0_135], %185 {strides = array<i32>} : memref<512x64xf32, #tpu.memory_space<vmem>>, vector<200x64xf32>,
    %c1_136 = arith.constant 1 : index
    %c0_137 = arith.constant 0 : index
    %187 = tpu.strided_load %arg11[%c1_136, %c0_137] {strides = array<i32: 2, 1>} : memref<512x64xf32, #tpu.memory_space<vmem>>, vector<99x64xf32>
    %c2_138 = arith.constant 2 : index
    %c0_139 = arith.constant 0 : index
    %188 = tpu.strided_load %arg11[%c2_138, %c0_139] {strides = array<i32: 2, 1>} : memref<512x64xf32, #tpu.memory_space<vmem>>, vector<99x64xf32>
    %189 = arith.maximumf %187, %188 : vector<99x64xf32>
    %c0_140 = arith.constant 0 : index
    %c0_141 = arith.constant 0 : index
    %190 = vector.load %arg12[%c0_140, %c0_141] : memref<256x64xf32, #tpu.memory_space<vmem>>, vector<99x64xf32>
    tpu.vector_store %arg12[%c0_140, %c0_141], %189 {strides = array<i32>} : memref<256x64xf32, #tpu.memory_space<vmem>>, vector<99x64xf32>,
    %c5_142 = arith.constant 5 : index
    %c0_143 = arith.constant 0 : index
    %191 = vector.load %arg12[%c5_142, %c0_143] : memref<256x64xf32, #tpu.memory_space<vmem>>, vector<4x64xf32>
    %c10 = arith.constant 10 : index
    %c0_144 = arith.constant 0 : index
    %192 = vector.load %arg12[%c10, %c0_144] : memref<256x64xf32, #tpu.memory_space<vmem>>, vector<4x64xf32>
    %193 = arith.maximumf %191, %192 : vector<4x64xf32>
    %c15_145 = arith.constant 15 : index
    %c0_146 = arith.constant 0 : index
    %194 = vector.load %arg9[%c15_145, %c0_146] : memref<88x64xf32, #tpu.memory_space<vmem>>, vector<4x64xf32>
    tpu.vector_store %arg9[%c15_145, %c0_146], %193 {strides = array<i32>} : memref<88x64xf32, #tpu.memory_space<vmem>>, vector<4x64xf32>,
    %c15_147 = arith.constant 15 : index
    %c0_148 = arith.constant 0 : index
    %195 = vector.load %arg12[%c15_147, %c0_148] : memref<256x64xf32, #tpu.memory_space<vmem>>, vector<4x64xf32>
    %c20 = arith.constant 20 : index
    %c0_149 = arith.constant 0 : index
    %196 = vector.load %arg12[%c20, %c0_149] : memref<256x64xf32, #tpu.memory_space<vmem>>, vector<4x64xf32>
    %197 = arith.maximumf %195, %196 : vector<4x64xf32>
    %c21 = arith.constant 21 : index
    %c0_150 = arith.constant 0 : index
    %198 = vector.load %arg9[%c21, %c0_150] : memref<88x64xf32, #tpu.memory_space<vmem>>, vector<4x64xf32>
    tpu.vector_store %arg9[%c21, %c0_150], %197 {strides = array<i32>} : memref<88x64xf32, #tpu.memory_space<vmem>>, vector<4x64xf32>,
    %c25_151 = arith.constant 25 : index
    %c0_152 = arith.constant 0 : index
    %199 = vector.load %arg12[%c25_151, %c0_152] : memref<256x64xf32, #tpu.memory_space<vmem>>, vector<4x64xf32>
    %c30 = arith.constant 30 : index
    %c0_153 = arith.constant 0 : index
    %200 = vector.load %arg12[%c30, %c0_153] : memref<256x64xf32, #tpu.memory_space<vmem>>, vector<4x64xf32>
    %201 = arith.maximumf %199, %200 : vector<4x64xf32>
    %c27_154 = arith.constant 27 : index
    %c0_155 = arith.constant 0 : index
    %202 = vector.load %arg9[%c27_154, %c0_155] : memref<88x64xf32, #tpu.memory_space<vmem>>, vector<4x64xf32>
    tpu.vector_store %arg9[%c27_154, %c0_155], %201 {strides = array<i32>} : memref<88x64xf32, #tpu.memory_space<vmem>>, vector<4x64xf32>,
    %c35 = arith.constant 35 : index
    %c0_156 = arith.constant 0 : index
    %203 = vector.load %arg12[%c35, %c0_156] : memref<256x64xf32, #tpu.memory_space<vmem>>, vector<4x64xf32>
    %c40_157 = arith.constant 40 : index
    %c0_158 = arith.constant 0 : index
    %204 = vector.load %arg12[%c40_157, %c0_158] : memref<256x64xf32, #tpu.memory_space<vmem>>, vector<4x64xf32>
    %205 = arith.maximumf %203, %204 : vector<4x64xf32>
    %c33 = arith.constant 33 : index
    %c0_159 = arith.constant 0 : index
    %206 = vector.load %arg9[%c33, %c0_159] : memref<88x64xf32, #tpu.memory_space<vmem>>, vector<4x64xf32>
    tpu.vector_store %arg9[%c33, %c0_159], %205 {strides = array<i32>} : memref<88x64xf32, #tpu.memory_space<vmem>>, vector<4x64xf32>,
    %c55 = arith.constant 55 : index
    %c0_160 = arith.constant 0 : index
    %207 = vector.load %arg12[%c55, %c0_160] : memref<256x64xf32, #tpu.memory_space<vmem>>, vector<4x64xf32>
    %c60 = arith.constant 60 : index
    %c0_161 = arith.constant 0 : index
    %208 = vector.load %arg12[%c60, %c0_161] : memref<256x64xf32, #tpu.memory_space<vmem>>, vector<4x64xf32>
    %209 = arith.maximumf %207, %208 : vector<4x64xf32>
    %c51 = arith.constant 51 : index
    %c0_162 = arith.constant 0 : index
    %210 = vector.load %arg9[%c51, %c0_162] : memref<88x64xf32, #tpu.memory_space<vmem>>, vector<4x64xf32>
    tpu.vector_store %arg9[%c51, %c0_162], %209 {strides = array<i32>} : memref<88x64xf32, #tpu.memory_space<vmem>>, vector<4x64xf32>,
    %c65 = arith.constant 65 : index
    %c0_163 = arith.constant 0 : index
    %211 = vector.load %arg12[%c65, %c0_163] : memref<256x64xf32, #tpu.memory_space<vmem>>, vector<4x64xf32>
    %c70 = arith.constant 70 : index
    %c0_164 = arith.constant 0 : index
    %212 = vector.load %arg12[%c70, %c0_164] : memref<256x64xf32, #tpu.memory_space<vmem>>, vector<4x64xf32>
    %213 = arith.maximumf %211, %212 : vector<4x64xf32>
    %c57_165 = arith.constant 57 : index
    %c0_166 = arith.constant 0 : index
    %214 = vector.load %arg9[%c57_165, %c0_166] : memref<88x64xf32, #tpu.memory_space<vmem>>, vector<4x64xf32>
    tpu.vector_store %arg9[%c57_165, %c0_166], %213 {strides = array<i32>} : memref<88x64xf32, #tpu.memory_space<vmem>>, vector<4x64xf32>,
    %c75 = arith.constant 75 : index
    %c0_167 = arith.constant 0 : index
    %215 = vector.load %arg12[%c75, %c0_167] : memref<256x64xf32, #tpu.memory_space<vmem>>, vector<4x64xf32>
    %c80_168 = arith.constant 80 : index
    %c0_169 = arith.constant 0 : index
    %216 = vector.load %arg12[%c80_168, %c0_169] : memref<256x64xf32, #tpu.memory_space<vmem>>, vector<4x64xf32>
    %217 = arith.maximumf %215, %216 : vector<4x64xf32>
    %c63 = arith.constant 63 : index
    %c0_170 = arith.constant 0 : index
    %218 = vector.load %arg9[%c63, %c0_170] : memref<88x64xf32, #tpu.memory_space<vmem>>, vector<4x64xf32>
    tpu.vector_store %arg9[%c63, %c0_170], %217 {strides = array<i32>} : memref<88x64xf32, #tpu.memory_space<vmem>>, vector<4x64xf32>,
    %c85 = arith.constant 85 : index
    %c0_171 = arith.constant 0 : index
    %219 = vector.load %arg12[%c85, %c0_171] : memref<256x64xf32, #tpu.memory_space<vmem>>, vector<4x64xf32>
    %c90 = arith.constant 90 : index
    %c0_172 = arith.constant 0 : index
    %220 = vector.load %arg12[%c90, %c0_172] : memref<256x64xf32, #tpu.memory_space<vmem>>, vector<4x64xf32>
    %221 = arith.maximumf %219, %220 : vector<4x64xf32>
    %c69 = arith.constant 69 : index
    %c0_173 = arith.constant 0 : index
    %222 = vector.load %arg9[%c69, %c0_173] : memref<88x64xf32, #tpu.memory_space<vmem>>, vector<4x64xf32>
    tpu.vector_store %arg9[%c69, %c0_173], %221 {strides = array<i32>} : memref<88x64xf32, #tpu.memory_space<vmem>>, vector<4x64xf32>,
    %c1_174 = arith.constant 1 : index
    %c0_175 = arith.constant 0 : index
    %223 = vector.load %arg9[%c1_174, %c0_175] : memref<88x64xf32, #tpu.memory_space<vmem>>, vector<72x64xf32>
    %224 = arith.truncf %223 : vector<72x64xf32> to vector<72x64xbf16>
    %c9 = arith.constant 9 : index
    %c0_176 = arith.constant 0 : index
    %c0_177 = arith.constant 0 : index
    %225 = vector.load %arg2[%c9, %c0_176, %c0_177] : memref<27x64x64xbf16, #tpu.memory_space<vmem>>, vector<1x64x64xbf16>
    %226 = vector.shape_cast %225 : vector<1x64x64xbf16> to vector<64x64xbf16>
    %cst_178 = arith.constant dense<0.000000e+00> : vector<72x64xf32>
    %227 = tpu.matmul %224, %226, %cst_178 {dimension_numbers = #tpu.dot_dimension_numbers<[1], [0], [0], [1], [0, 0, 1, 1], [], []>} : vector<72x64xbf16>, vector<64x64xbf16>, vector<72x64xf32> -> vector<72x64xf32>
    %c2_179 = arith.constant 2 : index
    %c0_180 = arith.constant 0 : index
    %228 = vector.load %arg9[%c2_179, %c0_180] : memref<88x64xf32, #tpu.memory_space<vmem>>, vector<72x64xf32>
    %229 = arith.truncf %228 : vector<72x64xf32> to vector<72x64xbf16>
    %c10_181 = arith.constant 10 : index
    %c0_182 = arith.constant 0 : index
    %c0_183 = arith.constant 0 : index
    %230 = vector.load %arg2[%c10_181, %c0_182, %c0_183] : memref<27x64x64xbf16, #tpu.memory_space<vmem>>, vector<1x64x64xbf16>
    %231 = vector.shape_cast %230 : vector<1x64x64xbf16> to vector<64x64xbf16>
    %cst_184 = arith.constant dense<0.000000e+00> : vector<72x64xf32>
    %232 = tpu.matmul %229, %231, %cst_184 {dimension_numbers = #tpu.dot_dimension_numbers<[1], [0], [0], [1], [0, 0, 1, 1], [], []>} : vector<72x64xbf16>, vector<64x64xbf16>, vector<72x64xf32> -> vector<72x64xf32>
    %233 = arith.addf %227, %232 : vector<72x64xf32>
    %c3_185 = arith.constant 3 : index
    %c0_186 = arith.constant 0 : index
    %234 = vector.load %arg9[%c3_185, %c0_186] : memref<88x64xf32, #tpu.memory_space<vmem>>, vector<72x64xf32>
    %235 = arith.truncf %234 : vector<72x64xf32> to vector<72x64xbf16>
    %c11 = arith.constant 11 : index
    %c0_187 = arith.constant 0 : index
    %c0_188 = arith.constant 0 : index
    %236 = vector.load %arg2[%c11, %c0_187, %c0_188] : memref<27x64x64xbf16, #tpu.memory_space<vmem>>, vector<1x64x64xbf16>
    %237 = vector.shape_cast %236 : vector<1x64x64xbf16> to vector<64x64xbf16>
    %cst_189 = arith.constant dense<0.000000e+00> : vector<72x64xf32>
    %238 = tpu.matmul %235, %237, %cst_189 {dimension_numbers = #tpu.dot_dimension_numbers<[1], [0], [0], [1], [0, 0, 1, 1], [], []>} : vector<72x64xbf16>, vector<64x64xbf16>, vector<72x64xf32> -> vector<72x64xf32>
    %239 = arith.addf %233, %238 : vector<72x64xf32>
    %c7_190 = arith.constant 7 : index
    %c0_191 = arith.constant 0 : index
    %240 = vector.load %arg9[%c7_190, %c0_191] : memref<88x64xf32, #tpu.memory_space<vmem>>, vector<72x64xf32>
    %241 = arith.truncf %240 : vector<72x64xf32> to vector<72x64xbf16>
    %c12 = arith.constant 12 : index
    %c0_192 = arith.constant 0 : index
    %c0_193 = arith.constant 0 : index
    %242 = vector.load %arg2[%c12, %c0_192, %c0_193] : memref<27x64x64xbf16, #tpu.memory_space<vmem>>, vector<1x64x64xbf16>
    %243 = vector.shape_cast %242 : vector<1x64x64xbf16> to vector<64x64xbf16>
    %cst_194 = arith.constant dense<0.000000e+00> : vector<72x64xf32>
    %244 = tpu.matmul %241, %243, %cst_194 {dimension_numbers = #tpu.dot_dimension_numbers<[1], [0], [0], [1], [0, 0, 1, 1], [], []>} : vector<72x64xbf16>, vector<64x64xbf16>, vector<72x64xf32> -> vector<72x64xf32>
    %245 = arith.addf %239, %244 : vector<72x64xf32>
    %c8_195 = arith.constant 8 : index
    %c0_196 = arith.constant 0 : index
    %246 = vector.load %arg9[%c8_195, %c0_196] : memref<88x64xf32, #tpu.memory_space<vmem>>, vector<72x64xf32>
    %247 = arith.truncf %246 : vector<72x64xf32> to vector<72x64xbf16>
    %c13 = arith.constant 13 : index
    %c0_197 = arith.constant 0 : index
    %c0_198 = arith.constant 0 : index
    %248 = vector.load %arg2[%c13, %c0_197, %c0_198] : memref<27x64x64xbf16, #tpu.memory_space<vmem>>, vector<1x64x64xbf16>
    %249 = vector.shape_cast %248 : vector<1x64x64xbf16> to vector<64x64xbf16>
    %cst_199 = arith.constant dense<0.000000e+00> : vector<72x64xf32>
    %250 = tpu.matmul %247, %249, %cst_199 {dimension_numbers = #tpu.dot_dimension_numbers<[1], [0], [0], [1], [0, 0, 1, 1], [], []>} : vector<72x64xbf16>, vector<64x64xbf16>, vector<72x64xf32> -> vector<72x64xf32>
    %251 = arith.addf %245, %250 : vector<72x64xf32>
    %c9_200 = arith.constant 9 : index
    %c0_201 = arith.constant 0 : index
    %252 = vector.load %arg9[%c9_200, %c0_201] : memref<88x64xf32, #tpu.memory_space<vmem>>, vector<72x64xf32>
    %253 = arith.truncf %252 : vector<72x64xf32> to vector<72x64xbf16>
    %c14 = arith.constant 14 : index
    %c0_202 = arith.constant 0 : index
    %c0_203 = arith.constant 0 : index
    %254 = vector.load %arg2[%c14, %c0_202, %c0_203] : memref<27x64x64xbf16, #tpu.memory_space<vmem>>, vector<1x64x64xbf16>
    %255 = vector.shape_cast %254 : vector<1x64x64xbf16> to vector<64x64xbf16>
    %cst_204 = arith.constant dense<0.000000e+00> : vector<72x64xf32>
    %256 = tpu.matmul %253, %255, %cst_204 {dimension_numbers = #tpu.dot_dimension_numbers<[1], [0], [0], [1], [0, 0, 1, 1], [], []>} : vector<72x64xbf16>, vector<64x64xbf16>, vector<72x64xf32> -> vector<72x64xf32>
    %257 = arith.addf %251, %256 : vector<72x64xf32>
    %c13_205 = arith.constant 13 : index
    %c0_206 = arith.constant 0 : index
    %258 = vector.load %arg9[%c13_205, %c0_206] : memref<88x64xf32, #tpu.memory_space<vmem>>, vector<72x64xf32>
    %259 = arith.truncf %258 : vector<72x64xf32> to vector<72x64xbf16>
    %c15_207 = arith.constant 15 : index
    %c0_208 = arith.constant 0 : index
    %c0_209 = arith.constant 0 : index
    %260 = vector.load %arg2[%c15_207, %c0_208, %c0_209] : memref<27x64x64xbf16, #tpu.memory_space<vmem>>, vector<1x64x64xbf16>
    %261 = vector.shape_cast %260 : vector<1x64x64xbf16> to vector<64x64xbf16>
    %cst_210 = arith.constant dense<0.000000e+00> : vector<72x64xf32>
    %262 = tpu.matmul %259, %261, %cst_210 {dimension_numbers = #tpu.dot_dimension_numbers<[1], [0], [0], [1], [0, 0, 1, 1], [], []>} : vector<72x64xbf16>, vector<64x64xbf16>, vector<72x64xf32> -> vector<72x64xf32>
    %263 = arith.addf %257, %262 : vector<72x64xf32>
    %c14_211 = arith.constant 14 : index
    %c0_212 = arith.constant 0 : index
    %264 = vector.load %arg9[%c14_211, %c0_212] : memref<88x64xf32, #tpu.memory_space<vmem>>, vector<72x64xf32>
    %265 = arith.truncf %264 : vector<72x64xf32> to vector<72x64xbf16>
    %c16_213 = arith.constant 16 : index
    %c0_214 = arith.constant 0 : index
    %c0_215 = arith.constant 0 : index
    %266 = vector.load %arg2[%c16_213, %c0_214, %c0_215] : memref<27x64x64xbf16, #tpu.memory_space<vmem>>, vector<1x64x64xbf16>
    %267 = vector.shape_cast %266 : vector<1x64x64xbf16> to vector<64x64xbf16>
    %cst_216 = arith.constant dense<0.000000e+00> : vector<72x64xf32>
    %268 = tpu.matmul %265, %267, %cst_216 {dimension_numbers = #tpu.dot_dimension_numbers<[1], [0], [0], [1], [0, 0, 1, 1], [], []>} : vector<72x64xbf16>, vector<64x64xbf16>, vector<72x64xf32> -> vector<72x64xf32>
    %269 = arith.addf %263, %268 : vector<72x64xf32>
    %c15_217 = arith.constant 15 : index
    %c0_218 = arith.constant 0 : index
    %270 = vector.load %arg9[%c15_217, %c0_218] : memref<88x64xf32, #tpu.memory_space<vmem>>, vector<72x64xf32>
    %271 = arith.truncf %270 : vector<72x64xf32> to vector<72x64xbf16>
    %c17_219 = arith.constant 17 : index
    %c0_220 = arith.constant 0 : index
    %c0_221 = arith.constant 0 : index
    %272 = vector.load %arg2[%c17_219, %c0_220, %c0_221] : memref<27x64x64xbf16, #tpu.memory_space<vmem>>, vector<1x64x64xbf16>
    %273 = vector.shape_cast %272 : vector<1x64x64xbf16> to vector<64x64xbf16>
    %cst_222 = arith.constant dense<0.000000e+00> : vector<72x64xf32>
    %274 = tpu.matmul %271, %273, %cst_222 {dimension_numbers = #tpu.dot_dimension_numbers<[1], [0], [0], [1], [0, 0, 1, 1], [], []>} : vector<72x64xbf16>, vector<64x64xbf16>, vector<72x64xf32> -> vector<72x64xf32>
    %275 = arith.addf %269, %274 : vector<72x64xf32>
    %c200_223 = arith.constant 200 : index
    %c0_224 = arith.constant 0 : index
    %276 = vector.load %arg4[%c200_223, %c0_224] : memref<304x1xf32, #tpu.memory_space<vmem>>, vector<72x1xf32>
    %c2_225 = arith.constant 2 : index
    %c0_226 = arith.constant 0 : index
    %277 = vector.load %arg3[%c2_225, %c0_226] : memref<8x64xf32, #tpu.memory_space<vmem>>, vector<1x64xf32>
    %c6_227 = arith.constant 6 : index
    %c0_228 = arith.constant 0 : index
    %278 = vector.load %arg3[%c6_227, %c0_228] : memref<8x64xf32, #tpu.memory_space<vmem>>, vector<1x64xf32>
    %279 = vector.broadcast %276 : vector<72x1xf32> to vector<72x64xf32>
    %280 = arith.mulf %275, %279 : vector<72x64xf32>
    %cst_229 = arith.constant dense<0.000000e+00> : vector<64xf32>
    %281 = vector.multi_reduction <add>, %280, %cst_229 [0] : vector<72x64xf32> to vector<64xf32>
    %282 = vector.shape_cast %281 : vector<64xf32> to vector<1x64xf32>
    %cst_230 = arith.constant 3.125000e-02 : f32
    %283 = vector.broadcast %cst_230 : f32 to vector<1x64xf32>
    %284 = arith.mulf %282, %283 : vector<1x64xf32>
    %285 = vector.broadcast %284 : vector<1x64xf32> to vector<72x64xf32>
    %286 = arith.subf %275, %285 : vector<72x64xf32>
    %287 = vector.broadcast %276 : vector<72x1xf32> to vector<72x64xf32>
    %288 = arith.mulf %286, %287 : vector<72x64xf32>
    %289 = arith.mulf %288, %288 : vector<72x64xf32>
    %cst_231 = arith.constant dense<0.000000e+00> : vector<64xf32>
    %290 = vector.multi_reduction <add>, %289, %cst_231 [0] : vector<72x64xf32> to vector<64xf32>
    %291 = vector.shape_cast %290 : vector<64xf32> to vector<1x64xf32>
    %cst_232 = arith.constant 3.125000e-02 : f32
    %292 = vector.broadcast %cst_232 : f32 to vector<1x64xf32>
    %293 = arith.mulf %291, %292 : vector<1x64xf32>
    %cst_233 = arith.constant 9.99999974E-6 : f32
    %294 = vector.broadcast %cst_233 : f32 to vector<1x64xf32>
    %295 = arith.addf %293, %294 : vector<1x64xf32>
    %296 = math.rsqrt %295 : vector<1x64xf32>
    %297 = arith.mulf %277, %296 : vector<1x64xf32>
    %298 = arith.mulf %284, %297 : vector<1x64xf32>
    %299 = arith.subf %278, %298 : vector<1x64xf32>
    %300 = vector.broadcast %297 : vector<1x64xf32> to vector<72x64xf32>
    %301 = arith.mulf %275, %300 : vector<72x64xf32>
    %302 = vector.broadcast %299 : vector<1x64xf32> to vector<72x64xf32>
    %303 = arith.addf %301, %302 : vector<72x64xf32>
    %cst_234 = arith.constant 0.000000e+00 : f32
    %304 = vector.broadcast %cst_234 : f32 to vector<72x64xf32>
    %305 = arith.maximumf %303, %304 : vector<72x64xf32>
    %c0_235 = arith.constant 0 : index
    %c0_236 = arith.constant 0 : index
    %306 = vector.load %arg11[%c0_235, %c0_236] : memref<512x64xf32, #tpu.memory_space<vmem>>, vector<72x64xf32>
    tpu.vector_store %arg11[%c0_235, %c0_236], %305 {strides = array<i32>} : memref<512x64xf32, #tpu.memory_space<vmem>>, vector<72x64xf32>,
    %c1_237 = arith.constant 1 : index
    %c0_238 = arith.constant 0 : index
    %307 = tpu.strided_load %arg11[%c1_237, %c0_238] {strides = array<i32: 2, 1>} : memref<512x64xf32, #tpu.memory_space<vmem>>, vector<35x64xf32>
    %c2_239 = arith.constant 2 : index
    %c0_240 = arith.constant 0 : index
    %308 = tpu.strided_load %arg11[%c2_239, %c0_240] {strides = array<i32: 2, 1>} : memref<512x64xf32, #tpu.memory_space<vmem>>, vector<35x64xf32>
    %309 = arith.maximumf %307, %308 : vector<35x64xf32>
    %c0_241 = arith.constant 0 : index
    %c0_242 = arith.constant 0 : index
    %310 = vector.load %arg12[%c0_241, %c0_242] : memref<256x64xf32, #tpu.memory_space<vmem>>, vector<35x64xf32>
    tpu.vector_store %arg12[%c0_241, %c0_242], %309 {strides = array<i32>} : memref<256x64xf32, #tpu.memory_space<vmem>>, vector<35x64xf32>,
    %c3_243 = arith.constant 3 : index
    %c0_244 = arith.constant 0 : index
    %311 = vector.load %arg12[%c3_243, %c0_244] : memref<256x64xf32, #tpu.memory_space<vmem>>, vector<2x64xf32>
    %c6_245 = arith.constant 6 : index
    %c0_246 = arith.constant 0 : index
    %312 = vector.load %arg12[%c6_245, %c0_246] : memref<256x64xf32, #tpu.memory_space<vmem>>, vector<2x64xf32>
    %313 = arith.maximumf %311, %312 : vector<2x64xf32>
    %c13_247 = arith.constant 13 : index
    %c0_248 = arith.constant 0 : index
    %314 = vector.load %arg10[%c13_247, %c0_248] : memref<48x64xf32, #tpu.memory_space<vmem>>, vector<2x64xf32>
    tpu.vector_store %arg10[%c13_247, %c0_248], %313 {strides = array<i32>} : memref<48x64xf32, #tpu.memory_space<vmem>>, vector<2x64xf32>,
    %c9_249 = arith.constant 9 : index
    %c0_250 = arith.constant 0 : index
    %315 = vector.load %arg12[%c9_249, %c0_250] : memref<256x64xf32, #tpu.memory_space<vmem>>, vector<2x64xf32>
    %c12_251 = arith.constant 12 : index
    %c0_252 = arith.constant 0 : index
    %316 = vector.load %arg12[%c12_251, %c0_252] : memref<256x64xf32, #tpu.memory_space<vmem>>, vector<2x64xf32>
    %317 = arith.maximumf %315, %316 : vector<2x64xf32>
    %c17_253 = arith.constant 17 : index
    %c0_254 = arith.constant 0 : index
    %318 = vector.load %arg10[%c17_253, %c0_254] : memref<48x64xf32, #tpu.memory_space<vmem>>, vector<2x64xf32>
    tpu.vector_store %arg10[%c17_253, %c0_254], %317 {strides = array<i32>} : memref<48x64xf32, #tpu.memory_space<vmem>>, vector<2x64xf32>,
    %c21_255 = arith.constant 21 : index
    %c0_256 = arith.constant 0 : index
    %319 = vector.load %arg12[%c21_255, %c0_256] : memref<256x64xf32, #tpu.memory_space<vmem>>, vector<2x64xf32>
    %c24_257 = arith.constant 24 : index
    %c0_258 = arith.constant 0 : index
    %320 = vector.load %arg12[%c24_257, %c0_258] : memref<256x64xf32, #tpu.memory_space<vmem>>, vector<2x64xf32>
    %321 = arith.maximumf %319, %320 : vector<2x64xf32>
    %c29 = arith.constant 29 : index
    %c0_259 = arith.constant 0 : index
    %322 = vector.load %arg10[%c29, %c0_259] : memref<48x64xf32, #tpu.memory_space<vmem>>, vector<2x64xf32>
    tpu.vector_store %arg10[%c29, %c0_259], %321 {strides = array<i32>} : memref<48x64xf32, #tpu.memory_space<vmem>>, vector<2x64xf32>,
    %c27_260 = arith.constant 27 : index
    %c0_261 = arith.constant 0 : index
    %323 = vector.load %arg12[%c27_260, %c0_261] : memref<256x64xf32, #tpu.memory_space<vmem>>, vector<2x64xf32>
    %c30_262 = arith.constant 30 : index
    %c0_263 = arith.constant 0 : index
    %324 = vector.load %arg12[%c30_262, %c0_263] : memref<256x64xf32, #tpu.memory_space<vmem>>, vector<2x64xf32>
    %325 = arith.maximumf %323, %324 : vector<2x64xf32>
    %c33_264 = arith.constant 33 : index
    %c0_265 = arith.constant 0 : index
    %326 = vector.load %arg10[%c33_264, %c0_265] : memref<48x64xf32, #tpu.memory_space<vmem>>, vector<2x64xf32>
    tpu.vector_store %arg10[%c33_264, %c0_265], %325 {strides = array<i32>} : memref<48x64xf32, #tpu.memory_space<vmem>>, vector<2x64xf32>,
    %c3_266 = arith.constant 3 : index
    %c0_267 = arith.constant 0 : index
    %327 = vector.load %arg10[%c3_266, %c0_267] : memref<48x64xf32, #tpu.memory_space<vmem>>, vector<32x64xf32>
    %328 = arith.truncf %327 : vector<32x64xf32> to vector<32x64xbf16>
    %c18 = arith.constant 18 : index
    %c0_268 = arith.constant 0 : index
    %c0_269 = arith.constant 0 : index
    %329 = vector.load %arg2[%c18, %c0_268, %c0_269] : memref<27x64x64xbf16, #tpu.memory_space<vmem>>, vector<1x64x64xbf16>
    %330 = vector.shape_cast %329 : vector<1x64x64xbf16> to vector<64x64xbf16>
    %cst_270 = arith.constant dense<0.000000e+00> : vector<32x64xf32>
    %331 = tpu.matmul %328, %330, %cst_270 {dimension_numbers = #tpu.dot_dimension_numbers<[1], [0], [0], [1], [0, 0, 1, 1], [], []>} : vector<32x64xbf16>, vector<64x64xbf16>, vector<32x64xf32> -> vector<32x64xf32>
    %c4_271 = arith.constant 4 : index
    %c0_272 = arith.constant 0 : index
    %332 = vector.load %arg10[%c4_271, %c0_272] : memref<48x64xf32, #tpu.memory_space<vmem>>, vector<32x64xf32>
    %333 = arith.truncf %332 : vector<32x64xf32> to vector<32x64xbf16>
    %c19 = arith.constant 19 : index
    %c0_273 = arith.constant 0 : index
    %c0_274 = arith.constant 0 : index
    %334 = vector.load %arg2[%c19, %c0_273, %c0_274] : memref<27x64x64xbf16, #tpu.memory_space<vmem>>, vector<1x64x64xbf16>
    %335 = vector.shape_cast %334 : vector<1x64x64xbf16> to vector<64x64xbf16>
    %cst_275 = arith.constant dense<0.000000e+00> : vector<32x64xf32>
    %336 = tpu.matmul %333, %335, %cst_275 {dimension_numbers = #tpu.dot_dimension_numbers<[1], [0], [0], [1], [0, 0, 1, 1], [], []>} : vector<32x64xbf16>, vector<64x64xbf16>, vector<32x64xf32> -> vector<32x64xf32>
    %337 = arith.addf %331, %336 : vector<32x64xf32>
    %c5_276 = arith.constant 5 : index
    %c0_277 = arith.constant 0 : index
    %338 = vector.load %arg10[%c5_276, %c0_277] : memref<48x64xf32, #tpu.memory_space<vmem>>, vector<32x64xf32>
    %339 = arith.truncf %338 : vector<32x64xf32> to vector<32x64xbf16>
    %c20_278 = arith.constant 20 : index
    %c0_279 = arith.constant 0 : index
    %c0_280 = arith.constant 0 : index
    %340 = vector.load %arg2[%c20_278, %c0_279, %c0_280] : memref<27x64x64xbf16, #tpu.memory_space<vmem>>, vector<1x64x64xbf16>
    %341 = vector.shape_cast %340 : vector<1x64x64xbf16> to vector<64x64xbf16>
    %cst_281 = arith.constant dense<0.000000e+00> : vector<32x64xf32>
    %342 = tpu.matmul %339, %341, %cst_281 {dimension_numbers = #tpu.dot_dimension_numbers<[1], [0], [0], [1], [0, 0, 1, 1], [], []>} : vector<32x64xbf16>, vector<64x64xbf16>, vector<32x64xf32> -> vector<32x64xf32>
    %343 = arith.addf %337, %342 : vector<32x64xf32>
    %c7_282 = arith.constant 7 : index
    %c0_283 = arith.constant 0 : index
    %344 = vector.load %arg10[%c7_282, %c0_283] : memref<48x64xf32, #tpu.memory_space<vmem>>, vector<32x64xf32>
    %345 = arith.truncf %344 : vector<32x64xf32> to vector<32x64xbf16>
    %c21_284 = arith.constant 21 : index
    %c0_285 = arith.constant 0 : index
    %c0_286 = arith.constant 0 : index
    %346 = vector.load %arg2[%c21_284, %c0_285, %c0_286] : memref<27x64x64xbf16, #tpu.memory_space<vmem>>, vector<1x64x64xbf16>
    %347 = vector.shape_cast %346 : vector<1x64x64xbf16> to vector<64x64xbf16>
    %cst_287 = arith.constant dense<0.000000e+00> : vector<32x64xf32>
    %348 = tpu.matmul %345, %347, %cst_287 {dimension_numbers = #tpu.dot_dimension_numbers<[1], [0], [0], [1], [0, 0, 1, 1], [], []>} : vector<32x64xbf16>, vector<64x64xbf16>, vector<32x64xf32> -> vector<32x64xf32>
    %349 = arith.addf %343, %348 : vector<32x64xf32>
    %c8_288 = arith.constant 8 : index
    %c0_289 = arith.constant 0 : index
    %350 = vector.load %arg10[%c8_288, %c0_289] : memref<48x64xf32, #tpu.memory_space<vmem>>, vector<32x64xf32>
    %351 = arith.truncf %350 : vector<32x64xf32> to vector<32x64xbf16>
    %c22 = arith.constant 22 : index
    %c0_290 = arith.constant 0 : index
    %c0_291 = arith.constant 0 : index
    %352 = vector.load %arg2[%c22, %c0_290, %c0_291] : memref<27x64x64xbf16, #tpu.memory_space<vmem>>, vector<1x64x64xbf16>
    %353 = vector.shape_cast %352 : vector<1x64x64xbf16> to vector<64x64xbf16>
    %cst_292 = arith.constant dense<0.000000e+00> : vector<32x64xf32>
    %354 = tpu.matmul %351, %353, %cst_292 {dimension_numbers = #tpu.dot_dimension_numbers<[1], [0], [0], [1], [0, 0, 1, 1], [], []>} : vector<32x64xbf16>, vector<64x64xbf16>, vector<32x64xf32> -> vector<32x64xf32>
    %355 = arith.addf %349, %354 : vector<32x64xf32>
    %c9_293 = arith.constant 9 : index
    %c0_294 = arith.constant 0 : index
    %356 = vector.load %arg10[%c9_293, %c0_294] : memref<48x64xf32, #tpu.memory_space<vmem>>, vector<32x64xf32>
    %357 = arith.truncf %356 : vector<32x64xf32> to vector<32x64xbf16>
    %c23 = arith.constant 23 : index
    %c0_295 = arith.constant 0 : index
    %c0_296 = arith.constant 0 : index
    %358 = vector.load %arg2[%c23, %c0_295, %c0_296] : memref<27x64x64xbf16, #tpu.memory_space<vmem>>, vector<1x64x64xbf16>
    %359 = vector.shape_cast %358 : vector<1x64x64xbf16> to vector<64x64xbf16>
    %cst_297 = arith.constant dense<0.000000e+00> : vector<32x64xf32>
    %360 = tpu.matmul %357, %359, %cst_297 {dimension_numbers = #tpu.dot_dimension_numbers<[1], [0], [0], [1], [0, 0, 1, 1], [], []>} : vector<32x64xbf16>, vector<64x64xbf16>, vector<32x64xf32> -> vector<32x64xf32>
    %361 = arith.addf %355, %360 : vector<32x64xf32>
    %c11_298 = arith.constant 11 : index
    %c0_299 = arith.constant 0 : index
    %362 = vector.load %arg10[%c11_298, %c0_299] : memref<48x64xf32, #tpu.memory_space<vmem>>, vector<32x64xf32>
    %363 = arith.truncf %362 : vector<32x64xf32> to vector<32x64xbf16>
    %c24_300 = arith.constant 24 : index
    %c0_301 = arith.constant 0 : index
    %c0_302 = arith.constant 0 : index
    %364 = vector.load %arg2[%c24_300, %c0_301, %c0_302] : memref<27x64x64xbf16, #tpu.memory_space<vmem>>, vector<1x64x64xbf16>
    %365 = vector.shape_cast %364 : vector<1x64x64xbf16> to vector<64x64xbf16>
    %cst_303 = arith.constant dense<0.000000e+00> : vector<32x64xf32>
    %366 = tpu.matmul %363, %365, %cst_303 {dimension_numbers = #tpu.dot_dimension_numbers<[1], [0], [0], [1], [0, 0, 1, 1], [], []>} : vector<32x64xbf16>, vector<64x64xbf16>, vector<32x64xf32> -> vector<32x64xf32>
    %367 = arith.addf %361, %366 : vector<32x64xf32>
    %c12_304 = arith.constant 12 : index
    %c0_305 = arith.constant 0 : index
    %368 = vector.load %arg10[%c12_304, %c0_305] : memref<48x64xf32, #tpu.memory_space<vmem>>, vector<32x64xf32>
    %369 = arith.truncf %368 : vector<32x64xf32> to vector<32x64xbf16>
    %c25_306 = arith.constant 25 : index
    %c0_307 = arith.constant 0 : index
    %c0_308 = arith.constant 0 : index
    %370 = vector.load %arg2[%c25_306, %c0_307, %c0_308] : memref<27x64x64xbf16, #tpu.memory_space<vmem>>, vector<1x64x64xbf16>
    %371 = vector.shape_cast %370 : vector<1x64x64xbf16> to vector<64x64xbf16>
    %cst_309 = arith.constant dense<0.000000e+00> : vector<32x64xf32>
    %372 = tpu.matmul %369, %371, %cst_309 {dimension_numbers = #tpu.dot_dimension_numbers<[1], [0], [0], [1], [0, 0, 1, 1], [], []>} : vector<32x64xbf16>, vector<64x64xbf16>, vector<32x64xf32> -> vector<32x64xf32>
    %373 = arith.addf %367, %372 : vector<32x64xf32>
    %c13_310 = arith.constant 13 : index
    %c0_311 = arith.constant 0 : index
    %374 = vector.load %arg10[%c13_310, %c0_311] : memref<48x64xf32, #tpu.memory_space<vmem>>, vector<32x64xf32>
    %375 = arith.truncf %374 : vector<32x64xf32> to vector<32x64xbf16>
    %c26_312 = arith.constant 26 : index
    %c0_313 = arith.constant 0 : index
    %c0_314 = arith.constant 0 : index
    %376 = vector.load %arg2[%c26_312, %c0_313, %c0_314] : memref<27x64x64xbf16, #tpu.memory_space<vmem>>, vector<1x64x64xbf16>
    %377 = vector.shape_cast %376 : vector<1x64x64xbf16> to vector<64x64xbf16>
    %cst_315 = arith.constant dense<0.000000e+00> : vector<32x64xf32>
    %378 = tpu.matmul %375, %377, %cst_315 {dimension_numbers = #tpu.dot_dimension_numbers<[1], [0], [0], [1], [0, 0, 1, 1], [], []>} : vector<32x64xbf16>, vector<64x64xbf16>, vector<32x64xf32> -> vector<32x64xf32>
    %379 = arith.addf %373, %378 : vector<32x64xf32>
    %c272 = arith.constant 272 : index
    %c0_316 = arith.constant 0 : index
    %380 = vector.load %arg4[%c272, %c0_316] : memref<304x1xf32, #tpu.memory_space<vmem>>, vector<32x1xf32>
    %c3_317 = arith.constant 3 : index
    %c0_318 = arith.constant 0 : index
    %381 = vector.load %arg3[%c3_317, %c0_318] : memref<8x64xf32, #tpu.memory_space<vmem>>, vector<1x64xf32>
    %c7_319 = arith.constant 7 : index
    %c0_320 = arith.constant 0 : index
    %382 = vector.load %arg3[%c7_319, %c0_320] : memref<8x64xf32, #tpu.memory_space<vmem>>, vector<1x64xf32>
    %383 = vector.broadcast %380 : vector<32x1xf32> to vector<32x64xf32>
    %384 = arith.mulf %379, %383 : vector<32x64xf32>
    %cst_321 = arith.constant dense<0.000000e+00> : vector<64xf32>
    %385 = vector.multi_reduction <add>, %384, %cst_321 [0] : vector<32x64xf32> to vector<64xf32>
    %386 = vector.shape_cast %385 : vector<64xf32> to vector<1x64xf32>
    %cst_322 = arith.constant 1.250000e-01 : f32
    %387 = vector.broadcast %cst_322 : f32 to vector<1x64xf32>
    %388 = arith.mulf %386, %387 : vector<1x64xf32>
    %389 = vector.broadcast %388 : vector<1x64xf32> to vector<32x64xf32>
    %390 = arith.subf %379, %389 : vector<32x64xf32>
    %391 = vector.broadcast %380 : vector<32x1xf32> to vector<32x64xf32>
    %392 = arith.mulf %390, %391 : vector<32x64xf32>
    %393 = arith.mulf %392, %392 : vector<32x64xf32>
    %cst_323 = arith.constant dense<0.000000e+00> : vector<64xf32>
    %394 = vector.multi_reduction <add>, %393, %cst_323 [0] : vector<32x64xf32> to vector<64xf32>
    %395 = vector.shape_cast %394 : vector<64xf32> to vector<1x64xf32>
    %cst_324 = arith.constant 1.250000e-01 : f32
    %396 = vector.broadcast %cst_324 : f32 to vector<1x64xf32>
    %397 = arith.mulf %395, %396 : vector<1x64xf32>
    %cst_325 = arith.constant 9.99999974E-6 : f32
    %398 = vector.broadcast %cst_325 : f32 to vector<1x64xf32>
    %399 = arith.addf %397, %398 : vector<1x64xf32>
    %400 = math.rsqrt %399 : vector<1x64xf32>
    %401 = arith.mulf %381, %400 : vector<1x64xf32>
    %402 = arith.mulf %388, %401 : vector<1x64xf32>
    %403 = arith.subf %382, %402 : vector<1x64xf32>
    %404 = vector.broadcast %401 : vector<1x64xf32> to vector<32x64xf32>
    %405 = arith.mulf %379, %404 : vector<32x64xf32>
    %406 = vector.broadcast %403 : vector<1x64xf32> to vector<32x64xf32>
    %407 = arith.addf %405, %406 : vector<32x64xf32>
    %cst_326 = arith.constant 0.000000e+00 : f32
    %408 = vector.broadcast %cst_326 : f32 to vector<32x64xf32>
    %409 = arith.maximumf %407, %408 : vector<32x64xf32>
    %c0_327 = arith.constant 0 : index
    %c0_328 = arith.constant 0 : index
    %410 = vector.load %arg11[%c0_327, %c0_328] : memref<512x64xf32, #tpu.memory_space<vmem>>, vector<32x64xf32>
    tpu.vector_store %arg11[%c0_327, %c0_328], %409 {strides = array<i32>} : memref<512x64xf32, #tpu.memory_space<vmem>>, vector<32x64xf32>,
    %c1_329 = arith.constant 1 : index
    %c0_330 = arith.constant 0 : index
    %411 = tpu.strided_load %arg11[%c1_329, %c0_330] {strides = array<i32: 2, 1>} : memref<512x64xf32, #tpu.memory_space<vmem>>, vector<15x64xf32>
    %c2_331 = arith.constant 2 : index
    %c0_332 = arith.constant 0 : index
    %412 = tpu.strided_load %arg11[%c2_331, %c0_332] {strides = array<i32: 2, 1>} : memref<512x64xf32, #tpu.memory_space<vmem>>, vector<15x64xf32>
    %413 = arith.maximumf %411, %412 : vector<15x64xf32>
    %c0_333 = arith.constant 0 : index
    %c0_334 = arith.constant 0 : index
    %414 = vector.load %arg12[%c0_333, %c0_334] : memref<256x64xf32, #tpu.memory_space<vmem>>, vector<15x64xf32>
    tpu.vector_store %arg12[%c0_333, %c0_334], %413 {strides = array<i32>} : memref<256x64xf32, #tpu.memory_space<vmem>>, vector<15x64xf32>,
    %c2_335 = arith.constant 2 : index
    %c0_336 = arith.constant 0 : index
    %415 = vector.load %arg12[%c2_335, %c0_336] : memref<256x64xf32, #tpu.memory_space<vmem>>, vector<1x64xf32>
    %c4_337 = arith.constant 4 : index
    %c0_338 = arith.constant 0 : index
    %416 = vector.load %arg12[%c4_337, %c0_338] : memref<256x64xf32, #tpu.memory_space<vmem>>, vector<1x64xf32>
    %417 = arith.maximumf %415, %416 : vector<1x64xf32>
    %c0_339 = arith.constant 0 : index
    %c0_340 = arith.constant 0 : index
    %418 = vector.load %arg13[%c0_339, %c0_340] : memref<2x64xf32, #tpu.memory_space<vmem>>, vector<1x64xf32>
    tpu.vector_store %arg13[%c0_339, %c0_340], %417 {strides = array<i32>} : memref<2x64xf32, #tpu.memory_space<vmem>>, vector<1x64xf32>,
    %c10_341 = arith.constant 10 : index
    %c0_342 = arith.constant 0 : index
    %419 = vector.load %arg12[%c10_341, %c0_342] : memref<256x64xf32, #tpu.memory_space<vmem>>, vector<1x64xf32>
    %c12_343 = arith.constant 12 : index
    %c0_344 = arith.constant 0 : index
    %420 = vector.load %arg12[%c12_343, %c0_344] : memref<256x64xf32, #tpu.memory_space<vmem>>, vector<1x64xf32>
    %421 = arith.maximumf %419, %420 : vector<1x64xf32>
    %c1_345 = arith.constant 1 : index
    %c0_346 = arith.constant 0 : index
    %422 = vector.load %arg13[%c1_345, %c0_346] : memref<2x64xf32, #tpu.memory_space<vmem>>, vector<1x64xf32>
    tpu.vector_store %arg13[%c1_345, %c0_346], %421 {strides = array<i32>} : memref<2x64xf32, #tpu.memory_space<vmem>>, vector<1x64xf32>,
    %c0_347 = arith.constant 0 : index
    %c0_348 = arith.constant 0 : index
    %423 = vector.load %arg13[%c0_347, %c0_348] : memref<2x64xf32, #tpu.memory_space<vmem>>, vector<2x64xf32>
    %424 = arith.truncf %423 : vector<2x64xf32> to vector<2x64xbf16>
    %c0_349 = arith.constant 0 : index
    %c0_350 = arith.constant 0 : index
    %425 = vector.load %arg5[%c0_349, %c0_350] : memref<64x128xbf16, #tpu.memory_space<vmem>>, vector<64x128xbf16>
    %cst_351 = arith.constant dense<0.000000e+00> : vector<2x128xf32>
    %426 = tpu.matmul %424, %425, %cst_351 {dimension_numbers = #tpu.dot_dimension_numbers<[1], [0], [0], [1], [0, 0, 1, 1], [], []>} : vector<2x64xbf16>, vector<64x128xbf16>, vector<2x128xf32> -> vector<2x128xf32>
    %c0_352 = arith.constant 0 : index
    %c0_353 = arith.constant 0 : index
    %427 = vector.load %arg6[%c0_352, %c0_353] : memref<1x128xf32, #tpu.memory_space<vmem>>, vector<1x128xf32>
    %428 = vector.broadcast %427 : vector<1x128xf32> to vector<2x128xf32>
    %429 = arith.addf %426, %428 : vector<2x128xf32>
    %c0_354 = arith.constant 0 : index
    %c0_355 = arith.constant 0 : index
    %430 = vector.load %arg7[%c0_354, %c0_355] : memref<2x128xf32, #tpu.memory_space<vmem>>, vector<2x128xf32>
    tpu.vector_store %arg7[%c0_354, %c0_355], %429 {strides = array<i32>} : memref<2x128xf32, #tpu.memory_space<vmem>>, vector<2x128xf32>,
    return
  }
}

</mosaic_0001>

<llo_original>
// kernel: classifier_forward.1
$region0: #{classifier_forward.1}
  #allocation0 [shape = 'u32[]', space=smem, size = 0x4, offset = 0x4, fixed_abs, tag = 'smem constant byte address 0x4 - core index']
  #allocation1 [shape = 'u32[144,128]{1,0:T(1,128)}', space=vmem, size = 0x12000, scoped, tag = 'internal scratch']
  #allocation2 [shape = 'f32[232,64]{1,0:T(8,128)}', space=vmem, size = 0x1d000, scoped, tag = 'scratch operand']
  #allocation3 [shape = 'f32[88,64]{1,0:T(8,128)}', space=vmem, size = 0xb000, scoped, tag = 'scratch operand']
  #allocation4 [shape = 'f32[48,64]{1,0:T(8,128)}', space=vmem, size = 0x6000, scoped, tag = 'scratch operand']
  #allocation5 [shape = 'f32[512,64]{1,0:T(8,128)}', space=vmem, size = 0x40000, scoped, tag = 'scratch operand']
  #allocation6 [shape = 'f32[256,64]{1,0:T(8,128)}', space=vmem, size = 0x20000, scoped, tag = 'scratch operand']
  #allocation7 [shape = 'f32[2,64]{1,0:T(2,128)}', space=vmem, size = 0x400, scoped, tag = 'scratch operand']
  %s0 = inlined_call_operand.vmem [shape: bf16[512,36], index: 0, kind: input, shape index: {}]
  %s1 = inlined_call_operand.vmem [shape: bf16[36,64], index: 1, kind: input, shape index: {}]
  %s2 = inlined_call_operand.vmem [shape: bf16[27,64,64], index: 2, kind: input, shape index: {}]
  %s3 = inlined_call_operand.vmem [shape: f32[8,64], index: 3, kind: input, shape index: {}]
  %s4 = inlined_call_operand.vmem [shape: f32[304,1], index: 4, kind: input, shape index: {}]
  %s5 = inlined_call_operand.vmem [shape: bf16[64,128], index: 5, kind: input, shape index: {}]
  %s6 = inlined_call_operand.vmem [shape: f32[1,128], index: 6, kind: input, shape index: {}]
  %s7 = inlined_call_operand.hbm [shape: f32[2,128], index: 7, kind: output, shape index: {}]
  %s8 = sld [smem:[#allocation0]]
  $region38: #{classifier_forward.1} parent=0
    _
  %s10 = ssub.s32 1, %s8
  %s11 = scalar_select 0, %s10, %s8
  $region1: #{classifier_forward.1} parent=0
    #allocation8 [shape = 'u8[1024]{0}', space=vmem, size = 0x400, scoped, tag = 'output window, operand 0, single buffered']
    #allocation9 [shape = 's32[1]{0}', space=sflag, size = 0x4, scoped, tag = 'scoped memory for classifier_forward.1']
    %12 = vsyncpa [#allocation9], 0
    // Predicated region
    $region2: #{classifier_forward.1} parent=1 // pred_check
      _
    $region3: #{classifier_forward.1} parent=1 // pred_check_branch
      %14 = sbr.rel (0) target = $region5
    $region4: #{classifier_forward.1} parent=1 // pred_region
      _
    $region5: #{classifier_forward.1} parent=1 // pred_fallthru
      _
    // Predicated region
    $region6: #{classifier_forward.1} parent=1 // pred_check
      _
    $region7: #{classifier_forward.1} parent=1 // pred_check_branch
      %16 = sbr.rel (0) target = $region9
    $region8: #{classifier_forward.1} parent=1 // pred_region
      _
    $region9: #{classifier_forward.1} parent=1 // pred_fallthru
      _
    // Predicated region
    $region10: #{classifier_forward.1} parent=1 // pred_check
      _
    $region11: #{classifier_forward.1} parent=1 // pred_check_branch
      %18 = sbr.rel (0) target = $region13
    $region12: #{classifier_forward.1} parent=1 // pred_region
      _
    $region13: #{classifier_forward.1} parent=1 // pred_fallthru
      _
    // Predicated region
    $region14: #{classifier_forward.1} parent=1 // pred_check
      _
    $region15: #{classifier_forward.1} parent=1 // pred_check_branch
      %20 = sbr.rel (0) target = $region17
    $region16: #{classifier_forward.1} parent=1 // pred_region
      _
    $region17: #{classifier_forward.1} parent=1 // pred_fallthru
      _
    // Predicated region
    $region18: #{classifier_forward.1} parent=1 // pred_check
      _
    $region19: #{classifier_forward.1} parent=1 // pred_check_branch
      %22 = sbr.rel (0) target = $region21
    $region20: #{classifier_forward.1} parent=1 // pred_region
      _
    $region21: #{classifier_forward.1} parent=1 // pred_fallthru
      _
    // Predicated region
    $region22: #{classifier_forward.1} parent=1 // pred_check
      _
    $region23: #{classifier_forward.1} parent=1 // pred_check_branch
      %24 = sbr.rel (0) target = $region25
    $region24: #{classifier_forward.1} parent=1 // pred_region
      _
    $region25: #{classifier_forward.1} parent=1 // pred_fallthru
      _
    // Predicated region
    $region26: #{classifier_forward.1} parent=1 // pred_check
      _
    $region27: #{classifier_forward.1} parent=1 // pred_check_branch
      %26 = sbr.rel (0) target = $region29
    $region28: #{classifier_forward.1} parent=1 // pred_region
      _
    $region29: #{classifier_forward.1} parent=1 // pred_fallthru
      _
    %vm28 = vcmask 523264
    %29 = vst.msk [vmem:[#allocation2] sm:$0xff] %vm28, 0.0
    %30 = vst.msk [vmem:[#allocation2 + $0x8] sm:$0xff] %vm28, 0.0
    %31 = vst.msk [vmem:[#allocation2 + $0x10] sm:$0xff] %vm28, 0.0
    %32 = vst.msk [vmem:[#allocation2 + $0x18] sm:$0xff] %vm28, 0.0
    %33 = vst.msk [vmem:[#allocation2 + $0x20] sm:$0xff] %vm28, 0.0
    %34 = vst.msk [vmem:[#allocation2 + $0x28] sm:$0xff] %vm28, 0.0
    %35 = vst.msk [vmem:[#allocation2 + $0x30] sm:$0xff] %vm28, 0.0
    %36 = vst.msk [vmem:[#allocation2 + $0x38] sm:$0xff] %vm28, 0.0
    %37 = vst.msk [vmem:[#allocation2 + $0x40] sm:$0xff] %vm28, 0.0
    %38 = vst.msk [vmem:[#allocation2 + $0x48] sm:$0xff] %vm28, 0.0
    %39 = vst.msk [vmem:[#allocation2 + $0x50] sm:$0xff] %vm28, 0.0
    %40 = vst.msk [vmem:[#allocation2 + $0x58] sm:$0xff] %vm28, 0.0
    %41 = vst.msk [vmem:[#allocation2 + $0x60] sm:$0xff] %vm28, 0.0
    %42 = vst.msk [vmem:[#allocation2 + $0x68] sm:$0xff] %vm28, 0.0
    %43 = vst.msk [vmem:[#allocation2 + $0x70] sm:$0xff] %vm28, 0.0
    %44 = vst.msk [vmem:[#allocation2 + $0x78] sm:$0xff] %vm28, 0.0
    %45 = vst.msk [vmem:[#allocation2 + $0x80] sm:$0xff] %vm28, 0.0
    %46 = vst.msk [vmem:[#allocation2 + $0x88] sm:$0xff] %vm28, 0.0
    %47 = vst.msk [vmem:[#allocation2 + $0x90] sm:$0xff] %vm28, 0.0
    %48 = vst.msk [vmem:[#allocation2 + $0x98] sm:$0xff] %vm28, 0.0
    %49 = vst.msk [vmem:[#allocation2 + $0xa0] sm:$0xff] %vm28, 0.0
    %50 = vst.msk [vmem:[#allocation2 + $0xa8] sm:$0xff] %vm28, 0.0
    %51 = vst.msk [vmem:[#allocation2 + $0xb0] sm:$0xff] %vm28, 0.0
    %52 = vst.msk [vmem:[#allocation2 + $0xb8] sm:$0xff] %vm28, 0.0
    %53 = vst.msk [vmem:[#allocation2 + $0xc0] sm:$0xff] %vm28, 0.0
    %54 = vst.msk [vmem:[#allocation2 + $0xc8] sm:$0xff] %vm28, 0.0
    %55 = vst.msk [vmem:[#allocation2 + $0xd0] sm:$0xff] %vm28, 0.0
    %56 = vst.msk [vmem:[#allocation2 + $0xd8] sm:$0xff] %vm28, 0.0
    %57 = vst.msk [vmem:[#allocation2 + $0xe0] sm:$0xff] %vm28, 0.0
    %58 = vst.msk [vmem:[#allocation3] sm:$0xff] %vm28, 0.0
    %59 = vst.msk [vmem:[#allocation3 + $0x8] sm:$0xff] %vm28, 0.0
    %60 = vst.msk [vmem:[#allocation3 + $0x10] sm:$0xff] %vm28, 0.0
    %61 = vst.msk [vmem:[#allocation3 + $0x18] sm:$0xff] %vm28, 0.0
    %62 = vst.msk [vmem:[#allocation3 + $0x20] sm:$0xff] %vm28, 0.0
    %63 = vst.msk [vmem:[#allocation3 + $0x28] sm:$0xff] %vm28, 0.0
    %64 = vst.msk [vmem:[#allocation3 + $0x30] sm:$0xff] %vm28, 0.0
    %65 = vst.msk [vmem:[#allocation3 + $0x38] sm:$0xff] %vm28, 0.0
    %66 = vst.msk [vmem:[#allocation3 + $0x40] sm:$0xff] %vm28, 0.0
    %67 = vst.msk [vmem:[#allocation3 + $0x48] sm:$0xff] %vm28, 0.0
    %68 = vst.msk [vmem:[#allocation3 + $0x50] sm:$0xff] %vm28, 0.0
    %69 = vst.msk [vmem:[#allocation4] sm:$0xff] %vm28, 0.0
    %70 = vst.msk [vmem:[#allocation4 + $0x8] sm:$0xff] %vm28, 0.0
    %71 = vst.msk [vmem:[#allocation4 + $0x10] sm:$0xff] %vm28, 0.0
    %72 = vst.msk [vmem:[#allocation4 + $0x18] sm:$0xff] %vm28, 0.0
    %73 = vst.msk [vmem:[#allocation4 + $0x20] sm:$0xff] %vm28, 0.0
    %74 = vst.msk [vmem:[#allocation4 + $0x28] sm:$0xff] %vm28, 0.0
    %v75 = vld [vmem:[%s0] sm:$0xf]
    %v76 = vld [vmem:[%s0 + $0x4] sm:$0xf]
    %v77 = vld [vmem:[%s0 + $0x8] sm:$0xf]
    %v78 = vld [vmem:[%s0 + $0xc] sm:$0xf]
    %v79 = vld [vmem:[%s0 + $0x10] sm:$0xf]
    %v80 = vld [vmem:[%s0 + $0x14] sm:$0xf]
    %v81 = vld [vmem:[%s0 + $0x18] sm:$0xf]
    %v82 = vld [vmem:[%s0 + $0x1c] sm:$0xf]
    %v83 = vld [vmem:[%s0 + $0x20] sm:$0xf]
    %v84 = vld [vmem:[%s0 + $0x24] sm:$0xf]
    %v85 = vld [vmem:[%s0 + $0x28] sm:$0xf]
    %v86 = vld [vmem:[%s0 + $0x2c] sm:$0xf]
    %v87 = vld [vmem:[%s0 + $0x30] sm:$0xf]
    %v88 = vld [vmem:[%s0 + $0x34] sm:$0xf]
    %v89 = vld [vmem:[%s0 + $0x38] sm:$0xf]
    %v90 = vld [vmem:[%s0 + $0x3c] sm:$0xf]
    %v91 = vld [vmem:[%s0 + $0x40] sm:$0xf]
    %v92 = vld [vmem:[%s0 + $0x44] sm:$0xf]
    %v93 = vld [vmem:[%s0 + $0x48] sm:$0xf]
    %v94 = vld [vmem:[%s0 + $0x4c] sm:$0xf]
    %v95 = vld [vmem:[%s0 + $0x50] sm:$0xf]
    %v96 = vld [vmem:[%s0 + $0x54] sm:$0xf]
    %v97 = vld [vmem:[%s0 + $0x58] sm:$0xf]
    %v98 = vld [vmem:[%s0 + $0x5c] sm:$0xf]
    %v99 = vld [vmem:[%s0 + $0x60] sm:$0xf]
    %v100 = vld [vmem:[%s0 + $0x64] sm:$0xf]
    %v101 = vld [vmem:[%s0 + $0x68] sm:$0xf]
    %v102 = vld [vmem:[%s0 + $0x6c] sm:$0xf]
    %v103 = vld [vmem:[%s0 + $0x70] sm:$0xf]
    %v104 = vld [vmem:[%s0 + $0x74] sm:$0xf]
    %v105 = vld [vmem:[%s0 + $0x78] sm:$0xf]
    %v106 = vld [vmem:[%s0 + $0x7c] sm:$0xf]
    %v107 = vld [vmem:[%s0 + $0x80] sm:$0xf]
    %v108 = vld [vmem:[%s0 + $0x84] sm:$0xf]
    %v109 = vld [vmem:[%s0 + $0x88] sm:$0xf]
    %v110 = vld [vmem:[%s0 + $0x8c] sm:$0xf]
    %v111 = vld [vmem:[%s0 + $0x90] sm:$0xf]
    %v112 = vld [vmem:[%s0 + $0x94] sm:$0xf]
    %v113 = vld [vmem:[%s0 + $0x98] sm:$0xf]
    %v114 = vld [vmem:[%s0 + $0x9c] sm:$0xf]
    %v115 = vld [vmem:[%s0 + $0xa0] sm:$0xf]
    %v116 = vld [vmem:[%s0 + $0xa4] sm:$0xf]
    %v117 = vld [vmem:[%s0 + $0xa8] sm:$0xf]
    %v118 = vld [vmem:[%s0 + $0xac] sm:$0xf]
    %v119 = vld [vmem:[%s0 + $0xb0] sm:$0xf]
    %v120 = vld [vmem:[%s0 + $0xb4] sm:$0xf]
    %v121 = vld [vmem:[%s0 + $0xb8] sm:$0xf]
    %v122 = vld [vmem:[%s0 + $0xbc] sm:$0xf]
    %v123 = vld [vmem:[%s0 + $0xc0] sm:$0xf]
    %v124 = vld [vmem:[%s0 + $0xc4] sm:$0xf]
    %v125 = vld [vmem:[%s0 + $0xc8] sm:$0xf]
    %v126 = vld [vmem:[%s0 + $0xcc] sm:$0xf]
    %v127 = vld [vmem:[%s0 + $0xd0] sm:$0xf]
    %v128 = vld [vmem:[%s0 + $0xd4] sm:$0xf]
    %v129 = vld [vmem:[%s0 + $0xd8] sm:$0xf]
    %v130 = vld [vmem:[%s0 + $0xdc] sm:$0xf]
    %v131 = vld [vmem:[%s0 + $0xe0] sm:$0xf]
    %v132 = vld [vmem:[%s0 + $0xe4] sm:$0xf]
    %v133 = vld [vmem:[%s0 + $0xe8] sm:$0xf]
    %v134 = vld [vmem:[%s0 + $0xec] sm:$0xf]
    %v135 = vld [vmem:[%s0 + $0xf0] sm:$0xf]
    %v136 = vld [vmem:[%s0 + $0xf4] sm:$0xf]
    %v137 = vld [vmem:[%s0 + $0xf8] sm:$0xf]
    %v138 = vld [vmem:[%s0 + $0xfc] sm:$0xf]
    %v139 = vld [vmem:[%s1] sm:$0xf]
    %v140 = vld [vmem:[%s1 + $0x4] sm:$0xf]
    %v141 = vld [vmem:[%s1 + $0x8] sm:$0xf]
    %v142 = vld [vmem:[%s1 + $0xc] sm:$0xf]
    %v143 = vld [vmem:[%s1 + $0x10] sm:$0x3]
    %v208 = vunpack.c.l.b16 %v75
    %v209 = vunpack.c.l.b16 %v76
    %v210 = vunpack.c.l.b16 %v77
    %v211 = vunpack.c.l.b16 %v78
    %v212 = vunpack.c.l.b16 %v79
    %v213 = vunpack.c.l.b16 %v80
    %v214 = vunpack.c.l.b16 %v81
    %v215 = vunpack.c.l.b16 %v82
    %v216 = vunpack.c.l.b16 %v83
    %v217 = vunpack.c.l.b16 %v84
    %v218 = vunpack.c.l.b16 %v85
    %v219 = vunpack.c.l.b16 %v86
    %v220 = vunpack.c.l.b16 %v87
    %v221 = vunpack.c.l.b16 %v88
    %v222 = vunpack.c.l.b16 %v89
    %v223 = vunpack.c.l.b16 %v90
    %v224 = vunpack.c.l.b16 %v91
    %v225 = vunpack.c.l.b16 %v92
    %v226 = vunpack.c.l.b16 %v93
    %v227 = vunpack.c.l.b16 %v94
    %v228 = vunpack.c.l.b16 %v95
    %v229 = vunpack.c.l.b16 %v96
    %v230 = vunpack.c.l.b16 %v97
    %v231 = vunpack.c.l.b16 %v98
    %v232 = vunpack.c.l.b16 %v99
    %v233 = vunpack.c.l.b16 %v100
    %v234 = vunpack.c.l.b16 %v101
    %v235 = vunpack.c.l.b16 %v102
    %v236 = vunpack.c.l.b16 %v103
    %v237 = vunpack.c.l.b16 %v104
    %v238 = vunpack.c.l.b16 %v105
    %v239 = vunpack.c.l.b16 %v106
    %v240 = vunpack.c.l.b16 %v107
    %v241 = vunpack.c.l.b16 %v108
    %v242 = vunpack.c.l.b16 %v109
    %v243 = vunpack.c.l.b16 %v110
    %v244 = vunpack.c.l.b16 %v111
    %v245 = vunpack.c.l.b16 %v112
    %v246 = vunpack.c.l.b16 %v113
    %v247 = vunpack.c.l.b16 %v114
    %v248 = vunpack.c.l.b16 %v115
    %v249 = vunpack.c.l.b16 %v116
    %v250 = vunpack.c.l.b16 %v117
    %v251 = vunpack.c.l.b16 %v118
    %v252 = vunpack.c.l.b16 %v119
    %v253 = vunpack.c.l.b16 %v120
    %v254 = vunpack.c.l.b16 %v121
    %v255 = vunpack.c.l.b16 %v122
    %v256 = vunpack.c.l.b16 %v123
    %v257 = vunpack.c.l.b16 %v124
    %v258 = vunpack.c.l.b16 %v125
    %v259 = vunpack.c.l.b16 %v126
    %v260 = vunpack.c.l.b16 %v127
    %v261 = vunpack.c.l.b16 %v128
    %v262 = vunpack.c.l.b16 %v129
    %v263 = vunpack.c.l.b16 %v130
    %v264 = vunpack.c.l.b16 %v131
    %v265 = vunpack.c.l.b16 %v132
    %v266 = vunpack.c.l.b16 %v133
    %v267 = vunpack.c.l.b16 %v134
    %v268 = vunpack.c.l.b16 %v135
    %v269 = vunpack.c.l.b16 %v136
    %v270 = vunpack.c.l.b16 %v137
    %v271 = vunpack.c.l.b16 %v138
    %v272 = vpack.c.b16 %v209, %v208
    %v273 = vpack.c.b16 %v211, %v210
    %v274 = vpack.c.b16 %v213, %v212
    %v275 = vpack.c.b16 %v215, %v214
    %v276 = vpack.c.b16 %v217, %v216
    %v277 = vpack.c.b16 %v219, %v218
    %v278 = vpack.c.b16 %v221, %v220
    %v279 = vpack.c.b16 %v223, %v222
    %v280 = vpack.c.b16 %v225, %v224
    %v281 = vpack.c.b16 %v227, %v226
    %v282 = vpack.c.b16 %v229, %v228
    %v283 = vpack.c.b16 %v231, %v230
    %v284 = vpack.c.b16 %v233, %v232
    %v285 = vpack.c.b16 %v235, %v234
    %v286 = vpack.c.b16 %v237, %v236
    %v287 = vpack.c.b16 %v239, %v238
    %v288 = vpack.c.b16 %v241, %v240
    %v289 = vpack.c.b16 %v243, %v242
    %v290 = vpack.c.b16 %v245, %v244
    %v291 = vpack.c.b16 %v247, %v246
    %v292 = vpack.c.b16 %v249, %v248
    %v293 = vpack.c.b16 %v251, %v250
    %v294 = vpack.c.b16 %v253, %v252
    %v295 = vpack.c.b16 %v255, %v254
    %v296 = vpack.c.b16 %v257, %v256
    %v297 = vpack.c.b16 %v259, %v258
    %v298 = vpack.c.b16 %v261, %v260
    %v299 = vpack.c.b16 %v263, %v262
    %v300 = vpack.c.b16 %v265, %v264
    %v301 = vpack.c.b16 %v267, %v266
    %v302 = vpack.c.b16 %v269, %v268
    %v303 = vpack.c.b16 %v271, %v270
    %v309 = vunpack.c.l.b16 %v139
    %v310 = vunpack.c.l.b16 %v140
    %v311 = vunpack.c.l.b16 %v141
    %v312 = vunpack.c.l.b16 %v142
    %v313 = vunpack.c.l.b16 %v143
    %v314 = vpack.c.b16 %v310, %v309
    %v315 = vpack.c.b16 %v312, %v311
    %v316 = vpack.c.b16 %v313, %v313
    %vm319 = vcmask 293888
    %v321 = vsel %vm319, %v272, 0
    %v324 = vsel %vm319, %v273, 0
    %v327 = vsel %vm319, %v274, 0
    %v330 = vsel %vm319, %v275, 0
    %v333 = vsel %vm319, %v276, 0
    %v336 = vsel %vm319, %v277, 0
    %v339 = vsel %vm319, %v278, 0
    %v342 = vsel %vm319, %v279, 0
    %v345 = vsel %vm319, %v280, 0
    %v348 = vsel %vm319, %v281, 0
    %v351 = vsel %vm319, %v282, 0
    %v354 = vsel %vm319, %v283, 0
    %v357 = vsel %vm319, %v284, 0
    %v360 = vsel %vm319, %v285, 0
    %v363 = vsel %vm319, %v286, 0
    %v366 = vsel %vm319, %v287, 0
    %v369 = vsel %vm319, %v288, 0
    %v372 = vsel %vm319, %v289, 0
    %v375 = vsel %vm319, %v290, 0
    %v378 = vsel %vm319, %v291, 0
    %v381 = vsel %vm319, %v292, 0
    %v384 = vsel %vm319, %v293, 0
    %v387 = vsel %vm319, %v294, 0
    %v390 = vsel %vm319, %v295, 0
    %v393 = vsel %vm319, %v296, 0
    %v396 = vsel %vm319, %v297, 0
    %v399 = vsel %vm319, %v298, 0
    %v402 = vsel %vm319, %v299, 0
    %v405 = vsel %vm319, %v300, 0
    %v408 = vsel %vm319, %v301, 0
    %v411 = vsel %vm319, %v302, 0
    %v414 = vsel %vm319, %v303, 0
    %vm416 = vcmask 1041408
    %v418 = vsel %vm416, %v316, 0
    %420 = vmatprep.subr.bf16.mxu0 0
    %421 = vmatpush1.bf16.msra.mxu0 0
    %422 = vmatprep.subr.bf16.mxu0 0
    %423 = vmatpush1.bf16.msra.mxu0 0
    %424 = vmatprep.subr.bf16.mxu0 0
    %425 = vmatpush1.bf16.msra.mxu0 0
    %426 = vmatprep.subr.bf16.mxu0 0
    %427 = vmatpush1.bf16.msra.mxu0 0
    %428 = vmatprep.subr.bf16.mxu0 0
    %429 = vmatpush1.bf16.msra.mxu0 0
    %430 = vmatprep.subr.bf16.mxu0 0
    %431 = vmatpush1.bf16.msra.mxu0 %v418
    %432 = vmatprep.subr.bf16.mxu0 0
    %433 = vmatpush1.bf16.msra.mxu0 %v315
    %434 = vmatprep.subr.bf16.mxu0 0
    %435 = vmatpush1.bf16.msra.mxu0 %v314
    %436 = vmatprep.subr.bf16.mxu0 0
    %437 = vmatpush2.bf16.msra.mxu0 0
    %438 = vmatprep.subr.bf16.mxu0 0
    %439 = vmatpush2.bf16.msra.mxu0 0
    %440 = vmatprep.subr.bf16.mxu0 0
    %441 = vmatpush2.bf16.msra.mxu0 0
    %442 = vmatprep.subr.bf16.mxu0 0
    %443 = vmatpush2.bf16.msra.mxu0 0
    %444 = vmatprep.subr.bf16.mxu0 0
    %445 = vmatpush2.bf16.msra.mxu0 0
    %446 = vmatprep.subr.bf16.mxu0 0
    %447 = vmatpush2.bf16.msra.mxu0 0
    %448 = vmatprep.subr.bf16.mxu0 0
    %449 = vmatpush2.bf16.msra.mxu0 0
    %450 = vmatprep.subr.bf16.mxu0 0
    %451 = vmatpush2.bf16.msra.mxu0 0
    %452 = vmatprep.mubr.bf16.mxu0 0
    %453 = vmatmul.mubr.bf16.gmra.mxu0 %v321
    %v454 = vpop.f32.mrf.mxu0
    %v455 = vadd.f32 0.0, %v454
    %v456 = vpop.f32.mrf.mxu0
    %v457 = vpop.f32.mrf.mxu0
    %v458 = vadd.f32 0.0, %v457
    %v459 = vpop.f32.mrf.mxu0
    %460 = vmatprep.mubr.bf16.mxu0 0
    %461 = vmatmul.mubr.bf16.gmra.mxu0 %v324
    %v462 = vpop.f32.mrf.mxu0
    %v463 = vadd.f32 0.0, %v462
    %v464 = vpop.f32.mrf.mxu0
    %v465 = vpop.f32.mrf.mxu0
    %v466 = vadd.f32 0.0, %v465
    %v467 = vpop.f32.mrf.mxu0
    %468 = vmatprep.mubr.bf16.mxu0 0
    %469 = vmatmul.mubr.bf16.gmra.mxu0 %v327
    %v470 = vpop.f32.mrf.mxu0
    %v471 = vadd.f32 0.0, %v470
    %v472 = vpop.f32.mrf.mxu0
    %v473 = vpop.f32.mrf.mxu0
    %v474 = vadd.f32 0.0, %v473
    %v475 = vpop.f32.mrf.mxu0
    %476 = vmatprep.mubr.bf16.mxu0 0
    %477 = vmatmul.mubr.bf16.gmra.mxu0 %v330
    %v478 = vpop.f32.mrf.mxu0
    %v479 = vadd.f32 0.0, %v478
    %v480 = vpop.f32.mrf.mxu0
    %v481 = vpop.f32.mrf.mxu0
    %v482 = vadd.f32 0.0, %v481
    %v483 = vpop.f32.mrf.mxu0
    %484 = vmatprep.mubr.bf16.mxu0 0
    %485 = vmatmul.mubr.bf16.gmra.mxu0 %v333
    %v486 = vpop.f32.mrf.mxu0
    %v487 = vadd.f32 0.0, %v486
    %v488 = vpop.f32.mrf.mxu0
    %v489 = vpop.f32.mrf.mxu0
    %v490 = vadd.f32 0.0, %v489
    %v491 = vpop.f32.mrf.mxu0
    %492 = vmatprep.mubr.bf16.mxu0 0
    %493 = vmatmul.mubr.bf16.gmra.mxu0 %v336
    %v494 = vpop.f32.mrf.mxu0
    %v495 = vadd.f32 0.0, %v494
    %v496 = vpop.f32.mrf.mxu0
    %v497 = vpop.f32.mrf.mxu0
    %v498 = vadd.f32 0.0, %v497
    %v499 = vpop.f32.mrf.mxu0
    %500 = vmatprep.mubr.bf16.mxu0 0
    %501 = vmatmul.mubr.bf16.gmra.mxu0 %v339
    %v502 = vpop.f32.mrf.mxu0
    %v503 = vadd.f32 0.0, %v502
    %v504 = vpop.f32.mrf.mxu0
    %v505 = vpop.f32.mrf.mxu0
    %v506 = vadd.f32 0.0, %v505
    %v507 = vpop.f32.mrf.mxu0
    %508 = vmatprep.mubr.bf16.mxu0 0
    %509 = vmatmul.mubr.bf16.gmra.mxu0 %v342
    %v510 = vpop.f32.mrf.mxu0
    %v511 = vadd.f32 0.0, %v510
    %v512 = vpop.f32.mrf.mxu0
    %v513 = vpop.f32.mrf.mxu0
    %v514 = vadd.f32 0.0, %v513
    %v515 = vpop.f32.mrf.mxu0
    %516 = vmatprep.mubr.bf16.mxu0 0
    %517 = vmatmul.mubr.bf16.gmra.mxu0 %v345
    %v518 = vpop.f32.mrf.mxu0
    %v519 = vadd.f32 0.0, %v518
    %v520 = vpop.f32.mrf.mxu0
    %v521 = vpop.f32.mrf.mxu0
    %v522 = vadd.f32 0.0, %v521
    %v523 = vpop.f32.mrf.mxu0
    %524 = vmatprep.mubr.bf16.mxu0 0
    %525 = vmatmul.mubr.bf16.gmra.mxu0 %v348
    %v526 = vpop.f32.mrf.mxu0
    %v527 = vadd.f32 0.0, %v526
    %v528 = vpop.f32.mrf.mxu0
    %v529 = vpop.f32.mrf.mxu0
    %v530 = vadd.f32 0.0, %v529
    %v531 = vpop.f32.mrf.mxu0
    %532 = vmatprep.mubr.bf16.mxu0 0
    %533 = vmatmul.mubr.bf16.gmra.mxu0 %v351
    %v534 = vpop.f32.mrf.mxu0
    %v535 = vadd.f32 0.0, %v534
    %v536 = vpop.f32.mrf.mxu0
    %v537 = vpop.f32.mrf.mxu0
    %v538 = vadd.f32 0.0, %v537
    %v539 = vpop.f32.mrf.mxu0
    %540 = vmatprep.mubr.bf16.mxu0 0
    %541 = vmatmul.mubr.bf16.gmra.mxu0 %v354
    %v542 = vpop.f32.mrf.mxu0
    %v543 = vadd.f32 0.0, %v542
    %v544 = vpop.f32.mrf.mxu0
    %v545 = vpop.f32.mrf.mxu0
    %v546 = vadd.f32 0.0, %v545
    %v547 = vpop.f32.mrf.mxu0
    %548 = vmatprep.mubr.bf16.mxu0 0
    %549 = vmatmul.mubr.bf16.gmra.mxu0 %v357
    %v550 = vpop.f32.mrf.mxu0
    %v551 = vadd.f32 0.0, %v550
    %v552 = vpop.f32.mrf.mxu0
    %v553 = vpop.f32.mrf.mxu0
    %v554 = vadd.f32 0.0, %v553
    %v555 = vpop.f32.mrf.mxu0
    %556 = vmatprep.mubr.bf16.mxu0 0
    %557 = vmatmul.mubr.bf16.gmra.mxu0 %v360
    %v558 = vpop.f32.mrf.mxu0
    %v559 = vadd.f32 0.0, %v558
    %v560 = vpop.f32.mrf.mxu0
    %v561 = vpop.f32.mrf.mxu0
    %v562 = vadd.f32 0.0, %v561
    %v563 = vpop.f32.mrf.mxu0
    %564 = vmatprep.mubr.bf16.mxu0 0
    %565 = vmatmul.mubr.bf16.gmra.mxu0 %v363
    %v566 = vpop.f32.mrf.mxu0
    %v567 = vadd.f32 0.0, %v566
    %v568 = vpop.f32.mrf.mxu0
    %v569 = vpop.f32.mrf.mxu0
    %v570 = vadd.f32 0.0, %v569
    %v571 = vpop.f32.mrf.mxu0
    %572 = vmatprep.mubr.bf16.mxu0 0
    %573 = vmatmul.mubr.bf16.gmra.mxu0 %v366
    %v574 = vpop.f32.mrf.mxu0
    %v575 = vadd.f32 0.0, %v574
    %v576 = vpop.f32.mrf.mxu0
    %v577 = vpop.f32.mrf.mxu0
    %v578 = vadd.f32 0.0, %v577
    %v579 = vpop.f32.mrf.mxu0
    %580 = vmatprep.mubr.bf16.mxu0 0
    %581 = vmatmul.mubr.bf16.gmra.mxu0 %v369
    %v582 = vpop.f32.mrf.mxu0
    %v583 = vadd.f32 0.0, %v582
    %v584 = vpop.f32.mrf.mxu0
    %v585 = vpop.f32.mrf.mxu0
    %v586 = vadd.f32 0.0, %v585
    %v587 = vpop.f32.mrf.mxu0
    %588 = vmatprep.mubr.bf16.mxu0 0
    %589 = vmatmul.mubr.bf16.gmra.mxu0 %v372
    %v590 = vpop.f32.mrf.mxu0
    %v591 = vadd.f32 0.0, %v590
    %v592 = vpop.f32.mrf.mxu0
    %v593 = vpop.f32.mrf.mxu0
    %v594 = vadd.f32 0.0, %v593
    %v595 = vpop.f32.mrf.mxu0
    %596 = vmatprep.mubr.bf16.mxu0 0
    %597 = vmatmul.mubr.bf16.gmra.mxu0 %v375
    %v598 = vpop.f32.mrf.mxu0
    %v599 = vadd.f32 0.0, %v598
    %v600 = vpop.f32.mrf.mxu0
    %v601 = vpop.f32.mrf.mxu0
    %v602 = vadd.f32 0.0, %v601
    %v603 = vpop.f32.mrf.mxu0
    %604 = vmatprep.mubr.bf16.mxu0 0
    %605 = vmatmul.mubr.bf16.gmra.mxu0 %v378
    %v606 = vpop.f32.mrf.mxu0
    %v607 = vadd.f32 0.0, %v606
    %v608 = vpop.f32.mrf.mxu0
    %v609 = vpop.f32.mrf.mxu0
    %v610 = vadd.f32 0.0, %v609
    %v611 = vpop.f32.mrf.mxu0
    %612 = vmatprep.mubr.bf16.mxu0 0
    %613 = vmatmul.mubr.bf16.gmra.mxu0 %v381
    %v614 = vpop.f32.mrf.mxu0
    %v615 = vadd.f32 0.0, %v614
    %v616 = vpop.f32.mrf.mxu0
    %v617 = vpop.f32.mrf.mxu0
    %v618 = vadd.f32 0.0, %v617
    %v619 = vpop.f32.mrf.mxu0
    %620 = vmatprep.mubr.bf16.mxu0 0
    %621 = vmatmul.mubr.bf16.gmra.mxu0 %v384
    %v622 = vpop.f32.mrf.mxu0
    %v623 = vadd.f32 0.0, %v622
    %v624 = vpop.f32.mrf.mxu0
    %v625 = vpop.f32.mrf.mxu0
    %v626 = vadd.f32 0.0, %v625
    %v627 = vpop.f32.mrf.mxu0
    %628 = vmatprep.mubr.bf16.mxu0 0
    %629 = vmatmul.mubr.bf16.gmra.mxu0 %v387
    %v630 = vpop.f32.mrf.mxu0
    %v631 = vadd.f32 0.0, %v630
    %v632 = vpop.f32.mrf.mxu0
    %v633 = vpop.f32.mrf.mxu0
    %v634 = vadd.f32 0.0, %v633
    %v635 = vpop.f32.mrf.mxu0
    %636 = vmatprep.mubr.bf16.mxu0 0
    %637 = vmatmul.mubr.bf16.gmra.mxu0 %v390
    %v638 = vpop.f32.mrf.mxu0
    %v639 = vadd.f32 0.0, %v638
    %v640 = vpop.f32.mrf.mxu0
    %v641 = vpop.f32.mrf.mxu0
    %v642 = vadd.f32 0.0, %v641
    %v643 = vpop.f32.mrf.mxu0
    %644 = vmatprep.mubr.bf16.mxu0 0
    %645 = vmatmul.mubr.bf16.gmra.mxu0 %v393
    %v646 = vpop.f32.mrf.mxu0
    %v647 = vadd.f32 0.0, %v646
    %v648 = vpop.f32.mrf.mxu0
    %v649 = vpop.f32.mrf.mxu0
    %v650 = vadd.f32 0.0, %v649
    %v651 = vpop.f32.mrf.mxu0
    %652 = vmatprep.mubr.bf16.mxu0 0
    %653 = vmatmul.mubr.bf16.gmra.mxu0 %v396
    %v654 = vpop.f32.mrf.mxu0
    %v655 = vadd.f32 0.0, %v654
    %v656 = vpop.f32.mrf.mxu0
    %v657 = vpop.f32.mrf.mxu0
    %v658 = vadd.f32 0.0, %v657
    %v659 = vpop.f32.mrf.mxu0
    %660 = vmatprep.mubr.bf16.mxu0 0
    %661 = vmatmul.mubr.bf16.gmra.mxu0 %v399
    %v662 = vpop.f32.mrf.mxu0
    %v663 = vadd.f32 0.0, %v662
    %v664 = vpop.f32.mrf.mxu0
    %v665 = vpop.f32.mrf.mxu0
    %v666 = vadd.f32 0.0, %v665
    %v667 = vpop.f32.mrf.mxu0
    %668 = vmatprep.mubr.bf16.mxu0 0
    %669 = vmatmul.mubr.bf16.gmra.mxu0 %v402
    %v670 = vpop.f32.mrf.mxu0
    %v671 = vadd.f32 0.0, %v670
    %v672 = vpop.f32.mrf.mxu0
    %v673 = vpop.f32.mrf.mxu0
    %v674 = vadd.f32 0.0, %v673
    %v675 = vpop.f32.mrf.mxu0
    %676 = vmatprep.mubr.bf16.mxu0 0
    %677 = vmatmul.mubr.bf16.gmra.mxu0 %v405
    %v678 = vpop.f32.mrf.mxu0
    %v679 = vadd.f32 0.0, %v678
    %v680 = vpop.f32.mrf.mxu0
    %v681 = vpop.f32.mrf.mxu0
    %v682 = vadd.f32 0.0, %v681
    %v683 = vpop.f32.mrf.mxu0
    %684 = vmatprep.mubr.bf16.mxu0 0
    %685 = vmatmul.mubr.bf16.gmra.mxu0 %v408
    %v686 = vpop.f32.mrf.mxu0
    %v687 = vadd.f32 0.0, %v686
    %v688 = vpop.f32.mrf.mxu0
    %v689 = vpop.f32.mrf.mxu0
    %v690 = vadd.f32 0.0, %v689
    %v691 = vpop.f32.mrf.mxu0
    %692 = vmatprep.mubr.bf16.mxu0 0
    %693 = vmatmul.mubr.bf16.gmra.mxu0 %v411
    %v694 = vpop.f32.mrf.mxu0
    %v695 = vadd.f32 0.0, %v694
    %v696 = vpop.f32.mrf.mxu0
    %v697 = vpop.f32.mrf.mxu0
    %v698 = vadd.f32 0.0, %v697
    %v699 = vpop.f32.mrf.mxu0
    %700 = vmatprep.mubr.bf16.mxu0 0
    %701 = vmatmul.mubr.bf16.gmra.mxu0 %v414
    %v702 = vpop.f32.mrf.mxu0
    %v703 = vadd.f32 0.0, %v702
    %v704 = vpop.f32.mrf.mxu0
    %v705 = vpop.f32.mrf.mxu0
    %v706 = vadd.f32 0.0, %v705
    %v707 = vpop.f32.mrf.mxu0
    %708 = vdwg.mxu0
    %v709 = vld [vmem:[%s3] sm:$0x1]
    %v710 = vld [vmem:[%s3 + $0x4] sm:$0x1]
    %v711 = vsel %vm28, %v455, 0.0
    %v712 = vsel %vm28, %v458, 0.0
    %v713 = vadd.f32 %v711, %v712
    %v714 = vsel %vm28, %v463, 0.0
    %v715 = vadd.f32 %v713, %v714
    %v716 = vsel %vm28, %v466, 0.0
    %v717 = vadd.f32 %v715, %v716
    %v718 = vsel %vm28, %v471, 0.0
    %v719 = vadd.f32 %v717, %v718
    %v720 = vsel %vm28, %v474, 0.0
    %v721 = vadd.f32 %v719, %v720
    %v722 = vsel %vm28, %v479, 0.0
    %v723 = vadd.f32 %v721, %v722
    %v724 = vsel %vm28, %v482, 0.0
    %v725 = vadd.f32 %v723, %v724
    %v726 = vsel %vm28, %v487, 0.0
    %v727 = vadd.f32 %v725, %v726
    %v728 = vsel %vm28, %v490, 0.0
    %v729 = vadd.f32 %v727, %v728
    %v730 = vsel %vm28, %v495, 0.0
    %v731 = vadd.f32 %v729, %v730
    %v732 = vsel %vm28, %v498, 0.0
    %v733 = vadd.f32 %v731, %v732
    %v734 = vsel %vm28, %v503, 0.0
    %v735 = vadd.f32 %v733, %v734
    %v736 = vsel %vm28, %v506, 0.0
    %v737 = vadd.f32 %v735, %v736
    %v738 = vsel %vm28, %v511, 0.0
    %v739 = vadd.f32 %v737, %v738
    %v740 = vsel %vm28, %v514, 0.0
    %v741 = vadd.f32 %v739, %v740
    %v742 = vsel %vm28, %v519, 0.0
    %v743 = vadd.f32 %v741, %v742
    %v744 = vsel %vm28, %v522, 0.0
    %v745 = vadd.f32 %v743, %v744
    %v746 = vsel %vm28, %v527, 0.0
    %v747 = vadd.f32 %v745, %v746
    %v748 = vsel %vm28, %v530, 0.0
    %v749 = vadd.f32 %v747, %v748
    %v750 = vsel %vm28, %v535, 0.0
    %v751 = vadd.f32 %v749, %v750
    %v752 = vsel %vm28, %v538, 0.0
    %v753 = vadd.f32 %v751, %v752
    %v754 = vsel %vm28, %v543, 0.0
    %v755 = vadd.f32 %v753, %v754
    %v756 = vsel %vm28, %v546, 0.0
    %v757 = vadd.f32 %v755, %v756
    %v758 = vsel %vm28, %v551, 0.0
    %v759 = vadd.f32 %v757, %v758
    %v760 = vsel %vm28, %v554, 0.0
    %v761 = vadd.f32 %v759, %v760
    %v762 = vsel %vm28, %v559, 0.0
    %v763 = vadd.f32 %v761, %v762
    %v764 = vsel %vm28, %v562, 0.0
    %v765 = vadd.f32 %v763, %v764
    %v766 = vsel %vm28, %v567, 0.0
    %v767 = vadd.f32 %v765, %v766
    %v768 = vsel %vm28, %v570, 0.0
    %v769 = vadd.f32 %v767, %v768
    %v770 = vsel %vm28, %v575, 0.0
    %v771 = vadd.f32 %v769, %v770
    %v772 = vsel %vm28, %v578, 0.0
    %v773 = vadd.f32 %v771, %v772
    %v774 = vsel %vm28, %v583, 0.0
    %v775 = vadd.f32 %v773, %v774
    %v776 = vsel %vm28, %v586, 0.0
    %v777 = vadd.f32 %v775, %v776
    %v778 = vsel %vm28, %v591, 0.0
    %v779 = vadd.f32 %v777, %v778
    %v780 = vsel %vm28, %v594, 0.0
    %v781 = vadd.f32 %v779, %v780
    %v782 = vsel %vm28, %v599, 0.0
    %v783 = vadd.f32 %v781, %v782
    %v784 = vsel %vm28, %v602, 0.0
    %v785 = vadd.f32 %v783, %v784
    %v786 = vsel %vm28, %v607, 0.0
    %v787 = vadd.f32 %v785, %v786
    %v788 = vsel %vm28, %v610, 0.0
    %v789 = vadd.f32 %v787, %v788
    %v790 = vsel %vm28, %v615, 0.0
    %v791 = vadd.f32 %v789, %v790
    %v792 = vsel %vm28, %v618, 0.0
    %v793 = vadd.f32 %v791, %v792
    %v794 = vsel %vm28, %v623, 0.0
    %v795 = vadd.f32 %v793, %v794
    %v796 = vsel %vm28, %v626, 0.0
    %v797 = vadd.f32 %v795, %v796
    %v798 = vsel %vm28, %v631, 0.0
    %v799 = vadd.f32 %v797, %v798
    %v800 = vsel %vm28, %v634, 0.0
    %v801 = vadd.f32 %v799, %v800
    %v802 = vsel %vm28, %v639, 0.0
    %v803 = vadd.f32 %v801, %v802
    %v804 = vsel %vm28, %v642, 0.0
    %v805 = vadd.f32 %v803, %v804
    %v806 = vsel %vm28, %v647, 0.0
    %v807 = vadd.f32 %v805, %v806
    %v808 = vsel %vm28, %v650, 0.0
    %v809 = vadd.f32 %v807, %v808
    %v810 = vsel %vm28, %v655, 0.0
    %v811 = vadd.f32 %v809, %v810
    %v812 = vsel %vm28, %v658, 0.0
    %v813 = vadd.f32 %v811, %v812
    %v814 = vsel %vm28, %v663, 0.0
    %v815 = vadd.f32 %v813, %v814
    %v816 = vsel %vm28, %v666, 0.0
    %v817 = vadd.f32 %v815, %v816
    %v818 = vsel %vm28, %v671, 0.0
    %v819 = vadd.f32 %v817, %v818
    %v820 = vsel %vm28, %v674, 0.0
    %v821 = vadd.f32 %v819, %v820
    %v822 = vsel %vm28, %v679, 0.0
    %v823 = vadd.f32 %v821, %v822
    %v824 = vsel %vm28, %v682, 0.0
    %v825 = vadd.f32 %v823, %v824
    %v826 = vsel %vm28, %v687, 0.0
    %v827 = vadd.f32 %v825, %v826
    %v828 = vsel %vm28, %v690, 0.0
    %v829 = vadd.f32 %v827, %v828
    %v830 = vsel %vm28, %v695, 0.0
    %v831 = vadd.f32 %v829, %v830
    %v832 = vsel %vm28, %v698, 0.0
    %v833 = vadd.f32 %v831, %v832
    %v834 = vsel %vm28, %v703, 0.0
    %v835 = vadd.f32 %v833, %v834
    %v836 = vsel %vm28, %v706, 0.0
    %v837 = vadd.f32 %v835, %v836
    %v838 = vrot.slane %v837, 4
    %v839 = vadd.f32 %v837, %v838
    %v840 = vrot.slane %v839, 2
    %v841 = vadd.f32 %v839, %v840
    %v842 = vrot.slane %v841, 1
    %v843 = vadd.f32 %v841, %v842
    %v844 = vmul.f32 %v843, 0.001953125
    %v845 = vsub.f32 %v455, %v844
    %v846 = vsub.f32 %v458, %v844
    %v847 = vsub.f32 %v463, %v844
    %v848 = vsub.f32 %v466, %v844
    %v849 = vsub.f32 %v471, %v844
    %v850 = vsub.f32 %v474, %v844
    %v851 = vsub.f32 %v479, %v844
    %v852 = vsub.f32 %v482, %v844
    %v853 = vsub.f32 %v487, %v844
    %v854 = vsub.f32 %v490, %v844
    %v855 = vsub.f32 %v495, %v844
    %v856 = vsub.f32 %v498, %v844
    %v857 = vsub.f32 %v503, %v844
    %v858 = vsub.f32 %v506, %v844
    %v859 = vsub.f32 %v511, %v844
    %v860 = vsub.f32 %v514, %v844
    %v861 = vsub.f32 %v519, %v844
    %v862 = vsub.f32 %v522, %v844
    %v863 = vsub.f32 %v527, %v844
    %v864 = vsub.f32 %v530, %v844
    %v865 = vsub.f32 %v535, %v844
    %v866 = vsub.f32 %v538, %v844
    %v867 = vsub.f32 %v543, %v844
    %v868 = vsub.f32 %v546, %v844
    %v869 = vsub.f32 %v551, %v844
    %v870 = vsub.f32 %v554, %v844
    %v871 = vsub.f32 %v559, %v844
    %v872 = vsub.f32 %v562, %v844
    %v873 = vsub.f32 %v567, %v844
    %v874 = vsub.f32 %v570, %v844
    %v875 = vsub.f32 %v575, %v844
    %v876 = vsub.f32 %v578, %v844
    %v877 = vsub.f32 %v583, %v844
    %v878 = vsub.f32 %v586, %v844
    %v879 = vsub.f32 %v591, %v844
    %v880 = vsub.f32 %v594, %v844
    %v881 = vsub.f32 %v599, %v844
    %v882 = vsub.f32 %v602, %v844
    %v883 = vsub.f32 %v607, %v844
    %v884 = vsub.f32 %v610, %v844
    %v885 = vsub.f32 %v615, %v844
    %v886 = vsub.f32 %v618, %v844
    %v887 = vsub.f32 %v623, %v844
    %v888 = vsub.f32 %v626, %v844
    %v889 = vsub.f32 %v631, %v844
    %v890 = vsub.f32 %v634, %v844
    %v891 = vsub.f32 %v639, %v844
    %v892 = vsub.f32 %v642, %v844
    %v893 = vsub.f32 %v647, %v844
    %v894 = vsub.f32 %v650, %v844
    %v895 = vsub.f32 %v655, %v844
    %v896 = vsub.f32 %v658, %v844
    %v897 = vsub.f32 %v663, %v844
    %v898 = vsub.f32 %v666, %v844
    %v899 = vsub.f32 %v671, %v844
    %v900 = vsub.f32 %v674, %v844
    %v901 = vsub.f32 %v679, %v844
    %v902 = vsub.f32 %v682, %v844
    %v903 = vsub.f32 %v687, %v844
    %v904 = vsub.f32 %v690, %v844
    %v905 = vsub.f32 %v695, %v844
    %v906 = vsub.f32 %v698, %v844
    %v907 = vsub.f32 %v703, %v844
    %v908 = vsub.f32 %v706, %v844
    %v909 = vmul.f32 %v845, %v845
    %v910 = vmul.f32 %v846, %v846
    %v911 = vmul.f32 %v847, %v847
    %v912 = vmul.f32 %v848, %v848
    %v913 = vmul.f32 %v849, %v849
    %v914 = vmul.f32 %v850, %v850
    %v915 = vmul.f32 %v851, %v851
    %v916 = vmul.f32 %v852, %v852
    %v917 = vmul.f32 %v853, %v853
    %v918 = vmul.f32 %v854, %v854
    %v919 = vmul.f32 %v855, %v855
    %v920 = vmul.f32 %v856, %v856
    %v921 = vmul.f32 %v857, %v857
    %v922 = vmul.f32 %v858, %v858
    %v923 = vmul.f32 %v859, %v859
    %v924 = vmul.f32 %v860, %v860
    %v925 = vmul.f32 %v861, %v861
    %v926 = vmul.f32 %v862, %v862
    %v927 = vmul.f32 %v863, %v863
    %v928 = vmul.f32 %v864, %v864
    %v929 = vmul.f32 %v865, %v865
    %v930 = vmul.f32 %v866, %v866
    %v931 = vmul.f32 %v867, %v867
    %v932 = vmul.f32 %v868, %v868
    %v933 = vmul.f32 %v869, %v869
    %v934 = vmul.f32 %v870, %v870
    %v935 = vmul.f32 %v871, %v871
    %v936 = vmul.f32 %v872, %v872
    %v937 = vmul.f32 %v873, %v873
    %v938 = vmul.f32 %v874, %v874
    %v939 = vmul.f32 %v875, %v875
    %v940 = vmul.f32 %v876, %v876
    %v941 = vmul.f32 %v877, %v877
    %v942 = vmul.f32 %v878, %v878
    %v943 = vmul.f32 %v879, %v879
    %v944 = vmul.f32 %v880, %v880
    %v945 = vmul.f32 %v881, %v881
    %v946 = vmul.f32 %v882, %v882
    %v947 = vmul.f32 %v883, %v883
    %v948 = vmul.f32 %v884, %v884
    %v949 = vmul.f32 %v885, %v885
    %v950 = vmul.f32 %v886, %v886
    %v951 = vmul.f32 %v887, %v887
    %v952 = vmul.f32 %v888, %v888
    %v953 = vmul.f32 %v889, %v889
    %v954 = vmul.f32 %v890, %v890
    %v955 = vmul.f32 %v891, %v891
    %v956 = vmul.f32 %v892, %v892
    %v957 = vmul.f32 %v893, %v893
    %v958 = vmul.f32 %v894, %v894
    %v959 = vmul.f32 %v895, %v895
    %v960 = vmul.f32 %v896, %v896
    %v961 = vmul.f32 %v897, %v897
    %v962 = vmul.f32 %v898, %v898
    %v963 = vmul.f32 %v899, %v899
    %v964 = vmul.f32 %v900, %v900
    %v965 = vmul.f32 %v901, %v901
    %v966 = vmul.f32 %v902, %v902
    %v967 = vmul.f32 %v903, %v903
    %v968 = vmul.f32 %v904, %v904
    %v969 = vmul.f32 %v905, %v905
    %v970 = vmul.f32 %v906, %v906
    %v971 = vmul.f32 %v907, %v907
    %v972 = vmul.f32 %v908, %v908
    %v973 = vsel %vm28, %v909, 0.0
    %v974 = vsel %vm28, %v910, 0.0
    %v975 = vadd.f32 %v973, %v974
    %v976 = vsel %vm28, %v911, 0.0
    %v977 = vadd.f32 %v975, %v976
    %v978 = vsel %vm28, %v912, 0.0
    %v979 = vadd.f32 %v977, %v978
    %v980 = vsel %vm28, %v913, 0.0
    %v981 = vadd.f32 %v979, %v980
    %v982 = vsel %vm28, %v914, 0.0
    %v983 = vadd.f32 %v981, %v982
    %v984 = vsel %vm28, %v915, 0.0
    %v985 = vadd.f32 %v983, %v984
    %v986 = vsel %vm28, %v916, 0.0
    %v987 = vadd.f32 %v985, %v986
    %v988 = vsel %vm28, %v917, 0.0
    %v989 = vadd.f32 %v987, %v988
    %v990 = vsel %vm28, %v918, 0.0
    %v991 = vadd.f32 %v989, %v990
    %v992 = vsel %vm28, %v919, 0.0
    %v993 = vadd.f32 %v991, %v992
    %v994 = vsel %vm28, %v920, 0.0
    %v995 = vadd.f32 %v993, %v994
    %v996 = vsel %vm28, %v921, 0.0
    %v997 = vadd.f32 %v995, %v996
    %v998 = vsel %vm28, %v922, 0.0
    %v999 = vadd.f32 %v997, %v998
    %v1000 = vsel %vm28, %v923, 0.0
    %v1001 = vadd.f32 %v999, %v1000
    %v1002 = vsel %vm28, %v924, 0.0
    %v1003 = vadd.f32 %v1001, %v1002
    %v1004 = vsel %vm28, %v925, 0.0
    %v1005 = vadd.f32 %v1003, %v1004
    %v1006 = vsel %vm28, %v926, 0.0
    %v1007 = vadd.f32 %v1005, %v1006
    %v1008 = vsel %vm28, %v927, 0.0
    %v1009 = vadd.f32 %v1007, %v1008
    %v1010 = vsel %vm28, %v928, 0.0
    %v1011 = vadd.f32 %v1009, %v1010
    %v1012 = vsel %vm28, %v929, 0.0
    %v1013 = vadd.f32 %v1011, %v1012
    %v1014 = vsel %vm28, %v930, 0.0
    %v1015 = vadd.f32 %v1013, %v1014
    %v1016 = vsel %vm28, %v931, 0.0
    %v1017 = vadd.f32 %v1015, %v1016
    %v1018 = vsel %vm28, %v932, 0.0
    %v1019 = vadd.f32 %v1017, %v1018
    %v1020 = vsel %vm28, %v933, 0.0
    %v1021 = vadd.f32 %v1019, %v1020
    %v1022 = vsel %vm28, %v934, 0.0
    %v1023 = vadd.f32 %v1021, %v1022
    %v1024 = vsel %vm28, %v935, 0.0
    %v1025 = vadd.f32 %v1023, %v1024
    %v1026 = vsel %vm28, %v936, 0.0
    %v1027 = vadd.f32 %v1025, %v1026
    %v1028 = vsel %vm28, %v937, 0.0
    %v1029 = vadd.f32 %v1027, %v1028
    %v1030 = vsel %vm28, %v938, 0.0
    %v1031 = vadd.f32 %v1029, %v1030
    %v1032 = vsel %vm28, %v939, 0.0
    %v1033 = vadd.f32 %v1031, %v1032
    %v1034 = vsel %vm28, %v940, 0.0
    %v1035 = vadd.f32 %v1033, %v1034
    %v1036 = vsel %vm28, %v941, 0.0
    %v1037 = vadd.f32 %v1035, %v1036
    %v1038 = vsel %vm28, %v942, 0.0
    %v1039 = vadd.f32 %v1037, %v1038
    %v1040 = vsel %vm28, %v943, 0.0
    %v1041 = vadd.f32 %v1039, %v1040
    %v1042 = vsel %vm28, %v944, 0.0
    %v1043 = vadd.f32 %v1041, %v1042
    %v1044 = vsel %vm28, %v945, 0.0
    %v1045 = vadd.f32 %v1043, %v1044
    %v1046 = vsel %vm28, %v946, 0.0
    %v1047 = vadd.f32 %v1045, %v1046
    %v1048 = vsel %vm28, %v947, 0.0
    %v1049 = vadd.f32 %v1047, %v1048
    %v1050 = vsel %vm28, %v948, 0.0
    %v1051 = vadd.f32 %v1049, %v1050
    %v1052 = vsel %vm28, %v949, 0.0
    %v1053 = vadd.f32 %v1051, %v1052
    %v1054 = vsel %vm28, %v950, 0.0
    %v1055 = vadd.f32 %v1053, %v1054
    %v1056 = vsel %vm28, %v951, 0.0
    %v1057 = vadd.f32 %v1055, %v1056
    %v1058 = vsel %vm28, %v952, 0.0
    %v1059 = vadd.f32 %v1057, %v1058
    %v1060 = vsel %vm28, %v953, 0.0
    %v1061 = vadd.f32 %v1059, %v1060
    %v1062 = vsel %vm28, %v954, 0.0
    %v1063 = vadd.f32 %v1061, %v1062
    %v1064 = vsel %vm28, %v955, 0.0
    %v1065 = vadd.f32 %v1063, %v1064
    %v1066 = vsel %vm28, %v956, 0.0
    %v1067 = vadd.f32 %v1065, %v1066
    %v1068 = vsel %vm28, %v957, 0.0
    %v1069 = vadd.f32 %v1067, %v1068
    %v1070 = vsel %vm28, %v958, 0.0
    %v1071 = vadd.f32 %v1069, %v1070
    %v1072 = vsel %vm28, %v959, 0.0
    %v1073 = vadd.f32 %v1071, %v1072
    %v1074 = vsel %vm28, %v960, 0.0
    %v1075 = vadd.f32 %v1073, %v1074
    %v1076 = vsel %vm28, %v961, 0.0
    %v1077 = vadd.f32 %v1075, %v1076
    %v1078 = vsel %vm28, %v962, 0.0
    %v1079 = vadd.f32 %v1077, %v1078
    %v1080 = vsel %vm28, %v963, 0.0
    %v1081 = vadd.f32 %v1079, %v1080
    %v1082 = vsel %vm28, %v964, 0.0
    %v1083 = vadd.f32 %v1081, %v1082
    %v1084 = vsel %vm28, %v965, 0.0
    %v1085 = vadd.f32 %v1083, %v1084
    %v1086 = vsel %vm28, %v966, 0.0
    %v1087 = vadd.f32 %v1085, %v1086
    %v1088 = vsel %vm28, %v967, 0.0
    %v1089 = vadd.f32 %v1087, %v1088
    %v1090 = vsel %vm28, %v968, 0.0
    %v1091 = vadd.f32 %v1089, %v1090
    %v1092 = vsel %vm28, %v969, 0.0
    %v1093 = vadd.f32 %v1091, %v1092
    %v1094 = vsel %vm28, %v970, 0.0
    %v1095 = vadd.f32 %v1093, %v1094
    %v1096 = vsel %vm28, %v971, 0.0
    %v1097 = vadd.f32 %v1095, %v1096
    %v1098 = vsel %vm28, %v972, 0.0
    %v1099 = vadd.f32 %v1097, %v1098
    %v1100 = vrot.slane %v1099, 4
    %v1101 = vadd.f32 %v1099, %v1100
    %v1102 = vrot.slane %v1101, 2
    %v1103 = vadd.f32 %v1101, %v1102
    %v1104 = vrot.slane %v1103, 1
    %v1105 = vadd.f32 %v1103, %v1104
    %v1106 = vmul.f32 %v1105, 0.001953125
    %v1107 = vadd.f32 %v1106, 1e-05
    %v1108 = vrsqrt.pop %v1107
    %v1109 = vmul.f32 %v709, %v1108
    %v1110 = vmul.f32 %v844, %v1109
    %v1111 = vsub.f32 %v710, %v1110
    %v1112 = vlaneseq
    %v1113 = vshrl.u32 %v1112, 7
    %v1114 = vsub.s32 0, %v1113
    %v1115 = vrot.slane %v1109, %v1114
    %v1116 = vmul.f32 %v455, %v1115
    %v1117 = vmul.f32 %v458, %v1115
    %v1118 = vmul.f32 %v463, %v1115
    %v1119 = vmul.f32 %v466, %v1115
    %v1120 = vmul.f32 %v471, %v1115
    %v1121 = vmul.f32 %v474, %v1115
    %v1122 = vmul.f32 %v479, %v1115
    %v1123 = vmul.f32 %v482, %v1115
    %v1124 = vmul.f32 %v487, %v1115
    %v1125 = vmul.f32 %v490, %v1115
    %v1126 = vmul.f32 %v495, %v1115
    %v1127 = vmul.f32 %v498, %v1115
    %v1128 = vmul.f32 %v503, %v1115
    %v1129 = vmul.f32 %v506, %v1115
    %v1130 = vmul.f32 %v511, %v1115
    %v1131 = vmul.f32 %v514, %v1115
    %v1132 = vmul.f32 %v519, %v1115
    %v1133 = vmul.f32 %v522, %v1115
    %v1134 = vmul.f32 %v527, %v1115
    %v1135 = vmul.f32 %v530, %v1115
    %v1136 = vmul.f32 %v535, %v1115
    %v1137 = vmul.f32 %v538, %v1115
    %v1138 = vmul.f32 %v543, %v1115
    %v1139 = vmul.f32 %v546, %v1115
    %v1140 = vmul.f32 %v551, %v1115
    %v1141 = vmul.f32 %v554, %v1115
    %v1142 = vmul.f32 %v559, %v1115
    %v1143 = vmul.f32 %v562, %v1115
    %v1144 = vmul.f32 %v567, %v1115
    %v1145 = vmul.f32 %v570, %v1115
    %v1146 = vmul.f32 %v575, %v1115
    %v1147 = vmul.f32 %v578, %v1115
    %v1148 = vmul.f32 %v583, %v1115
    %v1149 = vmul.f32 %v586, %v1115
    %v1150 = vmul.f32 %v591, %v1115
    %v1151 = vmul.f32 %v594, %v1115
    %v1152 = vmul.f32 %v599, %v1115
    %v1153 = vmul.f32 %v602, %v1115
    %v1154 = vmul.f32 %v607, %v1115
    %v1155 = vmul.f32 %v610, %v1115
    %v1156 = vmul.f32 %v615, %v1115
    %v1157 = vmul.f32 %v618, %v1115
    %v1158 = vmul.f32 %v623, %v1115
    %v1159 = vmul.f32 %v626, %v1115
    %v1160 = vmul.f32 %v631, %v1115
    %v1161 = vmul.f32 %v634, %v1115
    %v1162 = vmul.f32 %v639, %v1115
    %v1163 = vmul.f32 %v642, %v1115
    %v1164 = vmul.f32 %v647, %v1115
    %v1165 = vmul.f32 %v650, %v1115
    %v1166 = vmul.f32 %v655, %v1115
    %v1167 = vmul.f32 %v658, %v1115
    %v1168 = vmul.f32 %v663, %v1115
    %v1169 = vmul.f32 %v666, %v1115
    %v1170 = vmul.f32 %v671, %v1115
    %v1171 = vmul.f32 %v674, %v1115
    %v1172 = vmul.f32 %v679, %v1115
    %v1173 = vmul.f32 %v682, %v1115
    %v1174 = vmul.f32 %v687, %v1115
    %v1175 = vmul.f32 %v690, %v1115
    %v1176 = vmul.f32 %v695, %v1115
    %v1177 = vmul.f32 %v698, %v1115
    %v1178 = vmul.f32 %v703, %v1115
    %v1179 = vmul.f32 %v706, %v1115
    %v1180 = vlaneseq
    %v1181 = vshrl.u32 %v1180, 7
    %v1182 = vsub.s32 0, %v1181
    %v1183 = vrot.slane %v1111, %v1182
    %v1184 = vadd.f32 %v1116, %v1183
    %v1185 = vadd.f32 %v1117, %v1183
    %v1186 = vadd.f32 %v1118, %v1183
    %v1187 = vadd.f32 %v1119, %v1183
    %v1188 = vadd.f32 %v1120, %v1183
    %v1189 = vadd.f32 %v1121, %v1183
    %v1190 = vadd.f32 %v1122, %v1183
    %v1191 = vadd.f32 %v1123, %v1183
    %v1192 = vadd.f32 %v1124, %v1183
    %v1193 = vadd.f32 %v1125, %v1183
    %v1194 = vadd.f32 %v1126, %v1183
    %v1195 = vadd.f32 %v1127, %v1183
    %v1196 = vadd.f32 %v1128, %v1183
    %v1197 = vadd.f32 %v1129, %v1183
    %v1198 = vadd.f32 %v1130, %v1183
    %v1199 = vadd.f32 %v1131, %v1183
    %v1200 = vadd.f32 %v1132, %v1183
    %v1201 = vadd.f32 %v1133, %v1183
    %v1202 = vadd.f32 %v1134, %v1183
    %v1203 = vadd.f32 %v1135, %v1183
    %v1204 = vadd.f32 %v1136, %v1183
    %v1205 = vadd.f32 %v1137, %v1183
    %v1206 = vadd.f32 %v1138, %v1183
    %v1207 = vadd.f32 %v1139, %v1183
    %v1208 = vadd.f32 %v1140, %v1183
    %v1209 = vadd.f32 %v1141, %v1183
    %v1210 = vadd.f32 %v1142, %v1183
    %v1211 = vadd.f32 %v1143, %v1183
    %v1212 = vadd.f32 %v1144, %v1183
    %v1213 = vadd.f32 %v1145, %v1183
    %v1214 = vadd.f32 %v1146, %v1183
    %v1215 = vadd.f32 %v1147, %v1183
    %v1216 = vadd.f32 %v1148, %v1183
    %v1217 = vadd.f32 %v1149, %v1183
    %v1218 = vadd.f32 %v1150, %v1183
    %v1219 = vadd.f32 %v1151, %v1183
    %v1220 = vadd.f32 %v1152, %v1183
    %v1221 = vadd.f32 %v1153, %v1183
    %v1222 = vadd.f32 %v1154, %v1183
    %v1223 = vadd.f32 %v1155, %v1183
    %v1224 = vadd.f32 %v1156, %v1183
    %v1225 = vadd.f32 %v1157, %v1183
    %v1226 = vadd.f32 %v1158, %v1183
    %v1227 = vadd.f32 %v1159, %v1183
    %v1228 = vadd.f32 %v1160, %v1183
    %v1229 = vadd.f32 %v1161, %v1183
    %v1230 = vadd.f32 %v1162, %v1183
    %v1231 = vadd.f32 %v1163, %v1183
    %v1232 = vadd.f32 %v1164, %v1183
    %v1233 = vadd.f32 %v1165, %v1183
    %v1234 = vadd.f32 %v1166, %v1183
    %v1235 = vadd.f32 %v1167, %v1183
    %v1236 = vadd.f32 %v1168, %v1183
    %v1237 = vadd.f32 %v1169, %v1183
    %v1238 = vadd.f32 %v1170, %v1183
    %v1239 = vadd.f32 %v1171, %v1183
    %v1240 = vadd.f32 %v1172, %v1183
    %v1241 = vadd.f32 %v1173, %v1183
    %v1242 = vadd.f32 %v1174, %v1183
    %v1243 = vadd.f32 %v1175, %v1183
    %v1244 = vadd.f32 %v1176, %v1183
    %v1245 = vadd.f32 %v1177, %v1183
    %v1246 = vadd.f32 %v1178, %v1183
    %v1247 = vadd.f32 %v1179, %v1183
    %v1248 = vmax.f32 %v1184, 0.0
    %v1249 = vmax.f32 %v1185, 0.0
    %v1250 = vmax.f32 %v1186, 0.0
    %v1251 = vmax.f32 %v1187, 0.0
    %v1252 = vmax.f32 %v1188, 0.0
    %v1253 = vmax.f32 %v1189, 0.0
    %v1254 = vmax.f32 %v1190, 0.0
    %v1255 = vmax.f32 %v1191, 0.0
    %v1256 = vmax.f32 %v1192, 0.0
    %v1257 = vmax.f32 %v1193, 0.0
    %v1258 = vmax.f32 %v1194, 0.0
    %v1259 = vmax.f32 %v1195, 0.0
    %v1260 = vmax.f32 %v1196, 0.0
    %v1261 = vmax.f32 %v1197, 0.0
    %v1262 = vmax.f32 %v1198, 0.0
    %v1263 = vmax.f32 %v1199, 0.0
    %v1264 = vmax.f32 %v1200, 0.0
    %v1265 = vmax.f32 %v1201, 0.0
    %v1266 = vmax.f32 %v1202, 0.0
    %v1267 = vmax.f32 %v1203, 0.0
    %v1268 = vmax.f32 %v1204, 0.0
    %v1269 = vmax.f32 %v1205, 0.0
    %v1270 = vmax.f32 %v1206, 0.0
    %v1271 = vmax.f32 %v1207, 0.0
    %v1272 = vmax.f32 %v1208, 0.0
    %v1273 = vmax.f32 %v1209, 0.0
    %v1274 = vmax.f32 %v1210, 0.0
    %v1275 = vmax.f32 %v1211, 0.0
    %v1276 = vmax.f32 %v1212, 0.0
    %v1277 = vmax.f32 %v1213, 0.0
    %v1278 = vmax.f32 %v1214, 0.0
    %v1279 = vmax.f32 %v1215, 0.0
    %v1280 = vmax.f32 %v1216, 0.0
    %v1281 = vmax.f32 %v1217, 0.0
    %v1282 = vmax.f32 %v1218, 0.0
    %v1283 = vmax.f32 %v1219, 0.0
    %v1284 = vmax.f32 %v1220, 0.0
    %v1285 = vmax.f32 %v1221, 0.0
    %v1286 = vmax.f32 %v1222, 0.0
    %v1287 = vmax.f32 %v1223, 0.0
    %v1288 = vmax.f32 %v1224, 0.0
    %v1289 = vmax.f32 %v1225, 0.0
    %v1290 = vmax.f32 %v1226, 0.0
    %v1291 = vmax.f32 %v1227, 0.0
    %v1292 = vmax.f32 %v1228, 0.0
    %v1293 = vmax.f32 %v1229, 0.0
    %v1294 = vmax.f32 %v1230, 0.0
    %v1295 = vmax.f32 %v1231, 0.0
    %v1296 = vmax.f32 %v1232, 0.0
    %v1297 = vmax.f32 %v1233, 0.0
    %v1298 = vmax.f32 %v1234, 0.0
    %v1299 = vmax.f32 %v1235, 0.0
    %v1300 = vmax.f32 %v1236, 0.0
    %v1301 = vmax.f32 %v1237, 0.0
    %v1302 = vmax.f32 %v1238, 0.0
    %v1303 = vmax.f32 %v1239, 0.0
    %v1304 = vmax.f32 %v1240, 0.0
    %v1305 = vmax.f32 %v1241, 0.0
    %v1306 = vmax.f32 %v1242, 0.0
    %v1307 = vmax.f32 %v1243, 0.0
    %v1308 = vmax.f32 %v1244, 0.0
    %v1309 = vmax.f32 %v1245, 0.0
    %v1310 = vmax.f32 %v1246, 0.0
    %v1311 = vmax.f32 %v1247, 0.0
    %1312 = vst.msk [vmem:[#allocation5] sm:$0xff] %vm28, %v1248
    %1313 = vst.msk [vmem:[#allocation5 + $0x8] sm:$0xff] %vm28, %v1249
    %1314 = vst.msk [vmem:[#allocation5 + $0x10] sm:$0xff] %vm28, %v1250
    %1315 = vst.msk [vmem:[#allocation5 + $0x18] sm:$0xff] %vm28, %v1251
    %1316 = vst.msk [vmem:[#allocation5 + $0x20] sm:$0xff] %vm28, %v1252
    %1317 = vst.msk [vmem:[#allocation5 + $0x28] sm:$0xff] %vm28, %v1253
    %1318 = vst.msk [vmem:[#allocation5 + $0x30] sm:$0xff] %vm28, %v1254
    %1319 = vst.msk [vmem:[#allocation5 + $0x38] sm:$0xff] %vm28, %v1255
    %1320 = vst.msk [vmem:[#allocation5 + $0x40] sm:$0xff] %vm28, %v1256
    %1321 = vst.msk [vmem:[#allocation5 + $0x48] sm:$0xff] %vm28, %v1257
    %1322 = vst.msk [vmem:[#allocation5 + $0x50] sm:$0xff] %vm28, %v1258
    %1323 = vst.msk [vmem:[#allocation5 + $0x58] sm:$0xff] %vm28, %v1259
    %1324 = vst.msk [vmem:[#allocation5 + $0x60] sm:$0xff] %vm28, %v1260
    %1325 = vst.msk [vmem:[#allocation5 + $0x68] sm:$0xff] %vm28, %v1261
    %1326 = vst.msk [vmem:[#allocation5 + $0x70] sm:$0xff] %vm28, %v1262
    %1327 = vst.msk [vmem:[#allocation5 + $0x78] sm:$0xff] %vm28, %v1263
    %1328 = vst.msk [vmem:[#allocation5 + $0x80] sm:$0xff] %vm28, %v1264
    %1329 = vst.msk [vmem:[#allocation5 + $0x88] sm:$0xff] %vm28, %v1265
    %1330 = vst.msk [vmem:[#allocation5 + $0x90] sm:$0xff] %vm28, %v1266
    %1331 = vst.msk [vmem:[#allocation5 + $0x98] sm:$0xff] %vm28, %v1267
    %1332 = vst.msk [vmem:[#allocation5 + $0xa0] sm:$0xff] %vm28, %v1268
    %1333 = vst.msk [vmem:[#allocation5 + $0xa8] sm:$0xff] %vm28, %v1269
    %1334 = vst.msk [vmem:[#allocation5 + $0xb0] sm:$0xff] %vm28, %v1270
    %1335 = vst.msk [vmem:[#allocation5 + $0xb8] sm:$0xff] %vm28, %v1271
    %1336 = vst.msk [vmem:[#allocation5 + $0xc0] sm:$0xff] %vm28, %v1272
    %1337 = vst.msk [vmem:[#allocation5 + $0xc8] sm:$0xff] %vm28, %v1273
    %1338 = vst.msk [vmem:[#allocation5 + $0xd0] sm:$0xff] %vm28, %v1274
    %1339 = vst.msk [vmem:[#allocation5 + $0xd8] sm:$0xff] %vm28, %v1275
    %1340 = vst.msk [vmem:[#allocation5 + $0xe0] sm:$0xff] %vm28, %v1276
    %1341 = vst.msk [vmem:[#allocation5 + $0xe8] sm:$0xff] %vm28, %v1277
    %1342 = vst.msk [vmem:[#allocation5 + $0xf0] sm:$0xff] %vm28, %v1278
    %1343 = vst.msk [vmem:[#allocation5 + $0xf8] sm:$0xff] %vm28, %v1279
    %1344 = vst.msk [vmem:[#allocation5 + $0x100] sm:$0xff] %vm28, %v1280
    %1345 = vst.msk [vmem:[#allocation5 + $0x108] sm:$0xff] %vm28, %v1281
    %1346 = vst.msk [vmem:[#allocation5 + $0x110] sm:$0xff] %vm28, %v1282
    %1347 = vst.msk [vmem:[#allocation5 + $0x118] sm:$0xff] %vm28, %v1283
    %1348 = vst.msk [vmem:[#allocation5 + $0x120] sm:$0xff] %vm28, %v1284
    %1349 = vst.msk [vmem:[#allocation5 + $0x128] sm:$0xff] %vm28, %v1285
    %1350 = vst.msk [vmem:[#allocation5 + $0x130] sm:$0xff] %vm28, %v1286
    %1351 = vst.msk [vmem:[#allocation5 + $0x138] sm:$0xff] %vm28, %v1287
    %1352 = vst.msk [vmem:[#allocation5 + $0x140] sm:$0xff] %vm28, %v1288
    %1353 = vst.msk [vmem:[#allocation5 + $0x148] sm:$0xff] %vm28, %v1289
    %1354 = vst.msk [vmem:[#allocation5 + $0x150] sm:$0xff] %vm28, %v1290
    %1355 = vst.msk [vmem:[#allocation5 + $0x158] sm:$0xff] %vm28, %v1291
    %1356 = vst.msk [vmem:[#allocation5 + $0x160] sm:$0xff] %vm28, %v1292
    %1357 = vst.msk [vmem:[#allocation5 + $0x168] sm:$0xff] %vm28, %v1293
    %1358 = vst.msk [vmem:[#allocation5 + $0x170] sm:$0xff] %vm28, %v1294
    %1359 = vst.msk [vmem:[#allocation5 + $0x178] sm:$0xff] %vm28, %v1295
    %1360 = vst.msk [vmem:[#allocation5 + $0x180] sm:$0xff] %vm28, %v1296
    %1361 = vst.msk [vmem:[#allocation5 + $0x188] sm:$0xff] %vm28, %v1297
    %1362 = vst.msk [vmem:[#allocation5 + $0x190] sm:$0xff] %vm28, %v1298
    %1363 = vst.msk [vmem:[#allocation5 + $0x198] sm:$0xff] %vm28, %v1299
    %1364 = vst.msk [vmem:[#allocation5 + $0x1a0] sm:$0xff] %vm28, %v1300
    %1365 = vst.msk [vmem:[#allocation5 + $0x1a8] sm:$0xff] %vm28, %v1301
    %1366 = vst.msk [vmem:[#allocation5 + $0x1b0] sm:$0xff] %vm28, %v1302
    %1367 = vst.msk [vmem:[#allocation5 + $0x1b8] sm:$0xff] %vm28, %v1303
    %1368 = vst.msk [vmem:[#allocation5 + $0x1c0] sm:$0xff] %vm28, %v1304
    %1369 = vst.msk [vmem:[#allocation5 + $0x1c8] sm:$0xff] %vm28, %v1305
    %1370 = vst.msk [vmem:[#allocation5 + $0x1d0] sm:$0xff] %vm28, %v1306
    %1371 = vst.msk [vmem:[#allocation5 + $0x1d8] sm:$0xff] %vm28, %v1307
    %1372 = vst.msk [vmem:[#allocation5 + $0x1e0] sm:$0xff] %vm28, %v1308
    %1373 = vst.msk [vmem:[#allocation5 + $0x1e8] sm:$0xff] %vm28, %v1309
    %1374 = vst.msk [vmem:[#allocation5 + $0x1f0] sm:$0xff] %vm28, %v1310
    %1375 = vst.msk [vmem:[#allocation5 + $0x1f8] sm:$0xff] %vm28, %v1311
    %v1376 = vld [vmem:[#allocation5] ss:$2 sm:$0xff]
    %s1377 = scalar_lea.vmem [#allocation5], 16
    %v1378 = vld [vmem:[%s1377] ss:$2 sm:$0xff]
    %s1379 = scalar_lea.vmem [#allocation5], 32
    %v1380 = vld [vmem:[%s1379] ss:$2 sm:$0xff]
    %s1381 = scalar_lea.vmem [#allocation5], 48
    %v1382 = vld [vmem:[%s1381] ss:$2 sm:$0xff]
    %s1383 = scalar_lea.vmem [#allocation5], 64
    %v1384 = vld [vmem:[%s1383] ss:$2 sm:$0xff]
    %s1385 = scalar_lea.vmem [#allocation5], 80
    %v1386 = vld [vmem:[%s1385] ss:$2 sm:$0xff]
    %s1387 = scalar_lea.vmem [#allocation5], 96
    %v1388 = vld [vmem:[%s1387] ss:$2 sm:$0xff]
    %s1389 = scalar_lea.vmem [#allocation5], 112
    %v1390 = vld [vmem:[%s1389] ss:$2 sm:$0xff]
    %s1391 = scalar_lea.vmem [#allocation5], 128
    %v1392 = vld [vmem:[%s1391] ss:$2 sm:$0xff]
    %s1393 = scalar_lea.vmem [#allocation5], 144
    %v1394 = vld [vmem:[%s1393] ss:$2 sm:$0xff]
    %s1395 = scalar_lea.vmem [#allocation5], 160
    %v1396 = vld [vmem:[%s1395] ss:$2 sm:$0xff]
    %s1397 = scalar_lea.vmem [#allocation5], 176
    %v1398 = vld [vmem:[%s1397] ss:$2 sm:$0xff]
    %s1399 = scalar_lea.vmem [#allocation5], 192
    %v1400 = vld [vmem:[%s1399] ss:$2 sm:$0xff]
    %s1401 = scalar_lea.vmem [#allocation5], 208
    %v1402 = vld [vmem:[%s1401] ss:$2 sm:$0xff]
    %s1403 = scalar_lea.vmem [#allocation5], 224
    %v1404 = vld [vmem:[%s1403] ss:$2 sm:$0xff]
    %s1405 = scalar_lea.vmem [#allocation5], 240
    %v1406 = vld [vmem:[%s1405] ss:$2 sm:$0xff]
    %s1407 = scalar_lea.vmem [#allocation5], 256
    %v1408 = vld [vmem:[%s1407] ss:$2 sm:$0xff]
    %s1409 = scalar_lea.vmem [#allocation5], 272
    %v1410 = vld [vmem:[%s1409] ss:$2 sm:$0xff]
    %s1411 = scalar_lea.vmem [#allocation5], 288
    %v1412 = vld [vmem:[%s1411] ss:$2 sm:$0xff]
    %s1413 = scalar_lea.vmem [#allocation5], 304
    %v1414 = vld [vmem:[%s1413] ss:$2 sm:$0xff]
    %s1415 = scalar_lea.vmem [#allocation5], 320
    %v1416 = vld [vmem:[%s1415] ss:$2 sm:$0xff]
    %s1417 = scalar_lea.vmem [#allocation5], 336
    %v1418 = vld [vmem:[%s1417] ss:$2 sm:$0xff]
    %s1419 = scalar_lea.vmem [#allocation5], 352
    %v1420 = vld [vmem:[%s1419] ss:$2 sm:$0xff]
    %s1421 = scalar_lea.vmem [#allocation5], 368
    %v1422 = vld [vmem:[%s1421] ss:$2 sm:$0xff]
    %s1423 = scalar_lea.vmem [#allocation5], 384
    %v1424 = vld [vmem:[%s1423] ss:$2 sm:$0xff]
    %s1425 = scalar_lea.vmem [#allocation5], 400
    %v1426 = vld [vmem:[%s1425] ss:$2 sm:$0xff]
    %s1427 = scalar_lea.vmem [#allocation5], 416
    %v1428 = vld [vmem:[%s1427] ss:$2 sm:$0xff]
    %s1429 = scalar_lea.vmem [#allocation5], 432
    %v1430 = vld [vmem:[%s1429] ss:$2 sm:$0xff]
    %s1431 = scalar_lea.vmem [#allocation5], 448
    %v1432 = vld [vmem:[%s1431] ss:$2 sm:$0xff]
    %s1433 = scalar_lea.vmem [#allocation5], 464
    %v1434 = vld [vmem:[%s1433] ss:$2 sm:$0xff]
    %s1435 = scalar_lea.vmem [#allocation5], 480
    %v1436 = vld [vmem:[%s1435] ss:$2 sm:$0xff]
    %s1437 = scalar_lea.vmem [#allocation5], 496
    %v1438 = vld [vmem:[%s1437] ss:$2 sm:$0xff]
    %s1439 = scalar_lea.vmem [#allocation5], 1
    %v1440 = vld [vmem:[%s1439] ss:$2 sm:$0xff]
    %s1441 = scalar_lea.vmem [#allocation5], 17
    %v1442 = vld [vmem:[%s1441] ss:$2 sm:$0xff]
    %s1443 = scalar_lea.vmem [#allocation5], 33
    %v1444 = vld [vmem:[%s1443] ss:$2 sm:$0xff]
    %s1445 = scalar_lea.vmem [#allocation5], 49
    %v1446 = vld [vmem:[%s1445] ss:$2 sm:$0xff]
    %s1447 = scalar_lea.vmem [#allocation5], 65
    %v1448 = vld [vmem:[%s1447] ss:$2 sm:$0xff]
    %s1449 = scalar_lea.vmem [#allocation5], 81
    %v1450 = vld [vmem:[%s1449] ss:$2 sm:$0xff]
    %s1451 = scalar_lea.vmem [#allocation5], 97
    %v1452 = vld [vmem:[%s1451] ss:$2 sm:$0xff]
    %s1453 = scalar_lea.vmem [#allocation5], 113
    %v1454 = vld [vmem:[%s1453] ss:$2 sm:$0xff]
    %s1455 = scalar_lea.vmem [#allocation5], 129
    %v1456 = vld [vmem:[%s1455] ss:$2 sm:$0xff]
    %s1457 = scalar_lea.vmem [#allocation5], 145
    %v1458 = vld [vmem:[%s1457] ss:$2 sm:$0xff]
    %s1459 = scalar_lea.vmem [#allocation5], 161
    %v1460 = vld [vmem:[%s1459] ss:$2 sm:$0xff]
    %s1461 = scalar_lea.vmem [#allocation5], 177
    %v1462 = vld [vmem:[%s1461] ss:$2 sm:$0xff]
    %s1463 = scalar_lea.vmem [#allocation5], 193
    %v1464 = vld [vmem:[%s1463] ss:$2 sm:$0xff]
    %s1465 = scalar_lea.vmem [#allocation5], 209
    %v1466 = vld [vmem:[%s1465] ss:$2 sm:$0xff]
    %s1467 = scalar_lea.vmem [#allocation5], 225
    %v1468 = vld [vmem:[%s1467] ss:$2 sm:$0xff]
    %s1469 = scalar_lea.vmem [#allocation5], 241
    %v1470 = vld [vmem:[%s1469] ss:$2 sm:$0xff]
    %s1471 = scalar_lea.vmem [#allocation5], 257
    %v1472 = vld [vmem:[%s1471] ss:$2 sm:$0xff]
    %s1473 = scalar_lea.vmem [#allocation5], 273
    %v1474 = vld [vmem:[%s1473] ss:$2 sm:$0xff]
    %s1475 = scalar_lea.vmem [#allocation5], 289
    %v1476 = vld [vmem:[%s1475] ss:$2 sm:$0xff]
    %s1477 = scalar_lea.vmem [#allocation5], 305
    %v1478 = vld [vmem:[%s1477] ss:$2 sm:$0xff]
    %s1479 = scalar_lea.vmem [#allocation5], 321
    %v1480 = vld [vmem:[%s1479] ss:$2 sm:$0xff]
    %s1481 = scalar_lea.vmem [#allocation5], 337
    %v1482 = vld [vmem:[%s1481] ss:$2 sm:$0xff]
    %s1483 = scalar_lea.vmem [#allocation5], 353
    %v1484 = vld [vmem:[%s1483] ss:$2 sm:$0xff]
    %s1485 = scalar_lea.vmem [#allocation5], 369
    %v1486 = vld [vmem:[%s1485] ss:$2 sm:$0xff]
    %s1487 = scalar_lea.vmem [#allocation5], 385
    %v1488 = vld [vmem:[%s1487] ss:$2 sm:$0xff]
    %s1489 = scalar_lea.vmem [#allocation5], 401
    %v1490 = vld [vmem:[%s1489] ss:$2 sm:$0xff]
    %s1491 = scalar_lea.vmem [#allocation5], 417
    %v1492 = vld [vmem:[%s1491] ss:$2 sm:$0xff]
    %s1493 = scalar_lea.vmem [#allocation5], 433
    %v1494 = vld [vmem:[%s1493] ss:$2 sm:$0xff]
    %s1495 = scalar_lea.vmem [#allocation5], 449
    %v1496 = vld [vmem:[%s1495] ss:$2 sm:$0xff]
    %s1497 = scalar_lea.vmem [#allocation5], 465
    %v1498 = vld [vmem:[%s1497] ss:$2 sm:$0xff]
    %s1499 = scalar_lea.vmem [#allocation5], 481
    %v1500 = vld [vmem:[%s1499] ss:$2 sm:$0xff]
    %s1501 = scalar_lea.vmem [#allocation5], 497
    %v1502 = vld [vmem:[%s1501] ss:$2 sm:$0xff]
    %v1503 = vmax.f32 %v1376, %v1440
    %v1504 = vmax.f32 %v1378, %v1442
    %v1505 = vmax.f32 %v1380, %v1444
    %v1506 = vmax.f32 %v1382, %v1446
    %v1507 = vmax.f32 %v1384, %v1448
    %v1508 = vmax.f32 %v1386, %v1450
    %v1509 = vmax.f32 %v1388, %v1452
    %v1510 = vmax.f32 %v1390, %v1454
    %v1511 = vmax.f32 %v1392, %v1456
    %v1512 = vmax.f32 %v1394, %v1458
    %v1513 = vmax.f32 %v1396, %v1460
    %v1514 = vmax.f32 %v1398, %v1462
    %v1515 = vmax.f32 %v1400, %v1464
    %v1516 = vmax.f32 %v1402, %v1466
    %v1517 = vmax.f32 %v1404, %v1468
    %v1518 = vmax.f32 %v1406, %v1470
    %v1519 = vmax.f32 %v1408, %v1472
    %v1520 = vmax.f32 %v1410, %v1474
    %v1521 = vmax.f32 %v1412, %v1476
    %v1522 = vmax.f32 %v1414, %v1478
    %v1523 = vmax.f32 %v1416, %v1480
    %v1524 = vmax.f32 %v1418, %v1482
    %v1525 = vmax.f32 %v1420, %v1484
    %v1526 = vmax.f32 %v1422, %v1486
    %v1527 = vmax.f32 %v1424, %v1488
    %v1528 = vmax.f32 %v1426, %v1490
    %v1529 = vmax.f32 %v1428, %v1492
    %v1530 = vmax.f32 %v1430, %v1494
    %v1531 = vmax.f32 %v1432, %v1496
    %v1532 = vmax.f32 %v1434, %v1498
    %v1533 = vmax.f32 %v1436, %v1500
    %v1534 = vmax.f32 %v1438, %v1502
    %1535 = vst.msk [vmem:[#allocation6] sm:$0xff] %vm28, %v1503
    %1536 = vst.msk [vmem:[#allocation6 + $0x8] sm:$0xff] %vm28, %v1504
    %1537 = vst.msk [vmem:[#allocation6 + $0x10] sm:$0xff] %vm28, %v1505
    %1538 = vst.msk [vmem:[#allocation6 + $0x18] sm:$0xff] %vm28, %v1506
    %1539 = vst.msk [vmem:[#allocation6 + $0x20] sm:$0xff] %vm28, %v1507
    %1540 = vst.msk [vmem:[#allocation6 + $0x28] sm:$0xff] %vm28, %v1508
    %1541 = vst.msk [vmem:[#allocation6 + $0x30] sm:$0xff] %vm28, %v1509
    %1542 = vst.msk [vmem:[#allocation6 + $0x38] sm:$0xff] %vm28, %v1510
    %1543 = vst.msk [vmem:[#allocation6 + $0x40] sm:$0xff] %vm28, %v1511
    %1544 = vst.msk [vmem:[#allocation6 + $0x48] sm:$0xff] %vm28, %v1512
    %1545 = vst.msk [vmem:[#allocation6 + $0x50] sm:$0xff] %vm28, %v1513
    %1546 = vst.msk [vmem:[#allocation6 + $0x58] sm:$0xff] %vm28, %v1514
    %1547 = vst.msk [vmem:[#allocation6 + $0x60] sm:$0xff] %vm28, %v1515
    %1548 = vst.msk [vmem:[#allocation6 + $0x68] sm:$0xff] %vm28, %v1516
    %1549 = vst.msk [vmem:[#allocation6 + $0x70] sm:$0xff] %vm28, %v1517
    %1550 = vst.msk [vmem:[#allocation6 + $0x78] sm:$0xff] %vm28, %v1518
    %1551 = vst.msk [vmem:[#allocation6 + $0x80] sm:$0xff] %vm28, %v1519
    %1552 = vst.msk [vmem:[#allocation6 + $0x88] sm:$0xff] %vm28, %v1520
    %1553 = vst.msk [vmem:[#allocation6 + $0x90] sm:$0xff] %vm28, %v1521
    %1554 = vst.msk [vmem:[#allocation6 + $0x98] sm:$0xff] %vm28, %v1522
    %1555 = vst.msk [vmem:[#allocation6 + $0xa0] sm:$0xff] %vm28, %v1523
    %1556 = vst.msk [vmem:[#allocation6 + $0xa8] sm:$0xff] %vm28, %v1524
    %1557 = vst.msk [vmem:[#allocation6 + $0xb0] sm:$0xff] %vm28, %v1525
    %1558 = vst.msk [vmem:[#allocation6 + $0xb8] sm:$0xff] %vm28, %v1526
    %1559 = vst.msk [vmem:[#allocation6 + $0xc0] sm:$0xff] %vm28, %v1527
    %1560 = vst.msk [vmem:[#allocation6 + $0xc8] sm:$0xff] %vm28, %v1528
    %1561 = vst.msk [vmem:[#allocation6 + $0xd0] sm:$0xff] %vm28, %v1529
    %1562 = vst.msk [vmem:[#allocation6 + $0xd8] sm:$0xff] %vm28, %v1530
    %1563 = vst.msk [vmem:[#allocation6 + $0xe0] sm:$0xff] %vm28, %v1531
    %1564 = vst.msk [vmem:[#allocation6 + $0xe8] sm:$0xff] %vm28, %v1532
    %1565 = vst.msk [vmem:[#allocation6 + $0xf0] sm:$0xff] %vm28, %v1533
    %1566 = vst.msk [vmem:[#allocation6 + $0xf8] sm:$0xff] %vm28, %v1534
    %v1567 = vld [vmem:[#allocation6] sm:$0xff]
    %v1568 = vld [vmem:[#allocation6 + $0x8] sm:$0xff]
    %v1569 = vmax.f32 %v1567, %v1568
    %1570 = vst.msk [vmem:[#allocation2 + $0x1b] sm:$0xff] %vm28, %v1569
    %v1571 = vld [vmem:[#allocation6 + $0x10] sm:$0xff]
    %v1572 = vld [vmem:[#allocation6 + $0x18] sm:$0xff]
    %v1573 = vmax.f32 %v1571, %v1572
    %1574 = vst.msk [vmem:[#allocation2 + $0x25] sm:$0xff] %vm28, %v1573
    %v1575 = vld [vmem:[#allocation6 + $0x20] sm:$0xff]
    %v1576 = vld [vmem:[#allocation6 + $0x28] sm:$0xff]
    %v1577 = vmax.f32 %v1575, %v1576
    %1578 = vst.msk [vmem:[#allocation2 + $0x2f] sm:$0xff] %vm28, %v1577
    %v1579 = vld [vmem:[#allocation6 + $0x30] sm:$0xff]
    %v1580 = vld [vmem:[#allocation6 + $0x38] sm:$0xff]
    %v1581 = vmax.f32 %v1579, %v1580
    %1582 = vst.msk [vmem:[#allocation2 + $0x39] sm:$0xff] %vm28, %v1581
    %v1583 = vld [vmem:[#allocation6 + $0x40] sm:$0xff]
    %v1584 = vld [vmem:[#allocation6 + $0x48] sm:$0xff]
    %v1585 = vmax.f32 %v1583, %v1584
    %1586 = vst.msk [vmem:[#allocation2 + $0x43] sm:$0xff] %vm28, %v1585
    %v1587 = vld [vmem:[#allocation6 + $0x50] sm:$0xff]
    %v1588 = vld [vmem:[#allocation6 + $0x58] sm:$0xff]
    %v1589 = vmax.f32 %v1587, %v1588
    %1590 = vst.msk [vmem:[#allocation2 + $0x4d] sm:$0xff] %vm28, %v1589
    %v1591 = vld [vmem:[#allocation6 + $0x60] sm:$0xff]
    %v1592 = vld [vmem:[#allocation6 + $0x68] sm:$0xff]
    %v1593 = vmax.f32 %v1591, %v1592
    %1594 = vst.msk [vmem:[#allocation2 + $0x57] sm:$0xff] %vm28, %v1593
    %v1595 = vld [vmem:[#allocation6 + $0x70] sm:$0xff]
    %v1596 = vld [vmem:[#allocation6 + $0x78] sm:$0xff]
    %v1597 = vmax.f32 %v1595, %v1596
    %1598 = vst.msk [vmem:[#allocation2 + $0x61] sm:$0xff] %vm28, %v1597
    %v1599 = vld [vmem:[#allocation6 + $0x80] sm:$0xff]
    %v1600 = vld [vmem:[#allocation6 + $0x88] sm:$0xff]
    %v1601 = vmax.f32 %v1599, %v1600
    %1602 = vst.msk [vmem:[#allocation2 + $0x7f] sm:$0xff] %vm28, %v1601
    %v1603 = vld [vmem:[#allocation6 + $0x90] sm:$0xff]
    %v1604 = vld [vmem:[#allocation6 + $0x98] sm:$0xff]
    %v1605 = vmax.f32 %v1603, %v1604
    %1606 = vst.msk [vmem:[#allocation2 + $0x89] sm:$0xff] %vm28, %v1605
    %v1607 = vld [vmem:[#allocation6 + $0xa0] sm:$0xff]
    %v1608 = vld [vmem:[#allocation6 + $0xa8] sm:$0xff]
    %v1609 = vmax.f32 %v1607, %v1608
    %1610 = vst.msk [vmem:[#allocation2 + $0x93] sm:$0xff] %vm28, %v1609
    %v1611 = vld [vmem:[#allocation6 + $0xb0] sm:$0xff]
    %v1612 = vld [vmem:[#allocation6 + $0xb8] sm:$0xff]
    %v1613 = vmax.f32 %v1611, %v1612
    %1614 = vst.msk [vmem:[#allocation2 + $0x9d] sm:$0xff] %vm28, %v1613
    %v1615 = vld [vmem:[#allocation6 + $0xc0] sm:$0xff]
    %v1616 = vld [vmem:[#allocation6 + $0xc8] sm:$0xff]
    %v1617 = vmax.f32 %v1615, %v1616
    %1618 = vst.msk [vmem:[#allocation2 + $0xa7] sm:$0xff] %vm28, %v1617
    %v1619 = vld [vmem:[#allocation6 + $0xd0] sm:$0xff]
    %v1620 = vld [vmem:[#allocation6 + $0xd8] sm:$0xff]
    %v1621 = vmax.f32 %v1619, %v1620
    %1622 = vst.msk [vmem:[#allocation2 + $0xb1] sm:$0xff] %vm28, %v1621
    %v1623 = vld [vmem:[#allocation6 + $0xe0] sm:$0xff]
    %v1624 = vld [vmem:[#allocation6 + $0xe8] sm:$0xff]
    %v1625 = vmax.f32 %v1623, %v1624
    %1626 = vst.msk [vmem:[#allocation2 + $0xbb] sm:$0xff] %vm28, %v1625
    %v1627 = vld [vmem:[#allocation6 + $0xf0] sm:$0xff]
    %v1628 = vld [vmem:[#allocation6 + $0xf8] sm:$0xff]
    %v1629 = vmax.f32 %v1627, %v1628
    %1630 = vst.msk [vmem:[#allocation2 + $0xc5] sm:$0xff] %vm28, %v1629
    %v1631 = vld [vmem:[#allocation2 + $0x5] sm:$0xff]
    %v1632 = vld [vmem:[#allocation2 + $0xd] sm:$0xff]
    %v1633 = vld [vmem:[#allocation2 + $0x15] sm:$0xff]
    %v1634 = vld [vmem:[#allocation2 + $0x1d] sm:$0xff]
    %v1635 = vld [vmem:[#allocation2 + $0x25] sm:$0xff]
    %v1636 = vld [vmem:[#allocation2 + $0x2d] sm:$0xff]
    %v1637 = vld [vmem:[#allocation2 + $0x35] sm:$0xff]
    %v1638 = vld [vmem:[#allocation2 + $0x3d] sm:$0xff]
    %v1639 = vld [vmem:[#allocation2 + $0x45] sm:$0xff]
    %v1640 = vld [vmem:[#allocation2 + $0x4d] sm:$0xff]
    %v1641 = vld [vmem:[#allocation2 + $0x55] sm:$0xff]
    %v1642 = vld [vmem:[#allocation2 + $0x5d] sm:$0xff]
    %v1643 = vld [vmem:[#allocation2 + $0x65] sm:$0xff]
    %v1644 = vld [vmem:[#allocation2 + $0x6d] sm:$0xff]
    %v1645 = vld [vmem:[#allocation2 + $0x75] sm:$0xff]
    %v1646 = vld [vmem:[#allocation2 + $0x7d] sm:$0xff]
    %v1647 = vld [vmem:[#allocation2 + $0x85] sm:$0xff]
    %v1648 = vld [vmem:[#allocation2 + $0x8d] sm:$0xff]
    %v1649 = vld [vmem:[#allocation2 + $0x95] sm:$0xff]
    %v1650 = vld [vmem:[#allocation2 + $0x9d] sm:$0xff]
    %v1651 = vld [vmem:[#allocation2 + $0xa5] sm:$0xff]
    %v1652 = vld [vmem:[#allocation2 + $0xad] sm:$0xff]
    %v1653 = vld [vmem:[#allocation2 + $0xb5] sm:$0xff]
    %v1654 = vld [vmem:[#allocation2 + $0xbd] sm:$0xff]
    %v1655 = vld [vmem:[#allocation2 + $0xc5] sm:$0xff]
    %v1656 = vpack.c.bf16 %v1632, %v1631
    %v1657 = vpack.c.bf16 %v1634, %v1633
    %v1658 = vpack.c.bf16 %v1636, %v1635
    %v1659 = vpack.c.bf16 %v1638, %v1637
    %v1660 = vpack.c.bf16 %v1640, %v1639
    %v1661 = vpack.c.bf16 %v1642, %v1641
    %v1662 = vpack.c.bf16 %v1644, %v1643
    %v1663 = vpack.c.bf16 %v1646, %v1645
    %v1664 = vpack.c.bf16 %v1648, %v1647
    %v1665 = vpack.c.bf16 %v1650, %v1649
    %v1666 = vpack.c.bf16 %v1652, %v1651
    %v1667 = vpack.c.bf16 %v1654, %v1653
    %v1668 = vpack.c.bf16 %v1655, %v1655
    %v1669 = vld [vmem:[%s2] sm:$0xf]
    %v1670 = vld [vmem:[%s2 + $0x4] sm:$0xf]
    %v1671 = vld [vmem:[%s2 + $0x8] sm:$0xf]
    %v1672 = vld [vmem:[%s2 + $0xc] sm:$0xf]
    %v1673 = vld [vmem:[%s2 + $0x10] sm:$0xf]
    %v1674 = vld [vmem:[%s2 + $0x14] sm:$0xf]
    %v1675 = vld [vmem:[%s2 + $0x18] sm:$0xf]
    %v1676 = vld [vmem:[%s2 + $0x1c] sm:$0xf]
    %v1677 = vld [vmem:[#allocation2 + $0x6] sm:$0xff]
    %v1678 = vld [vmem:[#allocation2 + $0xe] sm:$0xff]
    %v1679 = vld [vmem:[#allocation2 + $0x16] sm:$0xff]
    %v1680 = vld [vmem:[#allocation2 + $0x1e] sm:$0xff]
    %v1681 = vld [vmem:[#allocation2 + $0x26] sm:$0xff]
    %v1682 = vld [vmem:[#allocation2 + $0x2e] sm:$0xff]
    %v1683 = vld [vmem:[#allocation2 + $0x36] sm:$0xff]
    %v1684 = vld [vmem:[#allocation2 + $0x3e] sm:$0xff]
    %v1685 = vld [vmem:[#allocation2 + $0x46] sm:$0xff]
    %v1686 = vld [vmem:[#allocation2 + $0x4e] sm:$0xff]
    %v1687 = vld [vmem:[#allocation2 + $0x56] sm:$0xff]
    %v1688 = vld [vmem:[#allocation2 + $0x5e] sm:$0xff]
    %v1689 = vld [vmem:[#allocation2 + $0x66] sm:$0xff]
    %v1690 = vld [vmem:[#allocation2 + $0x6e] sm:$0xff]
    %v1691 = vld [vmem:[#allocation2 + $0x76] sm:$0xff]
    %v1692 = vld [vmem:[#allocation2 + $0x7e] sm:$0xff]
    %v1693 = vld [vmem:[#allocation2 + $0x86] sm:$0xff]
    %v1694 = vld [vmem:[#allocation2 + $0x8e] sm:$0xff]
    %v1695 = vld [vmem:[#allocation2 + $0x96] sm:$0xff]
    %v1696 = vld [vmem:[#allocation2 + $0x9e] sm:$0xff]
    %v1697 = vld [vmem:[#allocation2 + $0xa6] sm:$0xff]
    %v1698 = vld [vmem:[#allocation2 + $0xae] sm:$0xff]
    %v1699 = vld [vmem:[#allocation2 + $0xb6] sm:$0xff]
    %v1700 = vld [vmem:[#allocation2 + $0xbe] sm:$0xff]
    %v1701 = vld [vmem:[#allocation2 + $0xc6] sm:$0xff]
    %v1702 = vpack.c.bf16 %v1678, %v1677
    %v1703 = vpack.c.bf16 %v1680, %v1679
    %v1704 = vpack.c.bf16 %v1682, %v1681
    %v1705 = vpack.c.bf16 %v1684, %v1683
    %v1706 = vpack.c.bf16 %v1686, %v1685
    %v1707 = vpack.c.bf16 %v1688, %v1687
    %v1708 = vpack.c.bf16 %v1690, %v1689
    %v1709 = vpack.c.bf16 %v1692, %v1691
    %v1710 = vpack.c.bf16 %v1694, %v1693
    %v1711 = vpack.c.bf16 %v1696, %v1695
    %v1712 = vpack.c.bf16 %v1698, %v1697
    %v1713 = vpack.c.bf16 %v1700, %v1699
    %v1714 = vpack.c.bf16 %v1701, %v1701
    %s1715 = scalar_lea.vmem %s2, 32
    %v1716 = vld [vmem:[%s1715] sm:$0xf]
    %v1717 = vld [vmem:[%s1715 + $0x4] sm:$0xf]
    %v1718 = vld [vmem:[%s1715 + $0x8] sm:$0xf]
    %v1719 = vld [vmem:[%s1715 + $0xc] sm:$0xf]
    %v1720 = vld [vmem:[%s1715 + $0x10] sm:$0xf]
    %v1721 = vld [vmem:[%s1715 + $0x14] sm:$0xf]
    %v1722 = vld [vmem:[%s1715 + $0x18] sm:$0xf]
    %v1723 = vld [vmem:[%s1715 + $0x1c] sm:$0xf]
    %v1732 = vunpack.c.l.b16 %v1716
    %v1733 = vunpack.c.l.b16 %v1717
    %v1734 = vunpack.c.l.b16 %v1718
    %v1735 = vunpack.c.l.b16 %v1719
    %v1736 = vunpack.c.l.b16 %v1720
    %v1737 = vunpack.c.l.b16 %v1721
    %v1738 = vunpack.c.l.b16 %v1722
    %v1739 = vunpack.c.l.b16 %v1723
    %v1740 = vpack.c.b16 %v1733, %v1732
    %v1741 = vpack.c.b16 %v1735, %v1734
    %v1742 = vpack.c.b16 %v1737, %v1736
    %v1743 = vpack.c.b16 %v1739, %v1738
    %v1749 = vsel %vm28, %v1702, 0
    %v1752 = vsel %vm28, %v1703, 0
    %v1755 = vsel %vm28, %v1704, 0
    %v1758 = vsel %vm28, %v1705, 0
    %v1761 = vsel %vm28, %v1706, 0
    %v1764 = vsel %vm28, %v1707, 0
    %v1767 = vsel %vm28, %v1708, 0
    %v1770 = vsel %vm28, %v1709, 0
    %v1773 = vsel %vm28, %v1710, 0
    %v1776 = vsel %vm28, %v1711, 0
    %v1779 = vsel %vm28, %v1712, 0
    %v1782 = vsel %vm28, %v1713, 0
    %v1785 = vsel %vm28, %v1714, 0
    %1787 = vmatprep.subr.bf16.mxu0 0
    %1788 = vmatpush1.bf16.msra.mxu0 0
    %1789 = vmatprep.subr.bf16.mxu0 0
    %1790 = vmatpush1.bf16.msra.mxu0 0
    %1791 = vmatprep.subr.bf16.mxu0 0
    %1792 = vmatpush1.bf16.msra.mxu0 0
    %1793 = vmatprep.subr.bf16.mxu0 0
    %1794 = vmatpush1.bf16.msra.mxu0 0
    %1795 = vmatprep.subr.bf16.mxu0 0
    %1796 = vmatpush1.bf16.msra.mxu0 %v1743
    %1797 = vmatprep.subr.bf16.mxu0 0
    %1798 = vmatpush1.bf16.msra.mxu0 %v1742
    %1799 = vmatprep.subr.bf16.mxu0 0
    %1800 = vmatpush1.bf16.msra.mxu0 %v1741
    %1801 = vmatprep.subr.bf16.mxu0 0
    %1802 = vmatpush1.bf16.msra.mxu0 %v1740
    %1803 = vmatprep.subr.bf16.mxu0 0
    %1804 = vmatpush2.bf16.msra.mxu0 0
    %1805 = vmatprep.subr.bf16.mxu0 0
    %1806 = vmatpush2.bf16.msra.mxu0 0
    %1807 = vmatprep.subr.bf16.mxu0 0
    %1808 = vmatpush2.bf16.msra.mxu0 0
    %1809 = vmatprep.subr.bf16.mxu0 0
    %1810 = vmatpush2.bf16.msra.mxu0 0
    %1811 = vmatprep.subr.bf16.mxu0 0
    %1812 = vmatpush2.bf16.msra.mxu0 0
    %1813 = vmatprep.subr.bf16.mxu0 0
    %1814 = vmatpush2.bf16.msra.mxu0 0
    %1815 = vmatprep.subr.bf16.mxu0 0
    %1816 = vmatpush2.bf16.msra.mxu0 0
    %1817 = vmatprep.subr.bf16.mxu0 0
    %1818 = vmatpush2.bf16.msra.mxu0 0
    %1819 = vmatprep.mubr.bf16.mxu0 0
    %1820 = vmatmul.mubr.bf16.gmra.mxu0 %v1749
    %v1821 = vpop.f32.mrf.mxu0
    %v1822 = vadd.f32 0.0, %v1821
    %v1823 = vpop.f32.mrf.mxu0
    %v1824 = vpop.f32.mrf.mxu0
    %v1825 = vadd.f32 0.0, %v1824
    %v1826 = vpop.f32.mrf.mxu0
    %1827 = vmatprep.mubr.bf16.mxu0 0
    %1828 = vmatmul.mubr.bf16.gmra.mxu0 %v1752
    %v1829 = vpop.f32.mrf.mxu0
    %v1830 = vadd.f32 0.0, %v1829
    %v1831 = vpop.f32.mrf.mxu0
    %v1832 = vpop.f32.mrf.mxu0
    %v1833 = vadd.f32 0.0, %v1832
    %v1834 = vpop.f32.mrf.mxu0
    %1835 = vmatprep.mubr.bf16.mxu0 0
    %1836 = vmatmul.mubr.bf16.gmra.mxu0 %v1755
    %v1837 = vpop.f32.mrf.mxu0
    %v1838 = vadd.f32 0.0, %v1837
    %v1839 = vpop.f32.mrf.mxu0
    %v1840 = vpop.f32.mrf.mxu0
    %v1841 = vadd.f32 0.0, %v1840
    %v1842 = vpop.f32.mrf.mxu0
    %1843 = vmatprep.mubr.bf16.mxu0 0
    %1844 = vmatmul.mubr.bf16.gmra.mxu0 %v1758
    %v1845 = vpop.f32.mrf.mxu0
    %v1846 = vadd.f32 0.0, %v1845
    %v1847 = vpop.f32.mrf.mxu0
    %v1848 = vpop.f32.mrf.mxu0
    %v1849 = vadd.f32 0.0, %v1848
    %v1850 = vpop.f32.mrf.mxu0
    %1851 = vmatprep.mubr.bf16.mxu0 0
    %1852 = vmatmul.mubr.bf16.gmra.mxu0 %v1761
    %v1853 = vpop.f32.mrf.mxu0
    %v1854 = vadd.f32 0.0, %v1853
    %v1855 = vpop.f32.mrf.mxu0
    %v1856 = vpop.f32.mrf.mxu0
    %v1857 = vadd.f32 0.0, %v1856
    %v1858 = vpop.f32.mrf.mxu0
    %1859 = vmatprep.mubr.bf16.mxu0 0
    %1860 = vmatmul.mubr.bf16.gmra.mxu0 %v1764
    %v1861 = vpop.f32.mrf.mxu0
    %v1862 = vadd.f32 0.0, %v1861
    %v1863 = vpop.f32.mrf.mxu0
    %v1864 = vpop.f32.mrf.mxu0
    %v1865 = vadd.f32 0.0, %v1864
    %v1866 = vpop.f32.mrf.mxu0
    %1867 = vmatprep.mubr.bf16.mxu0 0
    %1868 = vmatmul.mubr.bf16.gmra.mxu0 %v1767
    %v1869 = vpop.f32.mrf.mxu0
    %v1870 = vadd.f32 0.0, %v1869
    %v1871 = vpop.f32.mrf.mxu0
    %v1872 = vpop.f32.mrf.mxu0
    %v1873 = vadd.f32 0.0, %v1872
    %v1874 = vpop.f32.mrf.mxu0
    %1875 = vmatprep.mubr.bf16.mxu0 0
    %1876 = vmatmul.mubr.bf16.gmra.mxu0 %v1770
    %v1877 = vpop.f32.mrf.mxu0
    %v1878 = vadd.f32 0.0, %v1877
    %v1879 = vpop.f32.mrf.mxu0
    %v1880 = vpop.f32.mrf.mxu0
    %v1881 = vadd.f32 0.0, %v1880
    %v1882 = vpop.f32.mrf.mxu0
    %1883 = vmatprep.mubr.bf16.mxu0 0
    %1884 = vmatmul.mubr.bf16.gmra.mxu0 %v1773
    %v1885 = vpop.f32.mrf.mxu0
    %v1886 = vadd.f32 0.0, %v1885
    %v1887 = vpop.f32.mrf.mxu0
    %v1888 = vpop.f32.mrf.mxu0
    %v1889 = vadd.f32 0.0, %v1888
    %v1890 = vpop.f32.mrf.mxu0
    %1891 = vmatprep.mubr.bf16.mxu0 0
    %1892 = vmatmul.mubr.bf16.gmra.mxu0 %v1776
    %v1893 = vpop.f32.mrf.mxu0
    %v1894 = vadd.f32 0.0, %v1893
    %v1895 = vpop.f32.mrf.mxu0
    %v1896 = vpop.f32.mrf.mxu0
    %v1897 = vadd.f32 0.0, %v1896
    %v1898 = vpop.f32.mrf.mxu0
    %1899 = vmatprep.mubr.bf16.mxu0 0
    %1900 = vmatmul.mubr.bf16.gmra.mxu0 %v1779
    %v1901 = vpop.f32.mrf.mxu0
    %v1902 = vadd.f32 0.0, %v1901
    %v1903 = vpop.f32.mrf.mxu0
    %v1904 = vpop.f32.mrf.mxu0
    %v1905 = vadd.f32 0.0, %v1904
    %v1906 = vpop.f32.mrf.mxu0
    %1907 = vmatprep.mubr.bf16.mxu0 0
    %1908 = vmatmul.mubr.bf16.gmra.mxu0 %v1782
    %v1909 = vpop.f32.mrf.mxu0
    %v1910 = vadd.f32 0.0, %v1909
    %v1911 = vpop.f32.mrf.mxu0
    %v1912 = vpop.f32.mrf.mxu0
    %v1913 = vadd.f32 0.0, %v1912
    %v1914 = vpop.f32.mrf.mxu0
    %1915 = vmatprep.mubr.bf16.mxu0 0
    %1916 = vmatmul.mubr.bf16.gmra.mxu0 %v1785
    %v1917 = vpop.f32.mrf.mxu0
    %v1918 = vadd.f32 0.0, %v1917
    %v1919 = vpop.f32.mrf.mxu0
    %v1920 = vpop.f32.mrf.mxu0
    %v1921 = vpop.f32.mrf.mxu0
    %1922 = vdwg.mxu0
    %v1931 = vunpack.c.l.b16 %v1669
    %v1932 = vunpack.c.l.b16 %v1670
    %v1933 = vunpack.c.l.b16 %v1671
    %v1934 = vunpack.c.l.b16 %v1672
    %v1935 = vunpack.c.l.b16 %v1673
    %v1936 = vunpack.c.l.b16 %v1674
    %v1937 = vunpack.c.l.b16 %v1675
    %v1938 = vunpack.c.l.b16 %v1676
    %v1939 = vpack.c.b16 %v1932, %v1931
    %v1940 = vpack.c.b16 %v1934, %v1933
    %v1941 = vpack.c.b16 %v1936, %v1935
    %v1942 = vpack.c.b16 %v1938, %v1937
    %v1948 = vsel %vm28, %v1656, 0
    %v1951 = vsel %vm28, %v1657, 0
    %v1954 = vsel %vm28, %v1658, 0
    %v1957 = vsel %vm28, %v1659, 0
    %v1960 = vsel %vm28, %v1660, 0
    %v1963 = vsel %vm28, %v1661, 0
    %v1966 = vsel %vm28, %v1662, 0
    %v1969 = vsel %vm28, %v1663, 0
    %v1972 = vsel %vm28, %v1664, 0
    %v1975 = vsel %vm28, %v1665, 0
    %v1978 = vsel %vm28, %v1666, 0
    %v1981 = vsel %vm28, %v1667, 0
    %v1984 = vsel %vm28, %v1668, 0
    %1986 = vmatprep.subr.bf16.mxu0 0
    %1987 = vmatpush1.bf16.msra.mxu0 0
    %1988 = vmatprep.subr.bf16.mxu0 0
    %1989 = vmatpush1.bf16.msra.mxu0 0
    %1990 = vmatprep.subr.bf16.mxu0 0
    %1991 = vmatpush1.bf16.msra.mxu0 0
    %1992 = vmatprep.subr.bf16.mxu0 0
    %1993 = vmatpush1.bf16.msra.mxu0 0
    %1994 = vmatprep.subr.bf16.mxu0 0
    %1995 = vmatpush1.bf16.msra.mxu0 %v1942
    %1996 = vmatprep.subr.bf16.mxu0 0
    %1997 = vmatpush1.bf16.msra.mxu0 %v1941
    %1998 = vmatprep.subr.bf16.mxu0 0
    %1999 = vmatpush1.bf16.msra.mxu0 %v1940
    %2000 = vmatprep.subr.bf16.mxu0 0
    %2001 = vmatpush1.bf16.msra.mxu0 %v1939
    %2002 = vmatprep.subr.bf16.mxu0 0
    %2003 = vmatpush2.bf16.msra.mxu0 0
    %2004 = vmatprep.subr.bf16.mxu0 0
    %2005 = vmatpush2.bf16.msra.mxu0 0
    %2006 = vmatprep.subr.bf16.mxu0 0
    %2007 = vmatpush2.bf16.msra.mxu0 0
    %2008 = vmatprep.subr.bf16.mxu0 0
    %2009 = vmatpush2.bf16.msra.mxu0 0
    %2010 = vmatprep.subr.bf16.mxu0 0
    %2011 = vmatpush2.bf16.msra.mxu0 0
    %2012 = vmatprep.subr.bf16.mxu0 0
    %2013 = vmatpush2.bf16.msra.mxu0 0
    %2014 = vmatprep.subr.bf16.mxu0 0
    %2015 = vmatpush2.bf16.msra.mxu0 0
    %2016 = vmatprep.subr.bf16.mxu0 0
    %2017 = vmatpush2.bf16.msra.mxu0 0
    %2018 = vmatprep.mubr.bf16.mxu0 0
    %2019 = vmatmul.mubr.bf16.gmra.mxu0 %v1948
    %v2020 = vpop.f32.mrf.mxu0
    %v2021 = vadd.f32 %v1822, %v2020
    %v2022 = vpop.f32.mrf.mxu0
    %v2023 = vpop.f32.mrf.mxu0
    %v2024 = vadd.f32 %v1825, %v2023
    %v2025 = vpop.f32.mrf.mxu0
    %2026 = vmatprep.mubr.bf16.mxu0 0
    %2027 = vmatmul.mubr.bf16.gmra.mxu0 %v1951
    %v2028 = vpop.f32.mrf.mxu0
    %v2029 = vadd.f32 %v1830, %v2028
    %v2030 = vpop.f32.mrf.mxu0
    %v2031 = vpop.f32.mrf.mxu0
    %v2032 = vadd.f32 %v1833, %v2031
    %v2033 = vpop.f32.mrf.mxu0
    %2034 = vmatprep.mubr.bf16.mxu0 0
    %2035 = vmatmul.mubr.bf16.gmra.mxu0 %v1954
    %v2036 = vpop.f32.mrf.mxu0
    %v2037 = vadd.f32 %v1838, %v2036
    %v2038 = vpop.f32.mrf.mxu0
    %v2039 = vpop.f32.mrf.mxu0
    %v2040 = vadd.f32 %v1841, %v2039
    %v2041 = vpop.f32.mrf.mxu0
    %2042 = vmatprep.mubr.bf16.mxu0 0
    %2043 = vmatmul.mubr.bf16.gmra.mxu0 %v1957
    %v2044 = vpop.f32.mrf.mxu0
    %v2045 = vadd.f32 %v1846, %v2044
    %v2046 = vpop.f32.mrf.mxu0
    %v2047 = vpop.f32.mrf.mxu0
    %v2048 = vadd.f32 %v1849, %v2047
    %v2049 = vpop.f32.mrf.mxu0
    %2050 = vmatprep.mubr.bf16.mxu0 0
    %2051 = vmatmul.mubr.bf16.gmra.mxu0 %v1960
    %v2052 = vpop.f32.mrf.mxu0
    %v2053 = vadd.f32 %v1854, %v2052
    %v2054 = vpop.f32.mrf.mxu0
    %v2055 = vpop.f32.mrf.mxu0
    %v2056 = vadd.f32 %v1857, %v2055
    %v2057 = vpop.f32.mrf.mxu0
    %2058 = vmatprep.mubr.bf16.mxu0 0
    %2059 = vmatmul.mubr.bf16.gmra.mxu0 %v1963
    %v2060 = vpop.f32.mrf.mxu0
    %v2061 = vadd.f32 %v1862, %v2060
    %v2062 = vpop.f32.mrf.mxu0
    %v2063 = vpop.f32.mrf.mxu0
    %v2064 = vadd.f32 %v1865, %v2063
    %v2065 = vpop.f32.mrf.mxu0
    %2066 = vmatprep.mubr.bf16.mxu0 0
    %2067 = vmatmul.mubr.bf16.gmra.mxu0 %v1966
    %v2068 = vpop.f32.mrf.mxu0
    %v2069 = vadd.f32 %v1870, %v2068
    %v2070 = vpop.f32.mrf.mxu0
    %v2071 = vpop.f32.mrf.mxu0
    %v2072 = vadd.f32 %v1873, %v2071
    %v2073 = vpop.f32.mrf.mxu0
    %2074 = vmatprep.mubr.bf16.mxu0 0
    %2075 = vmatmul.mubr.bf16.gmra.mxu0 %v1969
    %v2076 = vpop.f32.mrf.mxu0
    %v2077 = vadd.f32 %v1878, %v2076
    %v2078 = vpop.f32.mrf.mxu0
    %v2079 = vpop.f32.mrf.mxu0
    %v2080 = vadd.f32 %v1881, %v2079
    %v2081 = vpop.f32.mrf.mxu0
    %2082 = vmatprep.mubr.bf16.mxu0 0
    %2083 = vmatmul.mubr.bf16.gmra.mxu0 %v1972
    %v2084 = vpop.f32.mrf.mxu0
    %v2085 = vadd.f32 %v1886, %v2084
    %v2086 = vpop.f32.mrf.mxu0
    %v2087 = vpop.f32.mrf.mxu0
    %v2088 = vadd.f32 %v1889, %v2087
    %v2089 = vpop.f32.mrf.mxu0
    %2090 = vmatprep.mubr.bf16.mxu0 0
    %2091 = vmatmul.mubr.bf16.gmra.mxu0 %v1975
    %v2092 = vpop.f32.mrf.mxu0
    %v2093 = vadd.f32 %v1894, %v2092
    %v2094 = vpop.f32.mrf.mxu0
    %v2095 = vpop.f32.mrf.mxu0
    %v2096 = vadd.f32 %v1897, %v2095
    %v2097 = vpop.f32.mrf.mxu0
    %2098 = vmatprep.mubr.bf16.mxu0 0
    %2099 = vmatmul.mubr.bf16.gmra.mxu0 %v1978
    %v2100 = vpop.f32.mrf.mxu0
    %v2101 = vadd.f32 %v1902, %v2100
    %v2102 = vpop.f32.mrf.mxu0
    %v2103 = vpop.f32.mrf.mxu0
    %v2104 = vadd.f32 %v1905, %v2103
    %v2105 = vpop.f32.mrf.mxu0
    %2106 = vmatprep.mubr.bf16.mxu0 0
    %2107 = vmatmul.mubr.bf16.gmra.mxu0 %v1981
    %v2108 = vpop.f32.mrf.mxu0
    %v2109 = vadd.f32 %v1910, %v2108
    %v2110 = vpop.f32.mrf.mxu0
    %v2111 = vpop.f32.mrf.mxu0
    %v2112 = vadd.f32 %v1913, %v2111
    %v2113 = vpop.f32.mrf.mxu0
    %2114 = vmatprep.mubr.bf16.mxu0 0
    %2115 = vmatmul.mubr.bf16.gmra.mxu0 %v1984
    %v2116 = vpop.f32.mrf.mxu0
    %v2117 = vadd.f32 %v1918, %v2116
    %v2118 = vpop.f32.mrf.mxu0
    %v2119 = vpop.f32.mrf.mxu0
    %v2120 = vpop.f32.mrf.mxu0
    %2121 = vdwg.mxu0
    %v2122 = vld [vmem:[#allocation2 + $0x7] sm:$0xff]
    %v2123 = vld [vmem:[#allocation2 + $0xf] sm:$0xff]
    %v2124 = vld [vmem:[#allocation2 + $0x17] sm:$0xff]
    %v2125 = vld [vmem:[#allocation2 + $0x1f] sm:$0xff]
    %v2126 = vld [vmem:[#allocation2 + $0x27] sm:$0xff]
    %v2127 = vld [vmem:[#allocation2 + $0x2f] sm:$0xff]
    %v2128 = vld [vmem:[#allocation2 + $0x37] sm:$0xff]
    %v2129 = vld [vmem:[#allocation2 + $0x3f] sm:$0xff]
    %v2130 = vld [vmem:[#allocation2 + $0x47] sm:$0xff]
    %v2131 = vld [vmem:[#allocation2 + $0x4f] sm:$0xff]
    %v2132 = vld [vmem:[#allocation2 + $0x57] sm:$0xff]
    %v2133 = vld [vmem:[#allocation2 + $0x5f] sm:$0xff]
    %v2134 = vld [vmem:[#allocation2 + $0x67] sm:$0xff]
    %v2135 = vld [vmem:[#allocation2 + $0x6f] sm:$0xff]
    %v2136 = vld [vmem:[#allocation2 + $0x77] sm:$0xff]
    %v2137 = vld [vmem:[#allocation2 + $0x7f] sm:$0xff]
    %v2138 = vld [vmem:[#allocation2 + $0x87] sm:$0xff]
    %v2139 = vld [vmem:[#allocation2 + $0x8f] sm:$0xff]
    %v2140 = vld [vmem:[#allocation2 + $0x97] sm:$0xff]
    %v2141 = vld [vmem:[#allocation2 + $0x9f] sm:$0xff]
    %v2142 = vld [vmem:[#allocation2 + $0xa7] sm:$0xff]
    %v2143 = vld [vmem:[#allocation2 + $0xaf] sm:$0xff]
    %v2144 = vld [vmem:[#allocation2 + $0xb7] sm:$0xff]
    %v2145 = vld [vmem:[#allocation2 + $0xbf] sm:$0xff]
    %v2146 = vld [vmem:[#allocation2 + $0xc7] sm:$0xff]
    %v2147 = vpack.c.bf16 %v2123, %v2122
    %v2148 = vpack.c.bf16 %v2125, %v2124
    %v2149 = vpack.c.bf16 %v2127, %v2126
    %v2150 = vpack.c.bf16 %v2129, %v2128
    %v2151 = vpack.c.bf16 %v2131, %v2130
    %v2152 = vpack.c.bf16 %v2133, %v2132
    %v2153 = vpack.c.bf16 %v2135, %v2134
    %v2154 = vpack.c.bf16 %v2137, %v2136
    %v2155 = vpack.c.bf16 %v2139, %v2138
    %v2156 = vpack.c.bf16 %v2141, %v2140
    %v2157 = vpack.c.bf16 %v2143, %v2142
    %v2158 = vpack.c.bf16 %v2145, %v2144
    %v2159 = vpack.c.bf16 %v2146, %v2146
    %s2160 = scalar_lea.vmem %s2, 64
    %v2161 = vld [vmem:[%s2160] sm:$0xf]
    %v2162 = vld [vmem:[%s2160 + $0x4] sm:$0xf]
    %v2163 = vld [vmem:[%s2160 + $0x8] sm:$0xf]
    %v2164 = vld [vmem:[%s2160 + $0xc] sm:$0xf]
    %v2165 = vld [vmem:[%s2160 + $0x10] sm:$0xf]
    %v2166 = vld [vmem:[%s2160 + $0x14] sm:$0xf]
    %v2167 = vld [vmem:[%s2160 + $0x18] sm:$0xf]
    %v2168 = vld [vmem:[%s2160 + $0x1c] sm:$0xf]
    %v2177 = vunpack.c.l.b16 %v2161
    %v2178 = vunpack.c.l.b16 %v2162
    %v2179 = vunpack.c.l.b16 %v2163
    %v2180 = vunpack.c.l.b16 %v2164
    %v2181 = vunpack.c.l.b16 %v2165
    %v2182 = vunpack.c.l.b16 %v2166
    %v2183 = vunpack.c.l.b16 %v2167
    %v2184 = vunpack.c.l.b16 %v2168
    %v2185 = vpack.c.b16 %v2178, %v2177
    %v2186 = vpack.c.b16 %v2180, %v2179
    %v2187 = vpack.c.b16 %v2182, %v2181
    %v2188 = vpack.c.b16 %v2184, %v2183
    %v2194 = vsel %vm28, %v2147, 0
    %v2197 = vsel %vm28, %v2148, 0
    %v2200 = vsel %vm28, %v2149, 0
    %v2203 = vsel %vm28, %v2150, 0
    %v2206 = vsel %vm28, %v2151, 0
    %v2209 = vsel %vm28, %v2152, 0
    %v2212 = vsel %vm28, %v2153, 0
    %v2215 = vsel %vm28, %v2154, 0
    %v2218 = vsel %vm28, %v2155, 0
    %v2221 = vsel %vm28, %v2156, 0
    %v2224 = vsel %vm28, %v2157, 0
    %v2227 = vsel %vm28, %v2158, 0
    %v2230 = vsel %vm28, %v2159, 0
    %2232 = vmatprep.subr.bf16.mxu0 0
    %2233 = vmatpush1.bf16.msra.mxu0 0
    %2234 = vmatprep.subr.bf16.mxu0 0
    %2235 = vmatpush1.bf16.msra.mxu0 0
    %2236 = vmatprep.subr.bf16.mxu0 0
    %2237 = vmatpush1.bf16.msra.mxu0 0
    %2238 = vmatprep.subr.bf16.mxu0 0
    %2239 = vmatpush1.bf16.msra.mxu0 0
    %2240 = vmatprep.subr.bf16.mxu0 0
    %2241 = vmatpush1.bf16.msra.mxu0 %v2188
    %2242 = vmatprep.subr.bf16.mxu0 0
    %2243 = vmatpush1.bf16.msra.mxu0 %v2187
    %2244 = vmatprep.subr.bf16.mxu0 0
    %2245 = vmatpush1.bf16.msra.mxu0 %v2186
    %2246 = vmatprep.subr.bf16.mxu0 0
    %2247 = vmatpush1.bf16.msra.mxu0 %v2185
    %2248 = vmatprep.subr.bf16.mxu0 0
    %2249 = vmatpush2.bf16.msra.mxu0 0
    %2250 = vmatprep.subr.bf16.mxu0 0
    %2251 = vmatpush2.bf16.msra.mxu0 0
    %2252 = vmatprep.subr.bf16.mxu0 0
    %2253 = vmatpush2.bf16.msra.mxu0 0
    %2254 = vmatprep.subr.bf16.mxu0 0
    %2255 = vmatpush2.bf16.msra.mxu0 0
    %2256 = vmatprep.subr.bf16.mxu0 0
    %2257 = vmatpush2.bf16.msra.mxu0 0
    %2258 = vmatprep.subr.bf16.mxu0 0
    %2259 = vmatpush2.bf16.msra.mxu0 0
    %2260 = vmatprep.subr.bf16.mxu0 0
    %2261 = vmatpush2.bf16.msra.mxu0 0
    %2262 = vmatprep.subr.bf16.mxu0 0
    %2263 = vmatpush2.bf16.msra.mxu0 0
    %2264 = vmatprep.mubr.bf16.mxu0 0
    %2265 = vmatmul.mubr.bf16.gmra.mxu0 %v2194
    %v2266 = vpop.f32.mrf.mxu0
    %v2267 = vadd.f32 0.0, %v2266
    %v2268 = vpop.f32.mrf.mxu0
    %v2269 = vpop.f32.mrf.mxu0
    %v2270 = vadd.f32 0.0, %v2269
    %v2271 = vpop.f32.mrf.mxu0
    %2272 = vmatprep.mubr.bf16.mxu0 0
    %2273 = vmatmul.mubr.bf16.gmra.mxu0 %v2197
    %v2274 = vpop.f32.mrf.mxu0
    %v2275 = vadd.f32 0.0, %v2274
    %v2276 = vpop.f32.mrf.mxu0
    %v2277 = vpop.f32.mrf.mxu0
    %v2278 = vadd.f32 0.0, %v2277
    %v2279 = vpop.f32.mrf.mxu0
    %2280 = vmatprep.mubr.bf16.mxu0 0
    %2281 = vmatmul.mubr.bf16.gmra.mxu0 %v2200
    %v2282 = vpop.f32.mrf.mxu0
    %v2283 = vadd.f32 0.0, %v2282
    %v2284 = vpop.f32.mrf.mxu0
    %v2285 = vpop.f32.mrf.mxu0
    %v2286 = vadd.f32 0.0, %v2285
    %v2287 = vpop.f32.mrf.mxu0
    %2288 = vmatprep.mubr.bf16.mxu0 0
    %2289 = vmatmul.mubr.bf16.gmra.mxu0 %v2203
    %v2290 = vpop.f32.mrf.mxu0
    %v2291 = vadd.f32 0.0, %v2290
    %v2292 = vpop.f32.mrf.mxu0
    %v2293 = vpop.f32.mrf.mxu0
    %v2294 = vadd.f32 0.0, %v2293
    %v2295 = vpop.f32.mrf.mxu0
    %2296 = vmatprep.mubr.bf16.mxu0 0
    %2297 = vmatmul.mubr.bf16.gmra.mxu0 %v2206
    %v2298 = vpop.f32.mrf.mxu0
    %v2299 = vadd.f32 0.0, %v2298
    %v2300 = vpop.f32.mrf.mxu0
    %v2301 = vpop.f32.mrf.mxu0
    %v2302 = vadd.f32 0.0, %v2301
    %v2303 = vpop.f32.mrf.mxu0
    %2304 = vmatprep.mubr.bf16.mxu0 0
    %2305 = vmatmul.mubr.bf16.gmra.mxu0 %v2209
    %v2306 = vpop.f32.mrf.mxu0
    %v2307 = vadd.f32 0.0, %v2306
    %v2308 = vpop.f32.mrf.mxu0
    %v2309 = vpop.f32.mrf.mxu0
    %v2310 = vadd.f32 0.0, %v2309
    %v2311 = vpop.f32.mrf.mxu0
    %2312 = vmatprep.mubr.bf16.mxu0 0
    %2313 = vmatmul.mubr.bf16.gmra.mxu0 %v2212
    %v2314 = vpop.f32.mrf.mxu0
    %v2315 = vadd.f32 0.0, %v2314
    %v2316 = vpop.f32.mrf.mxu0
    %v2317 = vpop.f32.mrf.mxu0
    %v2318 = vadd.f32 0.0, %v2317
    %v2319 = vpop.f32.mrf.mxu0
    %2320 = vmatprep.mubr.bf16.mxu0 0
    %2321 = vmatmul.mubr.bf16.gmra.mxu0 %v2215
    %v2322 = vpop.f32.mrf.mxu0
    %v2323 = vadd.f32 0.0, %v2322
    %v2324 = vpop.f32.mrf.mxu0
    %v2325 = vpop.f32.mrf.mxu0
    %v2326 = vadd.f32 0.0, %v2325
    %v2327 = vpop.f32.mrf.mxu0
    %2328 = vmatprep.mubr.bf16.mxu0 0
    %2329 = vmatmul.mubr.bf16.gmra.mxu0 %v2218
    %v2330 = vpop.f32.mrf.mxu0
    %v2331 = vadd.f32 0.0, %v2330
    %v2332 = vpop.f32.mrf.mxu0
    %v2333 = vpop.f32.mrf.mxu0
    %v2334 = vadd.f32 0.0, %v2333
    %v2335 = vpop.f32.mrf.mxu0
    %2336 = vmatprep.mubr.bf16.mxu0 0
    %2337 = vmatmul.mubr.bf16.gmra.mxu0 %v2221
    %v2338 = vpop.f32.mrf.mxu0
    %v2339 = vadd.f32 0.0, %v2338
    %v2340 = vpop.f32.mrf.mxu0
    %v2341 = vpop.f32.mrf.mxu0
    %v2342 = vadd.f32 0.0, %v2341
    %v2343 = vpop.f32.mrf.mxu0
    %2344 = vmatprep.mubr.bf16.mxu0 0
    %2345 = vmatmul.mubr.bf16.gmra.mxu0 %v2224
    %v2346 = vpop.f32.mrf.mxu0
    %v2347 = vadd.f32 0.0, %v2346
    %v2348 = vpop.f32.mrf.mxu0
    %v2349 = vpop.f32.mrf.mxu0
    %v2350 = vadd.f32 0.0, %v2349
    %v2351 = vpop.f32.mrf.mxu0
    %2352 = vmatprep.mubr.bf16.mxu0 0
    %2353 = vmatmul.mubr.bf16.gmra.mxu0 %v2227
    %v2354 = vpop.f32.mrf.mxu0
    %v2355 = vadd.f32 0.0, %v2354
    %v2356 = vpop.f32.mrf.mxu0
    %v2357 = vpop.f32.mrf.mxu0
    %v2358 = vadd.f32 0.0, %v2357
    %v2359 = vpop.f32.mrf.mxu0
    %2360 = vmatprep.mubr.bf16.mxu0 0
    %2361 = vmatmul.mubr.bf16.gmra.mxu0 %v2230
    %v2362 = vpop.f32.mrf.mxu0
    %v2363 = vadd.f32 0.0, %v2362
    %v2364 = vpop.f32.mrf.mxu0
    %v2365 = vpop.f32.mrf.mxu0
    %v2366 = vpop.f32.mrf.mxu0
    %2367 = vdwg.mxu0
    %v2368 = vadd.f32 %v2021, %v2267
    %v2369 = vadd.f32 %v2024, %v2270
    %v2370 = vadd.f32 %v2029, %v2275
    %v2371 = vadd.f32 %v2032, %v2278
    %v2372 = vadd.f32 %v2037, %v2283
    %v2373 = vadd.f32 %v2040, %v2286
    %v2374 = vadd.f32 %v2045, %v2291
    %v2375 = vadd.f32 %v2048, %v2294
    %v2376 = vadd.f32 %v2053, %v2299
    %v2377 = vadd.f32 %v2056, %v2302
    %v2378 = vadd.f32 %v2061, %v2307
    %v2379 = vadd.f32 %v2064, %v2310
    %v2380 = vadd.f32 %v2069, %v2315
    %v2381 = vadd.f32 %v2072, %v2318
    %v2382 = vadd.f32 %v2077, %v2323
    %v2383 = vadd.f32 %v2080, %v2326
    %v2384 = vadd.f32 %v2085, %v2331
    %v2385 = vadd.f32 %v2088, %v2334
    %v2386 = vadd.f32 %v2093, %v2339
    %v2387 = vadd.f32 %v2096, %v2342
    %v2388 = vadd.f32 %v2101, %v2347
    %v2389 = vadd.f32 %v2104, %v2350
    %v2390 = vadd.f32 %v2109, %v2355
    %v2391 = vadd.f32 %v2112, %v2358
    %v2392 = vadd.f32 %v2117, %v2363
    %v2393 = vld [vmem:[#allocation2 + $0xf] sm:$0xff]
    %v2394 = vld [vmem:[#allocation2 + $0x17] sm:$0xff]
    %v2395 = vld [vmem:[#allocation2 + $0x1f] sm:$0xff]
    %v2396 = vld [vmem:[#allocation2 + $0x27] sm:$0xff]
    %v2397 = vld [vmem:[#allocation2 + $0x2f] sm:$0xff]
    %v2398 = vld [vmem:[#allocation2 + $0x37] sm:$0xff]
    %v2399 = vld [vmem:[#allocation2 + $0x3f] sm:$0xff]
    %v2400 = vld [vmem:[#allocation2 + $0x47] sm:$0xff]
    %v2401 = vld [vmem:[#allocation2 + $0x4f] sm:$0xff]
    %v2402 = vld [vmem:[#allocation2 + $0x57] sm:$0xff]
    %v2403 = vld [vmem:[#allocation2 + $0x5f] sm:$0xff]
    %v2404 = vld [vmem:[#allocation2 + $0x67] sm:$0xff]
    %v2405 = vld [vmem:[#allocation2 + $0x6f] sm:$0xff]
    %v2406 = vld [vmem:[#allocation2 + $0x77] sm:$0xff]
    %v2407 = vld [vmem:[#allocation2 + $0x7f] sm:$0xff]
    %v2408 = vld [vmem:[#allocation2 + $0x87] sm:$0xff]
    %v2409 = vld [vmem:[#allocation2 + $0x8f] sm:$0xff]
    %v2410 = vld [vmem:[#allocation2 + $0x97] sm:$0xff]
    %v2411 = vld [vmem:[#allocation2 + $0x9f] sm:$0xff]
    %v2412 = vld [vmem:[#allocation2 + $0xa7] sm:$0xff]
    %v2413 = vld [vmem:[#allocation2 + $0xaf] sm:$0xff]
    %v2414 = vld [vmem:[#allocation2 + $0xb7] sm:$0xff]
    %v2415 = vld [vmem:[#allocation2 + $0xbf] sm:$0xff]
    %v2416 = vld [vmem:[#allocation2 + $0xc7] sm:$0xff]
    %v2417 = vld [vmem:[#allocation2 + $0xcf] sm:$0xff]
    %v2418 = vpack.c.bf16 %v2394, %v2393
    %v2419 = vpack.c.bf16 %v2396, %v2395
    %v2420 = vpack.c.bf16 %v2398, %v2397
    %v2421 = vpack.c.bf16 %v2400, %v2399
    %v2422 = vpack.c.bf16 %v2402, %v2401
    %v2423 = vpack.c.bf16 %v2404, %v2403
    %v2424 = vpack.c.bf16 %v2406, %v2405
    %v2425 = vpack.c.bf16 %v2408, %v2407
    %v2426 = vpack.c.bf16 %v2410, %v2409
    %v2427 = vpack.c.bf16 %v2412, %v2411
    %v2428 = vpack.c.bf16 %v2414, %v2413
    %v2429 = vpack.c.bf16 %v2416, %v2415
    %v2430 = vpack.c.bf16 %v2417, %v2417
    %s2431 = scalar_lea.vmem %s2, 96
    %v2432 = vld [vmem:[%s2431] sm:$0xf]
    %v2433 = vld [vmem:[%s2431 + $0x4] sm:$0xf]
    %v2434 = vld [vmem:[%s2431 + $0x8] sm:$0xf]
    %v2435 = vld [vmem:[%s2431 + $0xc] sm:$0xf]
    %v2436 = vld [vmem:[%s2431 + $0x10] sm:$0xf]
    %v2437 = vld [vmem:[%s2431 + $0x14] sm:$0xf]
    %v2438 = vld [vmem:[%s2431 + $0x18] sm:$0xf]
    %v2439 = vld [vmem:[%s2431 + $0x1c] sm:$0xf]
    %v2448 = vunpack.c.l.b16 %v2432
    %v2449 = vunpack.c.l.b16 %v2433
    %v2450 = vunpack.c.l.b16 %v2434
    %v2451 = vunpack.c.l.b16 %v2435
    %v2452 = vunpack.c.l.b16 %v2436
    %v2453 = vunpack.c.l.b16 %v2437
    %v2454 = vunpack.c.l.b16 %v2438
    %v2455 = vunpack.c.l.b16 %v2439
    %v2456 = vpack.c.b16 %v2449, %v2448
    %v2457 = vpack.c.b16 %v2451, %v2450
    %v2458 = vpack.c.b16 %v2453, %v2452
    %v2459 = vpack.c.b16 %v2455, %v2454
    %v2465 = vsel %vm28, %v2418, 0
    %v2468 = vsel %vm28, %v2419, 0
    %v2471 = vsel %vm28, %v2420, 0
    %v2474 = vsel %vm28, %v2421, 0
    %v2477 = vsel %vm28, %v2422, 0
    %v2480 = vsel %vm28, %v2423, 0
    %v2483 = vsel %vm28, %v2424, 0
    %v2486 = vsel %vm28, %v2425, 0
    %v2489 = vsel %vm28, %v2426, 0
    %v2492 = vsel %vm28, %v2427, 0
    %v2495 = vsel %vm28, %v2428, 0
    %v2498 = vsel %vm28, %v2429, 0
    %v2501 = vsel %vm28, %v2430, 0
    %2503 = vmatprep.subr.bf16.mxu0 0
    %2504 = vmatpush1.bf16.msra.mxu0 0
    %2505 = vmatprep.subr.bf16.mxu0 0
    %2506 = vmatpush1.bf16.msra.mxu0 0
    %2507 = vmatprep.subr.bf16.mxu0 0
    %2508 = vmatpush1.bf16.msra.mxu0 0
    %2509 = vmatprep.subr.bf16.mxu0 0
    %2510 = vmatpush1.bf16.msra.mxu0 0
    %2511 = vmatprep.subr.bf16.mxu0 0
    %2512 = vmatpush1.bf16.msra.mxu0 %v2459
    %2513 = vmatprep.subr.bf16.mxu0 0
    %2514 = vmatpush1.bf16.msra.mxu0 %v2458
    %2515 = vmatprep.subr.bf16.mxu0 0
    %2516 = vmatpush1.bf16.msra.mxu0 %v2457
    %2517 = vmatprep.subr.bf16.mxu0 0
    %2518 = vmatpush1.bf16.msra.mxu0 %v2456
    %2519 = vmatprep.subr.bf16.mxu0 0
    %2520 = vmatpush2.bf16.msra.mxu0 0
    %2521 = vmatprep.subr.bf16.mxu0 0
    %2522 = vmatpush2.bf16.msra.mxu0 0
    %2523 = vmatprep.subr.bf16.mxu0 0
    %2524 = vmatpush2.bf16.msra.mxu0 0
    %2525 = vmatprep.subr.bf16.mxu0 0
    %2526 = vmatpush2.bf16.msra.mxu0 0
    %2527 = vmatprep.subr.bf16.mxu0 0
    %2528 = vmatpush2.bf16.msra.mxu0 0
    %2529 = vmatprep.subr.bf16.mxu0 0
    %2530 = vmatpush2.bf16.msra.mxu0 0
    %2531 = vmatprep.subr.bf16.mxu0 0
    %2532 = vmatpush2.bf16.msra.mxu0 0
    %2533 = vmatprep.subr.bf16.mxu0 0
    %2534 = vmatpush2.bf16.msra.mxu0 0
    %2535 = vmatprep.mubr.bf16.mxu0 0
    %2536 = vmatmul.mubr.bf16.gmra.mxu0 %v2465
    %v2537 = vpop.f32.mrf.mxu0
    %v2538 = vadd.f32 0.0, %v2537
    %v2539 = vpop.f32.mrf.mxu0
    %v2540 = vpop.f32.mrf.mxu0
    %v2541 = vadd.f32 0.0, %v2540
    %v2542 = vpop.f32.mrf.mxu0
    %2543 = vmatprep.mubr.bf16.mxu0 0
    %2544 = vmatmul.mubr.bf16.gmra.mxu0 %v2468
    %v2545 = vpop.f32.mrf.mxu0
    %v2546 = vadd.f32 0.0, %v2545
    %v2547 = vpop.f32.mrf.mxu0
    %v2548 = vpop.f32.mrf.mxu0
    %v2549 = vadd.f32 0.0, %v2548
    %v2550 = vpop.f32.mrf.mxu0
    %2551 = vmatprep.mubr.bf16.mxu0 0
    %2552 = vmatmul.mubr.bf16.gmra.mxu0 %v2471
    %v2553 = vpop.f32.mrf.mxu0
    %v2554 = vadd.f32 0.0, %v2553
    %v2555 = vpop.f32.mrf.mxu0
    %v2556 = vpop.f32.mrf.mxu0
    %v2557 = vadd.f32 0.0, %v2556
    %v2558 = vpop.f32.mrf.mxu0
    %2559 = vmatprep.mubr.bf16.mxu0 0
    %2560 = vmatmul.mubr.bf16.gmra.mxu0 %v2474
    %v2561 = vpop.f32.mrf.mxu0
    %v2562 = vadd.f32 0.0, %v2561
    %v2563 = vpop.f32.mrf.mxu0
    %v2564 = vpop.f32.mrf.mxu0
    %v2565 = vadd.f32 0.0, %v2564
    %v2566 = vpop.f32.mrf.mxu0
    %2567 = vmatprep.mubr.bf16.mxu0 0
    %2568 = vmatmul.mubr.bf16.gmra.mxu0 %v2477
    %v2569 = vpop.f32.mrf.mxu0
    %v2570 = vadd.f32 0.0, %v2569
    %v2571 = vpop.f32.mrf.mxu0
    %v2572 = vpop.f32.mrf.mxu0
    %v2573 = vadd.f32 0.0, %v2572
    %v2574 = vpop.f32.mrf.mxu0
    %2575 = vmatprep.mubr.bf16.mxu0 0
    %2576 = vmatmul.mubr.bf16.gmra.mxu0 %v2480
    %v2577 = vpop.f32.mrf.mxu0
    %v2578 = vadd.f32 0.0, %v2577
    %v2579 = vpop.f32.mrf.mxu0
    %v2580 = vpop.f32.mrf.mxu0
    %v2581 = vadd.f32 0.0, %v2580
    %v2582 = vpop.f32.mrf.mxu0
    %2583 = vmatprep.mubr.bf16.mxu0 0
    %2584 = vmatmul.mubr.bf16.gmra.mxu0 %v2483
    %v2585 = vpop.f32.mrf.mxu0
    %v2586 = vadd.f32 0.0, %v2585
    %v2587 = vpop.f32.mrf.mxu0
    %v2588 = vpop.f32.mrf.mxu0
    %v2589 = vadd.f32 0.0, %v2588
    %v2590 = vpop.f32.mrf.mxu0
    %2591 = vmatprep.mubr.bf16.mxu0 0
    %2592 = vmatmul.mubr.bf16.gmra.mxu0 %v2486
    %v2593 = vpop.f32.mrf.mxu0
    %v2594 = vadd.f32 0.0, %v2593
    %v2595 = vpop.f32.mrf.mxu0
    %v2596 = vpop.f32.mrf.mxu0
    %v2597 = vadd.f32 0.0, %v2596
    %v2598 = vpop.f32.mrf.mxu0
    %2599 = vmatprep.mubr.bf16.mxu0 0
    %2600 = vmatmul.mubr.bf16.gmra.mxu0 %v2489
    %v2601 = vpop.f32.mrf.mxu0
    %v2602 = vadd.f32 0.0, %v2601
    %v2603 = vpop.f32.mrf.mxu0
    %v2604 = vpop.f32.mrf.mxu0
    %v2605 = vadd.f32 0.0, %v2604
    %v2606 = vpop.f32.mrf.mxu0
    %2607 = vmatprep.mubr.bf16.mxu0 0
    %2608 = vmatmul.mubr.bf16.gmra.mxu0 %v2492
    %v2609 = vpop.f32.mrf.mxu0
    %v2610 = vadd.f32 0.0, %v2609
    %v2611 = vpop.f32.mrf.mxu0
    %v2612 = vpop.f32.mrf.mxu0
    %v2613 = vadd.f32 0.0, %v2612
    %v2614 = vpop.f32.mrf.mxu0
    %2615 = vmatprep.mubr.bf16.mxu0 0
    %2616 = vmatmul.mubr.bf16.gmra.mxu0 %v2495
    %v2617 = vpop.f32.mrf.mxu0
    %v2618 = vadd.f32 0.0, %v2617
    %v2619 = vpop.f32.mrf.mxu0
    %v2620 = vpop.f32.mrf.mxu0
    %v2621 = vadd.f32 0.0, %v2620
    %v2622 = vpop.f32.mrf.mxu0
    %2623 = vmatprep.mubr.bf16.mxu0 0
    %2624 = vmatmul.mubr.bf16.gmra.mxu0 %v2498
    %v2625 = vpop.f32.mrf.mxu0
    %v2626 = vadd.f32 0.0, %v2625
    %v2627 = vpop.f32.mrf.mxu0
    %v2628 = vpop.f32.mrf.mxu0
    %v2629 = vadd.f32 0.0, %v2628
    %v2630 = vpop.f32.mrf.mxu0
    %2631 = vmatprep.mubr.bf16.mxu0 0
    %2632 = vmatmul.mubr.bf16.gmra.mxu0 %v2501
    %v2633 = vpop.f32.mrf.mxu0
    %v2634 = vadd.f32 0.0, %v2633
    %v2635 = vpop.f32.mrf.mxu0
    %v2636 = vpop.f32.mrf.mxu0
    %v2637 = vpop.f32.mrf.mxu0
    %2638 = vdwg.mxu0
    %v2639 = vadd.f32 %v2368, %v2538
    %v2640 = vadd.f32 %v2369, %v2541
    %v2641 = vadd.f32 %v2370, %v2546
    %v2642 = vadd.f32 %v2371, %v2549
    %v2643 = vadd.f32 %v2372, %v2554
    %v2644 = vadd.f32 %v2373, %v2557
    %v2645 = vadd.f32 %v2374, %v2562
    %v2646 = vadd.f32 %v2375, %v2565
    %v2647 = vadd.f32 %v2376, %v2570
    %v2648 = vadd.f32 %v2377, %v2573
    %v2649 = vadd.f32 %v2378, %v2578
    %v2650 = vadd.f32 %v2379, %v2581
    %v2651 = vadd.f32 %v2380, %v2586
    %v2652 = vadd.f32 %v2381, %v2589
    %v2653 = vadd.f32 %v2382, %v2594
    %v2654 = vadd.f32 %v2383, %v2597
    %v2655 = vadd.f32 %v2384, %v2602
    %v2656 = vadd.f32 %v2385, %v2605
    %v2657 = vadd.f32 %v2386, %v2610
    %v2658 = vadd.f32 %v2387, %v2613
    %v2659 = vadd.f32 %v2388, %v2618
    %v2660 = vadd.f32 %v2389, %v2621
    %v2661 = vadd.f32 %v2390, %v2626
    %v2662 = vadd.f32 %v2391, %v2629
    %v2663 = vadd.f32 %v2392, %v2634
    %v2664 = vld [vmem:[#allocation2 + $0x10] sm:$0xff]
    %v2665 = vld [vmem:[#allocation2 + $0x18] sm:$0xff]
    %v2666 = vld [vmem:[#allocation2 + $0x20] sm:$0xff]
    %v2667 = vld [vmem:[#allocation2 + $0x28] sm:$0xff]
    %v2668 = vld [vmem:[#allocation2 + $0x30] sm:$0xff]
    %v2669 = vld [vmem:[#allocation2 + $0x38] sm:$0xff]
    %v2670 = vld [vmem:[#allocation2 + $0x40] sm:$0xff]
    %v2671 = vld [vmem:[#allocation2 + $0x48] sm:$0xff]
    %v2672 = vld [vmem:[#allocation2 + $0x50] sm:$0xff]
    %v2673 = vld [vmem:[#allocation2 + $0x58] sm:$0xff]
    %v2674 = vld [vmem:[#allocation2 + $0x60] sm:$0xff]
    %v2675 = vld [vmem:[#allocation2 + $0x68] sm:$0xff]
    %v2676 = vld [vmem:[#allocation2 + $0x70] sm:$0xff]
    %v2677 = vld [vmem:[#allocation2 + $0x78] sm:$0xff]
    %v2678 = vld [vmem:[#allocation2 + $0x80] sm:$0xff]
    %v2679 = vld [vmem:[#allocation2 + $0x88] sm:$0xff]
    %v2680 = vld [vmem:[#allocation2 + $0x90] sm:$0xff]
    %v2681 = vld [vmem:[#allocation2 + $0x98] sm:$0xff]
    %v2682 = vld [vmem:[#allocation2 + $0xa0] sm:$0xff]
    %v2683 = vld [vmem:[#allocation2 + $0xa8] sm:$0xff]
    %v2684 = vld [vmem:[#allocation2 + $0xb0] sm:$0xff]
    %v2685 = vld [vmem:[#allocation2 + $0xb8] sm:$0xff]
    %v2686 = vld [vmem:[#allocation2 + $0xc0] sm:$0xff]
    %v2687 = vld [vmem:[#allocation2 + $0xc8] sm:$0xff]
    %v2688 = vld [vmem:[#allocation2 + $0xd0] sm:$0xff]
    %v2689 = vpack.c.bf16 %v2665, %v2664
    %v2690 = vpack.c.bf16 %v2667, %v2666
    %v2691 = vpack.c.bf16 %v2669, %v2668
    %v2692 = vpack.c.bf16 %v2671, %v2670
    %v2693 = vpack.c.bf16 %v2673, %v2672
    %v2694 = vpack.c.bf16 %v2675, %v2674
    %v2695 = vpack.c.bf16 %v2677, %v2676
    %v2696 = vpack.c.bf16 %v2679, %v2678
    %v2697 = vpack.c.bf16 %v2681, %v2680
    %v2698 = vpack.c.bf16 %v2683, %v2682
    %v2699 = vpack.c.bf16 %v2685, %v2684
    %v2700 = vpack.c.bf16 %v2687, %v2686
    %v2701 = vpack.c.bf16 %v2688, %v2688
    %s2702 = scalar_lea.vmem %s2, 128
    %v2703 = vld [vmem:[%s2702] sm:$0xf]
    %v2704 = vld [vmem:[%s2702 + $0x4] sm:$0xf]
    %v2705 = vld [vmem:[%s2702 + $0x8] sm:$0xf]
    %v2706 = vld [vmem:[%s2702 + $0xc] sm:$0xf]
    %v2707 = vld [vmem:[%s2702 + $0x10] sm:$0xf]
    %v2708 = vld [vmem:[%s2702 + $0x14] sm:$0xf]
    %v2709 = vld [vmem:[%s2702 + $0x18] sm:$0xf]
    %v2710 = vld [vmem:[%s2702 + $0x1c] sm:$0xf]
    %v2719 = vunpack.c.l.b16 %v2703
    %v2720 = vunpack.c.l.b16 %v2704
    %v2721 = vunpack.c.l.b16 %v2705
    %v2722 = vunpack.c.l.b16 %v2706
    %v2723 = vunpack.c.l.b16 %v2707
    %v2724 = vunpack.c.l.b16 %v2708
    %v2725 = vunpack.c.l.b16 %v2709
    %v2726 = vunpack.c.l.b16 %v2710
    %v2727 = vpack.c.b16 %v2720, %v2719
    %v2728 = vpack.c.b16 %v2722, %v2721
    %v2729 = vpack.c.b16 %v2724, %v2723
    %v2730 = vpack.c.b16 %v2726, %v2725
    %v2736 = vsel %vm28, %v2689, 0
    %v2739 = vsel %vm28, %v2690, 0
    %v2742 = vsel %vm28, %v2691, 0
    %v2745 = vsel %vm28, %v2692, 0
    %v2748 = vsel %vm28, %v2693, 0
    %v2751 = vsel %vm28, %v2694, 0
    %v2754 = vsel %vm28, %v2695, 0
    %v2757 = vsel %vm28, %v2696, 0
    %v2760 = vsel %vm28, %v2697, 0
    %v2763 = vsel %vm28, %v2698, 0
    %v2766 = vsel %vm28, %v2699, 0
    %v2769 = vsel %vm28, %v2700, 0
    %v2772 = vsel %vm28, %v2701, 0
    %2774 = vmatprep.subr.bf16.mxu0 0
    %2775 = vmatpush1.bf16.msra.mxu0 0
    %2776 = vmatprep.subr.bf16.mxu0 0
    %2777 = vmatpush1.bf16.msra.mxu0 0
    %2778 = vmatprep.subr.bf16.mxu0 0
    %2779 = vmatpush1.bf16.msra.mxu0 0
    %2780 = vmatprep.subr.bf16.mxu0 0
    %2781 = vmatpush1.bf16.msra.mxu0 0
    %2782 = vmatprep.subr.bf16.mxu0 0
    %2783 = vmatpush1.bf16.msra.mxu0 %v2730
    %2784 = vmatprep.subr.bf16.mxu0 0
    %2785 = vmatpush1.bf16.msra.mxu0 %v2729
    %2786 = vmatprep.subr.bf16.mxu0 0
    %2787 = vmatpush1.bf16.msra.mxu0 %v2728
    %2788 = vmatprep.subr.bf16.mxu0 0
    %2789 = vmatpush1.bf16.msra.mxu0 %v2727
    %2790 = vmatprep.subr.bf16.mxu0 0
    %2791 = vmatpush2.bf16.msra.mxu0 0
    %2792 = vmatprep.subr.bf16.mxu0 0
    %2793 = vmatpush2.bf16.msra.mxu0 0
    %2794 = vmatprep.subr.bf16.mxu0 0
    %2795 = vmatpush2.bf16.msra.mxu0 0
    %2796 = vmatprep.subr.bf16.mxu0 0
    %2797 = vmatpush2.bf16.msra.mxu0 0
    %2798 = vmatprep.subr.bf16.mxu0 0
    %2799 = vmatpush2.bf16.msra.mxu0 0
    %2800 = vmatprep.subr.bf16.mxu0 0
    %2801 = vmatpush2.bf16.msra.mxu0 0
    %2802 = vmatprep.subr.bf16.mxu0 0
    %2803 = vmatpush2.bf16.msra.mxu0 0
    %2804 = vmatprep.subr.bf16.mxu0 0
    %2805 = vmatpush2.bf16.msra.mxu0 0
    %2806 = vmatprep.mubr.bf16.mxu0 0
    %2807 = vmatmul.mubr.bf16.gmra.mxu0 %v2736
    %v2808 = vpop.f32.mrf.mxu0
    %v2809 = vadd.f32 0.0, %v2808
    %v2810 = vpop.f32.mrf.mxu0
    %v2811 = vpop.f32.mrf.mxu0
    %v2812 = vadd.f32 0.0, %v2811
    %v2813 = vpop.f32.mrf.mxu0
    %2814 = vmatprep.mubr.bf16.mxu0 0
    %2815 = vmatmul.mubr.bf16.gmra.mxu0 %v2739
    %v2816 = vpop.f32.mrf.mxu0
    %v2817 = vadd.f32 0.0, %v2816
    %v2818 = vpop.f32.mrf.mxu0
    %v2819 = vpop.f32.mrf.mxu0
    %v2820 = vadd.f32 0.0, %v2819
    %v2821 = vpop.f32.mrf.mxu0
    %2822 = vmatprep.mubr.bf16.mxu0 0
    %2823 = vmatmul.mubr.bf16.gmra.mxu0 %v2742
    %v2824 = vpop.f32.mrf.mxu0
    %v2825 = vadd.f32 0.0, %v2824
    %v2826 = vpop.f32.mrf.mxu0
    %v2827 = vpop.f32.mrf.mxu0
    %v2828 = vadd.f32 0.0, %v2827
    %v2829 = vpop.f32.mrf.mxu0
    %2830 = vmatprep.mubr.bf16.mxu0 0
    %2831 = vmatmul.mubr.bf16.gmra.mxu0 %v2745
    %v2832 = vpop.f32.mrf.mxu0
    %v2833 = vadd.f32 0.0, %v2832
    %v2834 = vpop.f32.mrf.mxu0
    %v2835 = vpop.f32.mrf.mxu0
    %v2836 = vadd.f32 0.0, %v2835
    %v2837 = vpop.f32.mrf.mxu0
    %2838 = vmatprep.mubr.bf16.mxu0 0
    %2839 = vmatmul.mubr.bf16.gmra.mxu0 %v2748
    %v2840 = vpop.f32.mrf.mxu0
    %v2841 = vadd.f32 0.0, %v2840
    %v2842 = vpop.f32.mrf.mxu0
    %v2843 = vpop.f32.mrf.mxu0
    %v2844 = vadd.f32 0.0, %v2843
    %v2845 = vpop.f32.mrf.mxu0
    %2846 = vmatprep.mubr.bf16.mxu0 0
    %2847 = vmatmul.mubr.bf16.gmra.mxu0 %v2751
    %v2848 = vpop.f32.mrf.mxu0
    %v2849 = vadd.f32 0.0, %v2848
    %v2850 = vpop.f32.mrf.mxu0
    %v2851 = vpop.f32.mrf.mxu0
    %v2852 = vadd.f32 0.0, %v2851
    %v2853 = vpop.f32.mrf.mxu0
    %2854 = vmatprep.mubr.bf16.mxu0 0
    %2855 = vmatmul.mubr.bf16.gmra.mxu0 %v2754
    %v2856 = vpop.f32.mrf.mxu0
    %v2857 = vadd.f32 0.0, %v2856
    %v2858 = vpop.f32.mrf.mxu0
    %v2859 = vpop.f32.mrf.mxu0
    %v2860 = vadd.f32 0.0, %v2859
    %v2861 = vpop.f32.mrf.mxu0
    %2862 = vmatprep.mubr.bf16.mxu0 0
    %2863 = vmatmul.mubr.bf16.gmra.mxu0 %v2757
    %v2864 = vpop.f32.mrf.mxu0
    %v2865 = vadd.f32 0.0, %v2864
    %v2866 = vpop.f32.mrf.mxu0
    %v2867 = vpop.f32.mrf.mxu0
    %v2868 = vadd.f32 0.0, %v2867
    %v2869 = vpop.f32.mrf.mxu0
    %2870 = vmatprep.mubr.bf16.mxu0 0
    %2871 = vmatmul.mubr.bf16.gmra.mxu0 %v2760
    %v2872 = vpop.f32.mrf.mxu0
    %v2873 = vadd.f32 0.0, %v2872
    %v2874 = vpop.f32.mrf.mxu0
    %v2875 = vpop.f32.mrf.mxu0
    %v2876 = vadd.f32 0.0, %v2875
    %v2877 = vpop.f32.mrf.mxu0
    %2878 = vmatprep.mubr.bf16.mxu0 0
    %2879 = vmatmul.mubr.bf16.gmra.mxu0 %v2763
    %v2880 = vpop.f32.mrf.mxu0
    %v2881 = vadd.f32 0.0, %v2880
    %v2882 = vpop.f32.mrf.mxu0
    %v2883 = vpop.f32.mrf.mxu0
    %v2884 = vadd.f32 0.0, %v2883
    %v2885 = vpop.f32.mrf.mxu0
    %2886 = vmatprep.mubr.bf16.mxu0 0
    %2887 = vmatmul.mubr.bf16.gmra.mxu0 %v2766
    %v2888 = vpop.f32.mrf.mxu0
    %v2889 = vadd.f32 0.0, %v2888
    %v2890 = vpop.f32.mrf.mxu0
    %v2891 = vpop.f32.mrf.mxu0
    %v2892 = vadd.f32 0.0, %v2891
    %v2893 = vpop.f32.mrf.mxu0
    %2894 = vmatprep.mubr.bf16.mxu0 0
    %2895 = vmatmul.mubr.bf16.gmra.mxu0 %v2769
    %v2896 = vpop.f32.mrf.mxu0
    %v2897 = vadd.f32 0.0, %v2896
    %v2898 = vpop.f32.mrf.mxu0
    %v2899 = vpop.f32.mrf.mxu0
    %v2900 = vadd.f32 0.0, %v2899
    %v2901 = vpop.f32.mrf.mxu0
    %2902 = vmatprep.mubr.bf16.mxu0 0
    %2903 = vmatmul.mubr.bf16.gmra.mxu0 %v2772
    %v2904 = vpop.f32.mrf.mxu0
    %v2905 = vadd.f32 0.0, %v2904
    %v2906 = vpop.f32.mrf.mxu0
    %v2907 = vpop.f32.mrf.mxu0
    %v2908 = vpop.f32.mrf.mxu0
    %2909 = vdwg.mxu0
    %v2910 = vadd.f32 %v2639, %v2809
    %v2911 = vadd.f32 %v2640, %v2812
    %v2912 = vadd.f32 %v2641, %v2817
    %v2913 = vadd.f32 %v2642, %v2820
    %v2914 = vadd.f32 %v2643, %v2825
    %v2915 = vadd.f32 %v2644, %v2828
    %v2916 = vadd.f32 %v2645, %v2833
    %v2917 = vadd.f32 %v2646, %v2836
    %v2918 = vadd.f32 %v2647, %v2841
    %v2919 = vadd.f32 %v2648, %v2844
    %v2920 = vadd.f32 %v2649, %v2849
    %v2921 = vadd.f32 %v2650, %v2852
    %v2922 = vadd.f32 %v2651, %v2857
    %v2923 = vadd.f32 %v2652, %v2860
    %v2924 = vadd.f32 %v2653, %v2865
    %v2925 = vadd.f32 %v2654, %v2868
    %v2926 = vadd.f32 %v2655, %v2873
    %v2927 = vadd.f32 %v2656, %v2876
    %v2928 = vadd.f32 %v2657, %v2881
    %v2929 = vadd.f32 %v2658, %v2884
    %v2930 = vadd.f32 %v2659, %v2889
    %v2931 = vadd.f32 %v2660, %v2892
    %v2932 = vadd.f32 %v2661, %v2897
    %v2933 = vadd.f32 %v2662, %v2900
    %v2934 = vadd.f32 %v2663, %v2905
    %v2935 = vld [vmem:[#allocation2 + $0x11] sm:$0xff]
    %v2936 = vld [vmem:[#allocation2 + $0x19] sm:$0xff]
    %v2937 = vld [vmem:[#allocation2 + $0x21] sm:$0xff]
    %v2938 = vld [vmem:[#allocation2 + $0x29] sm:$0xff]
    %v2939 = vld [vmem:[#allocation2 + $0x31] sm:$0xff]
    %v2940 = vld [vmem:[#allocation2 + $0x39] sm:$0xff]
    %v2941 = vld [vmem:[#allocation2 + $0x41] sm:$0xff]
    %v2942 = vld [vmem:[#allocation2 + $0x49] sm:$0xff]
    %v2943 = vld [vmem:[#allocation2 + $0x51] sm:$0xff]
    %v2944 = vld [vmem:[#allocation2 + $0x59] sm:$0xff]
    %v2945 = vld [vmem:[#allocation2 + $0x61] sm:$0xff]
    %v2946 = vld [vmem:[#allocation2 + $0x69] sm:$0xff]
    %v2947 = vld [vmem:[#allocation2 + $0x71] sm:$0xff]
    %v2948 = vld [vmem:[#allocation2 + $0x79] sm:$0xff]
    %v2949 = vld [vmem:[#allocation2 + $0x81] sm:$0xff]
    %v2950 = vld [vmem:[#allocation2 + $0x89] sm:$0xff]
    %v2951 = vld [vmem:[#allocation2 + $0x91] sm:$0xff]
    %v2952 = vld [vmem:[#allocation2 + $0x99] sm:$0xff]
    %v2953 = vld [vmem:[#allocation2 + $0xa1] sm:$0xff]
    %v2954 = vld [vmem:[#allocation2 + $0xa9] sm:$0xff]
    %v2955 = vld [vmem:[#allocation2 + $0xb1] sm:$0xff]
    %v2956 = vld [vmem:[#allocation2 + $0xb9] sm:$0xff]
    %v2957 = vld [vmem:[#allocation2 + $0xc1] sm:$0xff]
    %v2958 = vld [vmem:[#allocation2 + $0xc9] sm:$0xff]
    %v2959 = vld [vmem:[#allocation2 + $0xd1] sm:$0xff]
    %v2960 = vpack.c.bf16 %v2936, %v2935
    %v2961 = vpack.c.bf16 %v2938, %v2937
    %v2962 = vpack.c.bf16 %v2940, %v2939
    %v2963 = vpack.c.bf16 %v2942, %v2941
    %v2964 = vpack.c.bf16 %v2944, %v2943
    %v2965 = vpack.c.bf16 %v2946, %v2945
    %v2966 = vpack.c.bf16 %v2948, %v2947
    %v2967 = vpack.c.bf16 %v2950, %v2949
    %v2968 = vpack.c.bf16 %v2952, %v2951
    %v2969 = vpack.c.bf16 %v2954, %v2953
    %v2970 = vpack.c.bf16 %v2956, %v2955
    %v2971 = vpack.c.bf16 %v2958, %v2957
    %v2972 = vpack.c.bf16 %v2959, %v2959
    %s2973 = scalar_lea.vmem %s2, 160
    %v2974 = vld [vmem:[%s2973] sm:$0xf]
    %v2975 = vld [vmem:[%s2973 + $0x4] sm:$0xf]
    %v2976 = vld [vmem:[%s2973 + $0x8] sm:$0xf]
    %v2977 = vld [vmem:[%s2973 + $0xc] sm:$0xf]
    %v2978 = vld [vmem:[%s2973 + $0x10] sm:$0xf]
    %v2979 = vld [vmem:[%s2973 + $0x14] sm:$0xf]
    %v2980 = vld [vmem:[%s2973 + $0x18] sm:$0xf]
    %v2981 = vld [vmem:[%s2973 + $0x1c] sm:$0xf]
    %v2990 = vunpack.c.l.b16 %v2974
    %v2991 = vunpack.c.l.b16 %v2975
    %v2992 = vunpack.c.l.b16 %v2976
    %v2993 = vunpack.c.l.b16 %v2977
    %v2994 = vunpack.c.l.b16 %v2978
    %v2995 = vunpack.c.l.b16 %v2979
    %v2996 = vunpack.c.l.b16 %v2980
    %v2997 = vunpack.c.l.b16 %v2981
    %v2998 = vpack.c.b16 %v2991, %v2990
    %v2999 = vpack.c.b16 %v2993, %v2992
    %v3000 = vpack.c.b16 %v2995, %v2994
    %v3001 = vpack.c.b16 %v2997, %v2996
    %v3007 = vsel %vm28, %v2960, 0
    %v3010 = vsel %vm28, %v2961, 0
    %v3013 = vsel %vm28, %v2962, 0
    %v3016 = vsel %vm28, %v2963, 0
    %v3019 = vsel %vm28, %v2964, 0
    %v3022 = vsel %vm28, %v2965, 0
    %v3025 = vsel %vm28, %v2966, 0
    %v3028 = vsel %vm28, %v2967, 0
    %v3031 = vsel %vm28, %v2968, 0
    %v3034 = vsel %vm28, %v2969, 0
    %v3037 = vsel %vm28, %v2970, 0
    %v3040 = vsel %vm28, %v2971, 0
    %v3043 = vsel %vm28, %v2972, 0
    %3045 = vmatprep.subr.bf16.mxu0 0
    %3046 = vmatpush1.bf16.msra.mxu0 0
    %3047 = vmatprep.subr.bf16.mxu0 0
    %3048 = vmatpush1.bf16.msra.mxu0 0
    %3049 = vmatprep.subr.bf16.mxu0 0
    %3050 = vmatpush1.bf16.msra.mxu0 0
    %3051 = vmatprep.subr.bf16.mxu0 0
    %3052 = vmatpush1.bf16.msra.mxu0 0
    %3053 = vmatprep.subr.bf16.mxu0 0
    %3054 = vmatpush1.bf16.msra.mxu0 %v3001
    %3055 = vmatprep.subr.bf16.mxu0 0
    %3056 = vmatpush1.bf16.msra.mxu0 %v3000
    %3057 = vmatprep.subr.bf16.mxu0 0
    %3058 = vmatpush1.bf16.msra.mxu0 %v2999
    %3059 = vmatprep.subr.bf16.mxu0 0
    %3060 = vmatpush1.bf16.msra.mxu0 %v2998
    %3061 = vmatprep.subr.bf16.mxu0 0
    %3062 = vmatpush2.bf16.msra.mxu0 0
    %3063 = vmatprep.subr.bf16.mxu0 0
    %3064 = vmatpush2.bf16.msra.mxu0 0
    %3065 = vmatprep.subr.bf16.mxu0 0
    %3066 = vmatpush2.bf16.msra.mxu0 0
    %3067 = vmatprep.subr.bf16.mxu0 0
    %3068 = vmatpush2.bf16.msra.mxu0 0
    %3069 = vmatprep.subr.bf16.mxu0 0
    %3070 = vmatpush2.bf16.msra.mxu0 0
    %3071 = vmatprep.subr.bf16.mxu0 0
    %3072 = vmatpush2.bf16.msra.mxu0 0
    %3073 = vmatprep.subr.bf16.mxu0 0
    %3074 = vmatpush2.bf16.msra.mxu0 0
    %3075 = vmatprep.subr.bf16.mxu0 0
    %3076 = vmatpush2.bf16.msra.mxu0 0
    %3077 = vmatprep.mubr.bf16.mxu0 0
    %3078 = vmatmul.mubr.bf16.gmra.mxu0 %v3007
    %v3079 = vpop.f32.mrf.mxu0
    %v3080 = vadd.f32 0.0, %v3079
    %v3081 = vpop.f32.mrf.mxu0
    %v3082 = vpop.f32.mrf.mxu0
    %v3083 = vadd.f32 0.0, %v3082
    %v3084 = vpop.f32.mrf.mxu0
    %3085 = vmatprep.mubr.bf16.mxu0 0
    %3086 = vmatmul.mubr.bf16.gmra.mxu0 %v3010
    %v3087 = vpop.f32.mrf.mxu0
    %v3088 = vadd.f32 0.0, %v3087
    %v3089 = vpop.f32.mrf.mxu0
    %v3090 = vpop.f32.mrf.mxu0
    %v3091 = vadd.f32 0.0, %v3090
    %v3092 = vpop.f32.mrf.mxu0
    %3093 = vmatprep.mubr.bf16.mxu0 0
    %3094 = vmatmul.mubr.bf16.gmra.mxu0 %v3013
    %v3095 = vpop.f32.mrf.mxu0
    %v3096 = vadd.f32 0.0, %v3095
    %v3097 = vpop.f32.mrf.mxu0
    %v3098 = vpop.f32.mrf.mxu0
    %v3099 = vadd.f32 0.0, %v3098
    %v3100 = vpop.f32.mrf.mxu0
    %3101 = vmatprep.mubr.bf16.mxu0 0
    %3102 = vmatmul.mubr.bf16.gmra.mxu0 %v3016
    %v3103 = vpop.f32.mrf.mxu0
    %v3104 = vadd.f32 0.0, %v3103
    %v3105 = vpop.f32.mrf.mxu0
    %v3106 = vpop.f32.mrf.mxu0
    %v3107 = vadd.f32 0.0, %v3106
    %v3108 = vpop.f32.mrf.mxu0
    %3109 = vmatprep.mubr.bf16.mxu0 0
    %3110 = vmatmul.mubr.bf16.gmra.mxu0 %v3019
    %v3111 = vpop.f32.mrf.mxu0
    %v3112 = vadd.f32 0.0, %v3111
    %v3113 = vpop.f32.mrf.mxu0
    %v3114 = vpop.f32.mrf.mxu0
    %v3115 = vadd.f32 0.0, %v3114
    %v3116 = vpop.f32.mrf.mxu0
    %3117 = vmatprep.mubr.bf16.mxu0 0
    %3118 = vmatmul.mubr.bf16.gmra.mxu0 %v3022
    %v3119 = vpop.f32.mrf.mxu0
    %v3120 = vadd.f32 0.0, %v3119
    %v3121 = vpop.f32.mrf.mxu0
    %v3122 = vpop.f32.mrf.mxu0
    %v3123 = vadd.f32 0.0, %v3122
    %v3124 = vpop.f32.mrf.mxu0
    %3125 = vmatprep.mubr.bf16.mxu0 0
    %3126 = vmatmul.mubr.bf16.gmra.mxu0 %v3025
    %v3127 = vpop.f32.mrf.mxu0
    %v3128 = vadd.f32 0.0, %v3127
    %v3129 = vpop.f32.mrf.mxu0
    %v3130 = vpop.f32.mrf.mxu0
    %v3131 = vadd.f32 0.0, %v3130
    %v3132 = vpop.f32.mrf.mxu0
    %3133 = vmatprep.mubr.bf16.mxu0 0
    %3134 = vmatmul.mubr.bf16.gmra.mxu0 %v3028
    %v3135 = vpop.f32.mrf.mxu0
    %v3136 = vadd.f32 0.0, %v3135
    %v3137 = vpop.f32.mrf.mxu0
    %v3138 = vpop.f32.mrf.mxu0
    %v3139 = vadd.f32 0.0, %v3138
    %v3140 = vpop.f32.mrf.mxu0
    %3141 = vmatprep.mubr.bf16.mxu0 0
    %3142 = vmatmul.mubr.bf16.gmra.mxu0 %v3031
    %v3143 = vpop.f32.mrf.mxu0
    %v3144 = vadd.f32 0.0, %v3143
    %v3145 = vpop.f32.mrf.mxu0
    %v3146 = vpop.f32.mrf.mxu0
    %v3147 = vadd.f32 0.0, %v3146
    %v3148 = vpop.f32.mrf.mxu0
    %3149 = vmatprep.mubr.bf16.mxu0 0
    %3150 = vmatmul.mubr.bf16.gmra.mxu0 %v3034
    %v3151 = vpop.f32.mrf.mxu0
    %v3152 = vadd.f32 0.0, %v3151
    %v3153 = vpop.f32.mrf.mxu0
    %v3154 = vpop.f32.mrf.mxu0
    %v3155 = vadd.f32 0.0, %v3154
    %v3156 = vpop.f32.mrf.mxu0
    %3157 = vmatprep.mubr.bf16.mxu0 0
    %3158 = vmatmul.mubr.bf16.gmra.mxu0 %v3037
    %v3159 = vpop.f32.mrf.mxu0
    %v3160 = vadd.f32 0.0, %v3159
    %v3161 = vpop.f32.mrf.mxu0
    %v3162 = vpop.f32.mrf.mxu0
    %v3163 = vadd.f32 0.0, %v3162
    %v3164 = vpop.f32.mrf.mxu0
    %3165 = vmatprep.mubr.bf16.mxu0 0
    %3166 = vmatmul.mubr.bf16.gmra.mxu0 %v3040
    %v3167 = vpop.f32.mrf.mxu0
    %v3168 = vadd.f32 0.0, %v3167
    %v3169 = vpop.f32.mrf.mxu0
    %v3170 = vpop.f32.mrf.mxu0
    %v3171 = vadd.f32 0.0, %v3170
    %v3172 = vpop.f32.mrf.mxu0
    %3173 = vmatprep.mubr.bf16.mxu0 0
    %3174 = vmatmul.mubr.bf16.gmra.mxu0 %v3043
    %v3175 = vpop.f32.mrf.mxu0
    %v3176 = vadd.f32 0.0, %v3175
    %v3177 = vpop.f32.mrf.mxu0
    %v3178 = vpop.f32.mrf.mxu0
    %v3179 = vpop.f32.mrf.mxu0
    %3180 = vdwg.mxu0
    %v3181 = vadd.f32 %v2910, %v3080
    %v3182 = vadd.f32 %v2911, %v3083
    %v3183 = vadd.f32 %v2912, %v3088
    %v3184 = vadd.f32 %v2913, %v3091
    %v3185 = vadd.f32 %v2914, %v3096
    %v3186 = vadd.f32 %v2915, %v3099
    %v3187 = vadd.f32 %v2916, %v3104
    %v3188 = vadd.f32 %v2917, %v3107
    %v3189 = vadd.f32 %v2918, %v3112
    %v3190 = vadd.f32 %v2919, %v3115
    %v3191 = vadd.f32 %v2920, %v3120
    %v3192 = vadd.f32 %v2921, %v3123
    %v3193 = vadd.f32 %v2922, %v3128
    %v3194 = vadd.f32 %v2923, %v3131
    %v3195 = vadd.f32 %v2924, %v3136
    %v3196 = vadd.f32 %v2925, %v3139
    %v3197 = vadd.f32 %v2926, %v3144
    %v3198 = vadd.f32 %v2927, %v3147
    %v3199 = vadd.f32 %v2928, %v3152
    %v3200 = vadd.f32 %v2929, %v3155
    %v3201 = vadd.f32 %v2930, %v3160
    %v3202 = vadd.f32 %v2931, %v3163
    %v3203 = vadd.f32 %v2932, %v3168
    %v3204 = vadd.f32 %v2933, %v3171
    %v3205 = vadd.f32 %v2934, %v3176
    %v3206 = vld [vmem:[#allocation2 + $0x19] sm:$0xff]
    %v3207 = vld [vmem:[#allocation2 + $0x21] sm:$0xff]
    %v3208 = vld [vmem:[#allocation2 + $0x29] sm:$0xff]
    %v3209 = vld [vmem:[#allocation2 + $0x31] sm:$0xff]
    %v3210 = vld [vmem:[#allocation2 + $0x39] sm:$0xff]
    %v3211 = vld [vmem:[#allocation2 + $0x41] sm:$0xff]
    %v3212 = vld [vmem:[#allocation2 + $0x49] sm:$0xff]
    %v3213 = vld [vmem:[#allocation2 + $0x51] sm:$0xff]
    %v3214 = vld [vmem:[#allocation2 + $0x59] sm:$0xff]
    %v3215 = vld [vmem:[#allocation2 + $0x61] sm:$0xff]
    %v3216 = vld [vmem:[#allocation2 + $0x69] sm:$0xff]
    %v3217 = vld [vmem:[#allocation2 + $0x71] sm:$0xff]
    %v3218 = vld [vmem:[#allocation2 + $0x79] sm:$0xff]
    %v3219 = vld [vmem:[#allocation2 + $0x81] sm:$0xff]
    %v3220 = vld [vmem:[#allocation2 + $0x89] sm:$0xff]
    %v3221 = vld [vmem:[#allocation2 + $0x91] sm:$0xff]
    %v3222 = vld [vmem:[#allocation2 + $0x99] sm:$0xff]
    %v3223 = vld [vmem:[#allocation2 + $0xa1] sm:$0xff]
    %v3224 = vld [vmem:[#allocation2 + $0xa9] sm:$0xff]
    %v3225 = vld [vmem:[#allocation2 + $0xb1] sm:$0xff]
    %v3226 = vld [vmem:[#allocation2 + $0xb9] sm:$0xff]
    %v3227 = vld [vmem:[#allocation2 + $0xc1] sm:$0xff]
    %v3228 = vld [vmem:[#allocation2 + $0xc9] sm:$0xff]
    %v3229 = vld [vmem:[#allocation2 + $0xd1] sm:$0xff]
    %v3230 = vld [vmem:[#allocation2 + $0xd9] sm:$0xff]
    %v3231 = vpack.c.bf16 %v3207, %v3206
    %v3232 = vpack.c.bf16 %v3209, %v3208
    %v3233 = vpack.c.bf16 %v3211, %v3210
    %v3234 = vpack.c.bf16 %v3213, %v3212
    %v3235 = vpack.c.bf16 %v3215, %v3214
    %v3236 = vpack.c.bf16 %v3217, %v3216
    %v3237 = vpack.c.bf16 %v3219, %v3218
    %v3238 = vpack.c.bf16 %v3221, %v3220
    %v3239 = vpack.c.bf16 %v3223, %v3222
    %v3240 = vpack.c.bf16 %v3225, %v3224
    %v3241 = vpack.c.bf16 %v3227, %v3226
    %v3242 = vpack.c.bf16 %v3229, %v3228
    %v3243 = vpack.c.bf16 %v3230, %v3230
    %s3244 = scalar_lea.vmem %s2, 192
    %v3245 = vld [vmem:[%s3244] sm:$0xf]
    %v3246 = vld [vmem:[%s3244 + $0x4] sm:$0xf]
    %v3247 = vld [vmem:[%s3244 + $0x8] sm:$0xf]
    %v3248 = vld [vmem:[%s3244 + $0xc] sm:$0xf]
    %v3249 = vld [vmem:[%s3244 + $0x10] sm:$0xf]
    %v3250 = vld [vmem:[%s3244 + $0x14] sm:$0xf]
    %v3251 = vld [vmem:[%s3244 + $0x18] sm:$0xf]
    %v3252 = vld [vmem:[%s3244 + $0x1c] sm:$0xf]
    %v3261 = vunpack.c.l.b16 %v3245
    %v3262 = vunpack.c.l.b16 %v3246
    %v3263 = vunpack.c.l.b16 %v3247
    %v3264 = vunpack.c.l.b16 %v3248
    %v3265 = vunpack.c.l.b16 %v3249
    %v3266 = vunpack.c.l.b16 %v3250
    %v3267 = vunpack.c.l.b16 %v3251
    %v3268 = vunpack.c.l.b16 %v3252
    %v3269 = vpack.c.b16 %v3262, %v3261
    %v3270 = vpack.c.b16 %v3264, %v3263
    %v3271 = vpack.c.b16 %v3266, %v3265
    %v3272 = vpack.c.b16 %v3268, %v3267
    %v3278 = vsel %vm28, %v3231, 0
    %v3281 = vsel %vm28, %v3232, 0
    %v3284 = vsel %vm28, %v3233, 0
    %v3287 = vsel %vm28, %v3234, 0
    %v3290 = vsel %vm28, %v3235, 0
    %v3293 = vsel %vm28, %v3236, 0
    %v3296 = vsel %vm28, %v3237, 0
    %v3299 = vsel %vm28, %v3238, 0
    %v3302 = vsel %vm28, %v3239, 0
    %v3305 = vsel %vm28, %v3240, 0
    %v3308 = vsel %vm28, %v3241, 0
    %v3311 = vsel %vm28, %v3242, 0
    %v3314 = vsel %vm28, %v3243, 0
    %3316 = vmatprep.subr.bf16.mxu0 0
    %3317 = vmatpush1.bf16.msra.mxu0 0
    %3318 = vmatprep.subr.bf16.mxu0 0
    %3319 = vmatpush1.bf16.msra.mxu0 0
    %3320 = vmatprep.subr.bf16.mxu0 0
    %3321 = vmatpush1.bf16.msra.mxu0 0
    %3322 = vmatprep.subr.bf16.mxu0 0
    %3323 = vmatpush1.bf16.msra.mxu0 0
    %3324 = vmatprep.subr.bf16.mxu0 0
    %3325 = vmatpush1.bf16.msra.mxu0 %v3272
    %3326 = vmatprep.subr.bf16.mxu0 0
    %3327 = vmatpush1.bf16.msra.mxu0 %v3271
    %3328 = vmatprep.subr.bf16.mxu0 0
    %3329 = vmatpush1.bf16.msra.mxu0 %v3270
    %3330 = vmatprep.subr.bf16.mxu0 0
    %3331 = vmatpush1.bf16.msra.mxu0 %v3269
    %3332 = vmatprep.subr.bf16.mxu0 0
    %3333 = vmatpush2.bf16.msra.mxu0 0
    %3334 = vmatprep.subr.bf16.mxu0 0
    %3335 = vmatpush2.bf16.msra.mxu0 0
    %3336 = vmatprep.subr.bf16.mxu0 0
    %3337 = vmatpush2.bf16.msra.mxu0 0
    %3338 = vmatprep.subr.bf16.mxu0 0
    %3339 = vmatpush2.bf16.msra.mxu0 0
    %3340 = vmatprep.subr.bf16.mxu0 0
    %3341 = vmatpush2.bf16.msra.mxu0 0
    %3342 = vmatprep.subr.bf16.mxu0 0
    %3343 = vmatpush2.bf16.msra.mxu0 0
    %3344 = vmatprep.subr.bf16.mxu0 0
    %3345 = vmatpush2.bf16.msra.mxu0 0
    %3346 = vmatprep.subr.bf16.mxu0 0
    %3347 = vmatpush2.bf16.msra.mxu0 0
    %3348 = vmatprep.mubr.bf16.mxu0 0
    %3349 = vmatmul.mubr.bf16.gmra.mxu0 %v3278
    %v3350 = vpop.f32.mrf.mxu0
    %v3351 = vadd.f32 0.0, %v3350
    %v3352 = vpop.f32.mrf.mxu0
    %v3353 = vpop.f32.mrf.mxu0
    %v3354 = vadd.f32 0.0, %v3353
    %v3355 = vpop.f32.mrf.mxu0
    %3356 = vmatprep.mubr.bf16.mxu0 0
    %3357 = vmatmul.mubr.bf16.gmra.mxu0 %v3281
    %v3358 = vpop.f32.mrf.mxu0
    %v3359 = vadd.f32 0.0, %v3358
    %v3360 = vpop.f32.mrf.mxu0
    %v3361 = vpop.f32.mrf.mxu0
    %v3362 = vadd.f32 0.0, %v3361
    %v3363 = vpop.f32.mrf.mxu0
    %3364 = vmatprep.mubr.bf16.mxu0 0
    %3365 = vmatmul.mubr.bf16.gmra.mxu0 %v3284
    %v3366 = vpop.f32.mrf.mxu0
    %v3367 = vadd.f32 0.0, %v3366
    %v3368 = vpop.f32.mrf.mxu0
    %v3369 = vpop.f32.mrf.mxu0
    %v3370 = vadd.f32 0.0, %v3369
    %v3371 = vpop.f32.mrf.mxu0
    %3372 = vmatprep.mubr.bf16.mxu0 0
    %3373 = vmatmul.mubr.bf16.gmra.mxu0 %v3287
    %v3374 = vpop.f32.mrf.mxu0
    %v3375 = vadd.f32 0.0, %v3374
    %v3376 = vpop.f32.mrf.mxu0
    %v3377 = vpop.f32.mrf.mxu0
    %v3378 = vadd.f32 0.0, %v3377
    %v3379 = vpop.f32.mrf.mxu0
    %3380 = vmatprep.mubr.bf16.mxu0 0
    %3381 = vmatmul.mubr.bf16.gmra.mxu0 %v3290
    %v3382 = vpop.f32.mrf.mxu0
    %v3383 = vadd.f32 0.0, %v3382
    %v3384 = vpop.f32.mrf.mxu0
    %v3385 = vpop.f32.mrf.mxu0
    %v3386 = vadd.f32 0.0, %v3385
    %v3387 = vpop.f32.mrf.mxu0
    %3388 = vmatprep.mubr.bf16.mxu0 0
    %3389 = vmatmul.mubr.bf16.gmra.mxu0 %v3293
    %v3390 = vpop.f32.mrf.mxu0
    %v3391 = vadd.f32 0.0, %v3390
    %v3392 = vpop.f32.mrf.mxu0
    %v3393 = vpop.f32.mrf.mxu0
    %v3394 = vadd.f32 0.0, %v3393
    %v3395 = vpop.f32.mrf.mxu0
    %3396 = vmatprep.mubr.bf16.mxu0 0
    %3397 = vmatmul.mubr.bf16.gmra.mxu0 %v3296
    %v3398 = vpop.f32.mrf.mxu0
    %v3399 = vadd.f32 0.0, %v3398
    %v3400 = vpop.f32.mrf.mxu0
    %v3401 = vpop.f32.mrf.mxu0
    %v3402 = vadd.f32 0.0, %v3401
    %v3403 = vpop.f32.mrf.mxu0
    %3404 = vmatprep.mubr.bf16.mxu0 0
    %3405 = vmatmul.mubr.bf16.gmra.mxu0 %v3299
    %v3406 = vpop.f32.mrf.mxu0
    %v3407 = vadd.f32 0.0, %v3406
    %v3408 = vpop.f32.mrf.mxu0
    %v3409 = vpop.f32.mrf.mxu0
    %v3410 = vadd.f32 0.0, %v3409
    %v3411 = vpop.f32.mrf.mxu0
    %3412 = vmatprep.mubr.bf16.mxu0 0
    %3413 = vmatmul.mubr.bf16.gmra.mxu0 %v3302
    %v3414 = vpop.f32.mrf.mxu0
    %v3415 = vadd.f32 0.0, %v3414
    %v3416 = vpop.f32.mrf.mxu0
    %v3417 = vpop.f32.mrf.mxu0
    %v3418 = vadd.f32 0.0, %v3417
    %v3419 = vpop.f32.mrf.mxu0
    %3420 = vmatprep.mubr.bf16.mxu0 0
    %3421 = vmatmul.mubr.bf16.gmra.mxu0 %v3305
    %v3422 = vpop.f32.mrf.mxu0
    %v3423 = vadd.f32 0.0, %v3422
    %v3424 = vpop.f32.mrf.mxu0
    %v3425 = vpop.f32.mrf.mxu0
    %v3426 = vadd.f32 0.0, %v3425
    %v3427 = vpop.f32.mrf.mxu0
    %3428 = vmatprep.mubr.bf16.mxu0 0
    %3429 = vmatmul.mubr.bf16.gmra.mxu0 %v3308
    %v3430 = vpop.f32.mrf.mxu0
    %v3431 = vadd.f32 0.0, %v3430
    %v3432 = vpop.f32.mrf.mxu0
    %v3433 = vpop.f32.mrf.mxu0
    %v3434 = vadd.f32 0.0, %v3433
    %v3435 = vpop.f32.mrf.mxu0
    %3436 = vmatprep.mubr.bf16.mxu0 0
    %3437 = vmatmul.mubr.bf16.gmra.mxu0 %v3311
    %v3438 = vpop.f32.mrf.mxu0
    %v3439 = vadd.f32 0.0, %v3438
    %v3440 = vpop.f32.mrf.mxu0
    %v3441 = vpop.f32.mrf.mxu0
    %v3442 = vadd.f32 0.0, %v3441
    %v3443 = vpop.f32.mrf.mxu0
    %3444 = vmatprep.mubr.bf16.mxu0 0
    %3445 = vmatmul.mubr.bf16.gmra.mxu0 %v3314
    %v3446 = vpop.f32.mrf.mxu0
    %v3447 = vadd.f32 0.0, %v3446
    %v3448 = vpop.f32.mrf.mxu0
    %v3449 = vpop.f32.mrf.mxu0
    %v3450 = vpop.f32.mrf.mxu0
    %3451 = vdwg.mxu0
    %v3452 = vadd.f32 %v3181, %v3351
    %v3453 = vadd.f32 %v3182, %v3354
    %v3454 = vadd.f32 %v3183, %v3359
    %v3455 = vadd.f32 %v3184, %v3362
    %v3456 = vadd.f32 %v3185, %v3367
    %v3457 = vadd.f32 %v3186, %v3370
    %v3458 = vadd.f32 %v3187, %v3375
    %v3459 = vadd.f32 %v3188, %v3378
    %v3460 = vadd.f32 %v3189, %v3383
    %v3461 = vadd.f32 %v3190, %v3386
    %v3462 = vadd.f32 %v3191, %v3391
    %v3463 = vadd.f32 %v3192, %v3394
    %v3464 = vadd.f32 %v3193, %v3399
    %v3465 = vadd.f32 %v3194, %v3402
    %v3466 = vadd.f32 %v3195, %v3407
    %v3467 = vadd.f32 %v3196, %v3410
    %v3468 = vadd.f32 %v3197, %v3415
    %v3469 = vadd.f32 %v3198, %v3418
    %v3470 = vadd.f32 %v3199, %v3423
    %v3471 = vadd.f32 %v3200, %v3426
    %v3472 = vadd.f32 %v3201, %v3431
    %v3473 = vadd.f32 %v3202, %v3434
    %v3474 = vadd.f32 %v3203, %v3439
    %v3475 = vadd.f32 %v3204, %v3442
    %v3476 = vadd.f32 %v3205, %v3447
    %v3477 = vld [vmem:[#allocation2 + $0x1a] sm:$0xff]
    %v3478 = vld [vmem:[#allocation2 + $0x22] sm:$0xff]
    %v3479 = vld [vmem:[#allocation2 + $0x2a] sm:$0xff]
    %v3480 = vld [vmem:[#allocation2 + $0x32] sm:$0xff]
    %v3481 = vld [vmem:[#allocation2 + $0x3a] sm:$0xff]
    %v3482 = vld [vmem:[#allocation2 + $0x42] sm:$0xff]
    %v3483 = vld [vmem:[#allocation2 + $0x4a] sm:$0xff]
    %v3484 = vld [vmem:[#allocation2 + $0x52] sm:$0xff]
    %v3485 = vld [vmem:[#allocation2 + $0x5a] sm:$0xff]
    %v3486 = vld [vmem:[#allocation2 + $0x62] sm:$0xff]
    %v3487 = vld [vmem:[#allocation2 + $0x6a] sm:$0xff]
    %v3488 = vld [vmem:[#allocation2 + $0x72] sm:$0xff]
    %v3489 = vld [vmem:[#allocation2 + $0x7a] sm:$0xff]
    %v3490 = vld [vmem:[#allocation2 + $0x82] sm:$0xff]
    %v3491 = vld [vmem:[#allocation2 + $0x8a] sm:$0xff]
    %v3492 = vld [vmem:[#allocation2 + $0x92] sm:$0xff]
    %v3493 = vld [vmem:[#allocation2 + $0x9a] sm:$0xff]
    %v3494 = vld [vmem:[#allocation2 + $0xa2] sm:$0xff]
    %v3495 = vld [vmem:[#allocation2 + $0xaa] sm:$0xff]
    %v3496 = vld [vmem:[#allocation2 + $0xb2] sm:$0xff]
    %v3497 = vld [vmem:[#allocation2 + $0xba] sm:$0xff]
    %v3498 = vld [vmem:[#allocation2 + $0xc2] sm:$0xff]
    %v3499 = vld [vmem:[#allocation2 + $0xca] sm:$0xff]
    %v3500 = vld [vmem:[#allocation2 + $0xd2] sm:$0xff]
    %v3501 = vld [vmem:[#allocation2 + $0xda] sm:$0xff]
    %v3502 = vpack.c.bf16 %v3478, %v3477
    %v3503 = vpack.c.bf16 %v3480, %v3479
    %v3504 = vpack.c.bf16 %v3482, %v3481
    %v3505 = vpack.c.bf16 %v3484, %v3483
    %v3506 = vpack.c.bf16 %v3486, %v3485
    %v3507 = vpack.c.bf16 %v3488, %v3487
    %v3508 = vpack.c.bf16 %v3490, %v3489
    %v3509 = vpack.c.bf16 %v3492, %v3491
    %v3510 = vpack.c.bf16 %v3494, %v3493
    %v3511 = vpack.c.bf16 %v3496, %v3495
    %v3512 = vpack.c.bf16 %v3498, %v3497
    %v3513 = vpack.c.bf16 %v3500, %v3499
    %v3514 = vpack.c.bf16 %v3501, %v3501
    %s3515 = scalar_lea.vmem %s2, 224
    %v3516 = vld [vmem:[%s3515] sm:$0xf]
    %v3517 = vld [vmem:[%s3515 + $0x4] sm:$0xf]
    %v3518 = vld [vmem:[%s3515 + $0x8] sm:$0xf]
    %v3519 = vld [vmem:[%s3515 + $0xc] sm:$0xf]
    %v3520 = vld [vmem:[%s3515 + $0x10] sm:$0xf]
    %v3521 = vld [vmem:[%s3515 + $0x14] sm:$0xf]
    %v3522 = vld [vmem:[%s3515 + $0x18] sm:$0xf]
    %v3523 = vld [vmem:[%s3515 + $0x1c] sm:$0xf]
    %v3532 = vunpack.c.l.b16 %v3516
    %v3533 = vunpack.c.l.b16 %v3517
    %v3534 = vunpack.c.l.b16 %v3518
    %v3535 = vunpack.c.l.b16 %v3519
    %v3536 = vunpack.c.l.b16 %v3520
    %v3537 = vunpack.c.l.b16 %v3521
    %v3538 = vunpack.c.l.b16 %v3522
    %v3539 = vunpack.c.l.b16 %v3523
    %v3540 = vpack.c.b16 %v3533, %v3532
    %v3541 = vpack.c.b16 %v3535, %v3534
    %v3542 = vpack.c.b16 %v3537, %v3536
    %v3543 = vpack.c.b16 %v3539, %v3538
    %v3549 = vsel %vm28, %v3502, 0
    %v3552 = vsel %vm28, %v3503, 0
    %v3555 = vsel %vm28, %v3504, 0
    %v3558 = vsel %vm28, %v3505, 0
    %v3561 = vsel %vm28, %v3506, 0
    %v3564 = vsel %vm28, %v3507, 0
    %v3567 = vsel %vm28, %v3508, 0
    %v3570 = vsel %vm28, %v3509, 0
    %v3573 = vsel %vm28, %v3510, 0
    %v3576 = vsel %vm28, %v3511, 0
    %v3579 = vsel %vm28, %v3512, 0
    %v3582 = vsel %vm28, %v3513, 0
    %v3585 = vsel %vm28, %v3514, 0
    %3587 = vmatprep.subr.bf16.mxu0 0
    %3588 = vmatpush1.bf16.msra.mxu0 0
    %3589 = vmatprep.subr.bf16.mxu0 0
    %3590 = vmatpush1.bf16.msra.mxu0 0
    %3591 = vmatprep.subr.bf16.mxu0 0
    %3592 = vmatpush1.bf16.msra.mxu0 0
    %3593 = vmatprep.subr.bf16.mxu0 0
    %3594 = vmatpush1.bf16.msra.mxu0 0
    %3595 = vmatprep.subr.bf16.mxu0 0
    %3596 = vmatpush1.bf16.msra.mxu0 %v3543
    %3597 = vmatprep.subr.bf16.mxu0 0
    %3598 = vmatpush1.bf16.msra.mxu0 %v3542
    %3599 = vmatprep.subr.bf16.mxu0 0
    %3600 = vmatpush1.bf16.msra.mxu0 %v3541
    %3601 = vmatprep.subr.bf16.mxu0 0
    %3602 = vmatpush1.bf16.msra.mxu0 %v3540
    %3603 = vmatprep.subr.bf16.mxu0 0
    %3604 = vmatpush2.bf16.msra.mxu0 0
    %3605 = vmatprep.subr.bf16.mxu0 0
    %3606 = vmatpush2.bf16.msra.mxu0 0
    %3607 = vmatprep.subr.bf16.mxu0 0
    %3608 = vmatpush2.bf16.msra.mxu0 0
    %3609 = vmatprep.subr.bf16.mxu0 0
    %3610 = vmatpush2.bf16.msra.mxu0 0
    %3611 = vmatprep.subr.bf16.mxu0 0
    %3612 = vmatpush2.bf16.msra.mxu0 0
    %3613 = vmatprep.subr.bf16.mxu0 0
    %3614 = vmatpush2.bf16.msra.mxu0 0
    %3615 = vmatprep.subr.bf16.mxu0 0
    %3616 = vmatpush2.bf16.msra.mxu0 0
    %3617 = vmatprep.subr.bf16.mxu0 0
    %3618 = vmatpush2.bf16.msra.mxu0 0
    %3619 = vmatprep.mubr.bf16.mxu0 0
    %3620 = vmatmul.mubr.bf16.gmra.mxu0 %v3549
    %v3621 = vpop.f32.mrf.mxu0
    %v3622 = vadd.f32 0.0, %v3621
    %v3623 = vpop.f32.mrf.mxu0
    %v3624 = vpop.f32.mrf.mxu0
    %v3625 = vadd.f32 0.0, %v3624
    %v3626 = vpop.f32.mrf.mxu0
    %3627 = vmatprep.mubr.bf16.mxu0 0
    %3628 = vmatmul.mubr.bf16.gmra.mxu0 %v3552
    %v3629 = vpop.f32.mrf.mxu0
    %v3630 = vadd.f32 0.0, %v3629
    %v3631 = vpop.f32.mrf.mxu0
    %v3632 = vpop.f32.mrf.mxu0
    %v3633 = vadd.f32 0.0, %v3632
    %v3634 = vpop.f32.mrf.mxu0
    %3635 = vmatprep.mubr.bf16.mxu0 0
    %3636 = vmatmul.mubr.bf16.gmra.mxu0 %v3555
    %v3637 = vpop.f32.mrf.mxu0
    %v3638 = vadd.f32 0.0, %v3637
    %v3639 = vpop.f32.mrf.mxu0
    %v3640 = vpop.f32.mrf.mxu0
    %v3641 = vadd.f32 0.0, %v3640
    %v3642 = vpop.f32.mrf.mxu0
    %3643 = vmatprep.mubr.bf16.mxu0 0
    %3644 = vmatmul.mubr.bf16.gmra.mxu0 %v3558
    %v3645 = vpop.f32.mrf.mxu0
    %v3646 = vadd.f32 0.0, %v3645
    %v3647 = vpop.f32.mrf.mxu0
    %v3648 = vpop.f32.mrf.mxu0
    %v3649 = vadd.f32 0.0, %v3648
    %v3650 = vpop.f32.mrf.mxu0
    %3651 = vmatprep.mubr.bf16.mxu0 0
    %3652 = vmatmul.mubr.bf16.gmra.mxu0 %v3561
    %v3653 = vpop.f32.mrf.mxu0
    %v3654 = vadd.f32 0.0, %v3653
    %v3655 = vpop.f32.mrf.mxu0
    %v3656 = vpop.f32.mrf.mxu0
    %v3657 = vadd.f32 0.0, %v3656
    %v3658 = vpop.f32.mrf.mxu0
    %3659 = vmatprep.mubr.bf16.mxu0 0
    %3660 = vmatmul.mubr.bf16.gmra.mxu0 %v3564
    %v3661 = vpop.f32.mrf.mxu0
    %v3662 = vadd.f32 0.0, %v3661
    %v3663 = vpop.f32.mrf.mxu0
    %v3664 = vpop.f32.mrf.mxu0
    %v3665 = vadd.f32 0.0, %v3664
    %v3666 = vpop.f32.mrf.mxu0
    %3667 = vmatprep.mubr.bf16.mxu0 0
    %3668 = vmatmul.mubr.bf16.gmra.mxu0 %v3567
    %v3669 = vpop.f32.mrf.mxu0
    %v3670 = vadd.f32 0.0, %v3669
    %v3671 = vpop.f32.mrf.mxu0
    %v3672 = vpop.f32.mrf.mxu0
    %v3673 = vadd.f32 0.0, %v3672
    %v3674 = vpop.f32.mrf.mxu0
    %3675 = vmatprep.mubr.bf16.mxu0 0
    %3676 = vmatmul.mubr.bf16.gmra.mxu0 %v3570
    %v3677 = vpop.f32.mrf.mxu0
    %v3678 = vadd.f32 0.0, %v3677
    %v3679 = vpop.f32.mrf.mxu0
    %v3680 = vpop.f32.mrf.mxu0
    %v3681 = vadd.f32 0.0, %v3680
    %v3682 = vpop.f32.mrf.mxu0
    %3683 = vmatprep.mubr.bf16.mxu0 0
    %3684 = vmatmul.mubr.bf16.gmra.mxu0 %v3573
    %v3685 = vpop.f32.mrf.mxu0
    %v3686 = vadd.f32 0.0, %v3685
    %v3687 = vpop.f32.mrf.mxu0
    %v3688 = vpop.f32.mrf.mxu0
    %v3689 = vadd.f32 0.0, %v3688
    %v3690 = vpop.f32.mrf.mxu0
    %3691 = vmatprep.mubr.bf16.mxu0 0
    %3692 = vmatmul.mubr.bf16.gmra.mxu0 %v3576
    %v3693 = vpop.f32.mrf.mxu0
    %v3694 = vadd.f32 0.0, %v3693
    %v3695 = vpop.f32.mrf.mxu0
    %v3696 = vpop.f32.mrf.mxu0
    %v3697 = vadd.f32 0.0, %v3696
    %v3698 = vpop.f32.mrf.mxu0
    %3699 = vmatprep.mubr.bf16.mxu0 0
    %3700 = vmatmul.mubr.bf16.gmra.mxu0 %v3579
    %v3701 = vpop.f32.mrf.mxu0
    %v3702 = vadd.f32 0.0, %v3701
    %v3703 = vpop.f32.mrf.mxu0
    %v3704 = vpop.f32.mrf.mxu0
    %v3705 = vadd.f32 0.0, %v3704
    %v3706 = vpop.f32.mrf.mxu0
    %3707 = vmatprep.mubr.bf16.mxu0 0
    %3708 = vmatmul.mubr.bf16.gmra.mxu0 %v3582
    %v3709 = vpop.f32.mrf.mxu0
    %v3710 = vadd.f32 0.0, %v3709
    %v3711 = vpop.f32.mrf.mxu0
    %v3712 = vpop.f32.mrf.mxu0
    %v3713 = vadd.f32 0.0, %v3712
    %v3714 = vpop.f32.mrf.mxu0
    %3715 = vmatprep.mubr.bf16.mxu0 0
    %3716 = vmatmul.mubr.bf16.gmra.mxu0 %v3585
    %v3717 = vpop.f32.mrf.mxu0
    %v3718 = vadd.f32 0.0, %v3717
    %v3719 = vpop.f32.mrf.mxu0
    %v3720 = vpop.f32.mrf.mxu0
    %v3721 = vpop.f32.mrf.mxu0
    %3722 = vdwg.mxu0
    %v3723 = vadd.f32 %v3452, %v3622
    %v3724 = vadd.f32 %v3453, %v3625
    %v3725 = vadd.f32 %v3454, %v3630
    %v3726 = vadd.f32 %v3455, %v3633
    %v3727 = vadd.f32 %v3456, %v3638
    %v3728 = vadd.f32 %v3457, %v3641
    %v3729 = vadd.f32 %v3458, %v3646
    %v3730 = vadd.f32 %v3459, %v3649
    %v3731 = vadd.f32 %v3460, %v3654
    %v3732 = vadd.f32 %v3461, %v3657
    %v3733 = vadd.f32 %v3462, %v3662
    %v3734 = vadd.f32 %v3463, %v3665
    %v3735 = vadd.f32 %v3464, %v3670
    %v3736 = vadd.f32 %v3465, %v3673
    %v3737 = vadd.f32 %v3466, %v3678
    %v3738 = vadd.f32 %v3467, %v3681
    %v3739 = vadd.f32 %v3468, %v3686
    %v3740 = vadd.f32 %v3469, %v3689
    %v3741 = vadd.f32 %v3470, %v3694
    %v3742 = vadd.f32 %v3471, %v3697
    %v3743 = vadd.f32 %v3472, %v3702
    %v3744 = vadd.f32 %v3473, %v3705
    %v3745 = vadd.f32 %v3474, %v3710
    %v3746 = vadd.f32 %v3475, %v3713
    %v3747 = vadd.f32 %v3476, %v3718
    %v3748 = vld [vmem:[#allocation2 + $0x1b] sm:$0xff]
    %v3749 = vld [vmem:[#allocation2 + $0x23] sm:$0xff]
    %v3750 = vld [vmem:[#allocation2 + $0x2b] sm:$0xff]
    %v3751 = vld [vmem:[#allocation2 + $0x33] sm:$0xff]
    %v3752 = vld [vmem:[#allocation2 + $0x3b] sm:$0xff]
    %v3753 = vld [vmem:[#allocation2 + $0x43] sm:$0xff]
    %v3754 = vld [vmem:[#allocation2 + $0x4b] sm:$0xff]
    %v3755 = vld [vmem:[#allocation2 + $0x53] sm:$0xff]
    %v3756 = vld [vmem:[#allocation2 + $0x5b] sm:$0xff]
    %v3757 = vld [vmem:[#allocation2 + $0x63] sm:$0xff]
    %v3758 = vld [vmem:[#allocation2 + $0x6b] sm:$0xff]
    %v3759 = vld [vmem:[#allocation2 + $0x73] sm:$0xff]
    %v3760 = vld [vmem:[#allocation2 + $0x7b] sm:$0xff]
    %v3761 = vld [vmem:[#allocation2 + $0x83] sm:$0xff]
    %v3762 = vld [vmem:[#allocation2 + $0x8b] sm:$0xff]
    %v3763 = vld [vmem:[#allocation2 + $0x93] sm:$0xff]
    %v3764 = vld [vmem:[#allocation2 + $0x9b] sm:$0xff]
    %v3765 = vld [vmem:[#allocation2 + $0xa3] sm:$0xff]
    %v3766 = vld [vmem:[#allocation2 + $0xab] sm:$0xff]
    %v3767 = vld [vmem:[#allocation2 + $0xb3] sm:$0xff]
    %v3768 = vld [vmem:[#allocation2 + $0xbb] sm:$0xff]
    %v3769 = vld [vmem:[#allocation2 + $0xc3] sm:$0xff]
    %v3770 = vld [vmem:[#allocation2 + $0xcb] sm:$0xff]
    %v3771 = vld [vmem:[#allocation2 + $0xd3] sm:$0xff]
    %v3772 = vld [vmem:[#allocation2 + $0xdb] sm:$0xff]
    %v3773 = vpack.c.bf16 %v3749, %v3748
    %v3774 = vpack.c.bf16 %v3751, %v3750
    %v3775 = vpack.c.bf16 %v3753, %v3752
    %v3776 = vpack.c.bf16 %v3755, %v3754
    %v3777 = vpack.c.bf16 %v3757, %v3756
    %v3778 = vpack.c.bf16 %v3759, %v3758
    %v3779 = vpack.c.bf16 %v3761, %v3760
    %v3780 = vpack.c.bf16 %v3763, %v3762
    %v3781 = vpack.c.bf16 %v3765, %v3764
    %v3782 = vpack.c.bf16 %v3767, %v3766
    %v3783 = vpack.c.bf16 %v3769, %v3768
    %v3784 = vpack.c.bf16 %v3771, %v3770
    %v3785 = vpack.c.bf16 %v3772, %v3772
    %s3786 = scalar_lea.vmem %s2, 256
    %v3787 = vld [vmem:[%s3786] sm:$0xf]
    %v3788 = vld [vmem:[%s3786 + $0x4] sm:$0xf]
    %v3789 = vld [vmem:[%s3786 + $0x8] sm:$0xf]
    %v3790 = vld [vmem:[%s3786 + $0xc] sm:$0xf]
    %v3791 = vld [vmem:[%s3786 + $0x10] sm:$0xf]
    %v3792 = vld [vmem:[%s3786 + $0x14] sm:$0xf]
    %v3793 = vld [vmem:[%s3786 + $0x18] sm:$0xf]
    %v3794 = vld [vmem:[%s3786 + $0x1c] sm:$0xf]
    %v3803 = vunpack.c.l.b16 %v3787
    %v3804 = vunpack.c.l.b16 %v3788
    %v3805 = vunpack.c.l.b16 %v3789
    %v3806 = vunpack.c.l.b16 %v3790
    %v3807 = vunpack.c.l.b16 %v3791
    %v3808 = vunpack.c.l.b16 %v3792
    %v3809 = vunpack.c.l.b16 %v3793
    %v3810 = vunpack.c.l.b16 %v3794
    %v3811 = vpack.c.b16 %v3804, %v3803
    %v3812 = vpack.c.b16 %v3806, %v3805
    %v3813 = vpack.c.b16 %v3808, %v3807
    %v3814 = vpack.c.b16 %v3810, %v3809
    %v3820 = vsel %vm28, %v3773, 0
    %v3823 = vsel %vm28, %v3774, 0
    %v3826 = vsel %vm28, %v3775, 0
    %v3829 = vsel %vm28, %v3776, 0
    %v3832 = vsel %vm28, %v3777, 0
    %v3835 = vsel %vm28, %v3778, 0
    %v3838 = vsel %vm28, %v3779, 0
    %v3841 = vsel %vm28, %v3780, 0
    %v3844 = vsel %vm28, %v3781, 0
    %v3847 = vsel %vm28, %v3782, 0
    %v3850 = vsel %vm28, %v3783, 0
    %v3853 = vsel %vm28, %v3784, 0
    %v3856 = vsel %vm28, %v3785, 0
    %3858 = vmatprep.subr.bf16.mxu0 0
    %3859 = vmatpush1.bf16.msra.mxu0 0
    %3860 = vmatprep.subr.bf16.mxu0 0
    %3861 = vmatpush1.bf16.msra.mxu0 0
    %3862 = vmatprep.subr.bf16.mxu0 0
    %3863 = vmatpush1.bf16.msra.mxu0 0
    %3864 = vmatprep.subr.bf16.mxu0 0
    %3865 = vmatpush1.bf16.msra.mxu0 0
    %3866 = vmatprep.subr.bf16.mxu0 0
    %3867 = vmatpush1.bf16.msra.mxu0 %v3814
    %3868 = vmatprep.subr.bf16.mxu0 0
    %3869 = vmatpush1.bf16.msra.mxu0 %v3813
    %3870 = vmatprep.subr.bf16.mxu0 0
    %3871 = vmatpush1.bf16.msra.mxu0 %v3812
    %3872 = vmatprep.subr.bf16.mxu0 0
    %3873 = vmatpush1.bf16.msra.mxu0 %v3811
    %3874 = vmatprep.subr.bf16.mxu0 0
    %3875 = vmatpush2.bf16.msra.mxu0 0
    %3876 = vmatprep.subr.bf16.mxu0 0
    %3877 = vmatpush2.bf16.msra.mxu0 0
    %3878 = vmatprep.subr.bf16.mxu0 0
    %3879 = vmatpush2.bf16.msra.mxu0 0
    %3880 = vmatprep.subr.bf16.mxu0 0
    %3881 = vmatpush2.bf16.msra.mxu0 0
    %3882 = vmatprep.subr.bf16.mxu0 0
    %3883 = vmatpush2.bf16.msra.mxu0 0
    %3884 = vmatprep.subr.bf16.mxu0 0
    %3885 = vmatpush2.bf16.msra.mxu0 0
    %3886 = vmatprep.subr.bf16.mxu0 0
    %3887 = vmatpush2.bf16.msra.mxu0 0
    %3888 = vmatprep.subr.bf16.mxu0 0
    %3889 = vmatpush2.bf16.msra.mxu0 0
    %3890 = vmatprep.mubr.bf16.mxu0 0
    %3891 = vmatmul.mubr.bf16.gmra.mxu0 %v3820
    %v3892 = vpop.f32.mrf.mxu0
    %v3893 = vadd.f32 0.0, %v3892
    %v3894 = vpop.f32.mrf.mxu0
    %v3895 = vpop.f32.mrf.mxu0
    %v3896 = vadd.f32 0.0, %v3895
    %v3897 = vpop.f32.mrf.mxu0
    %3898 = vmatprep.mubr.bf16.mxu0 0
    %3899 = vmatmul.mubr.bf16.gmra.mxu0 %v3823
    %v3900 = vpop.f32.mrf.mxu0
    %v3901 = vadd.f32 0.0, %v3900
    %v3902 = vpop.f32.mrf.mxu0
    %v3903 = vpop.f32.mrf.mxu0
    %v3904 = vadd.f32 0.0, %v3903
    %v3905 = vpop.f32.mrf.mxu0
    %3906 = vmatprep.mubr.bf16.mxu0 0
    %3907 = vmatmul.mubr.bf16.gmra.mxu0 %v3826
    %v3908 = vpop.f32.mrf.mxu0
    %v3909 = vadd.f32 0.0, %v3908
    %v3910 = vpop.f32.mrf.mxu0
    %v3911 = vpop.f32.mrf.mxu0
    %v3912 = vadd.f32 0.0, %v3911
    %v3913 = vpop.f32.mrf.mxu0
    %3914 = vmatprep.mubr.bf16.mxu0 0
    %3915 = vmatmul.mubr.bf16.gmra.mxu0 %v3829
    %v3916 = vpop.f32.mrf.mxu0
    %v3917 = vadd.f32 0.0, %v3916
    %v3918 = vpop.f32.mrf.mxu0
    %v3919 = vpop.f32.mrf.mxu0
    %v3920 = vadd.f32 0.0, %v3919
    %v3921 = vpop.f32.mrf.mxu0
    %3922 = vmatprep.mubr.bf16.mxu0 0
    %3923 = vmatmul.mubr.bf16.gmra.mxu0 %v3832
    %v3924 = vpop.f32.mrf.mxu0
    %v3925 = vadd.f32 0.0, %v3924
    %v3926 = vpop.f32.mrf.mxu0
    %v3927 = vpop.f32.mrf.mxu0
    %v3928 = vadd.f32 0.0, %v3927
    %v3929 = vpop.f32.mrf.mxu0
    %3930 = vmatprep.mubr.bf16.mxu0 0
    %3931 = vmatmul.mubr.bf16.gmra.mxu0 %v3835
    %v3932 = vpop.f32.mrf.mxu0
    %v3933 = vadd.f32 0.0, %v3932
    %v3934 = vpop.f32.mrf.mxu0
    %v3935 = vpop.f32.mrf.mxu0
    %v3936 = vadd.f32 0.0, %v3935
    %v3937 = vpop.f32.mrf.mxu0
    %3938 = vmatprep.mubr.bf16.mxu0 0
    %3939 = vmatmul.mubr.bf16.gmra.mxu0 %v3838
    %v3940 = vpop.f32.mrf.mxu0
    %v3941 = vadd.f32 0.0, %v3940
    %v3942 = vpop.f32.mrf.mxu0
    %v3943 = vpop.f32.mrf.mxu0
    %v3944 = vadd.f32 0.0, %v3943
    %v3945 = vpop.f32.mrf.mxu0
    %3946 = vmatprep.mubr.bf16.mxu0 0
    %3947 = vmatmul.mubr.bf16.gmra.mxu0 %v3841
    %v3948 = vpop.f32.mrf.mxu0
    %v3949 = vadd.f32 0.0, %v3948
    %v3950 = vpop.f32.mrf.mxu0
    %v3951 = vpop.f32.mrf.mxu0
    %v3952 = vadd.f32 0.0, %v3951
    %v3953 = vpop.f32.mrf.mxu0
    %3954 = vmatprep.mubr.bf16.mxu0 0
    %3955 = vmatmul.mubr.bf16.gmra.mxu0 %v3844
    %v3956 = vpop.f32.mrf.mxu0
    %v3957 = vadd.f32 0.0, %v3956
    %v3958 = vpop.f32.mrf.mxu0
    %v3959 = vpop.f32.mrf.mxu0
    %v3960 = vadd.f32 0.0, %v3959
    %v3961 = vpop.f32.mrf.mxu0
    %3962 = vmatprep.mubr.bf16.mxu0 0
    %3963 = vmatmul.mubr.bf16.gmra.mxu0 %v3847
    %v3964 = vpop.f32.mrf.mxu0
    %v3965 = vadd.f32 0.0, %v3964
    %v3966 = vpop.f32.mrf.mxu0
    %v3967 = vpop.f32.mrf.mxu0
    %v3968 = vadd.f32 0.0, %v3967
    %v3969 = vpop.f32.mrf.mxu0
    %3970 = vmatprep.mubr.bf16.mxu0 0
    %3971 = vmatmul.mubr.bf16.gmra.mxu0 %v3850
    %v3972 = vpop.f32.mrf.mxu0
    %v3973 = vadd.f32 0.0, %v3972
    %v3974 = vpop.f32.mrf.mxu0
    %v3975 = vpop.f32.mrf.mxu0
    %v3976 = vadd.f32 0.0, %v3975
    %v3977 = vpop.f32.mrf.mxu0
    %3978 = vmatprep.mubr.bf16.mxu0 0
    %3979 = vmatmul.mubr.bf16.gmra.mxu0 %v3853
    %v3980 = vpop.f32.mrf.mxu0
    %v3981 = vadd.f32 0.0, %v3980
    %v3982 = vpop.f32.mrf.mxu0
    %v3983 = vpop.f32.mrf.mxu0
    %v3984 = vadd.f32 0.0, %v3983
    %v3985 = vpop.f32.mrf.mxu0
    %3986 = vmatprep.mubr.bf16.mxu0 0
    %3987 = vmatmul.mubr.bf16.gmra.mxu0 %v3856
    %v3988 = vpop.f32.mrf.mxu0
    %v3989 = vadd.f32 0.0, %v3988
    %v3990 = vpop.f32.mrf.mxu0
    %v3991 = vpop.f32.mrf.mxu0
    %v3992 = vpop.f32.mrf.mxu0
    %3993 = vdwg.mxu0
    %v3994 = vadd.f32 %v3723, %v3893
    %v3995 = vadd.f32 %v3724, %v3896
    %v3996 = vadd.f32 %v3725, %v3901
    %v3997 = vadd.f32 %v3726, %v3904
    %v3998 = vadd.f32 %v3727, %v3909
    %v3999 = vadd.f32 %v3728, %v3912
    %v4000 = vadd.f32 %v3729, %v3917
    %v4001 = vadd.f32 %v3730, %v3920
    %v4002 = vadd.f32 %v3731, %v3925
    %v4003 = vadd.f32 %v3732, %v3928
    %v4004 = vadd.f32 %v3733, %v3933
    %v4005 = vadd.f32 %v3734, %v3936
    %v4006 = vadd.f32 %v3735, %v3941
    %v4007 = vadd.f32 %v3736, %v3944
    %v4008 = vadd.f32 %v3737, %v3949
    %v4009 = vadd.f32 %v3738, %v3952
    %v4010 = vadd.f32 %v3739, %v3957
    %v4011 = vadd.f32 %v3740, %v3960
    %v4012 = vadd.f32 %v3741, %v3965
    %v4013 = vadd.f32 %v3742, %v3968
    %v4014 = vadd.f32 %v3743, %v3973
    %v4015 = vadd.f32 %v3744, %v3976
    %v4016 = vadd.f32 %v3745, %v3981
    %v4017 = vadd.f32 %v3746, %v3984
    %v4018 = vadd.f32 %v3747, %v3989
    %v4019 = vld [vmem:[%s4] sm:$0xff]
    %v4020 = vld [vmem:[%s4 + $0x8] sm:$0xff]
    %v4021 = vld [vmem:[%s4 + $0x10] sm:$0xff]
    %v4022 = vld [vmem:[%s4 + $0x18] sm:$0xff]
    %v4023 = vld [vmem:[%s4 + $0x20] sm:$0xff]
    %v4024 = vld [vmem:[%s4 + $0x28] sm:$0xff]
    %v4025 = vld [vmem:[%s4 + $0x30] sm:$0xff]
    %v4026 = vld [vmem:[%s4 + $0x38] sm:$0xff]
    %v4027 = vld [vmem:[%s4 + $0x40] sm:$0xff]
    %v4028 = vld [vmem:[%s4 + $0x48] sm:$0xff]
    %v4029 = vld [vmem:[%s4 + $0x50] sm:$0xff]
    %v4030 = vld [vmem:[%s4 + $0x58] sm:$0xff]
    %v4031 = vld [vmem:[%s4 + $0x60] sm:$0xff]
    %v4032 = vld [vmem:[%s4 + $0x68] sm:$0xff]
    %v4033 = vld [vmem:[%s4 + $0x70] sm:$0xff]
    %v4034 = vld [vmem:[%s4 + $0x78] sm:$0xff]
    %v4035 = vld [vmem:[%s4 + $0x80] sm:$0xff]
    %v4036 = vld [vmem:[%s4 + $0x88] sm:$0xff]
    %v4037 = vld [vmem:[%s4 + $0x90] sm:$0xff]
    %v4038 = vld [vmem:[%s4 + $0x98] sm:$0xff]
    %v4039 = vld [vmem:[%s4 + $0xa0] sm:$0xff]
    %v4040 = vld [vmem:[%s4 + $0xa8] sm:$0xff]
    %v4041 = vld [vmem:[%s4 + $0xb0] sm:$0xff]
    %v4042 = vld [vmem:[%s4 + $0xb8] sm:$0xff]
    %v4043 = vld [vmem:[%s4 + $0xc0] sm:$0xff]
    %v4044 = vld [vmem:[%s3 + $0x1] sm:$0x1]
    %v4045 = vld [vmem:[%s3 + $0x5] sm:$0x1]
    %4047 = vset.pattern.permute.xlu0 0
    %4048 = vperm.xlu0 %4047, %v4019
    %v4049 = vpop.permute.xlu0 %4048
    %4052 = vset.pattern.permute.xlu0 0
    %4053 = vperm.xlu0 %4052, %v4020
    %v4054 = vpop.permute.xlu0 %4053
    %4057 = vset.pattern.permute.xlu0 0
    %4058 = vperm.xlu0 %4057, %v4021
    %v4059 = vpop.permute.xlu0 %4058
    %4062 = vset.pattern.permute.xlu0 0
    %4063 = vperm.xlu0 %4062, %v4022
    %v4064 = vpop.permute.xlu0 %4063
    %4067 = vset.pattern.permute.xlu0 0
    %4068 = vperm.xlu0 %4067, %v4023
    %v4069 = vpop.permute.xlu0 %4068
    %4072 = vset.pattern.permute.xlu0 0
    %4073 = vperm.xlu0 %4072, %v4024
    %v4074 = vpop.permute.xlu0 %4073
    %4077 = vset.pattern.permute.xlu0 0
    %4078 = vperm.xlu0 %4077, %v4025
    %v4079 = vpop.permute.xlu0 %4078
    %4082 = vset.pattern.permute.xlu0 0
    %4083 = vperm.xlu0 %4082, %v4026
    %v4084 = vpop.permute.xlu0 %4083
    %4087 = vset.pattern.permute.xlu0 0
    %4088 = vperm.xlu0 %4087, %v4027
    %v4089 = vpop.permute.xlu0 %4088
    %4092 = vset.pattern.permute.xlu0 0
    %4093 = vperm.xlu0 %4092, %v4028
    %v4094 = vpop.permute.xlu0 %4093
    %4097 = vset.pattern.permute.xlu0 0
    %4098 = vperm.xlu0 %4097, %v4029
    %v4099 = vpop.permute.xlu0 %4098
    %4102 = vset.pattern.permute.xlu0 0
    %4103 = vperm.xlu0 %4102, %v4030
    %v4104 = vpop.permute.xlu0 %4103
    %4107 = vset.pattern.permute.xlu0 0
    %4108 = vperm.xlu0 %4107, %v4031
    %v4109 = vpop.permute.xlu0 %4108
    %4112 = vset.pattern.permute.xlu0 0
    %4113 = vperm.xlu0 %4112, %v4032
    %v4114 = vpop.permute.xlu0 %4113
    %4117 = vset.pattern.permute.xlu0 0
    %4118 = vperm.xlu0 %4117, %v4033
    %v4119 = vpop.permute.xlu0 %4118
    %4122 = vset.pattern.permute.xlu0 0
    %4123 = vperm.xlu0 %4122, %v4034
    %v4124 = vpop.permute.xlu0 %4123
    %4127 = vset.pattern.permute.xlu0 0
    %4128 = vperm.xlu0 %4127, %v4035
    %v4129 = vpop.permute.xlu0 %4128
    %4132 = vset.pattern.permute.xlu0 0
    %4133 = vperm.xlu0 %4132, %v4036
    %v4134 = vpop.permute.xlu0 %4133
    %4137 = vset.pattern.permute.xlu0 0
    %4138 = vperm.xlu0 %4137, %v4037
    %v4139 = vpop.permute.xlu0 %4138
    %4142 = vset.pattern.permute.xlu0 0
    %4143 = vperm.xlu0 %4142, %v4038
    %v4144 = vpop.permute.xlu0 %4143
    %4147 = vset.pattern.permute.xlu0 0
    %4148 = vperm.xlu0 %4147, %v4039
    %v4149 = vpop.permute.xlu0 %4148
    %4152 = vset.pattern.permute.xlu0 0
    %4153 = vperm.xlu0 %4152, %v4040
    %v4154 = vpop.permute.xlu0 %4153
    %4157 = vset.pattern.permute.xlu0 0
    %4158 = vperm.xlu0 %4157, %v4041
    %v4159 = vpop.permute.xlu0 %4158
    %4162 = vset.pattern.permute.xlu0 0
    %4163 = vperm.xlu0 %4162, %v4042
    %v4164 = vpop.permute.xlu0 %4163
    %4167 = vset.pattern.permute.xlu0 0
    %4168 = vperm.xlu0 %4167, %v4043
    %v4169 = vpop.permute.xlu0 %4168
    %v4171 = vmul.f32 %v3994, %v4049
    %v4172 = vmul.f32 %v3995, %v4054
    %v4173 = vmul.f32 %v3996, %v4059
    %v4174 = vmul.f32 %v3997, %v4064
    %v4175 = vmul.f32 %v3998, %v4069
    %v4176 = vmul.f32 %v3999, %v4074
    %v4177 = vmul.f32 %v4000, %v4079
    %v4178 = vmul.f32 %v4001, %v4084
    %v4179 = vmul.f32 %v4002, %v4089
    %v4180 = vmul.f32 %v4003, %v4094
    %v4181 = vmul.f32 %v4004, %v4099
    %v4182 = vmul.f32 %v4005, %v4104
    %v4183 = vmul.f32 %v4006, %v4109
    %v4184 = vmul.f32 %v4007, %v4114
    %v4185 = vmul.f32 %v4008, %v4119
    %v4186 = vmul.f32 %v4009, %v4124
    %v4187 = vmul.f32 %v4010, %v4129
    %v4188 = vmul.f32 %v4011, %v4134
    %v4189 = vmul.f32 %v4012, %v4139
    %v4190 = vmul.f32 %v4013, %v4144
    %v4191 = vmul.f32 %v4014, %v4149
    %v4192 = vmul.f32 %v4015, %v4154
    %v4193 = vmul.f32 %v4016, %v4159
    %v4194 = vmul.f32 %v4017, %v4164
    %v4195 = vmul.f32 %v4018, %v4169
    %v4196 = vsel %vm28, %v4171, 0.0
    %v4197 = vsel %vm28, %v4172, 0.0
    %v4198 = vadd.f32 %v4196, %v4197
    %v4199 = vsel %vm28, %v4173, 0.0
    %v4200 = vadd.f32 %v4198, %v4199
    %v4201 = vsel %vm28, %v4174, 0.0
    %v4202 = vadd.f32 %v4200, %v4201
    %v4203 = vsel %vm28, %v4175, 0.0
    %v4204 = vadd.f32 %v4202, %v4203
    %v4205 = vsel %vm28, %v4176, 0.0
    %v4206 = vadd.f32 %v4204, %v4205
    %v4207 = vsel %vm28, %v4177, 0.0
    %v4208 = vadd.f32 %v4206, %v4207
    %v4209 = vsel %vm28, %v4178, 0.0
    %v4210 = vadd.f32 %v4208, %v4209
    %v4211 = vsel %vm28, %v4179, 0.0
    %v4212 = vadd.f32 %v4210, %v4211
    %v4213 = vsel %vm28, %v4180, 0.0
    %v4214 = vadd.f32 %v4212, %v4213
    %v4215 = vsel %vm28, %v4181, 0.0
    %v4216 = vadd.f32 %v4214, %v4215
    %v4217 = vsel %vm28, %v4182, 0.0
    %v4218 = vadd.f32 %v4216, %v4217
    %v4219 = vsel %vm28, %v4183, 0.0
    %v4220 = vadd.f32 %v4218, %v4219
    %v4221 = vsel %vm28, %v4184, 0.0
    %v4222 = vadd.f32 %v4220, %v4221
    %v4223 = vsel %vm28, %v4185, 0.0
    %v4224 = vadd.f32 %v4222, %v4223
    %v4225 = vsel %vm28, %v4186, 0.0
    %v4226 = vadd.f32 %v4224, %v4225
    %v4227 = vsel %vm28, %v4187, 0.0
    %v4228 = vadd.f32 %v4226, %v4227
    %v4229 = vsel %vm28, %v4188, 0.0
    %v4230 = vadd.f32 %v4228, %v4229
    %v4231 = vsel %vm28, %v4189, 0.0
    %v4232 = vadd.f32 %v4230, %v4231
    %v4233 = vsel %vm28, %v4190, 0.0
    %v4234 = vadd.f32 %v4232, %v4233
    %v4235 = vsel %vm28, %v4191, 0.0
    %v4236 = vadd.f32 %v4234, %v4235
    %v4237 = vsel %vm28, %v4192, 0.0
    %v4238 = vadd.f32 %v4236, %v4237
    %v4239 = vsel %vm28, %v4193, 0.0
    %v4240 = vadd.f32 %v4238, %v4239
    %v4241 = vsel %vm28, %v4194, 0.0
    %v4242 = vadd.f32 %v4240, %v4241
    %v4243 = vsel %vm28, %v4195, 0.0
    %v4244 = vadd.f32 %v4242, %v4243
    %v4245 = vrot.slane %v4244, 4
    %v4246 = vadd.f32 %v4244, %v4245
    %v4247 = vrot.slane %v4246, 2
    %v4248 = vadd.f32 %v4246, %v4247
    %v4249 = vrot.slane %v4248, 1
    %v4250 = vadd.f32 %v4248, %v4249
    %v4251 = vmul.f32 %v4250, 0.0078125
    %v4252 = vsub.f32 %v3994, %v4251
    %v4253 = vsub.f32 %v3995, %v4251
    %v4254 = vsub.f32 %v3996, %v4251
    %v4255 = vsub.f32 %v3997, %v4251
    %v4256 = vsub.f32 %v3998, %v4251
    %v4257 = vsub.f32 %v3999, %v4251
    %v4258 = vsub.f32 %v4000, %v4251
    %v4259 = vsub.f32 %v4001, %v4251
    %v4260 = vsub.f32 %v4002, %v4251
    %v4261 = vsub.f32 %v4003, %v4251
    %v4262 = vsub.f32 %v4004, %v4251
    %v4263 = vsub.f32 %v4005, %v4251
    %v4264 = vsub.f32 %v4006, %v4251
    %v4265 = vsub.f32 %v4007, %v4251
    %v4266 = vsub.f32 %v4008, %v4251
    %v4267 = vsub.f32 %v4009, %v4251
    %v4268 = vsub.f32 %v4010, %v4251
    %v4269 = vsub.f32 %v4011, %v4251
    %v4270 = vsub.f32 %v4012, %v4251
    %v4271 = vsub.f32 %v4013, %v4251
    %v4272 = vsub.f32 %v4014, %v4251
    %v4273 = vsub.f32 %v4015, %v4251
    %v4274 = vsub.f32 %v4016, %v4251
    %v4275 = vsub.f32 %v4017, %v4251
    %v4276 = vsub.f32 %v4018, %v4251
    %v4277 = vmul.f32 %v4252, %v4049
    %v4278 = vmul.f32 %v4253, %v4054
    %v4279 = vmul.f32 %v4254, %v4059
    %v4280 = vmul.f32 %v4255, %v4064
    %v4281 = vmul.f32 %v4256, %v4069
    %v4282 = vmul.f32 %v4257, %v4074
    %v4283 = vmul.f32 %v4258, %v4079
    %v4284 = vmul.f32 %v4259, %v4084
    %v4285 = vmul.f32 %v4260, %v4089
    %v4286 = vmul.f32 %v4261, %v4094
    %v4287 = vmul.f32 %v4262, %v4099
    %v4288 = vmul.f32 %v4263, %v4104
    %v4289 = vmul.f32 %v4264, %v4109
    %v4290 = vmul.f32 %v4265, %v4114
    %v4291 = vmul.f32 %v4266, %v4119
    %v4292 = vmul.f32 %v4267, %v4124
    %v4293 = vmul.f32 %v4268, %v4129
    %v4294 = vmul.f32 %v4269, %v4134
    %v4295 = vmul.f32 %v4270, %v4139
    %v4296 = vmul.f32 %v4271, %v4144
    %v4297 = vmul.f32 %v4272, %v4149
    %v4298 = vmul.f32 %v4273, %v4154
    %v4299 = vmul.f32 %v4274, %v4159
    %v4300 = vmul.f32 %v4275, %v4164
    %v4301 = vmul.f32 %v4276, %v4169
    %v4302 = vmul.f32 %v4277, %v4277
    %v4303 = vmul.f32 %v4278, %v4278
    %v4304 = vmul.f32 %v4279, %v4279
    %v4305 = vmul.f32 %v4280, %v4280
    %v4306 = vmul.f32 %v4281, %v4281
    %v4307 = vmul.f32 %v4282, %v4282
    %v4308 = vmul.f32 %v4283, %v4283
    %v4309 = vmul.f32 %v4284, %v4284
    %v4310 = vmul.f32 %v4285, %v4285
    %v4311 = vmul.f32 %v4286, %v4286
    %v4312 = vmul.f32 %v4287, %v4287
    %v4313 = vmul.f32 %v4288, %v4288
    %v4314 = vmul.f32 %v4289, %v4289
    %v4315 = vmul.f32 %v4290, %v4290
    %v4316 = vmul.f32 %v4291, %v4291
    %v4317 = vmul.f32 %v4292, %v4292
    %v4318 = vmul.f32 %v4293, %v4293
    %v4319 = vmul.f32 %v4294, %v4294
    %v4320 = vmul.f32 %v4295, %v4295
    %v4321 = vmul.f32 %v4296, %v4296
    %v4322 = vmul.f32 %v4297, %v4297
    %v4323 = vmul.f32 %v4298, %v4298
    %v4324 = vmul.f32 %v4299, %v4299
    %v4325 = vmul.f32 %v4300, %v4300
    %v4326 = vmul.f32 %v4301, %v4301
    %v4327 = vsel %vm28, %v4302, 0.0
    %v4328 = vsel %vm28, %v4303, 0.0
    %v4329 = vadd.f32 %v4327, %v4328
    %v4330 = vsel %vm28, %v4304, 0.0
    %v4331 = vadd.f32 %v4329, %v4330
    %v4332 = vsel %vm28, %v4305, 0.0
    %v4333 = vadd.f32 %v4331, %v4332
    %v4334 = vsel %vm28, %v4306, 0.0
    %v4335 = vadd.f32 %v4333, %v4334
    %v4336 = vsel %vm28, %v4307, 0.0
    %v4337 = vadd.f32 %v4335, %v4336
    %v4338 = vsel %vm28, %v4308, 0.0
    %v4339 = vadd.f32 %v4337, %v4338
    %v4340 = vsel %vm28, %v4309, 0.0
    %v4341 = vadd.f32 %v4339, %v4340
    %v4342 = vsel %vm28, %v4310, 0.0
    %v4343 = vadd.f32 %v4341, %v4342
    %v4344 = vsel %vm28, %v4311, 0.0
    %v4345 = vadd.f32 %v4343, %v4344
    %v4346 = vsel %vm28, %v4312, 0.0
    %v4347 = vadd.f32 %v4345, %v4346
    %v4348 = vsel %vm28, %v4313, 0.0
    %v4349 = vadd.f32 %v4347, %v4348
    %v4350 = vsel %vm28, %v4314, 0.0
    %v4351 = vadd.f32 %v4349, %v4350
    %v4352 = vsel %vm28, %v4315, 0.0
    %v4353 = vadd.f32 %v4351, %v4352
    %v4354 = vsel %vm28, %v4316, 0.0
    %v4355 = vadd.f32 %v4353, %v4354
    %v4356 = vsel %vm28, %v4317, 0.0
    %v4357 = vadd.f32 %v4355, %v4356
    %v4358 = vsel %vm28, %v4318, 0.0
    %v4359 = vadd.f32 %v4357, %v4358
    %v4360 = vsel %vm28, %v4319, 0.0
    %v4361 = vadd.f32 %v4359, %v4360
    %v4362 = vsel %vm28, %v4320, 0.0
    %v4363 = vadd.f32 %v4361, %v4362
    %v4364 = vsel %vm28, %v4321, 0.0
    %v4365 = vadd.f32 %v4363, %v4364
    %v4366 = vsel %vm28, %v4322, 0.0
    %v4367 = vadd.f32 %v4365, %v4366
    %v4368 = vsel %vm28, %v4323, 0.0
    %v4369 = vadd.f32 %v4367, %v4368
    %v4370 = vsel %vm28, %v4324, 0.0
    %v4371 = vadd.f32 %v4369, %v4370
    %v4372 = vsel %vm28, %v4325, 0.0
    %v4373 = vadd.f32 %v4371, %v4372
    %v4374 = vsel %vm28, %v4326, 0.0
    %v4375 = vadd.f32 %v4373, %v4374
    %v4376 = vrot.slane %v4375, 4
    %v4377 = vadd.f32 %v4375, %v4376
    %v4378 = vrot.slane %v4377, 2
    %v4379 = vadd.f32 %v4377, %v4378
    %v4380 = vrot.slane %v4379, 1
    %v4381 = vadd.f32 %v4379, %v4380
    %v4382 = vmul.f32 %v4381, 0.0078125
    %v4383 = vadd.f32 %v4382, 1e-05
    %v4384 = vrsqrt.pop %v4383
    %v4385 = vmul.f32 %v4044, %v4384
    %v4386 = vmul.f32 %v4251, %v4385
    %v4387 = vsub.f32 %v4045, %v4386
    %v4388 = vlaneseq
    %v4389 = vshrl.u32 %v4388, 7
    %v4390 = vsub.s32 0, %v4389
    %v4391 = vrot.slane %v4385, %v4390
    %v4392 = vmul.f32 %v3994, %v4391
    %v4393 = vmul.f32 %v3995, %v4391
    %v4394 = vmul.f32 %v3996, %v4391
    %v4395 = vmul.f32 %v3997, %v4391
    %v4396 = vmul.f32 %v3998, %v4391
    %v4397 = vmul.f32 %v3999, %v4391
    %v4398 = vmul.f32 %v4000, %v4391
    %v4399 = vmul.f32 %v4001, %v4391
    %v4400 = vmul.f32 %v4002, %v4391
    %v4401 = vmul.f32 %v4003, %v4391
    %v4402 = vmul.f32 %v4004, %v4391
    %v4403 = vmul.f32 %v4005, %v4391
    %v4404 = vmul.f32 %v4006, %v4391
    %v4405 = vmul.f32 %v4007, %v4391
    %v4406 = vmul.f32 %v4008, %v4391
    %v4407 = vmul.f32 %v4009, %v4391
    %v4408 = vmul.f32 %v4010, %v4391
    %v4409 = vmul.f32 %v4011, %v4391
    %v4410 = vmul.f32 %v4012, %v4391
    %v4411 = vmul.f32 %v4013, %v4391
    %v4412 = vmul.f32 %v4014, %v4391
    %v4413 = vmul.f32 %v4015, %v4391
    %v4414 = vmul.f32 %v4016, %v4391
    %v4415 = vmul.f32 %v4017, %v4391
    %v4416 = vmul.f32 %v4018, %v4391
    %v4417 = vlaneseq
    %v4418 = vshrl.u32 %v4417, 7
    %v4419 = vsub.s32 0, %v4418
    %v4420 = vrot.slane %v4387, %v4419
    %v4421 = vadd.f32 %v4392, %v4420
    %v4422 = vadd.f32 %v4393, %v4420
    %v4423 = vadd.f32 %v4394, %v4420
    %v4424 = vadd.f32 %v4395, %v4420
    %v4425 = vadd.f32 %v4396, %v4420
    %v4426 = vadd.f32 %v4397, %v4420
    %v4427 = vadd.f32 %v4398, %v4420
    %v4428 = vadd.f32 %v4399, %v4420
    %v4429 = vadd.f32 %v4400, %v4420
    %v4430 = vadd.f32 %v4401, %v4420
    %v4431 = vadd.f32 %v4402, %v4420
    %v4432 = vadd.f32 %v4403, %v4420
    %v4433 = vadd.f32 %v4404, %v4420
    %v4434 = vadd.f32 %v4405, %v4420
    %v4435 = vadd.f32 %v4406, %v4420
    %v4436 = vadd.f32 %v4407, %v4420
    %v4437 = vadd.f32 %v4408, %v4420
    %v4438 = vadd.f32 %v4409, %v4420
    %v4439 = vadd.f32 %v4410, %v4420
    %v4440 = vadd.f32 %v4411, %v4420
    %v4441 = vadd.f32 %v4412, %v4420
    %v4442 = vadd.f32 %v4413, %v4420
    %v4443 = vadd.f32 %v4414, %v4420
    %v4444 = vadd.f32 %v4415, %v4420
    %v4445 = vadd.f32 %v4416, %v4420
    %v4446 = vmax.f32 %v4421, 0.0
    %v4447 = vmax.f32 %v4422, 0.0
    %v4448 = vmax.f32 %v4423, 0.0
    %v4449 = vmax.f32 %v4424, 0.0
    %v4450 = vmax.f32 %v4425, 0.0
    %v4451 = vmax.f32 %v4426, 0.0
    %v4452 = vmax.f32 %v4427, 0.0
    %v4453 = vmax.f32 %v4428, 0.0
    %v4454 = vmax.f32 %v4429, 0.0
    %v4455 = vmax.f32 %v4430, 0.0
    %v4456 = vmax.f32 %v4431, 0.0
    %v4457 = vmax.f32 %v4432, 0.0
    %v4458 = vmax.f32 %v4433, 0.0
    %v4459 = vmax.f32 %v4434, 0.0
    %v4460 = vmax.f32 %v4435, 0.0
    %v4461 = vmax.f32 %v4436, 0.0
    %v4462 = vmax.f32 %v4437, 0.0
    %v4463 = vmax.f32 %v4438, 0.0
    %v4464 = vmax.f32 %v4439, 0.0
    %v4465 = vmax.f32 %v4440, 0.0
    %v4466 = vmax.f32 %v4441, 0.0
    %v4467 = vmax.f32 %v4442, 0.0
    %v4468 = vmax.f32 %v4443, 0.0
    %v4469 = vmax.f32 %v4444, 0.0
    %v4470 = vmax.f32 %v4445, 0.0
    %4471 = vst.msk [vmem:[#allocation5] sm:$0xff] %vm28, %v4446
    %4472 = vst.msk [vmem:[#allocation5 + $0x8] sm:$0xff] %vm28, %v4447
    %4473 = vst.msk [vmem:[#allocation5 + $0x10] sm:$0xff] %vm28, %v4448
    %4474 = vst.msk [vmem:[#allocation5 + $0x18] sm:$0xff] %vm28, %v4449
    %4475 = vst.msk [vmem:[#allocation5 + $0x20] sm:$0xff] %vm28, %v4450
    %4476 = vst.msk [vmem:[#allocation5 + $0x28] sm:$0xff] %vm28, %v4451
    %4477 = vst.msk [vmem:[#allocation5 + $0x30] sm:$0xff] %vm28, %v4452
    %4478 = vst.msk [vmem:[#allocation5 + $0x38] sm:$0xff] %vm28, %v4453
    %4479 = vst.msk [vmem:[#allocation5 + $0x40] sm:$0xff] %vm28, %v4454
    %4480 = vst.msk [vmem:[#allocation5 + $0x48] sm:$0xff] %vm28, %v4455
    %4481 = vst.msk [vmem:[#allocation5 + $0x50] sm:$0xff] %vm28, %v4456
    %4482 = vst.msk [vmem:[#allocation5 + $0x58] sm:$0xff] %vm28, %v4457
    %4483 = vst.msk [vmem:[#allocation5 + $0x60] sm:$0xff] %vm28, %v4458
    %4484 = vst.msk [vmem:[#allocation5 + $0x68] sm:$0xff] %vm28, %v4459
    %4485 = vst.msk [vmem:[#allocation5 + $0x70] sm:$0xff] %vm28, %v4460
    %4486 = vst.msk [vmem:[#allocation5 + $0x78] sm:$0xff] %vm28, %v4461
    %4487 = vst.msk [vmem:[#allocation5 + $0x80] sm:$0xff] %vm28, %v4462
    %4488 = vst.msk [vmem:[#allocation5 + $0x88] sm:$0xff] %vm28, %v4463
    %4489 = vst.msk [vmem:[#allocation5 + $0x90] sm:$0xff] %vm28, %v4464
    %4490 = vst.msk [vmem:[#allocation5 + $0x98] sm:$0xff] %vm28, %v4465
    %4491 = vst.msk [vmem:[#allocation5 + $0xa0] sm:$0xff] %vm28, %v4466
    %4492 = vst.msk [vmem:[#allocation5 + $0xa8] sm:$0xff] %vm28, %v4467
    %4493 = vst.msk [vmem:[#allocation5 + $0xb0] sm:$0xff] %vm28, %v4468
    %4494 = vst.msk [vmem:[#allocation5 + $0xb8] sm:$0xff] %vm28, %v4469
    %4495 = vst.msk [vmem:[#allocation5 + $0xc0] sm:$0xff] %vm28, %v4470
    %v4496 = vld [vmem:[%s1439] ss:$2 sm:$0xff]
    %v4497 = vld [vmem:[%s1441] ss:$2 sm:$0xff]
    %v4498 = vld [vmem:[%s1443] ss:$2 sm:$0xff]
    %v4499 = vld [vmem:[%s1445] ss:$2 sm:$0xff]
    %v4500 = vld [vmem:[%s1447] ss:$2 sm:$0xff]
    %v4501 = vld [vmem:[%s1449] ss:$2 sm:$0xff]
    %v4502 = vld [vmem:[%s1451] ss:$2 sm:$0xff]
    %v4503 = vld [vmem:[%s1453] ss:$2 sm:$0xff]
    %v4504 = vld [vmem:[%s1455] ss:$2 sm:$0xff]
    %v4505 = vld [vmem:[%s1457] ss:$2 sm:$0xff]
    %v4506 = vld [vmem:[%s1459] ss:$2 sm:$0xff]
    %v4507 = vld [vmem:[%s1461] ss:$2 sm:$0xff]
    %v4508 = vld [vmem:[%s1463] ss:$2 sm:$0x7]
    %s4509 = scalar_lea.vmem [#allocation5], 2
    %v4510 = vld [vmem:[%s4509] ss:$2 sm:$0xff]
    %s4511 = scalar_lea.vmem [#allocation5], 18
    %v4512 = vld [vmem:[%s4511] ss:$2 sm:$0xff]
    %s4513 = scalar_lea.vmem [#allocation5], 34
    %v4514 = vld [vmem:[%s4513] ss:$2 sm:$0xff]
    %s4515 = scalar_lea.vmem [#allocation5], 50
    %v4516 = vld [vmem:[%s4515] ss:$2 sm:$0xff]
    %s4517 = scalar_lea.vmem [#allocation5], 66
    %v4518 = vld [vmem:[%s4517] ss:$2 sm:$0xff]
    %s4519 = scalar_lea.vmem [#allocation5], 82
    %v4520 = vld [vmem:[%s4519] ss:$2 sm:$0xff]
    %s4521 = scalar_lea.vmem [#allocation5], 98
    %v4522 = vld [vmem:[%s4521] ss:$2 sm:$0xff]
    %s4523 = scalar_lea.vmem [#allocation5], 114
    %v4524 = vld [vmem:[%s4523] ss:$2 sm:$0xff]
    %s4525 = scalar_lea.vmem [#allocation5], 130
    %v4526 = vld [vmem:[%s4525] ss:$2 sm:$0xff]
    %s4527 = scalar_lea.vmem [#allocation5], 146
    %v4528 = vld [vmem:[%s4527] ss:$2 sm:$0xff]
    %s4529 = scalar_lea.vmem [#allocation5], 162
    %v4530 = vld [vmem:[%s4529] ss:$2 sm:$0xff]
    %s4531 = scalar_lea.vmem [#allocation5], 178
    %v4532 = vld [vmem:[%s4531] ss:$2 sm:$0xff]
    %s4533 = scalar_lea.vmem [#allocation5], 194
    %v4534 = vld [vmem:[%s4533] ss:$2 sm:$0x7]
    %v4535 = vmax.f32 %v4496, %v4510
    %v4536 = vmax.f32 %v4497, %v4512
    %v4537 = vmax.f32 %v4498, %v4514
    %v4538 = vmax.f32 %v4499, %v4516
    %v4539 = vmax.f32 %v4500, %v4518
    %v4540 = vmax.f32 %v4501, %v4520
    %v4541 = vmax.f32 %v4502, %v4522
    %v4542 = vmax.f32 %v4503, %v4524
    %v4543 = vmax.f32 %v4504, %v4526
    %v4544 = vmax.f32 %v4505, %v4528
    %v4545 = vmax.f32 %v4506, %v4530
    %v4546 = vmax.f32 %v4507, %v4532
    %v4547 = vmax.f32 %v4508, %v4534
    %4548 = vst.msk [vmem:[#allocation6] sm:$0xff] %vm28, %v4535
    %4549 = vst.msk [vmem:[#allocation6 + $0x8] sm:$0xff] %vm28, %v4536
    %4550 = vst.msk [vmem:[#allocation6 + $0x10] sm:$0xff] %vm28, %v4537
    %4551 = vst.msk [vmem:[#allocation6 + $0x18] sm:$0xff] %vm28, %v4538
    %4552 = vst.msk [vmem:[#allocation6 + $0x20] sm:$0xff] %vm28, %v4539
    %4553 = vst.msk [vmem:[#allocation6 + $0x28] sm:$0xff] %vm28, %v4540
    %4554 = vst.msk [vmem:[#allocation6 + $0x30] sm:$0xff] %vm28, %v4541
    %4555 = vst.msk [vmem:[#allocation6 + $0x38] sm:$0xff] %vm28, %v4542
    %4556 = vst.msk [vmem:[#allocation6 + $0x40] sm:$0xff] %vm28, %v4543
    %4557 = vst.msk [vmem:[#allocation6 + $0x48] sm:$0xff] %vm28, %v4544
    %4558 = vst.msk [vmem:[#allocation6 + $0x50] sm:$0xff] %vm28, %v4545
    %4559 = vst.msk [vmem:[#allocation6 + $0x58] sm:$0xff] %vm28, %v4546
    %vm4560 = vcmask 518144
    %4561 = vst.msk [vmem:[#allocation6 + $0x60] sm:$0x7] %vm4560, %v4547
    %v4562 = vld [vmem:[#allocation6 + $0x5] sm:$0xf]
    %v4563 = vld [vmem:[#allocation6 + $0xa] sm:$0xf]
    %v4564 = vmax.f32 %v4562, %v4563
    %vm4565 = vcmask 519168
    %4566 = vst.msk [vmem:[#allocation3 + $0xf] sm:$0xf] %vm4565, %v4564
    %v4567 = vld [vmem:[#allocation6 + $0xf] sm:$0xf]
    %v4568 = vld [vmem:[#allocation6 + $0x14] sm:$0xf]
    %v4569 = vmax.f32 %v4567, %v4568
    %4570 = vst.msk [vmem:[#allocation3 + $0x15] sm:$0xf] %vm4565, %v4569
    %v4571 = vld [vmem:[#allocation6 + $0x19] sm:$0xf]
    %v4572 = vld [vmem:[#allocation6 + $0x1e] sm:$0xf]
    %v4573 = vmax.f32 %v4571, %v4572
    %4574 = vst.msk [vmem:[#allocation3 + $0x1b] sm:$0xf] %vm4565, %v4573
    %v4575 = vld [vmem:[#allocation6 + $0x23] sm:$0xf]
    %v4576 = vld [vmem:[#allocation6 + $0x28] sm:$0xf]
    %v4577 = vmax.f32 %v4575, %v4576
    %4578 = vst.msk [vmem:[#allocation3 + $0x21] sm:$0xf] %vm4565, %v4577
    %v4579 = vld [vmem:[#allocation6 + $0x37] sm:$0xf]
    %v4580 = vld [vmem:[#allocation6 + $0x3c] sm:$0xf]
    %v4581 = vmax.f32 %v4579, %v4580
    %4582 = vst.msk [vmem:[#allocation3 + $0x33] sm:$0xf] %vm4565, %v4581
    %v4583 = vld [vmem:[#allocation6 + $0x41] sm:$0xf]
    %v4584 = vld [vmem:[#allocation6 + $0x46] sm:$0xf]
    %v4585 = vmax.f32 %v4583, %v4584
    %4586 = vst.msk [vmem:[#allocation3 + $0x39] sm:$0xf] %vm4565, %v4585
    %v4587 = vld [vmem:[#allocation6 + $0x4b] sm:$0xf]
    %v4588 = vld [vmem:[#allocation6 + $0x50] sm:$0xf]
    %v4589 = vmax.f32 %v4587, %v4588
    %4590 = vst.msk [vmem:[#allocation3 + $0x3f] sm:$0xf] %vm4565, %v4589
    %v4591 = vld [vmem:[#allocation6 + $0x55] sm:$0xf]
    %v4592 = vld [vmem:[#allocation6 + $0x5a] sm:$0xf]
    %v4593 = vmax.f32 %v4591, %v4592
    %4594 = vst.msk [vmem:[#allocation3 + $0x45] sm:$0xf] %vm4565, %v4593
    %v4595 = vld [vmem:[#allocation3 + $0x1] sm:$0xff]
    %v4596 = vld [vmem:[#allocation3 + $0x9] sm:$0xff]
    %v4597 = vld [vmem:[#allocation3 + $0x11] sm:$0xff]
    %v4598 = vld [vmem:[#allocation3 + $0x19] sm:$0xff]
    %v4599 = vld [vmem:[#allocation3 + $0x21] sm:$0xff]
    %v4600 = vld [vmem:[#allocation3 + $0x29] sm:$0xff]
    %v4601 = vld [vmem:[#allocation3 + $0x31] sm:$0xff]
    %v4602 = vld [vmem:[#allocation3 + $0x39] sm:$0xff]
    %v4603 = vld [vmem:[#allocation3 + $0x41] sm:$0xff]
    %v4604 = vpack.c.bf16 %v4596, %v4595
    %v4605 = vpack.c.bf16 %v4598, %v4597
    %v4606 = vpack.c.bf16 %v4600, %v4599
    %v4607 = vpack.c.bf16 %v4602, %v4601
    %v4608 = vpack.c.bf16 %v4603, %v4603
    %s4609 = scalar_lea.vmem %s2, 288
    %v4610 = vld [vmem:[%s4609] sm:$0xf]
    %v4611 = vld [vmem:[%s4609 + $0x4] sm:$0xf]
    %v4612 = vld [vmem:[%s4609 + $0x8] sm:$0xf]
    %v4613 = vld [vmem:[%s4609 + $0xc] sm:$0xf]
    %v4614 = vld [vmem:[%s4609 + $0x10] sm:$0xf]
    %v4615 = vld [vmem:[%s4609 + $0x14] sm:$0xf]
    %v4616 = vld [vmem:[%s4609 + $0x18] sm:$0xf]
    %v4617 = vld [vmem:[%s4609 + $0x1c] sm:$0xf]
    %v4618 = vld [vmem:[#allocation3 + $0x2] sm:$0xff]
    %v4619 = vld [vmem:[#allocation3 + $0xa] sm:$0xff]
    %v4620 = vld [vmem:[#allocation3 + $0x12] sm:$0xff]
    %v4621 = vld [vmem:[#allocation3 + $0x1a] sm:$0xff]
    %v4622 = vld [vmem:[#allocation3 + $0x22] sm:$0xff]
    %v4623 = vld [vmem:[#allocation3 + $0x2a] sm:$0xff]
    %v4624 = vld [vmem:[#allocation3 + $0x32] sm:$0xff]
    %v4625 = vld [vmem:[#allocation3 + $0x3a] sm:$0xff]
    %v4626 = vld [vmem:[#allocation3 + $0x42] sm:$0xff]
    %v4627 = vpack.c.bf16 %v4619, %v4618
    %v4628 = vpack.c.bf16 %v4621, %v4620
    %v4629 = vpack.c.bf16 %v4623, %v4622
    %v4630 = vpack.c.bf16 %v4625, %v4624
    %v4631 = vpack.c.bf16 %v4626, %v4626
    %s4632 = scalar_lea.vmem %s2, 320
    %v4633 = vld [vmem:[%s4632] sm:$0xf]
    %v4634 = vld [vmem:[%s4632 + $0x4] sm:$0xf]
    %v4635 = vld [vmem:[%s4632 + $0x8] sm:$0xf]
    %v4636 = vld [vmem:[%s4632 + $0xc] sm:$0xf]
    %v4637 = vld [vmem:[%s4632 + $0x10] sm:$0xf]
    %v4638 = vld [vmem:[%s4632 + $0x14] sm:$0xf]
    %v4639 = vld [vmem:[%s4632 + $0x18] sm:$0xf]
    %v4640 = vld [vmem:[%s4632 + $0x1c] sm:$0xf]
    %v4649 = vunpack.c.l.b16 %v4633
    %v4650 = vunpack.c.l.b16 %v4634
    %v4651 = vunpack.c.l.b16 %v4635
    %v4652 = vunpack.c.l.b16 %v4636
    %v4653 = vunpack.c.l.b16 %v4637
    %v4654 = vunpack.c.l.b16 %v4638
    %v4655 = vunpack.c.l.b16 %v4639
    %v4656 = vunpack.c.l.b16 %v4640
    %v4657 = vpack.c.b16 %v4650, %v4649
    %v4658 = vpack.c.b16 %v4652, %v4651
    %v4659 = vpack.c.b16 %v4654, %v4653
    %v4660 = vpack.c.b16 %v4656, %v4655
    %v4666 = vsel %vm28, %v4627, 0
    %v4669 = vsel %vm28, %v4628, 0
    %v4672 = vsel %vm28, %v4629, 0
    %v4675 = vsel %vm28, %v4630, 0
    %v4678 = vsel %vm28, %v4631, 0
    %4680 = vmatprep.subr.bf16.mxu0 0
    %4681 = vmatpush1.bf16.msra.mxu0 0
    %4682 = vmatprep.subr.bf16.mxu0 0
    %4683 = vmatpush1.bf16.msra.mxu0 0
    %4684 = vmatprep.subr.bf16.mxu0 0
    %4685 = vmatpush1.bf16.msra.mxu0 0
    %4686 = vmatprep.subr.bf16.mxu0 0
    %4687 = vmatpush1.bf16.msra.mxu0 0
    %4688 = vmatprep.subr.bf16.mxu0 0
    %4689 = vmatpush1.bf16.msra.mxu0 %v4660
    %4690 = vmatprep.subr.bf16.mxu0 0
    %4691 = vmatpush1.bf16.msra.mxu0 %v4659
    %4692 = vmatprep.subr.bf16.mxu0 0
    %4693 = vmatpush1.bf16.msra.mxu0 %v4658
    %4694 = vmatprep.subr.bf16.mxu0 0
    %4695 = vmatpush1.bf16.msra.mxu0 %v4657
    %4696 = vmatprep.subr.bf16.mxu0 0
    %4697 = vmatpush2.bf16.msra.mxu0 0
    %4698 = vmatprep.subr.bf16.mxu0 0
    %4699 = vmatpush2.bf16.msra.mxu0 0
    %4700 = vmatprep.subr.bf16.mxu0 0
    %4701 = vmatpush2.bf16.msra.mxu0 0
    %4702 = vmatprep.subr.bf16.mxu0 0
    %4703 = vmatpush2.bf16.msra.mxu0 0
    %4704 = vmatprep.subr.bf16.mxu0 0
    %4705 = vmatpush2.bf16.msra.mxu0 0
    %4706 = vmatprep.subr.bf16.mxu0 0
    %4707 = vmatpush2.bf16.msra.mxu0 0
    %4708 = vmatprep.subr.bf16.mxu0 0
    %4709 = vmatpush2.bf16.msra.mxu0 0
    %4710 = vmatprep.subr.bf16.mxu0 0
    %4711 = vmatpush2.bf16.msra.mxu0 0
    %4712 = vmatprep.mubr.bf16.mxu0 0
    %4713 = vmatmul.mubr.bf16.gmra.mxu0 %v4666
    %v4714 = vpop.f32.mrf.mxu0
    %v4715 = vadd.f32 0.0, %v4714
    %v4716 = vpop.f32.mrf.mxu0
    %v4717 = vpop.f32.mrf.mxu0
    %v4718 = vadd.f32 0.0, %v4717
    %v4719 = vpop.f32.mrf.mxu0
    %4720 = vmatprep.mubr.bf16.mxu0 0
    %4721 = vmatmul.mubr.bf16.gmra.mxu0 %v4669
    %v4722 = vpop.f32.mrf.mxu0
    %v4723 = vadd.f32 0.0, %v4722
    %v4724 = vpop.f32.mrf.mxu0
    %v4725 = vpop.f32.mrf.mxu0
    %v4726 = vadd.f32 0.0, %v4725
    %v4727 = vpop.f32.mrf.mxu0
    %4728 = vmatprep.mubr.bf16.mxu0 0
    %4729 = vmatmul.mubr.bf16.gmra.mxu0 %v4672
    %v4730 = vpop.f32.mrf.mxu0
    %v4731 = vadd.f32 0.0, %v4730
    %v4732 = vpop.f32.mrf.mxu0
    %v4733 = vpop.f32.mrf.mxu0
    %v4734 = vadd.f32 0.0, %v4733
    %v4735 = vpop.f32.mrf.mxu0
    %4736 = vmatprep.mubr.bf16.mxu0 0
    %4737 = vmatmul.mubr.bf16.gmra.mxu0 %v4675
    %v4738 = vpop.f32.mrf.mxu0
    %v4739 = vadd.f32 0.0, %v4738
    %v4740 = vpop.f32.mrf.mxu0
    %v4741 = vpop.f32.mrf.mxu0
    %v4742 = vadd.f32 0.0, %v4741
    %v4743 = vpop.f32.mrf.mxu0
    %4744 = vmatprep.mubr.bf16.mxu0 0
    %4745 = vmatmul.mubr.bf16.gmra.mxu0 %v4678
    %v4746 = vpop.f32.mrf.mxu0
    %v4747 = vadd.f32 0.0, %v4746
    %v4748 = vpop.f32.mrf.mxu0
    %v4749 = vpop.f32.mrf.mxu0
    %v4750 = vpop.f32.mrf.mxu0
    %4751 = vdwg.mxu0
    %v4760 = vunpack.c.l.b16 %v4610
    %v4761 = vunpack.c.l.b16 %v4611
    %v4762 = vunpack.c.l.b16 %v4612
    %v4763 = vunpack.c.l.b16 %v4613
    %v4764 = vunpack.c.l.b16 %v4614
    %v4765 = vunpack.c.l.b16 %v4615
    %v4766 = vunpack.c.l.b16 %v4616
    %v4767 = vunpack.c.l.b16 %v4617
    %v4768 = vpack.c.b16 %v4761, %v4760
    %v4769 = vpack.c.b16 %v4763, %v4762
    %v4770 = vpack.c.b16 %v4765, %v4764
    %v4771 = vpack.c.b16 %v4767, %v4766
    %v4777 = vsel %vm28, %v4604, 0
    %v4780 = vsel %vm28, %v4605, 0
    %v4783 = vsel %vm28, %v4606, 0
    %v4786 = vsel %vm28, %v4607, 0
    %v4789 = vsel %vm28, %v4608, 0
    %4791 = vmatprep.subr.bf16.mxu0 0
    %4792 = vmatpush1.bf16.msra.mxu0 0
    %4793 = vmatprep.subr.bf16.mxu0 0
    %4794 = vmatpush1.bf16.msra.mxu0 0
    %4795 = vmatprep.subr.bf16.mxu0 0
    %4796 = vmatpush1.bf16.msra.mxu0 0
    %4797 = vmatprep.subr.bf16.mxu0 0
    %4798 = vmatpush1.bf16.msra.mxu0 0
    %4799 = vmatprep.subr.bf16.mxu0 0
    %4800 = vmatpush1.bf16.msra.mxu0 %v4771
    %4801 = vmatprep.subr.bf16.mxu0 0
    %4802 = vmatpush1.bf16.msra.mxu0 %v4770
    %4803 = vmatprep.subr.bf16.mxu0 0
    %4804 = vmatpush1.bf16.msra.mxu0 %v4769
    %4805 = vmatprep.subr.bf16.mxu0 0
    %4806 = vmatpush1.bf16.msra.mxu0 %v4768
    %4807 = vmatprep.subr.bf16.mxu0 0
    %4808 = vmatpush2.bf16.msra.mxu0 0
    %4809 = vmatprep.subr.bf16.mxu0 0
    %4810 = vmatpush2.bf16.msra.mxu0 0
    %4811 = vmatprep.subr.bf16.mxu0 0
    %4812 = vmatpush2.bf16.msra.mxu0 0
    %4813 = vmatprep.subr.bf16.mxu0 0
    %4814 = vmatpush2.bf16.msra.mxu0 0
    %4815 = vmatprep.subr.bf16.mxu0 0
    %4816 = vmatpush2.bf16.msra.mxu0 0
    %4817 = vmatprep.subr.bf16.mxu0 0
    %4818 = vmatpush2.bf16.msra.mxu0 0
    %4819 = vmatprep.subr.bf16.mxu0 0
    %4820 = vmatpush2.bf16.msra.mxu0 0
    %4821 = vmatprep.subr.bf16.mxu0 0
    %4822 = vmatpush2.bf16.msra.mxu0 0
    %4823 = vmatprep.mubr.bf16.mxu0 0
    %4824 = vmatmul.mubr.bf16.gmra.mxu0 %v4777
    %v4825 = vpop.f32.mrf.mxu0
    %v4826 = vadd.f32 %v4715, %v4825
    %v4827 = vpop.f32.mrf.mxu0
    %v4828 = vpop.f32.mrf.mxu0
    %v4829 = vadd.f32 %v4718, %v4828
    %v4830 = vpop.f32.mrf.mxu0
    %4831 = vmatprep.mubr.bf16.mxu0 0
    %4832 = vmatmul.mubr.bf16.gmra.mxu0 %v4780
    %v4833 = vpop.f32.mrf.mxu0
    %v4834 = vadd.f32 %v4723, %v4833
    %v4835 = vpop.f32.mrf.mxu0
    %v4836 = vpop.f32.mrf.mxu0
    %v4837 = vadd.f32 %v4726, %v4836
    %v4838 = vpop.f32.mrf.mxu0
    %4839 = vmatprep.mubr.bf16.mxu0 0
    %4840 = vmatmul.mubr.bf16.gmra.mxu0 %v4783
    %v4841 = vpop.f32.mrf.mxu0
    %v4842 = vadd.f32 %v4731, %v4841
    %v4843 = vpop.f32.mrf.mxu0
    %v4844 = vpop.f32.mrf.mxu0
    %v4845 = vadd.f32 %v4734, %v4844
    %v4846 = vpop.f32.mrf.mxu0
    %4847 = vmatprep.mubr.bf16.mxu0 0
    %4848 = vmatmul.mubr.bf16.gmra.mxu0 %v4786
    %v4849 = vpop.f32.mrf.mxu0
    %v4850 = vadd.f32 %v4739, %v4849
    %v4851 = vpop.f32.mrf.mxu0
    %v4852 = vpop.f32.mrf.mxu0
    %v4853 = vadd.f32 %v4742, %v4852
    %v4854 = vpop.f32.mrf.mxu0
    %4855 = vmatprep.mubr.bf16.mxu0 0
    %4856 = vmatmul.mubr.bf16.gmra.mxu0 %v4789
    %v4857 = vpop.f32.mrf.mxu0
    %v4858 = vadd.f32 %v4747, %v4857
    %v4859 = vpop.f32.mrf.mxu0
    %v4860 = vpop.f32.mrf.mxu0
    %v4861 = vpop.f32.mrf.mxu0
    %4862 = vdwg.mxu0
    %v4863 = vld [vmem:[#allocation3 + $0x3] sm:$0xff]
    %v4864 = vld [vmem:[#allocation3 + $0xb] sm:$0xff]
    %v4865 = vld [vmem:[#allocation3 + $0x13] sm:$0xff]
    %v4866 = vld [vmem:[#allocation3 + $0x1b] sm:$0xff]
    %v4867 = vld [vmem:[#allocation3 + $0x23] sm:$0xff]
    %v4868 = vld [vmem:[#allocation3 + $0x2b] sm:$0xff]
    %v4869 = vld [vmem:[#allocation3 + $0x33] sm:$0xff]
    %v4870 = vld [vmem:[#allocation3 + $0x3b] sm:$0xff]
    %v4871 = vld [vmem:[#allocation3 + $0x43] sm:$0xff]
    %v4872 = vpack.c.bf16 %v4864, %v4863
    %v4873 = vpack.c.bf16 %v4866, %v4865
    %v4874 = vpack.c.bf16 %v4868, %v4867
    %v4875 = vpack.c.bf16 %v4870, %v4869
    %v4876 = vpack.c.bf16 %v4871, %v4871
    %s4877 = scalar_lea.vmem %s2, 352
    %v4878 = vld [vmem:[%s4877] sm:$0xf]
    %v4879 = vld [vmem:[%s4877 + $0x4] sm:$0xf]
    %v4880 = vld [vmem:[%s4877 + $0x8] sm:$0xf]
    %v4881 = vld [vmem:[%s4877 + $0xc] sm:$0xf]
    %v4882 = vld [vmem:[%s4877 + $0x10] sm:$0xf]
    %v4883 = vld [vmem:[%s4877 + $0x14] sm:$0xf]
    %v4884 = vld [vmem:[%s4877 + $0x18] sm:$0xf]
    %v4885 = vld [vmem:[%s4877 + $0x1c] sm:$0xf]
    %v4894 = vunpack.c.l.b16 %v4878
    %v4895 = vunpack.c.l.b16 %v4879
    %v4896 = vunpack.c.l.b16 %v4880
    %v4897 = vunpack.c.l.b16 %v4881
    %v4898 = vunpack.c.l.b16 %v4882
    %v4899 = vunpack.c.l.b16 %v4883
    %v4900 = vunpack.c.l.b16 %v4884
    %v4901 = vunpack.c.l.b16 %v4885
    %v4902 = vpack.c.b16 %v4895, %v4894
    %v4903 = vpack.c.b16 %v4897, %v4896
    %v4904 = vpack.c.b16 %v4899, %v4898
    %v4905 = vpack.c.b16 %v4901, %v4900
    %v4911 = vsel %vm28, %v4872, 0
    %v4914 = vsel %vm28, %v4873, 0
    %v4917 = vsel %vm28, %v4874, 0
    %v4920 = vsel %vm28, %v4875, 0
    %v4923 = vsel %vm28, %v4876, 0
    %4925 = vmatprep.subr.bf16.mxu0 0
    %4926 = vmatpush1.bf16.msra.mxu0 0
    %4927 = vmatprep.subr.bf16.mxu0 0
    %4928 = vmatpush1.bf16.msra.mxu0 0
    %4929 = vmatprep.subr.bf16.mxu0 0
    %4930 = vmatpush1.bf16.msra.mxu0 0
    %4931 = vmatprep.subr.bf16.mxu0 0
    %4932 = vmatpush1.bf16.msra.mxu0 0
    %4933 = vmatprep.subr.bf16.mxu0 0
    %4934 = vmatpush1.bf16.msra.mxu0 %v4905
    %4935 = vmatprep.subr.bf16.mxu0 0
    %4936 = vmatpush1.bf16.msra.mxu0 %v4904
    %4937 = vmatprep.subr.bf16.mxu0 0
    %4938 = vmatpush1.bf16.msra.mxu0 %v4903
    %4939 = vmatprep.subr.bf16.mxu0 0
    %4940 = vmatpush1.bf16.msra.mxu0 %v4902
    %4941 = vmatprep.subr.bf16.mxu0 0
    %4942 = vmatpush2.bf16.msra.mxu0 0
    %4943 = vmatprep.subr.bf16.mxu0 0
    %4944 = vmatpush2.bf16.msra.mxu0 0
    %4945 = vmatprep.subr.bf16.mxu0 0
    %4946 = vmatpush2.bf16.msra.mxu0 0
    %4947 = vmatprep.subr.bf16.mxu0 0
    %4948 = vmatpush2.bf16.msra.mxu0 0
    %4949 = vmatprep.subr.bf16.mxu0 0
    %4950 = vmatpush2.bf16.msra.mxu0 0
    %4951 = vmatprep.subr.bf16.mxu0 0
    %4952 = vmatpush2.bf16.msra.mxu0 0
    %4953 = vmatprep.subr.bf16.mxu0 0
    %4954 = vmatpush2.bf16.msra.mxu0 0
    %4955 = vmatprep.subr.bf16.mxu0 0
    %4956 = vmatpush2.bf16.msra.mxu0 0
    %4957 = vmatprep.mubr.bf16.mxu0 0
    %4958 = vmatmul.mubr.bf16.gmra.mxu0 %v4911
    %v4959 = vpop.f32.mrf.mxu0
    %v4960 = vadd.f32 0.0, %v4959
    %v4961 = vpop.f32.mrf.mxu0
    %v4962 = vpop.f32.mrf.mxu0
    %v4963 = vadd.f32 0.0, %v4962
    %v4964 = vpop.f32.mrf.mxu0
    %4965 = vmatprep.mubr.bf16.mxu0 0
    %4966 = vmatmul.mubr.bf16.gmra.mxu0 %v4914
    %v4967 = vpop.f32.mrf.mxu0
    %v4968 = vadd.f32 0.0, %v4967
    %v4969 = vpop.f32.mrf.mxu0
    %v4970 = vpop.f32.mrf.mxu0
    %v4971 = vadd.f32 0.0, %v4970
    %v4972 = vpop.f32.mrf.mxu0
    %4973 = vmatprep.mubr.bf16.mxu0 0
    %4974 = vmatmul.mubr.bf16.gmra.mxu0 %v4917
    %v4975 = vpop.f32.mrf.mxu0
    %v4976 = vadd.f32 0.0, %v4975
    %v4977 = vpop.f32.mrf.mxu0
    %v4978 = vpop.f32.mrf.mxu0
    %v4979 = vadd.f32 0.0, %v4978
    %v4980 = vpop.f32.mrf.mxu0
    %4981 = vmatprep.mubr.bf16.mxu0 0
    %4982 = vmatmul.mubr.bf16.gmra.mxu0 %v4920
    %v4983 = vpop.f32.mrf.mxu0
    %v4984 = vadd.f32 0.0, %v4983
    %v4985 = vpop.f32.mrf.mxu0
    %v4986 = vpop.f32.mrf.mxu0
    %v4987 = vadd.f32 0.0, %v4986
    %v4988 = vpop.f32.mrf.mxu0
    %4989 = vmatprep.mubr.bf16.mxu0 0
    %4990 = vmatmul.mubr.bf16.gmra.mxu0 %v4923
    %v4991 = vpop.f32.mrf.mxu0
    %v4992 = vadd.f32 0.0, %v4991
    %v4993 = vpop.f32.mrf.mxu0
    %v4994 = vpop.f32.mrf.mxu0
    %v4995 = vpop.f32.mrf.mxu0
    %4996 = vdwg.mxu0
    %v4997 = vadd.f32 %v4826, %v4960
    %v4998 = vadd.f32 %v4829, %v4963
    %v4999 = vadd.f32 %v4834, %v4968
    %v5000 = vadd.f32 %v4837, %v4971
    %v5001 = vadd.f32 %v4842, %v4976
    %v5002 = vadd.f32 %v4845, %v4979
    %v5003 = vadd.f32 %v4850, %v4984
    %v5004 = vadd.f32 %v4853, %v4987
    %v5005 = vadd.f32 %v4858, %v4992
    %v5006 = vld [vmem:[#allocation3 + $0x7] sm:$0xff]
    %v5007 = vld [vmem:[#allocation3 + $0xf] sm:$0xff]
    %v5008 = vld [vmem:[#allocation3 + $0x17] sm:$0xff]
    %v5009 = vld [vmem:[#allocation3 + $0x1f] sm:$0xff]
    %v5010 = vld [vmem:[#allocation3 + $0x27] sm:$0xff]
    %v5011 = vld [vmem:[#allocation3 + $0x2f] sm:$0xff]
    %v5012 = vld [vmem:[#allocation3 + $0x37] sm:$0xff]
    %v5013 = vld [vmem:[#allocation3 + $0x3f] sm:$0xff]
    %v5014 = vld [vmem:[#allocation3 + $0x47] sm:$0xff]
    %v5015 = vpack.c.bf16 %v5007, %v5006
    %v5016 = vpack.c.bf16 %v5009, %v5008
    %v5017 = vpack.c.bf16 %v5011, %v5010
    %v5018 = vpack.c.bf16 %v5013, %v5012
    %v5019 = vpack.c.bf16 %v5014, %v5014
    %s5020 = scalar_lea.vmem %s2, 384
    %v5021 = vld [vmem:[%s5020] sm:$0xf]
    %v5022 = vld [vmem:[%s5020 + $0x4] sm:$0xf]
    %v5023 = vld [vmem:[%s5020 + $0x8] sm:$0xf]
    %v5024 = vld [vmem:[%s5020 + $0xc] sm:$0xf]
    %v5025 = vld [vmem:[%s5020 + $0x10] sm:$0xf]
    %v5026 = vld [vmem:[%s5020 + $0x14] sm:$0xf]
    %v5027 = vld [vmem:[%s5020 + $0x18] sm:$0xf]
    %v5028 = vld [vmem:[%s5020 + $0x1c] sm:$0xf]
    %v5037 = vunpack.c.l.b16 %v5021
    %v5038 = vunpack.c.l.b16 %v5022
    %v5039 = vunpack.c.l.b16 %v5023
    %v5040 = vunpack.c.l.b16 %v5024
    %v5041 = vunpack.c.l.b16 %v5025
    %v5042 = vunpack.c.l.b16 %v5026
    %v5043 = vunpack.c.l.b16 %v5027
    %v5044 = vunpack.c.l.b16 %v5028
    %v5045 = vpack.c.b16 %v5038, %v5037
    %v5046 = vpack.c.b16 %v5040, %v5039
    %v5047 = vpack.c.b16 %v5042, %v5041
    %v5048 = vpack.c.b16 %v5044, %v5043
    %v5054 = vsel %vm28, %v5015, 0
    %v5057 = vsel %vm28, %v5016, 0
    %v5060 = vsel %vm28, %v5017, 0
    %v5063 = vsel %vm28, %v5018, 0
    %v5066 = vsel %vm28, %v5019, 0
    %5068 = vmatprep.subr.bf16.mxu0 0
    %5069 = vmatpush1.bf16.msra.mxu0 0
    %5070 = vmatprep.subr.bf16.mxu0 0
    %5071 = vmatpush1.bf16.msra.mxu0 0
    %5072 = vmatprep.subr.bf16.mxu0 0
    %5073 = vmatpush1.bf16.msra.mxu0 0
    %5074 = vmatprep.subr.bf16.mxu0 0
    %5075 = vmatpush1.bf16.msra.mxu0 0
    %5076 = vmatprep.subr.bf16.mxu0 0
    %5077 = vmatpush1.bf16.msra.mxu0 %v5048
    %5078 = vmatprep.subr.bf16.mxu0 0
    %5079 = vmatpush1.bf16.msra.mxu0 %v5047
    %5080 = vmatprep.subr.bf16.mxu0 0
    %5081 = vmatpush1.bf16.msra.mxu0 %v5046
    %5082 = vmatprep.subr.bf16.mxu0 0
    %5083 = vmatpush1.bf16.msra.mxu0 %v5045
    %5084 = vmatprep.subr.bf16.mxu0 0
    %5085 = vmatpush2.bf16.msra.mxu0 0
    %5086 = vmatprep.subr.bf16.mxu0 0
    %5087 = vmatpush2.bf16.msra.mxu0 0
    %5088 = vmatprep.subr.bf16.mxu0 0
    %5089 = vmatpush2.bf16.msra.mxu0 0
    %5090 = vmatprep.subr.bf16.mxu0 0
    %5091 = vmatpush2.bf16.msra.mxu0 0
    %5092 = vmatprep.subr.bf16.mxu0 0
    %5093 = vmatpush2.bf16.msra.mxu0 0
    %5094 = vmatprep.subr.bf16.mxu0 0
    %5095 = vmatpush2.bf16.msra.mxu0 0
    %5096 = vmatprep.subr.bf16.mxu0 0
    %5097 = vmatpush2.bf16.msra.mxu0 0
    %5098 = vmatprep.subr.bf16.mxu0 0
    %5099 = vmatpush2.bf16.msra.mxu0 0
    %5100 = vmatprep.mubr.bf16.mxu0 0
    %5101 = vmatmul.mubr.bf16.gmra.mxu0 %v5054
    %v5102 = vpop.f32.mrf.mxu0
    %v5103 = vadd.f32 0.0, %v5102
    %v5104 = vpop.f32.mrf.mxu0
    %v5105 = vpop.f32.mrf.mxu0
    %v5106 = vadd.f32 0.0, %v5105
    %v5107 = vpop.f32.mrf.mxu0
    %5108 = vmatprep.mubr.bf16.mxu0 0
    %5109 = vmatmul.mubr.bf16.gmra.mxu0 %v5057
    %v5110 = vpop.f32.mrf.mxu0
    %v5111 = vadd.f32 0.0, %v5110
    %v5112 = vpop.f32.mrf.mxu0
    %v5113 = vpop.f32.mrf.mxu0
    %v5114 = vadd.f32 0.0, %v5113
    %v5115 = vpop.f32.mrf.mxu0
    %5116 = vmatprep.mubr.bf16.mxu0 0
    %5117 = vmatmul.mubr.bf16.gmra.mxu0 %v5060
    %v5118 = vpop.f32.mrf.mxu0
    %v5119 = vadd.f32 0.0, %v5118
    %v5120 = vpop.f32.mrf.mxu0
    %v5121 = vpop.f32.mrf.mxu0
    %v5122 = vadd.f32 0.0, %v5121
    %v5123 = vpop.f32.mrf.mxu0
    %5124 = vmatprep.mubr.bf16.mxu0 0
    %5125 = vmatmul.mubr.bf16.gmra.mxu0 %v5063
    %v5126 = vpop.f32.mrf.mxu0
    %v5127 = vadd.f32 0.0, %v5126
    %v5128 = vpop.f32.mrf.mxu0
    %v5129 = vpop.f32.mrf.mxu0
    %v5130 = vadd.f32 0.0, %v5129
    %v5131 = vpop.f32.mrf.mxu0
    %5132 = vmatprep.mubr.bf16.mxu0 0
    %5133 = vmatmul.mubr.bf16.gmra.mxu0 %v5066
    %v5134 = vpop.f32.mrf.mxu0
    %v5135 = vadd.f32 0.0, %v5134
    %v5136 = vpop.f32.mrf.mxu0
    %v5137 = vpop.f32.mrf.mxu0
    %v5138 = vpop.f32.mrf.mxu0
    %5139 = vdwg.mxu0
    %v5140 = vadd.f32 %v4997, %v5103
    %v5141 = vadd.f32 %v4998, %v5106
    %v5142 = vadd.f32 %v4999, %v5111
    %v5143 = vadd.f32 %v5000, %v5114
    %v5144 = vadd.f32 %v5001, %v5119
    %v5145 = vadd.f32 %v5002, %v5122
    %v5146 = vadd.f32 %v5003, %v5127
    %v5147 = vadd.f32 %v5004, %v5130
    %v5148 = vadd.f32 %v5005, %v5135
    %v5149 = vld [vmem:[#allocation3 + $0x8] sm:$0xff]
    %v5150 = vld [vmem:[#allocation3 + $0x10] sm:$0xff]
    %v5151 = vld [vmem:[#allocation3 + $0x18] sm:$0xff]
    %v5152 = vld [vmem:[#allocation3 + $0x20] sm:$0xff]
    %v5153 = vld [vmem:[#allocation3 + $0x28] sm:$0xff]
    %v5154 = vld [vmem:[#allocation3 + $0x30] sm:$0xff]
    %v5155 = vld [vmem:[#allocation3 + $0x38] sm:$0xff]
    %v5156 = vld [vmem:[#allocation3 + $0x40] sm:$0xff]
    %v5157 = vld [vmem:[#allocation3 + $0x48] sm:$0xff]
    %v5158 = vpack.c.bf16 %v5150, %v5149
    %v5159 = vpack.c.bf16 %v5152, %v5151
    %v5160 = vpack.c.bf16 %v5154, %v5153
    %v5161 = vpack.c.bf16 %v5156, %v5155
    %v5162 = vpack.c.bf16 %v5157, %v5157
    %s5163 = scalar_lea.vmem %s2, 416
    %v5164 = vld [vmem:[%s5163] sm:$0xf]
    %v5165 = vld [vmem:[%s5163 + $0x4] sm:$0xf]
    %v5166 = vld [vmem:[%s5163 + $0x8] sm:$0xf]
    %v5167 = vld [vmem:[%s5163 + $0xc] sm:$0xf]
    %v5168 = vld [vmem:[%s5163 + $0x10] sm:$0xf]
    %v5169 = vld [vmem:[%s5163 + $0x14] sm:$0xf]
    %v5170 = vld [vmem:[%s5163 + $0x18] sm:$0xf]
    %v5171 = vld [vmem:[%s5163 + $0x1c] sm:$0xf]
    %v5180 = vunpack.c.l.b16 %v5164
    %v5181 = vunpack.c.l.b16 %v5165
    %v5182 = vunpack.c.l.b16 %v5166
    %v5183 = vunpack.c.l.b16 %v5167
    %v5184 = vunpack.c.l.b16 %v5168
    %v5185 = vunpack.c.l.b16 %v5169
    %v5186 = vunpack.c.l.b16 %v5170
    %v5187 = vunpack.c.l.b16 %v5171
    %v5188 = vpack.c.b16 %v5181, %v5180
    %v5189 = vpack.c.b16 %v5183, %v5182
    %v5190 = vpack.c.b16 %v5185, %v5184
    %v5191 = vpack.c.b16 %v5187, %v5186
    %v5197 = vsel %vm28, %v5158, 0
    %v5200 = vsel %vm28, %v5159, 0
    %v5203 = vsel %vm28, %v5160, 0
    %v5206 = vsel %vm28, %v5161, 0
    %v5209 = vsel %vm28, %v5162, 0
    %5211 = vmatprep.subr.bf16.mxu0 0
    %5212 = vmatpush1.bf16.msra.mxu0 0
    %5213 = vmatprep.subr.bf16.mxu0 0
    %5214 = vmatpush1.bf16.msra.mxu0 0
    %5215 = vmatprep.subr.bf16.mxu0 0
    %5216 = vmatpush1.bf16.msra.mxu0 0
    %5217 = vmatprep.subr.bf16.mxu0 0
    %5218 = vmatpush1.bf16.msra.mxu0 0
    %5219 = vmatprep.subr.bf16.mxu0 0
    %5220 = vmatpush1.bf16.msra.mxu0 %v5191
    %5221 = vmatprep.subr.bf16.mxu0 0
    %5222 = vmatpush1.bf16.msra.mxu0 %v5190
    %5223 = vmatprep.subr.bf16.mxu0 0
    %5224 = vmatpush1.bf16.msra.mxu0 %v5189
    %5225 = vmatprep.subr.bf16.mxu0 0
    %5226 = vmatpush1.bf16.msra.mxu0 %v5188
    %5227 = vmatprep.subr.bf16.mxu0 0
    %5228 = vmatpush2.bf16.msra.mxu0 0
    %5229 = vmatprep.subr.bf16.mxu0 0
    %5230 = vmatpush2.bf16.msra.mxu0 0
    %5231 = vmatprep.subr.bf16.mxu0 0
    %5232 = vmatpush2.bf16.msra.mxu0 0
    %5233 = vmatprep.subr.bf16.mxu0 0
    %5234 = vmatpush2.bf16.msra.mxu0 0
    %5235 = vmatprep.subr.bf16.mxu0 0
    %5236 = vmatpush2.bf16.msra.mxu0 0
    %5237 = vmatprep.subr.bf16.mxu0 0
    %5238 = vmatpush2.bf16.msra.mxu0 0
    %5239 = vmatprep.subr.bf16.mxu0 0
    %5240 = vmatpush2.bf16.msra.mxu0 0
    %5241 = vmatprep.subr.bf16.mxu0 0
    %5242 = vmatpush2.bf16.msra.mxu0 0
    %5243 = vmatprep.mubr.bf16.mxu0 0
    %5244 = vmatmul.mubr.bf16.gmra.mxu0 %v5197
    %v5245 = vpop.f32.mrf.mxu0
    %v5246 = vadd.f32 0.0, %v5245
    %v5247 = vpop.f32.mrf.mxu0
    %v5248 = vpop.f32.mrf.mxu0
    %v5249 = vadd.f32 0.0, %v5248
    %v5250 = vpop.f32.mrf.mxu0
    %5251 = vmatprep.mubr.bf16.mxu0 0
    %5252 = vmatmul.mubr.bf16.gmra.mxu0 %v5200
    %v5253 = vpop.f32.mrf.mxu0
    %v5254 = vadd.f32 0.0, %v5253
    %v5255 = vpop.f32.mrf.mxu0
    %v5256 = vpop.f32.mrf.mxu0
    %v5257 = vadd.f32 0.0, %v5256
    %v5258 = vpop.f32.mrf.mxu0
    %5259 = vmatprep.mubr.bf16.mxu0 0
    %5260 = vmatmul.mubr.bf16.gmra.mxu0 %v5203
    %v5261 = vpop.f32.mrf.mxu0
    %v5262 = vadd.f32 0.0, %v5261
    %v5263 = vpop.f32.mrf.mxu0
    %v5264 = vpop.f32.mrf.mxu0
    %v5265 = vadd.f32 0.0, %v5264
    %v5266 = vpop.f32.mrf.mxu0
    %5267 = vmatprep.mubr.bf16.mxu0 0
    %5268 = vmatmul.mubr.bf16.gmra.mxu0 %v5206
    %v5269 = vpop.f32.mrf.mxu0
    %v5270 = vadd.f32 0.0, %v5269
    %v5271 = vpop.f32.mrf.mxu0
    %v5272 = vpop.f32.mrf.mxu0
    %v5273 = vadd.f32 0.0, %v5272
    %v5274 = vpop.f32.mrf.mxu0
    %5275 = vmatprep.mubr.bf16.mxu0 0
    %5276 = vmatmul.mubr.bf16.gmra.mxu0 %v5209
    %v5277 = vpop.f32.mrf.mxu0
    %v5278 = vadd.f32 0.0, %v5277
    %v5279 = vpop.f32.mrf.mxu0
    %v5280 = vpop.f32.mrf.mxu0
    %v5281 = vpop.f32.mrf.mxu0
    %5282 = vdwg.mxu0
    %v5283 = vadd.f32 %v5140, %v5246
    %v5284 = vadd.f32 %v5141, %v5249
    %v5285 = vadd.f32 %v5142, %v5254
    %v5286 = vadd.f32 %v5143, %v5257
    %v5287 = vadd.f32 %v5144, %v5262
    %v5288 = vadd.f32 %v5145, %v5265
    %v5289 = vadd.f32 %v5146, %v5270
    %v5290 = vadd.f32 %v5147, %v5273
    %v5291 = vadd.f32 %v5148, %v5278
    %v5292 = vld [vmem:[#allocation3 + $0x9] sm:$0xff]
    %v5293 = vld [vmem:[#allocation3 + $0x11] sm:$0xff]
    %v5294 = vld [vmem:[#allocation3 + $0x19] sm:$0xff]
    %v5295 = vld [vmem:[#allocation3 + $0x21] sm:$0xff]
    %v5296 = vld [vmem:[#allocation3 + $0x29] sm:$0xff]
    %v5297 = vld [vmem:[#allocation3 + $0x31] sm:$0xff]
    %v5298 = vld [vmem:[#allocation3 + $0x39] sm:$0xff]
    %v5299 = vld [vmem:[#allocation3 + $0x41] sm:$0xff]
    %v5300 = vld [vmem:[#allocation3 + $0x49] sm:$0xff]
    %v5301 = vpack.c.bf16 %v5293, %v5292
    %v5302 = vpack.c.bf16 %v5295, %v5294
    %v5303 = vpack.c.bf16 %v5297, %v5296
    %v5304 = vpack.c.bf16 %v5299, %v5298
    %v5305 = vpack.c.bf16 %v5300, %v5300
    %s5306 = scalar_lea.vmem %s2, 448
    %v5307 = vld [vmem:[%s5306] sm:$0xf]
    %v5308 = vld [vmem:[%s5306 + $0x4] sm:$0xf]
    %v5309 = vld [vmem:[%s5306 + $0x8] sm:$0xf]
    %v5310 = vld [vmem:[%s5306 + $0xc] sm:$0xf]
    %v5311 = vld [vmem:[%s5306 + $0x10] sm:$0xf]
    %v5312 = vld [vmem:[%s5306 + $0x14] sm:$0xf]
    %v5313 = vld [vmem:[%s5306 + $0x18] sm:$0xf]
    %v5314 = vld [vmem:[%s5306 + $0x1c] sm:$0xf]
    %v5323 = vunpack.c.l.b16 %v5307
    %v5324 = vunpack.c.l.b16 %v5308
    %v5325 = vunpack.c.l.b16 %v5309
    %v5326 = vunpack.c.l.b16 %v5310
    %v5327 = vunpack.c.l.b16 %v5311
    %v5328 = vunpack.c.l.b16 %v5312
    %v5329 = vunpack.c.l.b16 %v5313
    %v5330 = vunpack.c.l.b16 %v5314
    %v5331 = vpack.c.b16 %v5324, %v5323
    %v5332 = vpack.c.b16 %v5326, %v5325
    %v5333 = vpack.c.b16 %v5328, %v5327
    %v5334 = vpack.c.b16 %v5330, %v5329
    %v5340 = vsel %vm28, %v5301, 0
    %v5343 = vsel %vm28, %v5302, 0
    %v5346 = vsel %vm28, %v5303, 0
    %v5349 = vsel %vm28, %v5304, 0
    %v5352 = vsel %vm28, %v5305, 0
    %5354 = vmatprep.subr.bf16.mxu0 0
    %5355 = vmatpush1.bf16.msra.mxu0 0
    %5356 = vmatprep.subr.bf16.mxu0 0
    %5357 = vmatpush1.bf16.msra.mxu0 0
    %5358 = vmatprep.subr.bf16.mxu0 0
    %5359 = vmatpush1.bf16.msra.mxu0 0
    %5360 = vmatprep.subr.bf16.mxu0 0
    %5361 = vmatpush1.bf16.msra.mxu0 0
    %5362 = vmatprep.subr.bf16.mxu0 0
    %5363 = vmatpush1.bf16.msra.mxu0 %v5334
    %5364 = vmatprep.subr.bf16.mxu0 0
    %5365 = vmatpush1.bf16.msra.mxu0 %v5333
    %5366 = vmatprep.subr.bf16.mxu0 0
    %5367 = vmatpush1.bf16.msra.mxu0 %v5332
    %5368 = vmatprep.subr.bf16.mxu0 0
    %5369 = vmatpush1.bf16.msra.mxu0 %v5331
    %5370 = vmatprep.subr.bf16.mxu0 0
    %5371 = vmatpush2.bf16.msra.mxu0 0
    %5372 = vmatprep.subr.bf16.mxu0 0
    %5373 = vmatpush2.bf16.msra.mxu0 0
    %5374 = vmatprep.subr.bf16.mxu0 0
    %5375 = vmatpush2.bf16.msra.mxu0 0
    %5376 = vmatprep.subr.bf16.mxu0 0
    %5377 = vmatpush2.bf16.msra.mxu0 0
    %5378 = vmatprep.subr.bf16.mxu0 0
    %5379 = vmatpush2.bf16.msra.mxu0 0
    %5380 = vmatprep.subr.bf16.mxu0 0
    %5381 = vmatpush2.bf16.msra.mxu0 0
    %5382 = vmatprep.subr.bf16.mxu0 0
    %5383 = vmatpush2.bf16.msra.mxu0 0
    %5384 = vmatprep.subr.bf16.mxu0 0
    %5385 = vmatpush2.bf16.msra.mxu0 0
    %5386 = vmatprep.mubr.bf16.mxu0 0
    %5387 = vmatmul.mubr.bf16.gmra.mxu0 %v5340
    %v5388 = vpop.f32.mrf.mxu0
    %v5389 = vadd.f32 0.0, %v5388
    %v5390 = vpop.f32.mrf.mxu0
    %v5391 = vpop.f32.mrf.mxu0
    %v5392 = vadd.f32 0.0, %v5391
    %v5393 = vpop.f32.mrf.mxu0
    %5394 = vmatprep.mubr.bf16.mxu0 0
    %5395 = vmatmul.mubr.bf16.gmra.mxu0 %v5343
    %v5396 = vpop.f32.mrf.mxu0
    %v5397 = vadd.f32 0.0, %v5396
    %v5398 = vpop.f32.mrf.mxu0
    %v5399 = vpop.f32.mrf.mxu0
    %v5400 = vadd.f32 0.0, %v5399
    %v5401 = vpop.f32.mrf.mxu0
    %5402 = vmatprep.mubr.bf16.mxu0 0
    %5403 = vmatmul.mubr.bf16.gmra.mxu0 %v5346
    %v5404 = vpop.f32.mrf.mxu0
    %v5405 = vadd.f32 0.0, %v5404
    %v5406 = vpop.f32.mrf.mxu0
    %v5407 = vpop.f32.mrf.mxu0
    %v5408 = vadd.f32 0.0, %v5407
    %v5409 = vpop.f32.mrf.mxu0
    %5410 = vmatprep.mubr.bf16.mxu0 0
    %5411 = vmatmul.mubr.bf16.gmra.mxu0 %v5349
    %v5412 = vpop.f32.mrf.mxu0
    %v5413 = vadd.f32 0.0, %v5412
    %v5414 = vpop.f32.mrf.mxu0
    %v5415 = vpop.f32.mrf.mxu0
    %v5416 = vadd.f32 0.0, %v5415
    %v5417 = vpop.f32.mrf.mxu0
    %5418 = vmatprep.mubr.bf16.mxu0 0
    %5419 = vmatmul.mubr.bf16.gmra.mxu0 %v5352
    %v5420 = vpop.f32.mrf.mxu0
    %v5421 = vadd.f32 0.0, %v5420
    %v5422 = vpop.f32.mrf.mxu0
    %v5423 = vpop.f32.mrf.mxu0
    %v5424 = vpop.f32.mrf.mxu0
    %5425 = vdwg.mxu0
    %v5426 = vadd.f32 %v5283, %v5389
    %v5427 = vadd.f32 %v5284, %v5392
    %v5428 = vadd.f32 %v5285, %v5397
    %v5429 = vadd.f32 %v5286, %v5400
    %v5430 = vadd.f32 %v5287, %v5405
    %v5431 = vadd.f32 %v5288, %v5408
    %v5432 = vadd.f32 %v5289, %v5413
    %v5433 = vadd.f32 %v5290, %v5416
    %v5434 = vadd.f32 %v5291, %v5421
    %v5435 = vld [vmem:[#allocation3 + $0xd] sm:$0xff]
    %v5436 = vld [vmem:[#allocation3 + $0x15] sm:$0xff]
    %v5437 = vld [vmem:[#allocation3 + $0x1d] sm:$0xff]
    %v5438 = vld [vmem:[#allocation3 + $0x25] sm:$0xff]
    %v5439 = vld [vmem:[#allocation3 + $0x2d] sm:$0xff]
    %v5440 = vld [vmem:[#allocation3 + $0x35] sm:$0xff]
    %v5441 = vld [vmem:[#allocation3 + $0x3d] sm:$0xff]
    %v5442 = vld [vmem:[#allocation3 + $0x45] sm:$0xff]
    %v5443 = vld [vmem:[#allocation3 + $0x4d] sm:$0xff]
    %v5444 = vpack.c.bf16 %v5436, %v5435
    %v5445 = vpack.c.bf16 %v5438, %v5437
    %v5446 = vpack.c.bf16 %v5440, %v5439
    %v5447 = vpack.c.bf16 %v5442, %v5441
    %v5448 = vpack.c.bf16 %v5443, %v5443
    %s5449 = scalar_lea.vmem %s2, 480
    %v5450 = vld [vmem:[%s5449] sm:$0xf]
    %v5451 = vld [vmem:[%s5449 + $0x4] sm:$0xf]
    %v5452 = vld [vmem:[%s5449 + $0x8] sm:$0xf]
    %v5453 = vld [vmem:[%s5449 + $0xc] sm:$0xf]
    %v5454 = vld [vmem:[%s5449 + $0x10] sm:$0xf]
    %v5455 = vld [vmem:[%s5449 + $0x14] sm:$0xf]
    %v5456 = vld [vmem:[%s5449 + $0x18] sm:$0xf]
    %v5457 = vld [vmem:[%s5449 + $0x1c] sm:$0xf]
    %v5466 = vunpack.c.l.b16 %v5450
    %v5467 = vunpack.c.l.b16 %v5451
    %v5468 = vunpack.c.l.b16 %v5452
    %v5469 = vunpack.c.l.b16 %v5453
    %v5470 = vunpack.c.l.b16 %v5454
    %v5471 = vunpack.c.l.b16 %v5455
    %v5472 = vunpack.c.l.b16 %v5456
    %v5473 = vunpack.c.l.b16 %v5457
    %v5474 = vpack.c.b16 %v5467, %v5466
    %v5475 = vpack.c.b16 %v5469, %v5468
    %v5476 = vpack.c.b16 %v5471, %v5470
    %v5477 = vpack.c.b16 %v5473, %v5472
    %v5483 = vsel %vm28, %v5444, 0
    %v5486 = vsel %vm28, %v5445, 0
    %v5489 = vsel %vm28, %v5446, 0
    %v5492 = vsel %vm28, %v5447, 0
    %v5495 = vsel %vm28, %v5448, 0
    %5497 = vmatprep.subr.bf16.mxu0 0
    %5498 = vmatpush1.bf16.msra.mxu0 0
    %5499 = vmatprep.subr.bf16.mxu0 0
    %5500 = vmatpush1.bf16.msra.mxu0 0
    %5501 = vmatprep.subr.bf16.mxu0 0
    %5502 = vmatpush1.bf16.msra.mxu0 0
    %5503 = vmatprep.subr.bf16.mxu0 0
    %5504 = vmatpush1.bf16.msra.mxu0 0
    %5505 = vmatprep.subr.bf16.mxu0 0
    %5506 = vmatpush1.bf16.msra.mxu0 %v5477
    %5507 = vmatprep.subr.bf16.mxu0 0
    %5508 = vmatpush1.bf16.msra.mxu0 %v5476
    %5509 = vmatprep.subr.bf16.mxu0 0
    %5510 = vmatpush1.bf16.msra.mxu0 %v5475
    %5511 = vmatprep.subr.bf16.mxu0 0
    %5512 = vmatpush1.bf16.msra.mxu0 %v5474
    %5513 = vmatprep.subr.bf16.mxu0 0
    %5514 = vmatpush2.bf16.msra.mxu0 0
    %5515 = vmatprep.subr.bf16.mxu0 0
    %5516 = vmatpush2.bf16.msra.mxu0 0
    %5517 = vmatprep.subr.bf16.mxu0 0
    %5518 = vmatpush2.bf16.msra.mxu0 0
    %5519 = vmatprep.subr.bf16.mxu0 0
    %5520 = vmatpush2.bf16.msra.mxu0 0
    %5521 = vmatprep.subr.bf16.mxu0 0
    %5522 = vmatpush2.bf16.msra.mxu0 0
    %5523 = vmatprep.subr.bf16.mxu0 0
    %5524 = vmatpush2.bf16.msra.mxu0 0
    %5525 = vmatprep.subr.bf16.mxu0 0
    %5526 = vmatpush2.bf16.msra.mxu0 0
    %5527 = vmatprep.subr.bf16.mxu0 0
    %5528 = vmatpush2.bf16.msra.mxu0 0
    %5529 = vmatprep.mubr.bf16.mxu0 0
    %5530 = vmatmul.mubr.bf16.gmra.mxu0 %v5483
    %v5531 = vpop.f32.mrf.mxu0
    %v5532 = vadd.f32 0.0, %v5531
    %v5533 = vpop.f32.mrf.mxu0
    %v5534 = vpop.f32.mrf.mxu0
    %v5535 = vadd.f32 0.0, %v5534
    %v5536 = vpop.f32.mrf.mxu0
    %5537 = vmatprep.mubr.bf16.mxu0 0
    %5538 = vmatmul.mubr.bf16.gmra.mxu0 %v5486
    %v5539 = vpop.f32.mrf.mxu0
    %v5540 = vadd.f32 0.0, %v5539
    %v5541 = vpop.f32.mrf.mxu0
    %v5542 = vpop.f32.mrf.mxu0
    %v5543 = vadd.f32 0.0, %v5542
    %v5544 = vpop.f32.mrf.mxu0
    %5545 = vmatprep.mubr.bf16.mxu0 0
    %5546 = vmatmul.mubr.bf16.gmra.mxu0 %v5489
    %v5547 = vpop.f32.mrf.mxu0
    %v5548 = vadd.f32 0.0, %v5547
    %v5549 = vpop.f32.mrf.mxu0
    %v5550 = vpop.f32.mrf.mxu0
    %v5551 = vadd.f32 0.0, %v5550
    %v5552 = vpop.f32.mrf.mxu0
    %5553 = vmatprep.mubr.bf16.mxu0 0
    %5554 = vmatmul.mubr.bf16.gmra.mxu0 %v5492
    %v5555 = vpop.f32.mrf.mxu0
    %v5556 = vadd.f32 0.0, %v5555
    %v5557 = vpop.f32.mrf.mxu0
    %v5558 = vpop.f32.mrf.mxu0
    %v5559 = vadd.f32 0.0, %v5558
    %v5560 = vpop.f32.mrf.mxu0
    %5561 = vmatprep.mubr.bf16.mxu0 0
    %5562 = vmatmul.mubr.bf16.gmra.mxu0 %v5495
    %v5563 = vpop.f32.mrf.mxu0
    %v5564 = vadd.f32 0.0, %v5563
    %v5565 = vpop.f32.mrf.mxu0
    %v5566 = vpop.f32.mrf.mxu0
    %v5567 = vpop.f32.mrf.mxu0
    %5568 = vdwg.mxu0
    %v5569 = vadd.f32 %v5426, %v5532
    %v5570 = vadd.f32 %v5427, %v5535
    %v5571 = vadd.f32 %v5428, %v5540
    %v5572 = vadd.f32 %v5429, %v5543
    %v5573 = vadd.f32 %v5430, %v5548
    %v5574 = vadd.f32 %v5431, %v5551
    %v5575 = vadd.f32 %v5432, %v5556
    %v5576 = vadd.f32 %v5433, %v5559
    %v5577 = vadd.f32 %v5434, %v5564
    %v5578 = vld [vmem:[#allocation3 + $0xe] sm:$0xff]
    %v5579 = vld [vmem:[#allocation3 + $0x16] sm:$0xff]
    %v5580 = vld [vmem:[#allocation3 + $0x1e] sm:$0xff]
    %v5581 = vld [vmem:[#allocation3 + $0x26] sm:$0xff]
    %v5582 = vld [vmem:[#allocation3 + $0x2e] sm:$0xff]
    %v5583 = vld [vmem:[#allocation3 + $0x36] sm:$0xff]
    %v5584 = vld [vmem:[#allocation3 + $0x3e] sm:$0xff]
    %v5585 = vld [vmem:[#allocation3 + $0x46] sm:$0xff]
    %v5586 = vld [vmem:[#allocation3 + $0x4e] sm:$0xff]
    %v5587 = vpack.c.bf16 %v5579, %v5578
    %v5588 = vpack.c.bf16 %v5581, %v5580
    %v5589 = vpack.c.bf16 %v5583, %v5582
    %v5590 = vpack.c.bf16 %v5585, %v5584
    %v5591 = vpack.c.bf16 %v5586, %v5586
    %s5592 = scalar_lea.vmem %s2, 512
    %v5593 = vld [vmem:[%s5592] sm:$0xf]
    %v5594 = vld [vmem:[%s5592 + $0x4] sm:$0xf]
    %v5595 = vld [vmem:[%s5592 + $0x8] sm:$0xf]
    %v5596 = vld [vmem:[%s5592 + $0xc] sm:$0xf]
    %v5597 = vld [vmem:[%s5592 + $0x10] sm:$0xf]
    %v5598 = vld [vmem:[%s5592 + $0x14] sm:$0xf]
    %v5599 = vld [vmem:[%s5592 + $0x18] sm:$0xf]
    %v5600 = vld [vmem:[%s5592 + $0x1c] sm:$0xf]
    %v5609 = vunpack.c.l.b16 %v5593
    %v5610 = vunpack.c.l.b16 %v5594
    %v5611 = vunpack.c.l.b16 %v5595
    %v5612 = vunpack.c.l.b16 %v5596
    %v5613 = vunpack.c.l.b16 %v5597
    %v5614 = vunpack.c.l.b16 %v5598
    %v5615 = vunpack.c.l.b16 %v5599
    %v5616 = vunpack.c.l.b16 %v5600
    %v5617 = vpack.c.b16 %v5610, %v5609
    %v5618 = vpack.c.b16 %v5612, %v5611
    %v5619 = vpack.c.b16 %v5614, %v5613
    %v5620 = vpack.c.b16 %v5616, %v5615
    %v5626 = vsel %vm28, %v5587, 0
    %v5629 = vsel %vm28, %v5588, 0
    %v5632 = vsel %vm28, %v5589, 0
    %v5635 = vsel %vm28, %v5590, 0
    %v5638 = vsel %vm28, %v5591, 0
    %5640 = vmatprep.subr.bf16.mxu0 0
    %5641 = vmatpush1.bf16.msra.mxu0 0
    %5642 = vmatprep.subr.bf16.mxu0 0
    %5643 = vmatpush1.bf16.msra.mxu0 0
    %5644 = vmatprep.subr.bf16.mxu0 0
    %5645 = vmatpush1.bf16.msra.mxu0 0
    %5646 = vmatprep.subr.bf16.mxu0 0
    %5647 = vmatpush1.bf16.msra.mxu0 0
    %5648 = vmatprep.subr.bf16.mxu0 0
    %5649 = vmatpush1.bf16.msra.mxu0 %v5620
    %5650 = vmatprep.subr.bf16.mxu0 0
    %5651 = vmatpush1.bf16.msra.mxu0 %v5619
    %5652 = vmatprep.subr.bf16.mxu0 0
    %5653 = vmatpush1.bf16.msra.mxu0 %v5618
    %5654 = vmatprep.subr.bf16.mxu0 0
    %5655 = vmatpush1.bf16.msra.mxu0 %v5617
    %5656 = vmatprep.subr.bf16.mxu0 0
    %5657 = vmatpush2.bf16.msra.mxu0 0
    %5658 = vmatprep.subr.bf16.mxu0 0
    %5659 = vmatpush2.bf16.msra.mxu0 0
    %5660 = vmatprep.subr.bf16.mxu0 0
    %5661 = vmatpush2.bf16.msra.mxu0 0
    %5662 = vmatprep.subr.bf16.mxu0 0
    %5663 = vmatpush2.bf16.msra.mxu0 0
    %5664 = vmatprep.subr.bf16.mxu0 0
    %5665 = vmatpush2.bf16.msra.mxu0 0
    %5666 = vmatprep.subr.bf16.mxu0 0
    %5667 = vmatpush2.bf16.msra.mxu0 0
    %5668 = vmatprep.subr.bf16.mxu0 0
    %5669 = vmatpush2.bf16.msra.mxu0 0
    %5670 = vmatprep.subr.bf16.mxu0 0
    %5671 = vmatpush2.bf16.msra.mxu0 0
    %5672 = vmatprep.mubr.bf16.mxu0 0
    %5673 = vmatmul.mubr.bf16.gmra.mxu0 %v5626
    %v5674 = vpop.f32.mrf.mxu0
    %v5675 = vadd.f32 0.0, %v5674
    %v5676 = vpop.f32.mrf.mxu0
    %v5677 = vpop.f32.mrf.mxu0
    %v5678 = vadd.f32 0.0, %v5677
    %v5679 = vpop.f32.mrf.mxu0
    %5680 = vmatprep.mubr.bf16.mxu0 0
    %5681 = vmatmul.mubr.bf16.gmra.mxu0 %v5629
    %v5682 = vpop.f32.mrf.mxu0
    %v5683 = vadd.f32 0.0, %v5682
    %v5684 = vpop.f32.mrf.mxu0
    %v5685 = vpop.f32.mrf.mxu0
    %v5686 = vadd.f32 0.0, %v5685
    %v5687 = vpop.f32.mrf.mxu0
    %5688 = vmatprep.mubr.bf16.mxu0 0
    %5689 = vmatmul.mubr.bf16.gmra.mxu0 %v5632
    %v5690 = vpop.f32.mrf.mxu0
    %v5691 = vadd.f32 0.0, %v5690
    %v5692 = vpop.f32.mrf.mxu0
    %v5693 = vpop.f32.mrf.mxu0
    %v5694 = vadd.f32 0.0, %v5693
    %v5695 = vpop.f32.mrf.mxu0
    %5696 = vmatprep.mubr.bf16.mxu0 0
    %5697 = vmatmul.mubr.bf16.gmra.mxu0 %v5635
    %v5698 = vpop.f32.mrf.mxu0
    %v5699 = vadd.f32 0.0, %v5698
    %v5700 = vpop.f32.mrf.mxu0
    %v5701 = vpop.f32.mrf.mxu0
    %v5702 = vadd.f32 0.0, %v5701
    %v5703 = vpop.f32.mrf.mxu0
    %5704 = vmatprep.mubr.bf16.mxu0 0
    %5705 = vmatmul.mubr.bf16.gmra.mxu0 %v5638
    %v5706 = vpop.f32.mrf.mxu0
    %v5707 = vadd.f32 0.0, %v5706
    %v5708 = vpop.f32.mrf.mxu0
    %v5709 = vpop.f32.mrf.mxu0
    %v5710 = vpop.f32.mrf.mxu0
    %5711 = vdwg.mxu0
    %v5712 = vadd.f32 %v5569, %v5675
    %v5713 = vadd.f32 %v5570, %v5678
    %v5714 = vadd.f32 %v5571, %v5683
    %v5715 = vadd.f32 %v5572, %v5686
    %v5716 = vadd.f32 %v5573, %v5691
    %v5717 = vadd.f32 %v5574, %v5694
    %v5718 = vadd.f32 %v5575, %v5699
    %v5719 = vadd.f32 %v5576, %v5702
    %v5720 = vadd.f32 %v5577, %v5707
    %v5721 = vld [vmem:[#allocation3 + $0xf] sm:$0xff]
    %v5722 = vld [vmem:[#allocation3 + $0x17] sm:$0xff]
    %v5723 = vld [vmem:[#allocation3 + $0x1f] sm:$0xff]
    %v5724 = vld [vmem:[#allocation3 + $0x27] sm:$0xff]
    %v5725 = vld [vmem:[#allocation3 + $0x2f] sm:$0xff]
    %v5726 = vld [vmem:[#allocation3 + $0x37] sm:$0xff]
    %v5727 = vld [vmem:[#allocation3 + $0x3f] sm:$0xff]
    %v5728 = vld [vmem:[#allocation3 + $0x47] sm:$0xff]
    %v5729 = vld [vmem:[#allocation3 + $0x4f] sm:$0xff]
    %v5730 = vpack.c.bf16 %v5722, %v5721
    %v5731 = vpack.c.bf16 %v5724, %v5723
    %v5732 = vpack.c.bf16 %v5726, %v5725
    %v5733 = vpack.c.bf16 %v5728, %v5727
    %v5734 = vpack.c.bf16 %v5729, %v5729
    %s5735 = scalar_lea.vmem %s2, 544
    %v5736 = vld [vmem:[%s5735] sm:$0xf]
    %v5737 = vld [vmem:[%s5735 + $0x4] sm:$0xf]
    %v5738 = vld [vmem:[%s5735 + $0x8] sm:$0xf]
    %v5739 = vld [vmem:[%s5735 + $0xc] sm:$0xf]
    %v5740 = vld [vmem:[%s5735 + $0x10] sm:$0xf]
    %v5741 = vld [vmem:[%s5735 + $0x14] sm:$0xf]
    %v5742 = vld [vmem:[%s5735 + $0x18] sm:$0xf]
    %v5743 = vld [vmem:[%s5735 + $0x1c] sm:$0xf]
    %v5752 = vunpack.c.l.b16 %v5736
    %v5753 = vunpack.c.l.b16 %v5737
    %v5754 = vunpack.c.l.b16 %v5738
    %v5755 = vunpack.c.l.b16 %v5739
    %v5756 = vunpack.c.l.b16 %v5740
    %v5757 = vunpack.c.l.b16 %v5741
    %v5758 = vunpack.c.l.b16 %v5742
    %v5759 = vunpack.c.l.b16 %v5743
    %v5760 = vpack.c.b16 %v5753, %v5752
    %v5761 = vpack.c.b16 %v5755, %v5754
    %v5762 = vpack.c.b16 %v5757, %v5756
    %v5763 = vpack.c.b16 %v5759, %v5758
    %v5769 = vsel %vm28, %v5730, 0
    %v5772 = vsel %vm28, %v5731, 0
    %v5775 = vsel %vm28, %v5732, 0
    %v5778 = vsel %vm28, %v5733, 0
    %v5781 = vsel %vm28, %v5734, 0
    %5783 = vmatprep.subr.bf16.mxu0 0
    %5784 = vmatpush1.bf16.msra.mxu0 0
    %5785 = vmatprep.subr.bf16.mxu0 0
    %5786 = vmatpush1.bf16.msra.mxu0 0
    %5787 = vmatprep.subr.bf16.mxu0 0
    %5788 = vmatpush1.bf16.msra.mxu0 0
    %5789 = vmatprep.subr.bf16.mxu0 0
    %5790 = vmatpush1.bf16.msra.mxu0 0
    %5791 = vmatprep.subr.bf16.mxu0 0
    %5792 = vmatpush1.bf16.msra.mxu0 %v5763
    %5793 = vmatprep.subr.bf16.mxu0 0
    %5794 = vmatpush1.bf16.msra.mxu0 %v5762
    %5795 = vmatprep.subr.bf16.mxu0 0
    %5796 = vmatpush1.bf16.msra.mxu0 %v5761
    %5797 = vmatprep.subr.bf16.mxu0 0
    %5798 = vmatpush1.bf16.msra.mxu0 %v5760
    %5799 = vmatprep.subr.bf16.mxu0 0
    %5800 = vmatpush2.bf16.msra.mxu0 0
    %5801 = vmatprep.subr.bf16.mxu0 0
    %5802 = vmatpush2.bf16.msra.mxu0 0
    %5803 = vmatprep.subr.bf16.mxu0 0
    %5804 = vmatpush2.bf16.msra.mxu0 0
    %5805 = vmatprep.subr.bf16.mxu0 0
    %5806 = vmatpush2.bf16.msra.mxu0 0
    %5807 = vmatprep.subr.bf16.mxu0 0
    %5808 = vmatpush2.bf16.msra.mxu0 0
    %5809 = vmatprep.subr.bf16.mxu0 0
    %5810 = vmatpush2.bf16.msra.mxu0 0
    %5811 = vmatprep.subr.bf16.mxu0 0
    %5812 = vmatpush2.bf16.msra.mxu0 0
    %5813 = vmatprep.subr.bf16.mxu0 0
    %5814 = vmatpush2.bf16.msra.mxu0 0
    %5815 = vmatprep.mubr.bf16.mxu0 0
    %5816 = vmatmul.mubr.bf16.gmra.mxu0 %v5769
    %v5817 = vpop.f32.mrf.mxu0
    %v5818 = vadd.f32 0.0, %v5817
    %v5819 = vpop.f32.mrf.mxu0
    %v5820 = vpop.f32.mrf.mxu0
    %v5821 = vadd.f32 0.0, %v5820
    %v5822 = vpop.f32.mrf.mxu0
    %5823 = vmatprep.mubr.bf16.mxu0 0
    %5824 = vmatmul.mubr.bf16.gmra.mxu0 %v5772
    %v5825 = vpop.f32.mrf.mxu0
    %v5826 = vadd.f32 0.0, %v5825
    %v5827 = vpop.f32.mrf.mxu0
    %v5828 = vpop.f32.mrf.mxu0
    %v5829 = vadd.f32 0.0, %v5828
    %v5830 = vpop.f32.mrf.mxu0
    %5831 = vmatprep.mubr.bf16.mxu0 0
    %5832 = vmatmul.mubr.bf16.gmra.mxu0 %v5775
    %v5833 = vpop.f32.mrf.mxu0
    %v5834 = vadd.f32 0.0, %v5833
    %v5835 = vpop.f32.mrf.mxu0
    %v5836 = vpop.f32.mrf.mxu0
    %v5837 = vadd.f32 0.0, %v5836
    %v5838 = vpop.f32.mrf.mxu0
    %5839 = vmatprep.mubr.bf16.mxu0 0
    %5840 = vmatmul.mubr.bf16.gmra.mxu0 %v5778
    %v5841 = vpop.f32.mrf.mxu0
    %v5842 = vadd.f32 0.0, %v5841
    %v5843 = vpop.f32.mrf.mxu0
    %v5844 = vpop.f32.mrf.mxu0
    %v5845 = vadd.f32 0.0, %v5844
    %v5846 = vpop.f32.mrf.mxu0
    %5847 = vmatprep.mubr.bf16.mxu0 0
    %5848 = vmatmul.mubr.bf16.gmra.mxu0 %v5781
    %v5849 = vpop.f32.mrf.mxu0
    %v5850 = vadd.f32 0.0, %v5849
    %v5851 = vpop.f32.mrf.mxu0
    %v5852 = vpop.f32.mrf.mxu0
    %v5853 = vpop.f32.mrf.mxu0
    %5854 = vdwg.mxu0
    %v5855 = vadd.f32 %v5712, %v5818
    %v5856 = vadd.f32 %v5713, %v5821
    %v5857 = vadd.f32 %v5714, %v5826
    %v5858 = vadd.f32 %v5715, %v5829
    %v5859 = vadd.f32 %v5716, %v5834
    %v5860 = vadd.f32 %v5717, %v5837
    %v5861 = vadd.f32 %v5718, %v5842
    %v5862 = vadd.f32 %v5719, %v5845
    %v5863 = vadd.f32 %v5720, %v5850
    %v5864 = vld [vmem:[%s4 + $0xc8] sm:$0xff]
    %v5865 = vld [vmem:[%s4 + $0xd0] sm:$0xff]
    %v5866 = vld [vmem:[%s4 + $0xd8] sm:$0xff]
    %v5867 = vld [vmem:[%s4 + $0xe0] sm:$0xff]
    %v5868 = vld [vmem:[%s4 + $0xe8] sm:$0xff]
    %v5869 = vld [vmem:[%s4 + $0xf0] sm:$0xff]
    %v5870 = vld [vmem:[%s4 + $0xf8] sm:$0xff]
    %v5871 = vld [vmem:[%s4 + $0x100] sm:$0xff]
    %v5872 = vld [vmem:[%s4 + $0x108] sm:$0xff]
    %v5873 = vld [vmem:[%s3 + $0x2] sm:$0x1]
    %v5874 = vld [vmem:[%s3 + $0x6] sm:$0x1]
    %5876 = vset.pattern.permute.xlu0 0
    %5877 = vperm.xlu0 %5876, %v5864
    %v5878 = vpop.permute.xlu0 %5877
    %5881 = vset.pattern.permute.xlu0 0
    %5882 = vperm.xlu0 %5881, %v5865
    %v5883 = vpop.permute.xlu0 %5882
    %5886 = vset.pattern.permute.xlu0 0
    %5887 = vperm.xlu0 %5886, %v5866
    %v5888 = vpop.permute.xlu0 %5887
    %5891 = vset.pattern.permute.xlu0 0
    %5892 = vperm.xlu0 %5891, %v5867
    %v5893 = vpop.permute.xlu0 %5892
    %5896 = vset.pattern.permute.xlu0 0
    %5897 = vperm.xlu0 %5896, %v5868
    %v5898 = vpop.permute.xlu0 %5897
    %5901 = vset.pattern.permute.xlu0 0
    %5902 = vperm.xlu0 %5901, %v5869
    %v5903 = vpop.permute.xlu0 %5902
    %5906 = vset.pattern.permute.xlu0 0
    %5907 = vperm.xlu0 %5906, %v5870
    %v5908 = vpop.permute.xlu0 %5907
    %5911 = vset.pattern.permute.xlu0 0
    %5912 = vperm.xlu0 %5911, %v5871
    %v5913 = vpop.permute.xlu0 %5912
    %5916 = vset.pattern.permute.xlu0 0
    %5917 = vperm.xlu0 %5916, %v5872
    %v5918 = vpop.permute.xlu0 %5917
    %v5920 = vmul.f32 %v5855, %v5878
    %v5921 = vmul.f32 %v5856, %v5883
    %v5922 = vmul.f32 %v5857, %v5888
    %v5923 = vmul.f32 %v5858, %v5893
    %v5924 = vmul.f32 %v5859, %v5898
    %v5925 = vmul.f32 %v5860, %v5903
    %v5926 = vmul.f32 %v5861, %v5908
    %v5927 = vmul.f32 %v5862, %v5913
    %v5928 = vmul.f32 %v5863, %v5918
    %v5929 = vsel %vm28, %v5920, 0.0
    %v5930 = vsel %vm28, %v5921, 0.0
    %v5931 = vadd.f32 %v5929, %v5930
    %v5932 = vsel %vm28, %v5922, 0.0
    %v5933 = vadd.f32 %v5931, %v5932
    %v5934 = vsel %vm28, %v5923, 0.0
    %v5935 = vadd.f32 %v5933, %v5934
    %v5936 = vsel %vm28, %v5924, 0.0
    %v5937 = vadd.f32 %v5935, %v5936
    %v5938 = vsel %vm28, %v5925, 0.0
    %v5939 = vadd.f32 %v5937, %v5938
    %v5940 = vsel %vm28, %v5926, 0.0
    %v5941 = vadd.f32 %v5939, %v5940
    %v5942 = vsel %vm28, %v5927, 0.0
    %v5943 = vadd.f32 %v5941, %v5942
    %v5944 = vsel %vm28, %v5928, 0.0
    %v5945 = vadd.f32 %v5943, %v5944
    %v5946 = vrot.slane %v5945, 4
    %v5947 = vadd.f32 %v5945, %v5946
    %v5948 = vrot.slane %v5947, 2
    %v5949 = vadd.f32 %v5947, %v5948
    %v5950 = vrot.slane %v5949, 1
    %v5951 = vadd.f32 %v5949, %v5950
    %v5952 = vmul.f32 %v5951, 0.03125
    %v5953 = vsub.f32 %v5855, %v5952
    %v5954 = vsub.f32 %v5856, %v5952
    %v5955 = vsub.f32 %v5857, %v5952
    %v5956 = vsub.f32 %v5858, %v5952
    %v5957 = vsub.f32 %v5859, %v5952
    %v5958 = vsub.f32 %v5860, %v5952
    %v5959 = vsub.f32 %v5861, %v5952
    %v5960 = vsub.f32 %v5862, %v5952
    %v5961 = vsub.f32 %v5863, %v5952
    %v5962 = vmul.f32 %v5953, %v5878
    %v5963 = vmul.f32 %v5954, %v5883
    %v5964 = vmul.f32 %v5955, %v5888
    %v5965 = vmul.f32 %v5956, %v5893
    %v5966 = vmul.f32 %v5957, %v5898
    %v5967 = vmul.f32 %v5958, %v5903
    %v5968 = vmul.f32 %v5959, %v5908
    %v5969 = vmul.f32 %v5960, %v5913
    %v5970 = vmul.f32 %v5961, %v5918
    %v5971 = vmul.f32 %v5962, %v5962
    %v5972 = vmul.f32 %v5963, %v5963
    %v5973 = vmul.f32 %v5964, %v5964
    %v5974 = vmul.f32 %v5965, %v5965
    %v5975 = vmul.f32 %v5966, %v5966
    %v5976 = vmul.f32 %v5967, %v5967
    %v5977 = vmul.f32 %v5968, %v5968
    %v5978 = vmul.f32 %v5969, %v5969
    %v5979 = vmul.f32 %v5970, %v5970
    %v5980 = vsel %vm28, %v5971, 0.0
    %v5981 = vsel %vm28, %v5972, 0.0
    %v5982 = vadd.f32 %v5980, %v5981
    %v5983 = vsel %vm28, %v5973, 0.0
    %v5984 = vadd.f32 %v5982, %v5983
    %v5985 = vsel %vm28, %v5974, 0.0
    %v5986 = vadd.f32 %v5984, %v5985
    %v5987 = vsel %vm28, %v5975, 0.0
    %v5988 = vadd.f32 %v5986, %v5987
    %v5989 = vsel %vm28, %v5976, 0.0
    %v5990 = vadd.f32 %v5988, %v5989
    %v5991 = vsel %vm28, %v5977, 0.0
    %v5992 = vadd.f32 %v5990, %v5991
    %v5993 = vsel %vm28, %v5978, 0.0
    %v5994 = vadd.f32 %v5992, %v5993
    %v5995 = vsel %vm28, %v5979, 0.0
    %v5996 = vadd.f32 %v5994, %v5995
    %v5997 = vrot.slane %v5996, 4
    %v5998 = vadd.f32 %v5996, %v5997
    %v5999 = vrot.slane %v5998, 2
    %v6000 = vadd.f32 %v5998, %v5999
    %v6001 = vrot.slane %v6000, 1
    %v6002 = vadd.f32 %v6000, %v6001
    %v6003 = vmul.f32 %v6002, 0.03125
    %v6004 = vadd.f32 %v6003, 1e-05
    %v6005 = vrsqrt.pop %v6004
    %v6006 = vmul.f32 %v5873, %v6005
    %v6007 = vmul.f32 %v5952, %v6006
    %v6008 = vsub.f32 %v5874, %v6007
    %v6009 = vlaneseq
    %v6010 = vshrl.u32 %v6009, 7
    %v6011 = vsub.s32 0, %v6010
    %v6012 = vrot.slane %v6006, %v6011
    %v6013 = vmul.f32 %v5855, %v6012
    %v6014 = vmul.f32 %v5856, %v6012
    %v6015 = vmul.f32 %v5857, %v6012
    %v6016 = vmul.f32 %v5858, %v6012
    %v6017 = vmul.f32 %v5859, %v6012
    %v6018 = vmul.f32 %v5860, %v6012
    %v6019 = vmul.f32 %v5861, %v6012
    %v6020 = vmul.f32 %v5862, %v6012
    %v6021 = vmul.f32 %v5863, %v6012
    %v6022 = vlaneseq
    %v6023 = vshrl.u32 %v6022, 7
    %v6024 = vsub.s32 0, %v6023
    %v6025 = vrot.slane %v6008, %v6024
    %v6026 = vadd.f32 %v6013, %v6025
    %v6027 = vadd.f32 %v6014, %v6025
    %v6028 = vadd.f32 %v6015, %v6025
    %v6029 = vadd.f32 %v6016, %v6025
    %v6030 = vadd.f32 %v6017, %v6025
    %v6031 = vadd.f32 %v6018, %v6025
    %v6032 = vadd.f32 %v6019, %v6025
    %v6033 = vadd.f32 %v6020, %v6025
    %v6034 = vadd.f32 %v6021, %v6025
    %v6035 = vmax.f32 %v6026, 0.0
    %v6036 = vmax.f32 %v6027, 0.0
    %v6037 = vmax.f32 %v6028, 0.0
    %v6038 = vmax.f32 %v6029, 0.0
    %v6039 = vmax.f32 %v6030, 0.0
    %v6040 = vmax.f32 %v6031, 0.0
    %v6041 = vmax.f32 %v6032, 0.0
    %v6042 = vmax.f32 %v6033, 0.0
    %v6043 = vmax.f32 %v6034, 0.0
    %6044 = vst.msk [vmem:[#allocation5] sm:$0xff] %vm28, %v6035
    %6045 = vst.msk [vmem:[#allocation5 + $0x8] sm:$0xff] %vm28, %v6036
    %6046 = vst.msk [vmem:[#allocation5 + $0x10] sm:$0xff] %vm28, %v6037
    %6047 = vst.msk [vmem:[#allocation5 + $0x18] sm:$0xff] %vm28, %v6038
    %6048 = vst.msk [vmem:[#allocation5 + $0x20] sm:$0xff] %vm28, %v6039
    %6049 = vst.msk [vmem:[#allocation5 + $0x28] sm:$0xff] %vm28, %v6040
    %6050 = vst.msk [vmem:[#allocation5 + $0x30] sm:$0xff] %vm28, %v6041
    %6051 = vst.msk [vmem:[#allocation5 + $0x38] sm:$0xff] %vm28, %v6042
    %6052 = vst.msk [vmem:[#allocation5 + $0x40] sm:$0xff] %vm28, %v6043
    %v6053 = vld [vmem:[%s1439] ss:$2 sm:$0xff]
    %v6054 = vld [vmem:[%s1441] ss:$2 sm:$0xff]
    %v6055 = vld [vmem:[%s1443] ss:$2 sm:$0xff]
    %v6056 = vld [vmem:[%s1445] ss:$2 sm:$0xff]
    %v6057 = vld [vmem:[%s1447] ss:$2 sm:$0x7]
    %v6058 = vld [vmem:[%s4509] ss:$2 sm:$0xff]
    %v6059 = vld [vmem:[%s4511] ss:$2 sm:$0xff]
    %v6060 = vld [vmem:[%s4513] ss:$2 sm:$0xff]
    %v6061 = vld [vmem:[%s4515] ss:$2 sm:$0xff]
    %v6062 = vld [vmem:[%s4517] ss:$2 sm:$0x7]
    %v6063 = vmax.f32 %v6053, %v6058
    %v6064 = vmax.f32 %v6054, %v6059
    %v6065 = vmax.f32 %v6055, %v6060
    %v6066 = vmax.f32 %v6056, %v6061
    %v6067 = vmax.f32 %v6057, %v6062
    %6068 = vst.msk [vmem:[#allocation6] sm:$0xff] %vm28, %v6063
    %6069 = vst.msk [vmem:[#allocation6 + $0x8] sm:$0xff] %vm28, %v6064
    %6070 = vst.msk [vmem:[#allocation6 + $0x10] sm:$0xff] %vm28, %v6065
    %6071 = vst.msk [vmem:[#allocation6 + $0x18] sm:$0xff] %vm28, %v6066
    %6072 = vst.msk [vmem:[#allocation6 + $0x20] sm:$0x7] %vm4560, %v6067
    %v6073 = vld [vmem:[#allocation6 + $0x3] sm:$0x3]
    %v6074 = vld [vmem:[#allocation6 + $0x6] sm:$0x3]
    %v6075 = vmax.f32 %v6073, %v6074
    %vm6076 = vcmask 517120
    %6077 = vst.msk [vmem:[#allocation4 + $0xd] sm:$0x3] %vm6076, %v6075
    %v6078 = vld [vmem:[#allocation6 + $0x9] sm:$0x3]
    %v6079 = vld [vmem:[#allocation6 + $0xc] sm:$0x3]
    %v6080 = vmax.f32 %v6078, %v6079
    %6081 = vst.msk [vmem:[#allocation4 + $0x11] sm:$0x3] %vm6076, %v6080
    %v6082 = vld [vmem:[#allocation6 + $0x15] sm:$0x3]
    %v6083 = vld [vmem:[#allocation6 + $0x18] sm:$0x3]
    %v6084 = vmax.f32 %v6082, %v6083
    %6085 = vst.msk [vmem:[#allocation4 + $0x1d] sm:$0x3] %vm6076, %v6084
    %v6086 = vld [vmem:[#allocation6 + $0x1b] sm:$0x3]
    %v6087 = vld [vmem:[#allocation6 + $0x1e] sm:$0x3]
    %v6088 = vmax.f32 %v6086, %v6087
    %6089 = vst.msk [vmem:[#allocation4 + $0x21] sm:$0x3] %vm6076, %v6088
    %v6090 = vld [vmem:[#allocation4 + $0x3] sm:$0xff]
    %v6091 = vld [vmem:[#allocation4 + $0xb] sm:$0xff]
    %v6092 = vld [vmem:[#allocation4 + $0x13] sm:$0xff]
    %v6093 = vld [vmem:[#allocation4 + $0x1b] sm:$0xff]
    %v6094 = vpack.c.bf16 %v6091, %v6090
    %v6095 = vpack.c.bf16 %v6093, %v6092
    %s6096 = scalar_lea.vmem %s2, 576
    %v6097 = vld [vmem:[%s6096] sm:$0xf]
    %v6098 = vld [vmem:[%s6096 + $0x4] sm:$0xf]
    %v6099 = vld [vmem:[%s6096 + $0x8] sm:$0xf]
    %v6100 = vld [vmem:[%s6096 + $0xc] sm:$0xf]
    %v6101 = vld [vmem:[%s6096 + $0x10] sm:$0xf]
    %v6102 = vld [vmem:[%s6096 + $0x14] sm:$0xf]
    %v6103 = vld [vmem:[%s6096 + $0x18] sm:$0xf]
    %v6104 = vld [vmem:[%s6096 + $0x1c] sm:$0xf]
    %v6105 = vld [vmem:[#allocation4 + $0x4] sm:$0xff]
    %v6106 = vld [vmem:[#allocation4 + $0xc] sm:$0xff]
    %v6107 = vld [vmem:[#allocation4 + $0x14] sm:$0xff]
    %v6108 = vld [vmem:[#allocation4 + $0x1c] sm:$0xff]
    %v6109 = vpack.c.bf16 %v6106, %v6105
    %v6110 = vpack.c.bf16 %v6108, %v6107
    %s6111 = scalar_lea.vmem %s2, 608
    %v6112 = vld [vmem:[%s6111] sm:$0xf]
    %v6113 = vld [vmem:[%s6111 + $0x4] sm:$0xf]
    %v6114 = vld [vmem:[%s6111 + $0x8] sm:$0xf]
    %v6115 = vld [vmem:[%s6111 + $0xc] sm:$0xf]
    %v6116 = vld [vmem:[%s6111 + $0x10] sm:$0xf]
    %v6117 = vld [vmem:[%s6111 + $0x14] sm:$0xf]
    %v6118 = vld [vmem:[%s6111 + $0x18] sm:$0xf]
    %v6119 = vld [vmem:[%s6111 + $0x1c] sm:$0xf]
    %v6128 = vunpack.c.l.b16 %v6112
    %v6129 = vunpack.c.l.b16 %v6113
    %v6130 = vunpack.c.l.b16 %v6114
    %v6131 = vunpack.c.l.b16 %v6115
    %v6132 = vunpack.c.l.b16 %v6116
    %v6133 = vunpack.c.l.b16 %v6117
    %v6134 = vunpack.c.l.b16 %v6118
    %v6135 = vunpack.c.l.b16 %v6119
    %v6136 = vpack.c.b16 %v6129, %v6128
    %v6137 = vpack.c.b16 %v6131, %v6130
    %v6138 = vpack.c.b16 %v6133, %v6132
    %v6139 = vpack.c.b16 %v6135, %v6134
    %v6145 = vsel %vm28, %v6109, 0
    %v6148 = vsel %vm28, %v6110, 0
    %6150 = vmatprep.subr.bf16.mxu0 0
    %6151 = vmatpush1.bf16.msra.mxu0 0
    %6152 = vmatprep.subr.bf16.mxu0 0
    %6153 = vmatpush1.bf16.msra.mxu0 0
    %6154 = vmatprep.subr.bf16.mxu0 0
    %6155 = vmatpush1.bf16.msra.mxu0 0
    %6156 = vmatprep.subr.bf16.mxu0 0
    %6157 = vmatpush1.bf16.msra.mxu0 0
    %6158 = vmatprep.subr.bf16.mxu0 0
    %6159 = vmatpush1.bf16.msra.mxu0 %v6139
    %6160 = vmatprep.subr.bf16.mxu0 0
    %6161 = vmatpush1.bf16.msra.mxu0 %v6138
    %6162 = vmatprep.subr.bf16.mxu0 0
    %6163 = vmatpush1.bf16.msra.mxu0 %v6137
    %6164 = vmatprep.subr.bf16.mxu0 0
    %6165 = vmatpush1.bf16.msra.mxu0 %v6136
    %6166 = vmatprep.subr.bf16.mxu0 0
    %6167 = vmatpush2.bf16.msra.mxu0 0
    %6168 = vmatprep.subr.bf16.mxu0 0
    %6169 = vmatpush2.bf16.msra.mxu0 0
    %6170 = vmatprep.subr.bf16.mxu0 0
    %6171 = vmatpush2.bf16.msra.mxu0 0
    %6172 = vmatprep.subr.bf16.mxu0 0
    %6173 = vmatpush2.bf16.msra.mxu0 0
    %6174 = vmatprep.subr.bf16.mxu0 0
    %6175 = vmatpush2.bf16.msra.mxu0 0
    %6176 = vmatprep.subr.bf16.mxu0 0
    %6177 = vmatpush2.bf16.msra.mxu0 0
    %6178 = vmatprep.subr.bf16.mxu0 0
    %6179 = vmatpush2.bf16.msra.mxu0 0
    %6180 = vmatprep.subr.bf16.mxu0 0
    %6181 = vmatpush2.bf16.msra.mxu0 0
    %6182 = vmatprep.mubr.bf16.mxu0 0
    %6183 = vmatmul.mubr.bf16.gmra.mxu0 %v6145
    %v6184 = vpop.f32.mrf.mxu0
    %v6185 = vadd.f32 0.0, %v6184
    %v6186 = vpop.f32.mrf.mxu0
    %v6187 = vpop.f32.mrf.mxu0
    %v6188 = vadd.f32 0.0, %v6187
    %v6189 = vpop.f32.mrf.mxu0
    %6190 = vmatprep.mubr.bf16.mxu0 0
    %6191 = vmatmul.mubr.bf16.gmra.mxu0 %v6148
    %v6192 = vpop.f32.mrf.mxu0
    %v6193 = vadd.f32 0.0, %v6192
    %v6194 = vpop.f32.mrf.mxu0
    %v6195 = vpop.f32.mrf.mxu0
    %v6196 = vadd.f32 0.0, %v6195
    %v6197 = vpop.f32.mrf.mxu0
    %6198 = vdwg.mxu0
    %v6207 = vunpack.c.l.b16 %v6097
    %v6208 = vunpack.c.l.b16 %v6098
    %v6209 = vunpack.c.l.b16 %v6099
    %v6210 = vunpack.c.l.b16 %v6100
    %v6211 = vunpack.c.l.b16 %v6101
    %v6212 = vunpack.c.l.b16 %v6102
    %v6213 = vunpack.c.l.b16 %v6103
    %v6214 = vunpack.c.l.b16 %v6104
    %v6215 = vpack.c.b16 %v6208, %v6207
    %v6216 = vpack.c.b16 %v6210, %v6209
    %v6217 = vpack.c.b16 %v6212, %v6211
    %v6218 = vpack.c.b16 %v6214, %v6213
    %v6224 = vsel %vm28, %v6094, 0
    %v6227 = vsel %vm28, %v6095, 0
    %6229 = vmatprep.subr.bf16.mxu0 0
    %6230 = vmatpush1.bf16.msra.mxu0 0
    %6231 = vmatprep.subr.bf16.mxu0 0
    %6232 = vmatpush1.bf16.msra.mxu0 0
    %6233 = vmatprep.subr.bf16.mxu0 0
    %6234 = vmatpush1.bf16.msra.mxu0 0
    %6235 = vmatprep.subr.bf16.mxu0 0
    %6236 = vmatpush1.bf16.msra.mxu0 0
    %6237 = vmatprep.subr.bf16.mxu0 0
    %6238 = vmatpush1.bf16.msra.mxu0 %v6218
    %6239 = vmatprep.subr.bf16.mxu0 0
    %6240 = vmatpush1.bf16.msra.mxu0 %v6217
    %6241 = vmatprep.subr.bf16.mxu0 0
    %6242 = vmatpush1.bf16.msra.mxu0 %v6216
    %6243 = vmatprep.subr.bf16.mxu0 0
    %6244 = vmatpush1.bf16.msra.mxu0 %v6215
    %6245 = vmatprep.subr.bf16.mxu0 0
    %6246 = vmatpush2.bf16.msra.mxu0 0
    %6247 = vmatprep.subr.bf16.mxu0 0
    %6248 = vmatpush2.bf16.msra.mxu0 0
    %6249 = vmatprep.subr.bf16.mxu0 0
    %6250 = vmatpush2.bf16.msra.mxu0 0
    %6251 = vmatprep.subr.bf16.mxu0 0
    %6252 = vmatpush2.bf16.msra.mxu0 0
    %6253 = vmatprep.subr.bf16.mxu0 0
    %6254 = vmatpush2.bf16.msra.mxu0 0
    %6255 = vmatprep.subr.bf16.mxu0 0
    %6256 = vmatpush2.bf16.msra.mxu0 0
    %6257 = vmatprep.subr.bf16.mxu0 0
    %6258 = vmatpush2.bf16.msra.mxu0 0
    %6259 = vmatprep.subr.bf16.mxu0 0
    %6260 = vmatpush2.bf16.msra.mxu0 0
    %6261 = vmatprep.mubr.bf16.mxu0 0
    %6262 = vmatmul.mubr.bf16.gmra.mxu0 %v6224
    %v6263 = vpop.f32.mrf.mxu0
    %v6264 = vadd.f32 %v6185, %v6263
    %v6265 = vpop.f32.mrf.mxu0
    %v6266 = vpop.f32.mrf.mxu0
    %v6267 = vadd.f32 %v6188, %v6266
    %v6268 = vpop.f32.mrf.mxu0
    %6269 = vmatprep.mubr.bf16.mxu0 0
    %6270 = vmatmul.mubr.bf16.gmra.mxu0 %v6227
    %v6271 = vpop.f32.mrf.mxu0
    %v6272 = vadd.f32 %v6193, %v6271
    %v6273 = vpop.f32.mrf.mxu0
    %v6274 = vpop.f32.mrf.mxu0
    %v6275 = vadd.f32 %v6196, %v6274
    %v6276 = vpop.f32.mrf.mxu0
    %6277 = vdwg.mxu0
    %v6278 = vld [vmem:[#allocation4 + $0x5] sm:$0xff]
    %v6279 = vld [vmem:[#allocation4 + $0xd] sm:$0xff]
    %v6280 = vld [vmem:[#allocation4 + $0x15] sm:$0xff]
    %v6281 = vld [vmem:[#allocation4 + $0x1d] sm:$0xff]
    %v6282 = vpack.c.bf16 %v6279, %v6278
    %v6283 = vpack.c.bf16 %v6281, %v6280
    %s6284 = scalar_lea.vmem %s2, 640
    %v6285 = vld [vmem:[%s6284] sm:$0xf]
    %v6286 = vld [vmem:[%s6284 + $0x4] sm:$0xf]
    %v6287 = vld [vmem:[%s6284 + $0x8] sm:$0xf]
    %v6288 = vld [vmem:[%s6284 + $0xc] sm:$0xf]
    %v6289 = vld [vmem:[%s6284 + $0x10] sm:$0xf]
    %v6290 = vld [vmem:[%s6284 + $0x14] sm:$0xf]
    %v6291 = vld [vmem:[%s6284 + $0x18] sm:$0xf]
    %v6292 = vld [vmem:[%s6284 + $0x1c] sm:$0xf]
    %v6301 = vunpack.c.l.b16 %v6285
    %v6302 = vunpack.c.l.b16 %v6286
    %v6303 = vunpack.c.l.b16 %v6287
    %v6304 = vunpack.c.l.b16 %v6288
    %v6305 = vunpack.c.l.b16 %v6289
    %v6306 = vunpack.c.l.b16 %v6290
    %v6307 = vunpack.c.l.b16 %v6291
    %v6308 = vunpack.c.l.b16 %v6292
    %v6309 = vpack.c.b16 %v6302, %v6301
    %v6310 = vpack.c.b16 %v6304, %v6303
    %v6311 = vpack.c.b16 %v6306, %v6305
    %v6312 = vpack.c.b16 %v6308, %v6307
    %v6318 = vsel %vm28, %v6282, 0
    %v6321 = vsel %vm28, %v6283, 0
    %6323 = vmatprep.subr.bf16.mxu0 0
    %6324 = vmatpush1.bf16.msra.mxu0 0
    %6325 = vmatprep.subr.bf16.mxu0 0
    %6326 = vmatpush1.bf16.msra.mxu0 0
    %6327 = vmatprep.subr.bf16.mxu0 0
    %6328 = vmatpush1.bf16.msra.mxu0 0
    %6329 = vmatprep.subr.bf16.mxu0 0
    %6330 = vmatpush1.bf16.msra.mxu0 0
    %6331 = vmatprep.subr.bf16.mxu0 0
    %6332 = vmatpush1.bf16.msra.mxu0 %v6312
    %6333 = vmatprep.subr.bf16.mxu0 0
    %6334 = vmatpush1.bf16.msra.mxu0 %v6311
    %6335 = vmatprep.subr.bf16.mxu0 0
    %6336 = vmatpush1.bf16.msra.mxu0 %v6310
    %6337 = vmatprep.subr.bf16.mxu0 0
    %6338 = vmatpush1.bf16.msra.mxu0 %v6309
    %6339 = vmatprep.subr.bf16.mxu0 0
    %6340 = vmatpush2.bf16.msra.mxu0 0
    %6341 = vmatprep.subr.bf16.mxu0 0
    %6342 = vmatpush2.bf16.msra.mxu0 0
    %6343 = vmatprep.subr.bf16.mxu0 0
    %6344 = vmatpush2.bf16.msra.mxu0 0
    %6345 = vmatprep.subr.bf16.mxu0 0
    %6346 = vmatpush2.bf16.msra.mxu0 0
    %6347 = vmatprep.subr.bf16.mxu0 0
    %6348 = vmatpush2.bf16.msra.mxu0 0
    %6349 = vmatprep.subr.bf16.mxu0 0
    %6350 = vmatpush2.bf16.msra.mxu0 0
    %6351 = vmatprep.subr.bf16.mxu0 0
    %6352 = vmatpush2.bf16.msra.mxu0 0
    %6353 = vmatprep.subr.bf16.mxu0 0
    %6354 = vmatpush2.bf16.msra.mxu0 0
    %6355 = vmatprep.mubr.bf16.mxu0 0
    %6356 = vmatmul.mubr.bf16.gmra.mxu0 %v6318
    %v6357 = vpop.f32.mrf.mxu0
    %v6358 = vadd.f32 0.0, %v6357
    %v6359 = vpop.f32.mrf.mxu0
    %v6360 = vpop.f32.mrf.mxu0
    %v6361 = vadd.f32 0.0, %v6360
    %v6362 = vpop.f32.mrf.mxu0
    %6363 = vmatprep.mubr.bf16.mxu0 0
    %6364 = vmatmul.mubr.bf16.gmra.mxu0 %v6321
    %v6365 = vpop.f32.mrf.mxu0
    %v6366 = vadd.f32 0.0, %v6365
    %v6367 = vpop.f32.mrf.mxu0
    %v6368 = vpop.f32.mrf.mxu0
    %v6369 = vadd.f32 0.0, %v6368
    %v6370 = vpop.f32.mrf.mxu0
    %6371 = vdwg.mxu0
    %v6372 = vadd.f32 %v6264, %v6358
    %v6373 = vadd.f32 %v6267, %v6361
    %v6374 = vadd.f32 %v6272, %v6366
    %v6375 = vadd.f32 %v6275, %v6369
    %v6376 = vld [vmem:[#allocation4 + $0x7] sm:$0xff]
    %v6377 = vld [vmem:[#allocation4 + $0xf] sm:$0xff]
    %v6378 = vld [vmem:[#allocation4 + $0x17] sm:$0xff]
    %v6379 = vld [vmem:[#allocation4 + $0x1f] sm:$0xff]
    %v6380 = vpack.c.bf16 %v6377, %v6376
    %v6381 = vpack.c.bf16 %v6379, %v6378
    %s6382 = scalar_lea.vmem %s2, 672
    %v6383 = vld [vmem:[%s6382] sm:$0xf]
    %v6384 = vld [vmem:[%s6382 + $0x4] sm:$0xf]
    %v6385 = vld [vmem:[%s6382 + $0x8] sm:$0xf]
    %v6386 = vld [vmem:[%s6382 + $0xc] sm:$0xf]
    %v6387 = vld [vmem:[%s6382 + $0x10] sm:$0xf]
    %v6388 = vld [vmem:[%s6382 + $0x14] sm:$0xf]
    %v6389 = vld [vmem:[%s6382 + $0x18] sm:$0xf]
    %v6390 = vld [vmem:[%s6382 + $0x1c] sm:$0xf]
    %v6399 = vunpack.c.l.b16 %v6383
    %v6400 = vunpack.c.l.b16 %v6384
    %v6401 = vunpack.c.l.b16 %v6385
    %v6402 = vunpack.c.l.b16 %v6386
    %v6403 = vunpack.c.l.b16 %v6387
    %v6404 = vunpack.c.l.b16 %v6388
    %v6405 = vunpack.c.l.b16 %v6389
    %v6406 = vunpack.c.l.b16 %v6390
    %v6407 = vpack.c.b16 %v6400, %v6399
    %v6408 = vpack.c.b16 %v6402, %v6401
    %v6409 = vpack.c.b16 %v6404, %v6403
    %v6410 = vpack.c.b16 %v6406, %v6405
    %v6416 = vsel %vm28, %v6380, 0
    %v6419 = vsel %vm28, %v6381, 0
    %6421 = vmatprep.subr.bf16.mxu0 0
    %6422 = vmatpush1.bf16.msra.mxu0 0
    %6423 = vmatprep.subr.bf16.mxu0 0
    %6424 = vmatpush1.bf16.msra.mxu0 0
    %6425 = vmatprep.subr.bf16.mxu0 0
    %6426 = vmatpush1.bf16.msra.mxu0 0
    %6427 = vmatprep.subr.bf16.mxu0 0
    %6428 = vmatpush1.bf16.msra.mxu0 0
    %6429 = vmatprep.subr.bf16.mxu0 0
    %6430 = vmatpush1.bf16.msra.mxu0 %v6410
    %6431 = vmatprep.subr.bf16.mxu0 0
    %6432 = vmatpush1.bf16.msra.mxu0 %v6409
    %6433 = vmatprep.subr.bf16.mxu0 0
    %6434 = vmatpush1.bf16.msra.mxu0 %v6408
    %6435 = vmatprep.subr.bf16.mxu0 0
    %6436 = vmatpush1.bf16.msra.mxu0 %v6407
    %6437 = vmatprep.subr.bf16.mxu0 0
    %6438 = vmatpush2.bf16.msra.mxu0 0
    %6439 = vmatprep.subr.bf16.mxu0 0
    %6440 = vmatpush2.bf16.msra.mxu0 0
    %6441 = vmatprep.subr.bf16.mxu0 0
    %6442 = vmatpush2.bf16.msra.mxu0 0
    %6443 = vmatprep.subr.bf16.mxu0 0
    %6444 = vmatpush2.bf16.msra.mxu0 0
    %6445 = vmatprep.subr.bf16.mxu0 0
    %6446 = vmatpush2.bf16.msra.mxu0 0
    %6447 = vmatprep.subr.bf16.mxu0 0
    %6448 = vmatpush2.bf16.msra.mxu0 0
    %6449 = vmatprep.subr.bf16.mxu0 0
    %6450 = vmatpush2.bf16.msra.mxu0 0
    %6451 = vmatprep.subr.bf16.mxu0 0
    %6452 = vmatpush2.bf16.msra.mxu0 0
    %6453 = vmatprep.mubr.bf16.mxu0 0
    %6454 = vmatmul.mubr.bf16.gmra.mxu0 %v6416
    %v6455 = vpop.f32.mrf.mxu0
    %v6456 = vadd.f32 0.0, %v6455
    %v6457 = vpop.f32.mrf.mxu0
    %v6458 = vpop.f32.mrf.mxu0
    %v6459 = vadd.f32 0.0, %v6458
    %v6460 = vpop.f32.mrf.mxu0
    %6461 = vmatprep.mubr.bf16.mxu0 0
    %6462 = vmatmul.mubr.bf16.gmra.mxu0 %v6419
    %v6463 = vpop.f32.mrf.mxu0
    %v6464 = vadd.f32 0.0, %v6463
    %v6465 = vpop.f32.mrf.mxu0
    %v6466 = vpop.f32.mrf.mxu0
    %v6467 = vadd.f32 0.0, %v6466
    %v6468 = vpop.f32.mrf.mxu0
    %6469 = vdwg.mxu0
    %v6470 = vadd.f32 %v6372, %v6456
    %v6471 = vadd.f32 %v6373, %v6459
    %v6472 = vadd.f32 %v6374, %v6464
    %v6473 = vadd.f32 %v6375, %v6467
    %v6474 = vld [vmem:[#allocation4 + $0x8] sm:$0xff]
    %v6475 = vld [vmem:[#allocation4 + $0x10] sm:$0xff]
    %v6476 = vld [vmem:[#allocation4 + $0x18] sm:$0xff]
    %v6477 = vld [vmem:[#allocation4 + $0x20] sm:$0xff]
    %v6478 = vpack.c.bf16 %v6475, %v6474
    %v6479 = vpack.c.bf16 %v6477, %v6476
    %s6480 = scalar_lea.vmem %s2, 704
    %v6481 = vld [vmem:[%s6480] sm:$0xf]
    %v6482 = vld [vmem:[%s6480 + $0x4] sm:$0xf]
    %v6483 = vld [vmem:[%s6480 + $0x8] sm:$0xf]
    %v6484 = vld [vmem:[%s6480 + $0xc] sm:$0xf]
    %v6485 = vld [vmem:[%s6480 + $0x10] sm:$0xf]
    %v6486 = vld [vmem:[%s6480 + $0x14] sm:$0xf]
    %v6487 = vld [vmem:[%s6480 + $0x18] sm:$0xf]
    %v6488 = vld [vmem:[%s6480 + $0x1c] sm:$0xf]
    %v6497 = vunpack.c.l.b16 %v6481
    %v6498 = vunpack.c.l.b16 %v6482
    %v6499 = vunpack.c.l.b16 %v6483
    %v6500 = vunpack.c.l.b16 %v6484
    %v6501 = vunpack.c.l.b16 %v6485
    %v6502 = vunpack.c.l.b16 %v6486
    %v6503 = vunpack.c.l.b16 %v6487
    %v6504 = vunpack.c.l.b16 %v6488
    %v6505 = vpack.c.b16 %v6498, %v6497
    %v6506 = vpack.c.b16 %v6500, %v6499
    %v6507 = vpack.c.b16 %v6502, %v6501
    %v6508 = vpack.c.b16 %v6504, %v6503
    %v6514 = vsel %vm28, %v6478, 0
    %v6517 = vsel %vm28, %v6479, 0
    %6519 = vmatprep.subr.bf16.mxu0 0
    %6520 = vmatpush1.bf16.msra.mxu0 0
    %6521 = vmatprep.subr.bf16.mxu0 0
    %6522 = vmatpush1.bf16.msra.mxu0 0
    %6523 = vmatprep.subr.bf16.mxu0 0
    %6524 = vmatpush1.bf16.msra.mxu0 0
    %6525 = vmatprep.subr.bf16.mxu0 0
    %6526 = vmatpush1.bf16.msra.mxu0 0
    %6527 = vmatprep.subr.bf16.mxu0 0
    %6528 = vmatpush1.bf16.msra.mxu0 %v6508
    %6529 = vmatprep.subr.bf16.mxu0 0
    %6530 = vmatpush1.bf16.msra.mxu0 %v6507
    %6531 = vmatprep.subr.bf16.mxu0 0
    %6532 = vmatpush1.bf16.msra.mxu0 %v6506
    %6533 = vmatprep.subr.bf16.mxu0 0
    %6534 = vmatpush1.bf16.msra.mxu0 %v6505
    %6535 = vmatprep.subr.bf16.mxu0 0
    %6536 = vmatpush2.bf16.msra.mxu0 0
    %6537 = vmatprep.subr.bf16.mxu0 0
    %6538 = vmatpush2.bf16.msra.mxu0 0
    %6539 = vmatprep.subr.bf16.mxu0 0
    %6540 = vmatpush2.bf16.msra.mxu0 0
    %6541 = vmatprep.subr.bf16.mxu0 0
    %6542 = vmatpush2.bf16.msra.mxu0 0
    %6543 = vmatprep.subr.bf16.mxu0 0
    %6544 = vmatpush2.bf16.msra.mxu0 0
    %6545 = vmatprep.subr.bf16.mxu0 0
    %6546 = vmatpush2.bf16.msra.mxu0 0
    %6547 = vmatprep.subr.bf16.mxu0 0
    %6548 = vmatpush2.bf16.msra.mxu0 0
    %6549 = vmatprep.subr.bf16.mxu0 0
    %6550 = vmatpush2.bf16.msra.mxu0 0
    %6551 = vmatprep.mubr.bf16.mxu0 0
    %6552 = vmatmul.mubr.bf16.gmra.mxu0 %v6514
    %v6553 = vpop.f32.mrf.mxu0
    %v6554 = vadd.f32 0.0, %v6553
    %v6555 = vpop.f32.mrf.mxu0
    %v6556 = vpop.f32.mrf.mxu0
    %v6557 = vadd.f32 0.0, %v6556
    %v6558 = vpop.f32.mrf.mxu0
    %6559 = vmatprep.mubr.bf16.mxu0 0
    %6560 = vmatmul.mubr.bf16.gmra.mxu0 %v6517
    %v6561 = vpop.f32.mrf.mxu0
    %v6562 = vadd.f32 0.0, %v6561
    %v6563 = vpop.f32.mrf.mxu0
    %v6564 = vpop.f32.mrf.mxu0
    %v6565 = vadd.f32 0.0, %v6564
    %v6566 = vpop.f32.mrf.mxu0
    %6567 = vdwg.mxu0
    %v6568 = vadd.f32 %v6470, %v6554
    %v6569 = vadd.f32 %v6471, %v6557
    %v6570 = vadd.f32 %v6472, %v6562
    %v6571 = vadd.f32 %v6473, %v6565
    %v6572 = vld [vmem:[#allocation4 + $0x9] sm:$0xff]
    %v6573 = vld [vmem:[#allocation4 + $0x11] sm:$0xff]
    %v6574 = vld [vmem:[#allocation4 + $0x19] sm:$0xff]
    %v6575 = vld [vmem:[#allocation4 + $0x21] sm:$0xff]
    %v6576 = vpack.c.bf16 %v6573, %v6572
    %v6577 = vpack.c.bf16 %v6575, %v6574
    %s6578 = scalar_lea.vmem %s2, 736
    %v6579 = vld [vmem:[%s6578] sm:$0xf]
    %v6580 = vld [vmem:[%s6578 + $0x4] sm:$0xf]
    %v6581 = vld [vmem:[%s6578 + $0x8] sm:$0xf]
    %v6582 = vld [vmem:[%s6578 + $0xc] sm:$0xf]
    %v6583 = vld [vmem:[%s6578 + $0x10] sm:$0xf]
    %v6584 = vld [vmem:[%s6578 + $0x14] sm:$0xf]
    %v6585 = vld [vmem:[%s6578 + $0x18] sm:$0xf]
    %v6586 = vld [vmem:[%s6578 + $0x1c] sm:$0xf]
    %v6595 = vunpack.c.l.b16 %v6579
    %v6596 = vunpack.c.l.b16 %v6580
    %v6597 = vunpack.c.l.b16 %v6581
    %v6598 = vunpack.c.l.b16 %v6582
    %v6599 = vunpack.c.l.b16 %v6583
    %v6600 = vunpack.c.l.b16 %v6584
    %v6601 = vunpack.c.l.b16 %v6585
    %v6602 = vunpack.c.l.b16 %v6586
    %v6603 = vpack.c.b16 %v6596, %v6595
    %v6604 = vpack.c.b16 %v6598, %v6597
    %v6605 = vpack.c.b16 %v6600, %v6599
    %v6606 = vpack.c.b16 %v6602, %v6601
    %v6612 = vsel %vm28, %v6576, 0
    %v6615 = vsel %vm28, %v6577, 0
    %6617 = vmatprep.subr.bf16.mxu0 0
    %6618 = vmatpush1.bf16.msra.mxu0 0
    %6619 = vmatprep.subr.bf16.mxu0 0
    %6620 = vmatpush1.bf16.msra.mxu0 0
    %6621 = vmatprep.subr.bf16.mxu0 0
    %6622 = vmatpush1.bf16.msra.mxu0 0
    %6623 = vmatprep.subr.bf16.mxu0 0
    %6624 = vmatpush1.bf16.msra.mxu0 0
    %6625 = vmatprep.subr.bf16.mxu0 0
    %6626 = vmatpush1.bf16.msra.mxu0 %v6606
    %6627 = vmatprep.subr.bf16.mxu0 0
    %6628 = vmatpush1.bf16.msra.mxu0 %v6605
    %6629 = vmatprep.subr.bf16.mxu0 0
    %6630 = vmatpush1.bf16.msra.mxu0 %v6604
    %6631 = vmatprep.subr.bf16.mxu0 0
    %6632 = vmatpush1.bf16.msra.mxu0 %v6603
    %6633 = vmatprep.subr.bf16.mxu0 0
    %6634 = vmatpush2.bf16.msra.mxu0 0
    %6635 = vmatprep.subr.bf16.mxu0 0
    %6636 = vmatpush2.bf16.msra.mxu0 0
    %6637 = vmatprep.subr.bf16.mxu0 0
    %6638 = vmatpush2.bf16.msra.mxu0 0
    %6639 = vmatprep.subr.bf16.mxu0 0
    %6640 = vmatpush2.bf16.msra.mxu0 0
    %6641 = vmatprep.subr.bf16.mxu0 0
    %6642 = vmatpush2.bf16.msra.mxu0 0
    %6643 = vmatprep.subr.bf16.mxu0 0
    %6644 = vmatpush2.bf16.msra.mxu0 0
    %6645 = vmatprep.subr.bf16.mxu0 0
    %6646 = vmatpush2.bf16.msra.mxu0 0
    %6647 = vmatprep.subr.bf16.mxu0 0
    %6648 = vmatpush2.bf16.msra.mxu0 0
    %6649 = vmatprep.mubr.bf16.mxu0 0
    %6650 = vmatmul.mubr.bf16.gmra.mxu0 %v6612
    %v6651 = vpop.f32.mrf.mxu0
    %v6652 = vadd.f32 0.0, %v6651
    %v6653 = vpop.f32.mrf.mxu0
    %v6654 = vpop.f32.mrf.mxu0
    %v6655 = vadd.f32 0.0, %v6654
    %v6656 = vpop.f32.mrf.mxu0
    %6657 = vmatprep.mubr.bf16.mxu0 0
    %6658 = vmatmul.mubr.bf16.gmra.mxu0 %v6615
    %v6659 = vpop.f32.mrf.mxu0
    %v6660 = vadd.f32 0.0, %v6659
    %v6661 = vpop.f32.mrf.mxu0
    %v6662 = vpop.f32.mrf.mxu0
    %v6663 = vadd.f32 0.0, %v6662
    %v6664 = vpop.f32.mrf.mxu0
    %6665 = vdwg.mxu0
    %v6666 = vadd.f32 %v6568, %v6652
    %v6667 = vadd.f32 %v6569, %v6655
    %v6668 = vadd.f32 %v6570, %v6660
    %v6669 = vadd.f32 %v6571, %v6663
    %v6670 = vld [vmem:[#allocation4 + $0xb] sm:$0xff]
    %v6671 = vld [vmem:[#allocation4 + $0x13] sm:$0xff]
    %v6672 = vld [vmem:[#allocation4 + $0x1b] sm:$0xff]
    %v6673 = vld [vmem:[#allocation4 + $0x23] sm:$0xff]
    %v6674 = vpack.c.bf16 %v6671, %v6670
    %v6675 = vpack.c.bf16 %v6673, %v6672
    %s6676 = scalar_lea.vmem %s2, 768
    %v6677 = vld [vmem:[%s6676] sm:$0xf]
    %v6678 = vld [vmem:[%s6676 + $0x4] sm:$0xf]
    %v6679 = vld [vmem:[%s6676 + $0x8] sm:$0xf]
    %v6680 = vld [vmem:[%s6676 + $0xc] sm:$0xf]
    %v6681 = vld [vmem:[%s6676 + $0x10] sm:$0xf]
    %v6682 = vld [vmem:[%s6676 + $0x14] sm:$0xf]
    %v6683 = vld [vmem:[%s6676 + $0x18] sm:$0xf]
    %v6684 = vld [vmem:[%s6676 + $0x1c] sm:$0xf]
    %v6693 = vunpack.c.l.b16 %v6677
    %v6694 = vunpack.c.l.b16 %v6678
    %v6695 = vunpack.c.l.b16 %v6679
    %v6696 = vunpack.c.l.b16 %v6680
    %v6697 = vunpack.c.l.b16 %v6681
    %v6698 = vunpack.c.l.b16 %v6682
    %v6699 = vunpack.c.l.b16 %v6683
    %v6700 = vunpack.c.l.b16 %v6684
    %v6701 = vpack.c.b16 %v6694, %v6693
    %v6702 = vpack.c.b16 %v6696, %v6695
    %v6703 = vpack.c.b16 %v6698, %v6697
    %v6704 = vpack.c.b16 %v6700, %v6699
    %v6710 = vsel %vm28, %v6674, 0
    %v6713 = vsel %vm28, %v6675, 0
    %6715 = vmatprep.subr.bf16.mxu0 0
    %6716 = vmatpush1.bf16.msra.mxu0 0
    %6717 = vmatprep.subr.bf16.mxu0 0
    %6718 = vmatpush1.bf16.msra.mxu0 0
    %6719 = vmatprep.subr.bf16.mxu0 0
    %6720 = vmatpush1.bf16.msra.mxu0 0
    %6721 = vmatprep.subr.bf16.mxu0 0
    %6722 = vmatpush1.bf16.msra.mxu0 0
    %6723 = vmatprep.subr.bf16.mxu0 0
    %6724 = vmatpush1.bf16.msra.mxu0 %v6704
    %6725 = vmatprep.subr.bf16.mxu0 0
    %6726 = vmatpush1.bf16.msra.mxu0 %v6703
    %6727 = vmatprep.subr.bf16.mxu0 0
    %6728 = vmatpush1.bf16.msra.mxu0 %v6702
    %6729 = vmatprep.subr.bf16.mxu0 0
    %6730 = vmatpush1.bf16.msra.mxu0 %v6701
    %6731 = vmatprep.subr.bf16.mxu0 0
    %6732 = vmatpush2.bf16.msra.mxu0 0
    %6733 = vmatprep.subr.bf16.mxu0 0
    %6734 = vmatpush2.bf16.msra.mxu0 0
    %6735 = vmatprep.subr.bf16.mxu0 0
    %6736 = vmatpush2.bf16.msra.mxu0 0
    %6737 = vmatprep.subr.bf16.mxu0 0
    %6738 = vmatpush2.bf16.msra.mxu0 0
    %6739 = vmatprep.subr.bf16.mxu0 0
    %6740 = vmatpush2.bf16.msra.mxu0 0
    %6741 = vmatprep.subr.bf16.mxu0 0
    %6742 = vmatpush2.bf16.msra.mxu0 0
    %6743 = vmatprep.subr.bf16.mxu0 0
    %6744 = vmatpush2.bf16.msra.mxu0 0
    %6745 = vmatprep.subr.bf16.mxu0 0
    %6746 = vmatpush2.bf16.msra.mxu0 0
    %6747 = vmatprep.mubr.bf16.mxu0 0
    %6748 = vmatmul.mubr.bf16.gmra.mxu0 %v6710
    %v6749 = vpop.f32.mrf.mxu0
    %v6750 = vadd.f32 0.0, %v6749
    %v6751 = vpop.f32.mrf.mxu0
    %v6752 = vpop.f32.mrf.mxu0
    %v6753 = vadd.f32 0.0, %v6752
    %v6754 = vpop.f32.mrf.mxu0
    %6755 = vmatprep.mubr.bf16.mxu0 0
    %6756 = vmatmul.mubr.bf16.gmra.mxu0 %v6713
    %v6757 = vpop.f32.mrf.mxu0
    %v6758 = vadd.f32 0.0, %v6757
    %v6759 = vpop.f32.mrf.mxu0
    %v6760 = vpop.f32.mrf.mxu0
    %v6761 = vadd.f32 0.0, %v6760
    %v6762 = vpop.f32.mrf.mxu0
    %6763 = vdwg.mxu0
    %v6764 = vadd.f32 %v6666, %v6750
    %v6765 = vadd.f32 %v6667, %v6753
    %v6766 = vadd.f32 %v6668, %v6758
    %v6767 = vadd.f32 %v6669, %v6761
    %v6768 = vld [vmem:[#allocation4 + $0xc] sm:$0xff]
    %v6769 = vld [vmem:[#allocation4 + $0x14] sm:$0xff]
    %v6770 = vld [vmem:[#allocation4 + $0x1c] sm:$0xff]
    %v6771 = vld [vmem:[#allocation4 + $0x24] sm:$0xff]
    %v6772 = vpack.c.bf16 %v6769, %v6768
    %v6773 = vpack.c.bf16 %v6771, %v6770
    %s6774 = scalar_lea.vmem %s2, 800
    %v6775 = vld [vmem:[%s6774] sm:$0xf]
    %v6776 = vld [vmem:[%s6774 + $0x4] sm:$0xf]
    %v6777 = vld [vmem:[%s6774 + $0x8] sm:$0xf]
    %v6778 = vld [vmem:[%s6774 + $0xc] sm:$0xf]
    %v6779 = vld [vmem:[%s6774 + $0x10] sm:$0xf]
    %v6780 = vld [vmem:[%s6774 + $0x14] sm:$0xf]
    %v6781 = vld [vmem:[%s6774 + $0x18] sm:$0xf]
    %v6782 = vld [vmem:[%s6774 + $0x1c] sm:$0xf]
    %v6791 = vunpack.c.l.b16 %v6775
    %v6792 = vunpack.c.l.b16 %v6776
    %v6793 = vunpack.c.l.b16 %v6777
    %v6794 = vunpack.c.l.b16 %v6778
    %v6795 = vunpack.c.l.b16 %v6779
    %v6796 = vunpack.c.l.b16 %v6780
    %v6797 = vunpack.c.l.b16 %v6781
    %v6798 = vunpack.c.l.b16 %v6782
    %v6799 = vpack.c.b16 %v6792, %v6791
    %v6800 = vpack.c.b16 %v6794, %v6793
    %v6801 = vpack.c.b16 %v6796, %v6795
    %v6802 = vpack.c.b16 %v6798, %v6797
    %v6808 = vsel %vm28, %v6772, 0
    %v6811 = vsel %vm28, %v6773, 0
    %6813 = vmatprep.subr.bf16.mxu0 0
    %6814 = vmatpush1.bf16.msra.mxu0 0
    %6815 = vmatprep.subr.bf16.mxu0 0
    %6816 = vmatpush1.bf16.msra.mxu0 0
    %6817 = vmatprep.subr.bf16.mxu0 0
    %6818 = vmatpush1.bf16.msra.mxu0 0
    %6819 = vmatprep.subr.bf16.mxu0 0
    %6820 = vmatpush1.bf16.msra.mxu0 0
    %6821 = vmatprep.subr.bf16.mxu0 0
    %6822 = vmatpush1.bf16.msra.mxu0 %v6802
    %6823 = vmatprep.subr.bf16.mxu0 0
    %6824 = vmatpush1.bf16.msra.mxu0 %v6801
    %6825 = vmatprep.subr.bf16.mxu0 0
    %6826 = vmatpush1.bf16.msra.mxu0 %v6800
    %6827 = vmatprep.subr.bf16.mxu0 0
    %6828 = vmatpush1.bf16.msra.mxu0 %v6799
    %6829 = vmatprep.subr.bf16.mxu0 0
    %6830 = vmatpush2.bf16.msra.mxu0 0
    %6831 = vmatprep.subr.bf16.mxu0 0
    %6832 = vmatpush2.bf16.msra.mxu0 0
    %6833 = vmatprep.subr.bf16.mxu0 0
    %6834 = vmatpush2.bf16.msra.mxu0 0
    %6835 = vmatprep.subr.bf16.mxu0 0
    %6836 = vmatpush2.bf16.msra.mxu0 0
    %6837 = vmatprep.subr.bf16.mxu0 0
    %6838 = vmatpush2.bf16.msra.mxu0 0
    %6839 = vmatprep.subr.bf16.mxu0 0
    %6840 = vmatpush2.bf16.msra.mxu0 0
    %6841 = vmatprep.subr.bf16.mxu0 0
    %6842 = vmatpush2.bf16.msra.mxu0 0
    %6843 = vmatprep.subr.bf16.mxu0 0
    %6844 = vmatpush2.bf16.msra.mxu0 0
    %6845 = vmatprep.mubr.bf16.mxu0 0
    %6846 = vmatmul.mubr.bf16.gmra.mxu0 %v6808
    %v6847 = vpop.f32.mrf.mxu0
    %v6848 = vadd.f32 0.0, %v6847
    %v6849 = vpop.f32.mrf.mxu0
    %v6850 = vpop.f32.mrf.mxu0
    %v6851 = vadd.f32 0.0, %v6850
    %v6852 = vpop.f32.mrf.mxu0
    %6853 = vmatprep.mubr.bf16.mxu0 0
    %6854 = vmatmul.mubr.bf16.gmra.mxu0 %v6811
    %v6855 = vpop.f32.mrf.mxu0
    %v6856 = vadd.f32 0.0, %v6855
    %v6857 = vpop.f32.mrf.mxu0
    %v6858 = vpop.f32.mrf.mxu0
    %v6859 = vadd.f32 0.0, %v6858
    %v6860 = vpop.f32.mrf.mxu0
    %6861 = vdwg.mxu0
    %v6862 = vadd.f32 %v6764, %v6848
    %v6863 = vadd.f32 %v6765, %v6851
    %v6864 = vadd.f32 %v6766, %v6856
    %v6865 = vadd.f32 %v6767, %v6859
    %v6866 = vld [vmem:[#allocation4 + $0xd] sm:$0xff]
    %v6867 = vld [vmem:[#allocation4 + $0x15] sm:$0xff]
    %v6868 = vld [vmem:[#allocation4 + $0x1d] sm:$0xff]
    %v6869 = vld [vmem:[#allocation4 + $0x25] sm:$0xff]
    %v6870 = vpack.c.bf16 %v6867, %v6866
    %v6871 = vpack.c.bf16 %v6869, %v6868
    %s6872 = scalar_lea.vmem %s2, 832
    %v6873 = vld [vmem:[%s6872] sm:$0xf]
    %v6874 = vld [vmem:[%s6872 + $0x4] sm:$0xf]
    %v6875 = vld [vmem:[%s6872 + $0x8] sm:$0xf]
    %v6876 = vld [vmem:[%s6872 + $0xc] sm:$0xf]
    %v6877 = vld [vmem:[%s6872 + $0x10] sm:$0xf]
    %v6878 = vld [vmem:[%s6872 + $0x14] sm:$0xf]
    %v6879 = vld [vmem:[%s6872 + $0x18] sm:$0xf]
    %v6880 = vld [vmem:[%s6872 + $0x1c] sm:$0xf]
    %v6889 = vunpack.c.l.b16 %v6873
    %v6890 = vunpack.c.l.b16 %v6874
    %v6891 = vunpack.c.l.b16 %v6875
    %v6892 = vunpack.c.l.b16 %v6876
    %v6893 = vunpack.c.l.b16 %v6877
    %v6894 = vunpack.c.l.b16 %v6878
    %v6895 = vunpack.c.l.b16 %v6879
    %v6896 = vunpack.c.l.b16 %v6880
    %v6897 = vpack.c.b16 %v6890, %v6889
    %v6898 = vpack.c.b16 %v6892, %v6891
    %v6899 = vpack.c.b16 %v6894, %v6893
    %v6900 = vpack.c.b16 %v6896, %v6895
    %v6906 = vsel %vm28, %v6870, 0
    %v6909 = vsel %vm28, %v6871, 0
    %6911 = vmatprep.subr.bf16.mxu0 0
    %6912 = vmatpush1.bf16.msra.mxu0 0
    %6913 = vmatprep.subr.bf16.mxu0 0
    %6914 = vmatpush1.bf16.msra.mxu0 0
    %6915 = vmatprep.subr.bf16.mxu0 0
    %6916 = vmatpush1.bf16.msra.mxu0 0
    %6917 = vmatprep.subr.bf16.mxu0 0
    %6918 = vmatpush1.bf16.msra.mxu0 0
    %6919 = vmatprep.subr.bf16.mxu0 0
    %6920 = vmatpush1.bf16.msra.mxu0 %v6900
    %6921 = vmatprep.subr.bf16.mxu0 0
    %6922 = vmatpush1.bf16.msra.mxu0 %v6899
    %6923 = vmatprep.subr.bf16.mxu0 0
    %6924 = vmatpush1.bf16.msra.mxu0 %v6898
    %6925 = vmatprep.subr.bf16.mxu0 0
    %6926 = vmatpush1.bf16.msra.mxu0 %v6897
    %6927 = vmatprep.subr.bf16.mxu0 0
    %6928 = vmatpush2.bf16.msra.mxu0 0
    %6929 = vmatprep.subr.bf16.mxu0 0
    %6930 = vmatpush2.bf16.msra.mxu0 0
    %6931 = vmatprep.subr.bf16.mxu0 0
    %6932 = vmatpush2.bf16.msra.mxu0 0
    %6933 = vmatprep.subr.bf16.mxu0 0
    %6934 = vmatpush2.bf16.msra.mxu0 0
    %6935 = vmatprep.subr.bf16.mxu0 0
    %6936 = vmatpush2.bf16.msra.mxu0 0
    %6937 = vmatprep.subr.bf16.mxu0 0
    %6938 = vmatpush2.bf16.msra.mxu0 0
    %6939 = vmatprep.subr.bf16.mxu0 0
    %6940 = vmatpush2.bf16.msra.mxu0 0
    %6941 = vmatprep.subr.bf16.mxu0 0
    %6942 = vmatpush2.bf16.msra.mxu0 0
    %6943 = vmatprep.mubr.bf16.mxu0 0
    %6944 = vmatmul.mubr.bf16.gmra.mxu0 %v6906
    %v6945 = vpop.f32.mrf.mxu0
    %v6946 = vadd.f32 0.0, %v6945
    %v6947 = vpop.f32.mrf.mxu0
    %v6948 = vpop.f32.mrf.mxu0
    %v6949 = vadd.f32 0.0, %v6948
    %v6950 = vpop.f32.mrf.mxu0
    %6951 = vmatprep.mubr.bf16.mxu0 0
    %6952 = vmatmul.mubr.bf16.gmra.mxu0 %v6909
    %v6953 = vpop.f32.mrf.mxu0
    %v6954 = vadd.f32 0.0, %v6953
    %v6955 = vpop.f32.mrf.mxu0
    %v6956 = vpop.f32.mrf.mxu0
    %v6957 = vadd.f32 0.0, %v6956
    %v6958 = vpop.f32.mrf.mxu0
    %6959 = vdwg.mxu0
    %v6960 = vadd.f32 %v6862, %v6946
    %v6961 = vadd.f32 %v6863, %v6949
    %v6962 = vadd.f32 %v6864, %v6954
    %v6963 = vadd.f32 %v6865, %v6957
    %v6964 = vld [vmem:[%s4 + $0x110] sm:$0xff]
    %v6965 = vld [vmem:[%s4 + $0x118] sm:$0xff]
    %v6966 = vld [vmem:[%s4 + $0x120] sm:$0xff]
    %v6967 = vld [vmem:[%s4 + $0x128] sm:$0xff]
    %v6968 = vld [vmem:[%s3 + $0x3] sm:$0x1]
    %v6969 = vld [vmem:[%s3 + $0x7] sm:$0x1]
    %6971 = vset.pattern.permute.xlu0 0
    %6972 = vperm.xlu0 %6971, %v6964
    %v6973 = vpop.permute.xlu0 %6972
    %6976 = vset.pattern.permute.xlu0 0
    %6977 = vperm.xlu0 %6976, %v6965
    %v6978 = vpop.permute.xlu0 %6977
    %6981 = vset.pattern.permute.xlu0 0
    %6982 = vperm.xlu0 %6981, %v6966
    %v6983 = vpop.permute.xlu0 %6982
    %6986 = vset.pattern.permute.xlu0 0
    %6987 = vperm.xlu0 %6986, %v6967
    %v6988 = vpop.permute.xlu0 %6987
    %v6990 = vmul.f32 %v6960, %v6973
    %v6991 = vmul.f32 %v6961, %v6978
    %v6992 = vmul.f32 %v6962, %v6983
    %v6993 = vmul.f32 %v6963, %v6988
    %v6994 = vsel %vm28, %v6990, 0.0
    %v6995 = vsel %vm28, %v6991, 0.0
    %v6996 = vadd.f32 %v6994, %v6995
    %v6997 = vsel %vm28, %v6992, 0.0
    %v6998 = vadd.f32 %v6996, %v6997
    %v6999 = vsel %vm28, %v6993, 0.0
    %v7000 = vadd.f32 %v6998, %v6999
    %v7001 = vrot.slane %v7000, 4
    %v7002 = vadd.f32 %v7000, %v7001
    %v7003 = vrot.slane %v7002, 2
    %v7004 = vadd.f32 %v7002, %v7003
    %v7005 = vrot.slane %v7004, 1
    %v7006 = vadd.f32 %v7004, %v7005
    %v7007 = vmul.f32 %v7006, 0.125
    %v7008 = vsub.f32 %v6960, %v7007
    %v7009 = vsub.f32 %v6961, %v7007
    %v7010 = vsub.f32 %v6962, %v7007
    %v7011 = vsub.f32 %v6963, %v7007
    %v7012 = vmul.f32 %v7008, %v6973
    %v7013 = vmul.f32 %v7009, %v6978
    %v7014 = vmul.f32 %v7010, %v6983
    %v7015 = vmul.f32 %v7011, %v6988
    %v7016 = vmul.f32 %v7012, %v7012
    %v7017 = vmul.f32 %v7013, %v7013
    %v7018 = vmul.f32 %v7014, %v7014
    %v7019 = vmul.f32 %v7015, %v7015
    %v7020 = vsel %vm28, %v7016, 0.0
    %v7021 = vsel %vm28, %v7017, 0.0
    %v7022 = vadd.f32 %v7020, %v7021
    %v7023 = vsel %vm28, %v7018, 0.0
    %v7024 = vadd.f32 %v7022, %v7023
    %v7025 = vsel %vm28, %v7019, 0.0
    %v7026 = vadd.f32 %v7024, %v7025
    %v7027 = vrot.slane %v7026, 4
    %v7028 = vadd.f32 %v7026, %v7027
    %v7029 = vrot.slane %v7028, 2
    %v7030 = vadd.f32 %v7028, %v7029
    %v7031 = vrot.slane %v7030, 1
    %v7032 = vadd.f32 %v7030, %v7031
    %v7033 = vmul.f32 %v7032, 0.125
    %v7034 = vadd.f32 %v7033, 1e-05
    %v7035 = vrsqrt.pop %v7034
    %v7036 = vmul.f32 %v6968, %v7035
    %v7037 = vmul.f32 %v7007, %v7036
    %v7038 = vsub.f32 %v6969, %v7037
    %v7039 = vlaneseq
    %v7040 = vshrl.u32 %v7039, 7
    %v7041 = vsub.s32 0, %v7040
    %v7042 = vrot.slane %v7036, %v7041
    %v7043 = vmul.f32 %v6960, %v7042
    %v7044 = vmul.f32 %v6961, %v7042
    %v7045 = vmul.f32 %v6962, %v7042
    %v7046 = vmul.f32 %v6963, %v7042
    %v7047 = vlaneseq
    %v7048 = vshrl.u32 %v7047, 7
    %v7049 = vsub.s32 0, %v7048
    %v7050 = vrot.slane %v7038, %v7049
    %v7051 = vadd.f32 %v7043, %v7050
    %v7052 = vadd.f32 %v7044, %v7050
    %v7053 = vadd.f32 %v7045, %v7050
    %v7054 = vadd.f32 %v7046, %v7050
    %v7055 = vmax.f32 %v7051, 0.0
    %v7056 = vmax.f32 %v7052, 0.0
    %v7057 = vmax.f32 %v7053, 0.0
    %v7058 = vmax.f32 %v7054, 0.0
    %7059 = vst.msk [vmem:[#allocation5] sm:$0xff] %vm28, %v7055
    %7060 = vst.msk [vmem:[#allocation5 + $0x8] sm:$0xff] %vm28, %v7056
    %7061 = vst.msk [vmem:[#allocation5 + $0x10] sm:$0xff] %vm28, %v7057
    %7062 = vst.msk [vmem:[#allocation5 + $0x18] sm:$0xff] %vm28, %v7058
    %v7063 = vld [vmem:[%s1439] ss:$2 sm:$0xff]
    %v7064 = vld [vmem:[%s1441] ss:$2 sm:$0x7f]
    %v7065 = vld [vmem:[%s4509] ss:$2 sm:$0xff]
    %v7066 = vld [vmem:[%s4511] ss:$2 sm:$0x7f]
    %v7067 = vmax.f32 %v7063, %v7065
    %v7068 = vmax.f32 %v7064, %v7066
    %7069 = vst.msk [vmem:[#allocation6] sm:$0xff] %vm28, %v7067
    %vm7070 = vcmask 522240
    %7071 = vst.msk [vmem:[#allocation6 + $0x8] sm:$0x7f] %vm7070, %v7068
    %v7072 = vld [vmem:[#allocation6 + $0x2] sm:$0x1]
    %v7073 = vld [vmem:[#allocation6 + $0x4] sm:$0x1]
    %v7074 = vmax.f32 %v7072, %v7073
    %vm7075 = vcmask 516096
    %7076 = vst.msk [vmem:[#allocation7] sm:$0x1] %vm7075, %v7074
    %v7077 = vld [vmem:[#allocation6 + $0xa] sm:$0x1]
    %v7078 = vld [vmem:[#allocation6 + $0xc] sm:$0x1]
    %v7079 = vmax.f32 %v7077, %v7078
    %7080 = vst.msk [vmem:[#allocation7 + $0x1] sm:$0x1] %vm7075, %v7079
    %v7081 = vld [vmem:[#allocation7] sm:$0x3]
    %v7082 = vpack.c.bf16 %v7081, %v7081
    %v7083 = vld [vmem:[%s5] sm:$0xf]
    %v7084 = vld [vmem:[%s5 + $0x4] sm:$0xf]
    %v7085 = vld [vmem:[%s5 + $0x8] sm:$0xf]
    %v7086 = vld [vmem:[%s5 + $0xc] sm:$0xf]
    %v7087 = vld [vmem:[%s5 + $0x10] sm:$0xf]
    %v7088 = vld [vmem:[%s5 + $0x14] sm:$0xf]
    %v7089 = vld [vmem:[%s5 + $0x18] sm:$0xf]
    %v7090 = vld [vmem:[%s5 + $0x1c] sm:$0xf]
    %v7091 = vld [vmem:[%s6] sm:$0x1]
    %v7093 = vlaneseq
    %v7094 = vshrl.u32 %v7093, 7
    %v7095 = vsub.s32 0, %v7094
    %v7096 = vrot.slane %v7091, %v7095
    %v7106 = vunpack.c.l.b16 %v7083
    %v7107 = vunpack.c.l.b16 %v7084
    %v7108 = vunpack.c.l.b16 %v7085
    %v7109 = vunpack.c.l.b16 %v7086
    %v7110 = vunpack.c.l.b16 %v7087
    %v7111 = vunpack.c.l.b16 %v7088
    %v7112 = vunpack.c.l.b16 %v7089
    %v7113 = vunpack.c.l.b16 %v7090
    %v7114 = vpack.c.b16 %v7107, %v7106
    %v7115 = vpack.c.b16 %v7109, %v7108
    %v7116 = vpack.c.b16 %v7111, %v7110
    %v7117 = vpack.c.b16 %v7113, %v7112
    %v7123 = vsel %vm28, %v7082, 0
    %7125 = vmatprep.subr.bf16.mxu0 0
    %7126 = vmatpush1.bf16.msra.mxu0 0
    %7127 = vmatprep.subr.bf16.mxu0 0
    %7128 = vmatpush1.bf16.msra.mxu0 0
    %7129 = vmatprep.subr.bf16.mxu0 0
    %7130 = vmatpush1.bf16.msra.mxu0 0
    %7131 = vmatprep.subr.bf16.mxu0 0
    %7132 = vmatpush1.bf16.msra.mxu0 0
    %7133 = vmatprep.subr.bf16.mxu0 0
    %7134 = vmatpush1.bf16.msra.mxu0 %v7117
    %7135 = vmatprep.subr.bf16.mxu0 0
    %7136 = vmatpush1.bf16.msra.mxu0 %v7116
    %7137 = vmatprep.subr.bf16.mxu0 0
    %7138 = vmatpush1.bf16.msra.mxu0 %v7115
    %7139 = vmatprep.subr.bf16.mxu0 0
    %7140 = vmatpush1.bf16.msra.mxu0 %v7114
    %7141 = vmatprep.subr.bf16.mxu0 0
    %7142 = vmatpush2.bf16.msra.mxu0 0
    %7143 = vmatprep.subr.bf16.mxu0 0
    %7144 = vmatpush2.bf16.msra.mxu0 0
    %7145 = vmatprep.subr.bf16.mxu0 0
    %7146 = vmatpush2.bf16.msra.mxu0 0
    %7147 = vmatprep.subr.bf16.mxu0 0
    %7148 = vmatpush2.bf16.msra.mxu0 0
    %7149 = vmatprep.subr.bf16.mxu0 0
    %7150 = vmatpush2.bf16.msra.mxu0 0
    %7151 = vmatprep.subr.bf16.mxu0 0
    %7152 = vmatpush2.bf16.msra.mxu0 0
    %7153 = vmatprep.subr.bf16.mxu0 0
    %7154 = vmatpush2.bf16.msra.mxu0 0
    %7155 = vmatprep.subr.bf16.mxu0 0
    %7156 = vmatpush2.bf16.msra.mxu0 0
    %7157 = vmatprep.mubr.bf16.mxu0 0
    %7158 = vmatmul.mubr.bf16.gmra.mxu0 %v7123
    %v7159 = vpop.f32.mrf.mxu0
    %v7160 = vadd.f32 %v7096, %v7159
    %v7161 = vpop.f32.mrf.mxu0
    %v7162 = vpop.f32.mrf.mxu0
    %v7163 = vpop.f32.mrf.mxu0
    %7164 = vdwg.mxu0
    %7165 = vst [vmem:[#allocation8] sm:$0x3] %v7160
    // Predicated region
    $region30: #{classifier_forward.1} parent=1 // pred_check
      _
    $region31: #{classifier_forward.1} parent=1 // pred_check_branch
      %7167 = sbr.rel (0) target = $region33
    $region32: #{classifier_forward.1} parent=1 // pred_region
      %s7169 = ssub.s32 32, 32
      %7170 = vsyncadd [#allocation9], %s7169
      %s7172 = sshll.u32 [#allocation8], 4
      %s7173 = int_to_ptr.vmem [resolvable:$true] %s7172
      %7175 = dma.vmem_to_hbm [thread:$0]  %s7173, 32, %s7, [#allocation9]
    $region33: #{classifier_forward.1} parent=1 // pred_fallthru
      _
    // Predicated region
    $region34: #{classifier_forward.1} parent=1 // pred_check
      _
    $region35: #{classifier_forward.1} parent=1 // pred_check_branch
      %7177 = sbr.rel (0) target = $region37
    $region36: #{classifier_forward.1} parent=1 // pred_region
      %7178 = dma.done [#allocation9], 32
    $region37: #{classifier_forward.1} parent=1 // pred_fallthru
      _
    %7179 = vsyncpa [#allocation9], 1

</llo_original>
